<compile_context>
chip_gen: v6e
topology: v6e:2x2x1
jax: 0.10.0
libtpu: 0.0.40
codegen_flags: <defaults>
</compile_context>

<pallas_src>
import jax
import jax.numpy as jnp
from jax.experimental import pallas as pl
from jax.experimental.pallas import tpu as pltpu


# ----------------------------------------------------------------------------
# Pallas kernel 1: fused conv1 + conv2 (im2col in VMEM, GEMMs on the MXU).
# ----------------------------------------------------------------------------
def _make_conv_fused_kernel(TB, C):
    HALF = 16 * C          # lane width of the "second W-block" piece

    def kernel(xq_ref, w1_ref, b1_ref, w2_ref, b2_ref, o_ref, p1_s, h1_s, p2_s):
        # ---- conv1 im2col (double patch) ------------------------------------
        # GEMM row = (ho1, wb1), 200 rows/image; columns ordered (i, dc, r, c).
        for ho in range(20):
            pieces = []
            for i in (0, 1):
                blk = xq_ref[:, ho + i, :, :].astype(jnp.float32)   # (TB,11,32C)
                pieces.append(blk[:, 0:10, :])            # cols 8*wb + [0,8)
                pieces.append(blk[:, 1:11, 0:HALF])       # cols 8*wb + [8,12)
            p1_s[:, 10 * ho:10 * ho + 10, :] = jnp.concatenate(pieces, axis=-1)

        # ---- conv1 GEMM + bias + ReLU  (N = 32 = 2 W-parities x 16 chans) ----
        w1 = w1_ref[...]
        b1 = b1_ref[...]
        for b in range(TB):
            acc = jnp.dot(p1_s[b].astype(jnp.bfloat16), w1,
                          preferred_element_type=jnp.float32)       # (200, 32)
            h1_s[b] = jnp.maximum(acc + b1, 0.0)

        # ---- conv2 im2col from VMEM-resident conv1 output --------------------
        # h1_s row = 10*ho1 + wb1, lanes = (s2, c).  All reads are contiguous.
        for ho2 in range(9):
            cols = [h1_s[:, pl.ds(20 * ho2 + 10 * a + j, 9), :]
                    for a in range(4) for j in (0, 1)]
            p2_s[:, 9 * ho2:9 * ho2 + 9, :] = jnp.concatenate(cols, axis=-1)

        # ---- conv2 GEMM + bias + ReLU -> bf16 output -------------------------
        w2 = w2_ref[...]
        b2 = b2_ref[...]
        for b in range(TB):
            acc = jnp.dot(p2_s[b].astype(jnp.bfloat16), w2,
                          preferred_element_type=jnp.float32)       # (81, 32)
            o_ref[b] = jnp.maximum(acc + b2, 0.0).astype(o_ref.dtype)

    return kernel


def conv_fused(xq, w1d, b1d, w2p, b2p, TB):
    """xq:(Bp,21,11,32C) bf16 -> h2:(Bp,81,32) bf16 (conv1+conv2, bias, ReLU)."""
    Bp = xq.shape[0]
    C = xq.shape[-1] // 32
    assert 32 * C == xq.shape[-1] and Bp % TB == 0
    K1 = 96 * C
    flops = int(2 * Bp * (200 * K1 * 32 + 81 * 256 * 32))
    bytes_acc = int(xq.size * 2 + Bp * 81 * 32 * 2
                    + (w1d.size + w2p.size) * 2 + (b1d.size + b2p.size) * 4)
    return pl.pallas_call(
        _make_conv_fused_kernel(TB, C),
        out_shape=jax.ShapeDtypeStruct((Bp, 81, 32), jnp.bfloat16),
        grid=(Bp // TB,),
        in_specs=[
            pl.BlockSpec((TB, 21, 11, 32 * C), lambda i: (i, 0, 0, 0)),
            pl.BlockSpec((K1, 32), lambda i: (0, 0)),
            pl.BlockSpec((1, 32), lambda i: (0, 0)),
            pl.BlockSpec((256, 32), lambda i: (0, 0)),
            pl.BlockSpec((1, 32), lambda i: (0, 0)),
        ],
        out_specs=pl.BlockSpec((TB, 81, 32), lambda i: (i, 0, 0)),
        scratch_shapes=[
            pltpu.VMEM((TB, 200, K1), jnp.float32),    # conv1 patches
            pltpu.VMEM((TB, 200, 32), jnp.float32),    # conv1 output
            pltpu.VMEM((TB, 81, 256), jnp.float32),    # conv2 patches
        ],
        compiler_params=pltpu.CompilerParams(
            dimension_semantics=("parallel",),
            vmem_limit_bytes=40 * 1024 * 1024),
        cost_estimate=pl.CostEstimate(
            flops=flops, transcendentals=0, bytes_accessed=bytes_acc),
    )(xq, w1d, b1d, w2p, b2p)


# ----------------------------------------------------------------------------
# Pallas kernel 2: fused FC tail  relu(x @ w3 + b3) @ w4 + b4.
# ----------------------------------------------------------------------------
def _fc_fused_kernel(x_ref, w3_ref, b3_ref, w4_ref, b4_ref, o_ref):
    h = jnp.dot(x_ref[...], w3_ref[...], preferred_element_type=jnp.float32)
    h = jnp.maximum(h + b3_ref[...], 0.0)
    out = jnp.dot(h.astype(jnp.bfloat16), w4_ref[...],
                  preferred_element_type=jnp.float32)
    o_ref[...] = (out + b4_ref[...]).astype(o_ref.dtype)


def fc_fused(feat, w3, b3, w4, b4):
    """feat:(B,K) bf16, w3:(K,H) bf16, w4:(H,N) bf16, biases (1,.) f32."""
    B, K = feat.shape
    _, H = w3.shape
    _, N = w4.shape
    if B <= 16:
        TM = B                              # full-dim block for small batch
    elif B <= 256:
        TM = ((B + 15) // 16) * 8           # ~B/2, mult of 8 -> >=2 grid steps
    else:
        TM = 128
    flops = int(2 * B * (K * H + H * N))
    bytes_acc = int(feat.size * 2 + w3.size * 2 + w4.size * 2 + B * N * 4)
    return pl.pallas_call(
        _fc_fused_kernel,
        out_shape=jax.ShapeDtypeStruct((B, N), jnp.float32),
        grid=(pl.cdiv(B, TM),),
        in_specs=[
            pl.BlockSpec((TM, K), lambda i: (i, 0)),
            pl.BlockSpec((K, H), lambda i: (0, 0)),
            pl.BlockSpec((1, H), lambda i: (0, 0)),
            pl.BlockSpec((H, N), lambda i: (0, 0)),
            pl.BlockSpec((1, N), lambda i: (0, 0)),
        ],
        out_specs=pl.BlockSpec((TM, N), lambda i: (i, 0)),
        compiler_params=pltpu.CompilerParams(
            dimension_semantics=("parallel",),
            vmem_limit_bytes=40 * 1024 * 1024),
        cost_estimate=pl.CostEstimate(
            flops=flops, transcendentals=0, bytes_accessed=bytes_acc),
    )(feat, w3, b3, w4, b4)


# ----------------------------------------------------------------------------
# Input prep (single XLA pass): NCHW f32 -> space-to-depth bf16.
#   xq[b, hB, wB, (s8, r, c)] = x[b, c, 4*hB + r, 8*wB + s8]
# ----------------------------------------------------------------------------
def prep_input(x):
    B, C, Hh, Ww = x.shape
    assert Hh == 84 and Ww == 84, "CNN flatten (32*9*9) requires 84x84 input"
    xpad = jnp.pad(x, ((0, 0), (0, 0), (0, 0), (0, 4)))          # W: 84 -> 88
    xq = xpad.reshape(B, C, 21, 4, 11, 8)                        # (b,c,hB,r,wB,s8)
    xq = jnp.transpose(xq, (0, 2, 4, 5, 3, 1))                   # (b,hB,wB,s8,r,c)
    return xq.reshape(B, 21, 11, 32 * C).astype(jnp.bfloat16)


# ----------------------------------------------------------------------------
# One-time weight preparation (outside the jitted forward).
# ----------------------------------------------------------------------------
def prepare_params(params, in_channels):
    w1, b1, w2, b2, w3, b3, w4, b4 = params
    bf, f32 = jnp.bfloat16, jnp.float32
    C = in_channels

    # conv1 "double patch" weight (96C, 32): rows p=(i, dc, r, c), cols n=(s2, o)
    # w1d[p, n] = w1[o, c, 4i+r, dc - 4*s2] if 0 <= dc-4*s2 < 8 else 0
    w1_k = jnp.transpose(w1, (2, 3, 1, 0))                       # (8,8,C,16) [kh,kw,c,o]
    w1_s = jnp.stack(
        [jnp.pad(w1_k, ((0, 0), (4 * s2, 4 - 4 * s2), (0, 0), (0, 0)))
         for s2 in (0, 1)], axis=3)                              # (8,12,C,2,16)
    w1_s = w1_s.reshape(2, 4, 12, C, 2, 16)                      # (i,r,dc,c,s2,o)
    w1_s = jnp.transpose(w1_s, (0, 2, 1, 3, 4, 5))               # (i,dc,r,c,s2,o)
    w1d = w1_s.reshape(96 * C, 32).astype(bf)
    b1d = jnp.concatenate([b1, b1]).reshape(1, 32).astype(f32)   # n = (s2, o)

    # conv2 weight (256, 32): rows q = (a, j, s2, c_in), kw2 = 2j + s2
    w2_r = w2.reshape(32, 16, 4, 2, 2)                           # (o2, c, a, j, s2)
    w2p = jnp.transpose(w2_r, (2, 3, 4, 1, 0)).reshape(256, 32).astype(bf)
    b2p = b2.reshape(1, 32).astype(f32)

    # fc1 weight (2592, 256): rows ordered (ho2, wo2, o2) to match our flatten,
    # re-permuted from PyTorch's (C, H, W) flatten semantics.
    nh = w3.shape[0]
    w3p = (w3.reshape(nh, 32, 9, 9).transpose(2, 3, 1, 0)
             .reshape(32 * 9 * 9, nh).astype(bf))
    b3p = b3.reshape(1, -1).astype(f32)
    w4p = w4.T.astype(bf)
    b4p = b4.reshape(1, -1).astype(f32)
    return (w1d, b1d, w2p, b2p, w3p, b3p, w4p, b4p)


# ----------------------------------------------------------------------------
# Full forward pass (mirrors CNN.forward).  Expects prepared params.
# ----------------------------------------------------------------------------
def cnn_forward(x, prepped):
    w1d, b1d, w2p, b2p, w3p, b3p, w4p, b4p = prepped
    B = x.shape[0]

    # batch tile: >=2 grid steps for megacore, 8 images/step at scale
    TB = 8 if B >= 16 else max(1, (B + 1) // 2)
    Bp = ((B + TB - 1) // TB) * TB
    if Bp != B:
        x = jnp.pad(x, ((0, Bp - B), (0, 0), (0, 0), (0, 0)))

    xq = prep_input(x)                                  # (Bp, 21, 11, 32C) bf16
    h2 = conv_fused(xq, w1d, b1d, w2p, b2p, TB)         # (Bp, 81, 32) bf16
    feat = h2.reshape(Bp, 81 * 32)                      # free row-major reshape
    out = fc_fused(feat, w3p, b3p, w4p, b4p)            # (Bp, out) f32
    return out[:B]


# ----------------------------------------------------------------------------
# Reference with the same bf16-multiply / f32-accumulate rounding points,
# using the ORIGINAL PyTorch-layout parameters (validates all weight re-lays).
# ----------------------------------------------------------------------------
def cnn_forward_ref(x, params):
    w1, b1, w2, b2, w3, b3, w4, b4 = params
    dn = ("NCHW", "OIHW", "NCHW")
    bf = jnp.bfloat16
    h = jax.lax.conv_general_dilated(
        x.astype(bf), w1.astype(bf), (4, 4), "VALID", dimension_numbers=dn,
        preferred_element_type=jnp.float32)
    h = jnp.maximum(h + b1[None, :, None, None], 0.0)
    h = jax.lax.conv_general_dilated(
        h.astype(bf), w2.astype(bf), (2, 2), "VALID", dimension_numbers=dn,
        preferred_element_type=jnp.float32)
    h = jnp.maximum(h + b2[None, :, None, None], 0.0)
    h = h.reshape(h.shape[0], -1)                      # PyTorch (C,H,W) flatten
    h = jnp.maximum(
        jnp.dot(h.astype(bf), w3.T.astype(bf),
                preferred_element_type=jnp.float32) + b3, 0.0)
    return jnp.dot(h.astype(bf), w4.T.astype(bf),
                   preferred_element_type=jnp.float32) + b4


# ----------------------------------------------------------------------------
# Deterministic parameter construction (shapes from CNN.__init__).
# ----------------------------------------------------------------------------
def make_params(key, in_channels, out_channels):
    ks = jax.random.split(key, 8)

    def init(k, shape, fan_in):
        return jax.random.normal(k, shape, jnp.float32) / jnp.sqrt(fan_in)

    w1 = init(ks[0], (16, in_channels, 8, 8), in_channels * 64)
    b1 = init(ks[1], (16,), in_channels * 64)
    w2 = init(ks[2], (32, 16, 4, 4), 16 * 16)
    b2 = init(ks[3], (32,), 16 * 16)
    w3 = init(ks[4], (256, 32 * 9 * 9), 32 * 9 * 9)
    b3 = init(ks[5], (256,), 32 * 9 * 9)
    w4 = init(ks[6], (out_channels, 256), 256)
    b4 = init(ks[7], (out_channels,), 256)
    return (w1, b1, w2, b2, w3, b3, w4, b4)


if __name__ == "__main__":
    B, C_in, H, W = 2, 4, 84, 84     # 84x84 required by the 32*9*9 flatten
    out_channels = 4

    key = jax.random.PRNGKey(0)
    k_x, k_p = jax.random.split(key)
    x = jax.random.normal(k_x, (B, C_in, H, W), jnp.float32)
    params = make_params(k_p, C_in, out_channels)
    prepped = prepare_params(params, C_in)           # one-time weight re-lay

    fwd = jax.jit(cnn_forward)
    out = jax.block_until_ready(fwd(x, prepped))
    ref = jax.block_until_ready(cnn_forward_ref(x, params))

    assert out.shape == (B, out_channels), out.shape
    assert jnp.allclose(out, ref, atol=2e-3, rtol=2e-3), (
        float(jnp.max(jnp.abs(out - ref))))
    print("KERNEL_OK")
</pallas_src>

<mosaic_0001>
module attributes {stable_mosaic.version = 11 : i64} {
  func.func @kernel(%arg0: i32, %arg1: memref<1x21x11x128xbf16, #tpu.memory_space<vmem>>, %arg2: memref<384x32xbf16, #tpu.memory_space<vmem>>, %arg3: memref<1x32xf32, #tpu.memory_space<vmem>>, %arg4: memref<256x32xbf16, #tpu.memory_space<vmem>>, %arg5: memref<1x32xf32, #tpu.memory_space<vmem>>, %arg6: memref<1x81x32xbf16, #tpu.memory_space<vmem>>, %arg7: memref<1x200x384xf32, #tpu.memory_space<vmem>>, %arg8: memref<1x200x32xf32, #tpu.memory_space<vmem>>, %arg9: memref<1x81x256xf32, #tpu.memory_space<vmem>>) attributes {dimension_semantics = [#tpu.dimension_semantics<parallel>], iteration_bounds = array<i64: 2>, scalar_prefetch = 0 : i64, scratch_operands = 3 : i64, tpu.core_type = #tpu.core_type<tc>, window_params = [{transform_indices = @transform_0, window_bounds = array<i64: 1, 21, 11, 128>}, {pipeline_mode = #tpu.pipeline_mode<synchronous>, transform_indices = @transform_1, window_bounds = array<i64: 384, 32>}, {pipeline_mode = #tpu.pipeline_mode<synchronous>, transform_indices = @transform_2, window_bounds = array<i64: 1, 32>}, {pipeline_mode = #tpu.pipeline_mode<synchronous>, transform_indices = @transform_3, window_bounds = array<i64: 256, 32>}, {pipeline_mode = #tpu.pipeline_mode<synchronous>, transform_indices = @transform_4, window_bounds = array<i64: 1, 32>}, {transform_indices = @transform_5, window_bounds = array<i64: 1, 81, 32>}]} {
    %c0 = arith.constant 0 : index
    %c0_0 = arith.constant 0 : index
    %c0_1 = arith.constant 0 : index
    %c0_2 = arith.constant 0 : index
    %0 = vector.load %arg1[%c0, %c0_0, %c0_1, %c0_2] : memref<1x21x11x128xbf16, #tpu.memory_space<vmem>>, vector<1x1x11x128xbf16>
    %1 = vector.shape_cast %0 : vector<1x1x11x128xbf16> to vector<1x11x128xbf16>
    %2 = arith.extf %1 : vector<1x11x128xbf16> to vector<1x11x128xf32>
    %3 = vector.extract_strided_slice %2 {offsets = [0, 0, 0], sizes = [1, 10, 128], strides = [1, 1, 1]} : vector<1x11x128xf32> to vector<1x10x128xf32>
    %4 = vector.extract_strided_slice %2 {offsets = [0, 1, 0], sizes = [1, 10, 64], strides = [1, 1, 1]} : vector<1x11x128xf32> to vector<1x10x64xf32>
    %c0_3 = arith.constant 0 : index
    %c1 = arith.constant 1 : index
    %c0_4 = arith.constant 0 : index
    %c0_5 = arith.constant 0 : index
    %5 = vector.load %arg1[%c0_3, %c1, %c0_4, %c0_5] : memref<1x21x11x128xbf16, #tpu.memory_space<vmem>>, vector<1x1x11x128xbf16>
    %6 = vector.shape_cast %5 : vector<1x1x11x128xbf16> to vector<1x11x128xbf16>
    %7 = arith.extf %6 : vector<1x11x128xbf16> to vector<1x11x128xf32>
    %8 = vector.extract_strided_slice %7 {offsets = [0, 0, 0], sizes = [1, 10, 128], strides = [1, 1, 1]} : vector<1x11x128xf32> to vector<1x10x128xf32>
    %9 = vector.extract_strided_slice %7 {offsets = [0, 1, 0], sizes = [1, 10, 64], strides = [1, 1, 1]} : vector<1x11x128xf32> to vector<1x10x64xf32>
    %10 = tpu.concatenate %3, %4, %8, %9 in 2 : vector<1x10x128xf32>, vector<1x10x64xf32>, vector<1x10x128xf32>, vector<1x10x64xf32> -> vector<1x10x384xf32>
    %c0_6 = arith.constant 0 : index
    %c0_7 = arith.constant 0 : index
    %c0_8 = arith.constant 0 : index
    %11 = vector.load %arg7[%c0_6, %c0_7, %c0_8] : memref<1x200x384xf32, #tpu.memory_space<vmem>>, vector<1x10x384xf32>
    tpu.vector_store %arg7[%c0_6, %c0_7, %c0_8], %10 {strides = array<i32>} : memref<1x200x384xf32, #tpu.memory_space<vmem>>, vector<1x10x384xf32>,
    %c0_9 = arith.constant 0 : index
    %c1_10 = arith.constant 1 : index
    %c0_11 = arith.constant 0 : index
    %c0_12 = arith.constant 0 : index
    %12 = vector.load %arg1[%c0_9, %c1_10, %c0_11, %c0_12] : memref<1x21x11x128xbf16, #tpu.memory_space<vmem>>, vector<1x1x11x128xbf16>
    %13 = vector.shape_cast %12 : vector<1x1x11x128xbf16> to vector<1x11x128xbf16>
    %14 = arith.extf %13 : vector<1x11x128xbf16> to vector<1x11x128xf32>
    %15 = vector.extract_strided_slice %14 {offsets = [0, 0, 0], sizes = [1, 10, 128], strides = [1, 1, 1]} : vector<1x11x128xf32> to vector<1x10x128xf32>
    %16 = vector.extract_strided_slice %14 {offsets = [0, 1, 0], sizes = [1, 10, 64], strides = [1, 1, 1]} : vector<1x11x128xf32> to vector<1x10x64xf32>
    %c0_13 = arith.constant 0 : index
    %c2 = arith.constant 2 : index
    %c0_14 = arith.constant 0 : index
    %c0_15 = arith.constant 0 : index
    %17 = vector.load %arg1[%c0_13, %c2, %c0_14, %c0_15] : memref<1x21x11x128xbf16, #tpu.memory_space<vmem>>, vector<1x1x11x128xbf16>
    %18 = vector.shape_cast %17 : vector<1x1x11x128xbf16> to vector<1x11x128xbf16>
    %19 = arith.extf %18 : vector<1x11x128xbf16> to vector<1x11x128xf32>
    %20 = vector.extract_strided_slice %19 {offsets = [0, 0, 0], sizes = [1, 10, 128], strides = [1, 1, 1]} : vector<1x11x128xf32> to vector<1x10x128xf32>
    %21 = vector.extract_strided_slice %19 {offsets = [0, 1, 0], sizes = [1, 10, 64], strides = [1, 1, 1]} : vector<1x11x128xf32> to vector<1x10x64xf32>
    %22 = tpu.concatenate %15, %16, %20, %21 in 2 : vector<1x10x128xf32>, vector<1x10x64xf32>, vector<1x10x128xf32>, vector<1x10x64xf32> -> vector<1x10x384xf32>
    %c0_16 = arith.constant 0 : index
    %c10 = arith.constant 10 : index
    %c0_17 = arith.constant 0 : index
    %23 = vector.load %arg7[%c0_16, %c10, %c0_17] : memref<1x200x384xf32, #tpu.memory_space<vmem>>, vector<1x10x384xf32>
    tpu.vector_store %arg7[%c0_16, %c10, %c0_17], %22 {strides = array<i32>} : memref<1x200x384xf32, #tpu.memory_space<vmem>>, vector<1x10x384xf32>,
    %c0_18 = arith.constant 0 : index
    %c2_19 = arith.constant 2 : index
    %c0_20 = arith.constant 0 : index
    %c0_21 = arith.constant 0 : index
    %24 = vector.load %arg1[%c0_18, %c2_19, %c0_20, %c0_21] : memref<1x21x11x128xbf16, #tpu.memory_space<vmem>>, vector<1x1x11x128xbf16>
    %25 = vector.shape_cast %24 : vector<1x1x11x128xbf16> to vector<1x11x128xbf16>
    %26 = arith.extf %25 : vector<1x11x128xbf16> to vector<1x11x128xf32>
    %27 = vector.extract_strided_slice %26 {offsets = [0, 0, 0], sizes = [1, 10, 128], strides = [1, 1, 1]} : vector<1x11x128xf32> to vector<1x10x128xf32>
    %28 = vector.extract_strided_slice %26 {offsets = [0, 1, 0], sizes = [1, 10, 64], strides = [1, 1, 1]} : vector<1x11x128xf32> to vector<1x10x64xf32>
    %c0_22 = arith.constant 0 : index
    %c3 = arith.constant 3 : index
    %c0_23 = arith.constant 0 : index
    %c0_24 = arith.constant 0 : index
    %29 = vector.load %arg1[%c0_22, %c3, %c0_23, %c0_24] : memref<1x21x11x128xbf16, #tpu.memory_space<vmem>>, vector<1x1x11x128xbf16>
    %30 = vector.shape_cast %29 : vector<1x1x11x128xbf16> to vector<1x11x128xbf16>
    %31 = arith.extf %30 : vector<1x11x128xbf16> to vector<1x11x128xf32>
    %32 = vector.extract_strided_slice %31 {offsets = [0, 0, 0], sizes = [1, 10, 128], strides = [1, 1, 1]} : vector<1x11x128xf32> to vector<1x10x128xf32>
    %33 = vector.extract_strided_slice %31 {offsets = [0, 1, 0], sizes = [1, 10, 64], strides = [1, 1, 1]} : vector<1x11x128xf32> to vector<1x10x64xf32>
    %34 = tpu.concatenate %27, %28, %32, %33 in 2 : vector<1x10x128xf32>, vector<1x10x64xf32>, vector<1x10x128xf32>, vector<1x10x64xf32> -> vector<1x10x384xf32>
    %c0_25 = arith.constant 0 : index
    %c20 = arith.constant 20 : index
    %c0_26 = arith.constant 0 : index
    %35 = vector.load %arg7[%c0_25, %c20, %c0_26] : memref<1x200x384xf32, #tpu.memory_space<vmem>>, vector<1x10x384xf32>
    tpu.vector_store %arg7[%c0_25, %c20, %c0_26], %34 {strides = array<i32>} : memref<1x200x384xf32, #tpu.memory_space<vmem>>, vector<1x10x384xf32>,
    %c0_27 = arith.constant 0 : index
    %c3_28 = arith.constant 3 : index
    %c0_29 = arith.constant 0 : index
    %c0_30 = arith.constant 0 : index
    %36 = vector.load %arg1[%c0_27, %c3_28, %c0_29, %c0_30] : memref<1x21x11x128xbf16, #tpu.memory_space<vmem>>, vector<1x1x11x128xbf16>
    %37 = vector.shape_cast %36 : vector<1x1x11x128xbf16> to vector<1x11x128xbf16>
    %38 = arith.extf %37 : vector<1x11x128xbf16> to vector<1x11x128xf32>
    %39 = vector.extract_strided_slice %38 {offsets = [0, 0, 0], sizes = [1, 10, 128], strides = [1, 1, 1]} : vector<1x11x128xf32> to vector<1x10x128xf32>
    %40 = vector.extract_strided_slice %38 {offsets = [0, 1, 0], sizes = [1, 10, 64], strides = [1, 1, 1]} : vector<1x11x128xf32> to vector<1x10x64xf32>
    %c0_31 = arith.constant 0 : index
    %c4 = arith.constant 4 : index
    %c0_32 = arith.constant 0 : index
    %c0_33 = arith.constant 0 : index
    %41 = vector.load %arg1[%c0_31, %c4, %c0_32, %c0_33] : memref<1x21x11x128xbf16, #tpu.memory_space<vmem>>, vector<1x1x11x128xbf16>
    %42 = vector.shape_cast %41 : vector<1x1x11x128xbf16> to vector<1x11x128xbf16>
    %43 = arith.extf %42 : vector<1x11x128xbf16> to vector<1x11x128xf32>
    %44 = vector.extract_strided_slice %43 {offsets = [0, 0, 0], sizes = [1, 10, 128], strides = [1, 1, 1]} : vector<1x11x128xf32> to vector<1x10x128xf32>
    %45 = vector.extract_strided_slice %43 {offsets = [0, 1, 0], sizes = [1, 10, 64], strides = [1, 1, 1]} : vector<1x11x128xf32> to vector<1x10x64xf32>
    %46 = tpu.concatenate %39, %40, %44, %45 in 2 : vector<1x10x128xf32>, vector<1x10x64xf32>, vector<1x10x128xf32>, vector<1x10x64xf32> -> vector<1x10x384xf32>
    %c0_34 = arith.constant 0 : index
    %c30 = arith.constant 30 : index
    %c0_35 = arith.constant 0 : index
    %47 = vector.load %arg7[%c0_34, %c30, %c0_35] : memref<1x200x384xf32, #tpu.memory_space<vmem>>, vector<1x10x384xf32>
    tpu.vector_store %arg7[%c0_34, %c30, %c0_35], %46 {strides = array<i32>} : memref<1x200x384xf32, #tpu.memory_space<vmem>>, vector<1x10x384xf32>,
    %c0_36 = arith.constant 0 : index
    %c4_37 = arith.constant 4 : index
    %c0_38 = arith.constant 0 : index
    %c0_39 = arith.constant 0 : index
    %48 = vector.load %arg1[%c0_36, %c4_37, %c0_38, %c0_39] : memref<1x21x11x128xbf16, #tpu.memory_space<vmem>>, vector<1x1x11x128xbf16>
    %49 = vector.shape_cast %48 : vector<1x1x11x128xbf16> to vector<1x11x128xbf16>
    %50 = arith.extf %49 : vector<1x11x128xbf16> to vector<1x11x128xf32>
    %51 = vector.extract_strided_slice %50 {offsets = [0, 0, 0], sizes = [1, 10, 128], strides = [1, 1, 1]} : vector<1x11x128xf32> to vector<1x10x128xf32>
    %52 = vector.extract_strided_slice %50 {offsets = [0, 1, 0], sizes = [1, 10, 64], strides = [1, 1, 1]} : vector<1x11x128xf32> to vector<1x10x64xf32>
    %c0_40 = arith.constant 0 : index
    %c5 = arith.constant 5 : index
    %c0_41 = arith.constant 0 : index
    %c0_42 = arith.constant 0 : index
    %53 = vector.load %arg1[%c0_40, %c5, %c0_41, %c0_42] : memref<1x21x11x128xbf16, #tpu.memory_space<vmem>>, vector<1x1x11x128xbf16>
    %54 = vector.shape_cast %53 : vector<1x1x11x128xbf16> to vector<1x11x128xbf16>
    %55 = arith.extf %54 : vector<1x11x128xbf16> to vector<1x11x128xf32>
    %56 = vector.extract_strided_slice %55 {offsets = [0, 0, 0], sizes = [1, 10, 128], strides = [1, 1, 1]} : vector<1x11x128xf32> to vector<1x10x128xf32>
    %57 = vector.extract_strided_slice %55 {offsets = [0, 1, 0], sizes = [1, 10, 64], strides = [1, 1, 1]} : vector<1x11x128xf32> to vector<1x10x64xf32>
    %58 = tpu.concatenate %51, %52, %56, %57 in 2 : vector<1x10x128xf32>, vector<1x10x64xf32>, vector<1x10x128xf32>, vector<1x10x64xf32> -> vector<1x10x384xf32>
    %c0_43 = arith.constant 0 : index
    %c40 = arith.constant 40 : index
    %c0_44 = arith.constant 0 : index
    %59 = vector.load %arg7[%c0_43, %c40, %c0_44] : memref<1x200x384xf32, #tpu.memory_space<vmem>>, vector<1x10x384xf32>
    tpu.vector_store %arg7[%c0_43, %c40, %c0_44], %58 {strides = array<i32>} : memref<1x200x384xf32, #tpu.memory_space<vmem>>, vector<1x10x384xf32>,
    %c0_45 = arith.constant 0 : index
    %c5_46 = arith.constant 5 : index
    %c0_47 = arith.constant 0 : index
    %c0_48 = arith.constant 0 : index
    %60 = vector.load %arg1[%c0_45, %c5_46, %c0_47, %c0_48] : memref<1x21x11x128xbf16, #tpu.memory_space<vmem>>, vector<1x1x11x128xbf16>
    %61 = vector.shape_cast %60 : vector<1x1x11x128xbf16> to vector<1x11x128xbf16>
    %62 = arith.extf %61 : vector<1x11x128xbf16> to vector<1x11x128xf32>
    %63 = vector.extract_strided_slice %62 {offsets = [0, 0, 0], sizes = [1, 10, 128], strides = [1, 1, 1]} : vector<1x11x128xf32> to vector<1x10x128xf32>
    %64 = vector.extract_strided_slice %62 {offsets = [0, 1, 0], sizes = [1, 10, 64], strides = [1, 1, 1]} : vector<1x11x128xf32> to vector<1x10x64xf32>
    %c0_49 = arith.constant 0 : index
    %c6 = arith.constant 6 : index
    %c0_50 = arith.constant 0 : index
    %c0_51 = arith.constant 0 : index
    %65 = vector.load %arg1[%c0_49, %c6, %c0_50, %c0_51] : memref<1x21x11x128xbf16, #tpu.memory_space<vmem>>, vector<1x1x11x128xbf16>
    %66 = vector.shape_cast %65 : vector<1x1x11x128xbf16> to vector<1x11x128xbf16>
    %67 = arith.extf %66 : vector<1x11x128xbf16> to vector<1x11x128xf32>
    %68 = vector.extract_strided_slice %67 {offsets = [0, 0, 0], sizes = [1, 10, 128], strides = [1, 1, 1]} : vector<1x11x128xf32> to vector<1x10x128xf32>
    %69 = vector.extract_strided_slice %67 {offsets = [0, 1, 0], sizes = [1, 10, 64], strides = [1, 1, 1]} : vector<1x11x128xf32> to vector<1x10x64xf32>
    %70 = tpu.concatenate %63, %64, %68, %69 in 2 : vector<1x10x128xf32>, vector<1x10x64xf32>, vector<1x10x128xf32>, vector<1x10x64xf32> -> vector<1x10x384xf32>
    %c0_52 = arith.constant 0 : index
    %c50 = arith.constant 50 : index
    %c0_53 = arith.constant 0 : index
    %71 = vector.load %arg7[%c0_52, %c50, %c0_53] : memref<1x200x384xf32, #tpu.memory_space<vmem>>, vector<1x10x384xf32>
    tpu.vector_store %arg7[%c0_52, %c50, %c0_53], %70 {strides = array<i32>} : memref<1x200x384xf32, #tpu.memory_space<vmem>>, vector<1x10x384xf32>,
    %c0_54 = arith.constant 0 : index
    %c6_55 = arith.constant 6 : index
    %c0_56 = arith.constant 0 : index
    %c0_57 = arith.constant 0 : index
    %72 = vector.load %arg1[%c0_54, %c6_55, %c0_56, %c0_57] : memref<1x21x11x128xbf16, #tpu.memory_space<vmem>>, vector<1x1x11x128xbf16>
    %73 = vector.shape_cast %72 : vector<1x1x11x128xbf16> to vector<1x11x128xbf16>
    %74 = arith.extf %73 : vector<1x11x128xbf16> to vector<1x11x128xf32>
    %75 = vector.extract_strided_slice %74 {offsets = [0, 0, 0], sizes = [1, 10, 128], strides = [1, 1, 1]} : vector<1x11x128xf32> to vector<1x10x128xf32>
    %76 = vector.extract_strided_slice %74 {offsets = [0, 1, 0], sizes = [1, 10, 64], strides = [1, 1, 1]} : vector<1x11x128xf32> to vector<1x10x64xf32>
    %c0_58 = arith.constant 0 : index
    %c7 = arith.constant 7 : index
    %c0_59 = arith.constant 0 : index
    %c0_60 = arith.constant 0 : index
    %77 = vector.load %arg1[%c0_58, %c7, %c0_59, %c0_60] : memref<1x21x11x128xbf16, #tpu.memory_space<vmem>>, vector<1x1x11x128xbf16>
    %78 = vector.shape_cast %77 : vector<1x1x11x128xbf16> to vector<1x11x128xbf16>
    %79 = arith.extf %78 : vector<1x11x128xbf16> to vector<1x11x128xf32>
    %80 = vector.extract_strided_slice %79 {offsets = [0, 0, 0], sizes = [1, 10, 128], strides = [1, 1, 1]} : vector<1x11x128xf32> to vector<1x10x128xf32>
    %81 = vector.extract_strided_slice %79 {offsets = [0, 1, 0], sizes = [1, 10, 64], strides = [1, 1, 1]} : vector<1x11x128xf32> to vector<1x10x64xf32>
    %82 = tpu.concatenate %75, %76, %80, %81 in 2 : vector<1x10x128xf32>, vector<1x10x64xf32>, vector<1x10x128xf32>, vector<1x10x64xf32> -> vector<1x10x384xf32>
    %c0_61 = arith.constant 0 : index
    %c60 = arith.constant 60 : index
    %c0_62 = arith.constant 0 : index
    %83 = vector.load %arg7[%c0_61, %c60, %c0_62] : memref<1x200x384xf32, #tpu.memory_space<vmem>>, vector<1x10x384xf32>
    tpu.vector_store %arg7[%c0_61, %c60, %c0_62], %82 {strides = array<i32>} : memref<1x200x384xf32, #tpu.memory_space<vmem>>, vector<1x10x384xf32>,
    %c0_63 = arith.constant 0 : index
    %c7_64 = arith.constant 7 : index
    %c0_65 = arith.constant 0 : index
    %c0_66 = arith.constant 0 : index
    %84 = vector.load %arg1[%c0_63, %c7_64, %c0_65, %c0_66] : memref<1x21x11x128xbf16, #tpu.memory_space<vmem>>, vector<1x1x11x128xbf16>
    %85 = vector.shape_cast %84 : vector<1x1x11x128xbf16> to vector<1x11x128xbf16>
    %86 = arith.extf %85 : vector<1x11x128xbf16> to vector<1x11x128xf32>
    %87 = vector.extract_strided_slice %86 {offsets = [0, 0, 0], sizes = [1, 10, 128], strides = [1, 1, 1]} : vector<1x11x128xf32> to vector<1x10x128xf32>
    %88 = vector.extract_strided_slice %86 {offsets = [0, 1, 0], sizes = [1, 10, 64], strides = [1, 1, 1]} : vector<1x11x128xf32> to vector<1x10x64xf32>
    %c0_67 = arith.constant 0 : index
    %c8 = arith.constant 8 : index
    %c0_68 = arith.constant 0 : index
    %c0_69 = arith.constant 0 : index
    %89 = vector.load %arg1[%c0_67, %c8, %c0_68, %c0_69] : memref<1x21x11x128xbf16, #tpu.memory_space<vmem>>, vector<1x1x11x128xbf16>
    %90 = vector.shape_cast %89 : vector<1x1x11x128xbf16> to vector<1x11x128xbf16>
    %91 = arith.extf %90 : vector<1x11x128xbf16> to vector<1x11x128xf32>
    %92 = vector.extract_strided_slice %91 {offsets = [0, 0, 0], sizes = [1, 10, 128], strides = [1, 1, 1]} : vector<1x11x128xf32> to vector<1x10x128xf32>
    %93 = vector.extract_strided_slice %91 {offsets = [0, 1, 0], sizes = [1, 10, 64], strides = [1, 1, 1]} : vector<1x11x128xf32> to vector<1x10x64xf32>
    %94 = tpu.concatenate %87, %88, %92, %93 in 2 : vector<1x10x128xf32>, vector<1x10x64xf32>, vector<1x10x128xf32>, vector<1x10x64xf32> -> vector<1x10x384xf32>
    %c0_70 = arith.constant 0 : index
    %c70 = arith.constant 70 : index
    %c0_71 = arith.constant 0 : index
    %95 = vector.load %arg7[%c0_70, %c70, %c0_71] : memref<1x200x384xf32, #tpu.memory_space<vmem>>, vector<1x10x384xf32>
    tpu.vector_store %arg7[%c0_70, %c70, %c0_71], %94 {strides = array<i32>} : memref<1x200x384xf32, #tpu.memory_space<vmem>>, vector<1x10x384xf32>,
    %c0_72 = arith.constant 0 : index
    %c8_73 = arith.constant 8 : index
    %c0_74 = arith.constant 0 : index
    %c0_75 = arith.constant 0 : index
    %96 = vector.load %arg1[%c0_72, %c8_73, %c0_74, %c0_75] : memref<1x21x11x128xbf16, #tpu.memory_space<vmem>>, vector<1x1x11x128xbf16>
    %97 = vector.shape_cast %96 : vector<1x1x11x128xbf16> to vector<1x11x128xbf16>
    %98 = arith.extf %97 : vector<1x11x128xbf16> to vector<1x11x128xf32>
    %99 = vector.extract_strided_slice %98 {offsets = [0, 0, 0], sizes = [1, 10, 128], strides = [1, 1, 1]} : vector<1x11x128xf32> to vector<1x10x128xf32>
    %100 = vector.extract_strided_slice %98 {offsets = [0, 1, 0], sizes = [1, 10, 64], strides = [1, 1, 1]} : vector<1x11x128xf32> to vector<1x10x64xf32>
    %c0_76 = arith.constant 0 : index
    %c9 = arith.constant 9 : index
    %c0_77 = arith.constant 0 : index
    %c0_78 = arith.constant 0 : index
    %101 = vector.load %arg1[%c0_76, %c9, %c0_77, %c0_78] : memref<1x21x11x128xbf16, #tpu.memory_space<vmem>>, vector<1x1x11x128xbf16>
    %102 = vector.shape_cast %101 : vector<1x1x11x128xbf16> to vector<1x11x128xbf16>
    %103 = arith.extf %102 : vector<1x11x128xbf16> to vector<1x11x128xf32>
    %104 = vector.extract_strided_slice %103 {offsets = [0, 0, 0], sizes = [1, 10, 128], strides = [1, 1, 1]} : vector<1x11x128xf32> to vector<1x10x128xf32>
    %105 = vector.extract_strided_slice %103 {offsets = [0, 1, 0], sizes = [1, 10, 64], strides = [1, 1, 1]} : vector<1x11x128xf32> to vector<1x10x64xf32>
    %106 = tpu.concatenate %99, %100, %104, %105 in 2 : vector<1x10x128xf32>, vector<1x10x64xf32>, vector<1x10x128xf32>, vector<1x10x64xf32> -> vector<1x10x384xf32>
    %c0_79 = arith.constant 0 : index
    %c80 = arith.constant 80 : index
    %c0_80 = arith.constant 0 : index
    %107 = vector.load %arg7[%c0_79, %c80, %c0_80] : memref<1x200x384xf32, #tpu.memory_space<vmem>>, vector<1x10x384xf32>
    tpu.vector_store %arg7[%c0_79, %c80, %c0_80], %106 {strides = array<i32>} : memref<1x200x384xf32, #tpu.memory_space<vmem>>, vector<1x10x384xf32>,
    %c0_81 = arith.constant 0 : index
    %c9_82 = arith.constant 9 : index
    %c0_83 = arith.constant 0 : index
    %c0_84 = arith.constant 0 : index
    %108 = vector.load %arg1[%c0_81, %c9_82, %c0_83, %c0_84] : memref<1x21x11x128xbf16, #tpu.memory_space<vmem>>, vector<1x1x11x128xbf16>
    %109 = vector.shape_cast %108 : vector<1x1x11x128xbf16> to vector<1x11x128xbf16>
    %110 = arith.extf %109 : vector<1x11x128xbf16> to vector<1x11x128xf32>
    %111 = vector.extract_strided_slice %110 {offsets = [0, 0, 0], sizes = [1, 10, 128], strides = [1, 1, 1]} : vector<1x11x128xf32> to vector<1x10x128xf32>
    %112 = vector.extract_strided_slice %110 {offsets = [0, 1, 0], sizes = [1, 10, 64], strides = [1, 1, 1]} : vector<1x11x128xf32> to vector<1x10x64xf32>
    %c0_85 = arith.constant 0 : index
    %c10_86 = arith.constant 10 : index
    %c0_87 = arith.constant 0 : index
    %c0_88 = arith.constant 0 : index
    %113 = vector.load %arg1[%c0_85, %c10_86, %c0_87, %c0_88] : memref<1x21x11x128xbf16, #tpu.memory_space<vmem>>, vector<1x1x11x128xbf16>
    %114 = vector.shape_cast %113 : vector<1x1x11x128xbf16> to vector<1x11x128xbf16>
    %115 = arith.extf %114 : vector<1x11x128xbf16> to vector<1x11x128xf32>
    %116 = vector.extract_strided_slice %115 {offsets = [0, 0, 0], sizes = [1, 10, 128], strides = [1, 1, 1]} : vector<1x11x128xf32> to vector<1x10x128xf32>
    %117 = vector.extract_strided_slice %115 {offsets = [0, 1, 0], sizes = [1, 10, 64], strides = [1, 1, 1]} : vector<1x11x128xf32> to vector<1x10x64xf32>
    %118 = tpu.concatenate %111, %112, %116, %117 in 2 : vector<1x10x128xf32>, vector<1x10x64xf32>, vector<1x10x128xf32>, vector<1x10x64xf32> -> vector<1x10x384xf32>
    %c0_89 = arith.constant 0 : index
    %c90 = arith.constant 90 : index
    %c0_90 = arith.constant 0 : index
    %119 = vector.load %arg7[%c0_89, %c90, %c0_90] : memref<1x200x384xf32, #tpu.memory_space<vmem>>, vector<1x10x384xf32>
    tpu.vector_store %arg7[%c0_89, %c90, %c0_90], %118 {strides = array<i32>} : memref<1x200x384xf32, #tpu.memory_space<vmem>>, vector<1x10x384xf32>,
    %c0_91 = arith.constant 0 : index
    %c10_92 = arith.constant 10 : index
    %c0_93 = arith.constant 0 : index
    %c0_94 = arith.constant 0 : index
    %120 = vector.load %arg1[%c0_91, %c10_92, %c0_93, %c0_94] : memref<1x21x11x128xbf16, #tpu.memory_space<vmem>>, vector<1x1x11x128xbf16>
    %121 = vector.shape_cast %120 : vector<1x1x11x128xbf16> to vector<1x11x128xbf16>
    %122 = arith.extf %121 : vector<1x11x128xbf16> to vector<1x11x128xf32>
    %123 = vector.extract_strided_slice %122 {offsets = [0, 0, 0], sizes = [1, 10, 128], strides = [1, 1, 1]} : vector<1x11x128xf32> to vector<1x10x128xf32>
    %124 = vector.extract_strided_slice %122 {offsets = [0, 1, 0], sizes = [1, 10, 64], strides = [1, 1, 1]} : vector<1x11x128xf32> to vector<1x10x64xf32>
    %c0_95 = arith.constant 0 : index
    %c11 = arith.constant 11 : index
    %c0_96 = arith.constant 0 : index
    %c0_97 = arith.constant 0 : index
    %125 = vector.load %arg1[%c0_95, %c11, %c0_96, %c0_97] : memref<1x21x11x128xbf16, #tpu.memory_space<vmem>>, vector<1x1x11x128xbf16>
    %126 = vector.shape_cast %125 : vector<1x1x11x128xbf16> to vector<1x11x128xbf16>
    %127 = arith.extf %126 : vector<1x11x128xbf16> to vector<1x11x128xf32>
    %128 = vector.extract_strided_slice %127 {offsets = [0, 0, 0], sizes = [1, 10, 128], strides = [1, 1, 1]} : vector<1x11x128xf32> to vector<1x10x128xf32>
    %129 = vector.extract_strided_slice %127 {offsets = [0, 1, 0], sizes = [1, 10, 64], strides = [1, 1, 1]} : vector<1x11x128xf32> to vector<1x10x64xf32>
    %130 = tpu.concatenate %123, %124, %128, %129 in 2 : vector<1x10x128xf32>, vector<1x10x64xf32>, vector<1x10x128xf32>, vector<1x10x64xf32> -> vector<1x10x384xf32>
    %c0_98 = arith.constant 0 : index
    %c100 = arith.constant 100 : index
    %c0_99 = arith.constant 0 : index
    %131 = vector.load %arg7[%c0_98, %c100, %c0_99] : memref<1x200x384xf32, #tpu.memory_space<vmem>>, vector<1x10x384xf32>
    tpu.vector_store %arg7[%c0_98, %c100, %c0_99], %130 {strides = array<i32>} : memref<1x200x384xf32, #tpu.memory_space<vmem>>, vector<1x10x384xf32>,
    %c0_100 = arith.constant 0 : index
    %c11_101 = arith.constant 11 : index
    %c0_102 = arith.constant 0 : index
    %c0_103 = arith.constant 0 : index
    %132 = vector.load %arg1[%c0_100, %c11_101, %c0_102, %c0_103] : memref<1x21x11x128xbf16, #tpu.memory_space<vmem>>, vector<1x1x11x128xbf16>
    %133 = vector.shape_cast %132 : vector<1x1x11x128xbf16> to vector<1x11x128xbf16>
    %134 = arith.extf %133 : vector<1x11x128xbf16> to vector<1x11x128xf32>
    %135 = vector.extract_strided_slice %134 {offsets = [0, 0, 0], sizes = [1, 10, 128], strides = [1, 1, 1]} : vector<1x11x128xf32> to vector<1x10x128xf32>
    %136 = vector.extract_strided_slice %134 {offsets = [0, 1, 0], sizes = [1, 10, 64], strides = [1, 1, 1]} : vector<1x11x128xf32> to vector<1x10x64xf32>
    %c0_104 = arith.constant 0 : index
    %c12 = arith.constant 12 : index
    %c0_105 = arith.constant 0 : index
    %c0_106 = arith.constant 0 : index
    %137 = vector.load %arg1[%c0_104, %c12, %c0_105, %c0_106] : memref<1x21x11x128xbf16, #tpu.memory_space<vmem>>, vector<1x1x11x128xbf16>
    %138 = vector.shape_cast %137 : vector<1x1x11x128xbf16> to vector<1x11x128xbf16>
    %139 = arith.extf %138 : vector<1x11x128xbf16> to vector<1x11x128xf32>
    %140 = vector.extract_strided_slice %139 {offsets = [0, 0, 0], sizes = [1, 10, 128], strides = [1, 1, 1]} : vector<1x11x128xf32> to vector<1x10x128xf32>
    %141 = vector.extract_strided_slice %139 {offsets = [0, 1, 0], sizes = [1, 10, 64], strides = [1, 1, 1]} : vector<1x11x128xf32> to vector<1x10x64xf32>
    %142 = tpu.concatenate %135, %136, %140, %141 in 2 : vector<1x10x128xf32>, vector<1x10x64xf32>, vector<1x10x128xf32>, vector<1x10x64xf32> -> vector<1x10x384xf32>
    %c0_107 = arith.constant 0 : index
    %c110 = arith.constant 110 : index
    %c0_108 = arith.constant 0 : index
    %143 = vector.load %arg7[%c0_107, %c110, %c0_108] : memref<1x200x384xf32, #tpu.memory_space<vmem>>, vector<1x10x384xf32>
    tpu.vector_store %arg7[%c0_107, %c110, %c0_108], %142 {strides = array<i32>} : memref<1x200x384xf32, #tpu.memory_space<vmem>>, vector<1x10x384xf32>,
    %c0_109 = arith.constant 0 : index
    %c12_110 = arith.constant 12 : index
    %c0_111 = arith.constant 0 : index
    %c0_112 = arith.constant 0 : index
    %144 = vector.load %arg1[%c0_109, %c12_110, %c0_111, %c0_112] : memref<1x21x11x128xbf16, #tpu.memory_space<vmem>>, vector<1x1x11x128xbf16>
    %145 = vector.shape_cast %144 : vector<1x1x11x128xbf16> to vector<1x11x128xbf16>
    %146 = arith.extf %145 : vector<1x11x128xbf16> to vector<1x11x128xf32>
    %147 = vector.extract_strided_slice %146 {offsets = [0, 0, 0], sizes = [1, 10, 128], strides = [1, 1, 1]} : vector<1x11x128xf32> to vector<1x10x128xf32>
    %148 = vector.extract_strided_slice %146 {offsets = [0, 1, 0], sizes = [1, 10, 64], strides = [1, 1, 1]} : vector<1x11x128xf32> to vector<1x10x64xf32>
    %c0_113 = arith.constant 0 : index
    %c13 = arith.constant 13 : index
    %c0_114 = arith.constant 0 : index
    %c0_115 = arith.constant 0 : index
    %149 = vector.load %arg1[%c0_113, %c13, %c0_114, %c0_115] : memref<1x21x11x128xbf16, #tpu.memory_space<vmem>>, vector<1x1x11x128xbf16>
    %150 = vector.shape_cast %149 : vector<1x1x11x128xbf16> to vector<1x11x128xbf16>
    %151 = arith.extf %150 : vector<1x11x128xbf16> to vector<1x11x128xf32>
    %152 = vector.extract_strided_slice %151 {offsets = [0, 0, 0], sizes = [1, 10, 128], strides = [1, 1, 1]} : vector<1x11x128xf32> to vector<1x10x128xf32>
    %153 = vector.extract_strided_slice %151 {offsets = [0, 1, 0], sizes = [1, 10, 64], strides = [1, 1, 1]} : vector<1x11x128xf32> to vector<1x10x64xf32>
    %154 = tpu.concatenate %147, %148, %152, %153 in 2 : vector<1x10x128xf32>, vector<1x10x64xf32>, vector<1x10x128xf32>, vector<1x10x64xf32> -> vector<1x10x384xf32>
    %c0_116 = arith.constant 0 : index
    %c120 = arith.constant 120 : index
    %c0_117 = arith.constant 0 : index
    %155 = vector.load %arg7[%c0_116, %c120, %c0_117] : memref<1x200x384xf32, #tpu.memory_space<vmem>>, vector<1x10x384xf32>
    tpu.vector_store %arg7[%c0_116, %c120, %c0_117], %154 {strides = array<i32>} : memref<1x200x384xf32, #tpu.memory_space<vmem>>, vector<1x10x384xf32>,
    %c0_118 = arith.constant 0 : index
    %c13_119 = arith.constant 13 : index
    %c0_120 = arith.constant 0 : index
    %c0_121 = arith.constant 0 : index
    %156 = vector.load %arg1[%c0_118, %c13_119, %c0_120, %c0_121] : memref<1x21x11x128xbf16, #tpu.memory_space<vmem>>, vector<1x1x11x128xbf16>
    %157 = vector.shape_cast %156 : vector<1x1x11x128xbf16> to vector<1x11x128xbf16>
    %158 = arith.extf %157 : vector<1x11x128xbf16> to vector<1x11x128xf32>
    %159 = vector.extract_strided_slice %158 {offsets = [0, 0, 0], sizes = [1, 10, 128], strides = [1, 1, 1]} : vector<1x11x128xf32> to vector<1x10x128xf32>
    %160 = vector.extract_strided_slice %158 {offsets = [0, 1, 0], sizes = [1, 10, 64], strides = [1, 1, 1]} : vector<1x11x128xf32> to vector<1x10x64xf32>
    %c0_122 = arith.constant 0 : index
    %c14 = arith.constant 14 : index
    %c0_123 = arith.constant 0 : index
    %c0_124 = arith.constant 0 : index
    %161 = vector.load %arg1[%c0_122, %c14, %c0_123, %c0_124] : memref<1x21x11x128xbf16, #tpu.memory_space<vmem>>, vector<1x1x11x128xbf16>
    %162 = vector.shape_cast %161 : vector<1x1x11x128xbf16> to vector<1x11x128xbf16>
    %163 = arith.extf %162 : vector<1x11x128xbf16> to vector<1x11x128xf32>
    %164 = vector.extract_strided_slice %163 {offsets = [0, 0, 0], sizes = [1, 10, 128], strides = [1, 1, 1]} : vector<1x11x128xf32> to vector<1x10x128xf32>
    %165 = vector.extract_strided_slice %163 {offsets = [0, 1, 0], sizes = [1, 10, 64], strides = [1, 1, 1]} : vector<1x11x128xf32> to vector<1x10x64xf32>
    %166 = tpu.concatenate %159, %160, %164, %165 in 2 : vector<1x10x128xf32>, vector<1x10x64xf32>, vector<1x10x128xf32>, vector<1x10x64xf32> -> vector<1x10x384xf32>
    %c0_125 = arith.constant 0 : index
    %c130 = arith.constant 130 : index
    %c0_126 = arith.constant 0 : index
    %167 = vector.load %arg7[%c0_125, %c130, %c0_126] : memref<1x200x384xf32, #tpu.memory_space<vmem>>, vector<1x10x384xf32>
    tpu.vector_store %arg7[%c0_125, %c130, %c0_126], %166 {strides = array<i32>} : memref<1x200x384xf32, #tpu.memory_space<vmem>>, vector<1x10x384xf32>,
    %c0_127 = arith.constant 0 : index
    %c14_128 = arith.constant 14 : index
    %c0_129 = arith.constant 0 : index
    %c0_130 = arith.constant 0 : index
    %168 = vector.load %arg1[%c0_127, %c14_128, %c0_129, %c0_130] : memref<1x21x11x128xbf16, #tpu.memory_space<vmem>>, vector<1x1x11x128xbf16>
    %169 = vector.shape_cast %168 : vector<1x1x11x128xbf16> to vector<1x11x128xbf16>
    %170 = arith.extf %169 : vector<1x11x128xbf16> to vector<1x11x128xf32>
    %171 = vector.extract_strided_slice %170 {offsets = [0, 0, 0], sizes = [1, 10, 128], strides = [1, 1, 1]} : vector<1x11x128xf32> to vector<1x10x128xf32>
    %172 = vector.extract_strided_slice %170 {offsets = [0, 1, 0], sizes = [1, 10, 64], strides = [1, 1, 1]} : vector<1x11x128xf32> to vector<1x10x64xf32>
    %c0_131 = arith.constant 0 : index
    %c15 = arith.constant 15 : index
    %c0_132 = arith.constant 0 : index
    %c0_133 = arith.constant 0 : index
    %173 = vector.load %arg1[%c0_131, %c15, %c0_132, %c0_133] : memref<1x21x11x128xbf16, #tpu.memory_space<vmem>>, vector<1x1x11x128xbf16>
    %174 = vector.shape_cast %173 : vector<1x1x11x128xbf16> to vector<1x11x128xbf16>
    %175 = arith.extf %174 : vector<1x11x128xbf16> to vector<1x11x128xf32>
    %176 = vector.extract_strided_slice %175 {offsets = [0, 0, 0], sizes = [1, 10, 128], strides = [1, 1, 1]} : vector<1x11x128xf32> to vector<1x10x128xf32>
    %177 = vector.extract_strided_slice %175 {offsets = [0, 1, 0], sizes = [1, 10, 64], strides = [1, 1, 1]} : vector<1x11x128xf32> to vector<1x10x64xf32>
    %178 = tpu.concatenate %171, %172, %176, %177 in 2 : vector<1x10x128xf32>, vector<1x10x64xf32>, vector<1x10x128xf32>, vector<1x10x64xf32> -> vector<1x10x384xf32>
    %c0_134 = arith.constant 0 : index
    %c140 = arith.constant 140 : index
    %c0_135 = arith.constant 0 : index
    %179 = vector.load %arg7[%c0_134, %c140, %c0_135] : memref<1x200x384xf32, #tpu.memory_space<vmem>>, vector<1x10x384xf32>
    tpu.vector_store %arg7[%c0_134, %c140, %c0_135], %178 {strides = array<i32>} : memref<1x200x384xf32, #tpu.memory_space<vmem>>, vector<1x10x384xf32>,
    %c0_136 = arith.constant 0 : index
    %c15_137 = arith.constant 15 : index
    %c0_138 = arith.constant 0 : index
    %c0_139 = arith.constant 0 : index
    %180 = vector.load %arg1[%c0_136, %c15_137, %c0_138, %c0_139] : memref<1x21x11x128xbf16, #tpu.memory_space<vmem>>, vector<1x1x11x128xbf16>
    %181 = vector.shape_cast %180 : vector<1x1x11x128xbf16> to vector<1x11x128xbf16>
    %182 = arith.extf %181 : vector<1x11x128xbf16> to vector<1x11x128xf32>
    %183 = vector.extract_strided_slice %182 {offsets = [0, 0, 0], sizes = [1, 10, 128], strides = [1, 1, 1]} : vector<1x11x128xf32> to vector<1x10x128xf32>
    %184 = vector.extract_strided_slice %182 {offsets = [0, 1, 0], sizes = [1, 10, 64], strides = [1, 1, 1]} : vector<1x11x128xf32> to vector<1x10x64xf32>
    %c0_140 = arith.constant 0 : index
    %c16 = arith.constant 16 : index
    %c0_141 = arith.constant 0 : index
    %c0_142 = arith.constant 0 : index
    %185 = vector.load %arg1[%c0_140, %c16, %c0_141, %c0_142] : memref<1x21x11x128xbf16, #tpu.memory_space<vmem>>, vector<1x1x11x128xbf16>
    %186 = vector.shape_cast %185 : vector<1x1x11x128xbf16> to vector<1x11x128xbf16>
    %187 = arith.extf %186 : vector<1x11x128xbf16> to vector<1x11x128xf32>
    %188 = vector.extract_strided_slice %187 {offsets = [0, 0, 0], sizes = [1, 10, 128], strides = [1, 1, 1]} : vector<1x11x128xf32> to vector<1x10x128xf32>
    %189 = vector.extract_strided_slice %187 {offsets = [0, 1, 0], sizes = [1, 10, 64], strides = [1, 1, 1]} : vector<1x11x128xf32> to vector<1x10x64xf32>
    %190 = tpu.concatenate %183, %184, %188, %189 in 2 : vector<1x10x128xf32>, vector<1x10x64xf32>, vector<1x10x128xf32>, vector<1x10x64xf32> -> vector<1x10x384xf32>
    %c0_143 = arith.constant 0 : index
    %c150 = arith.constant 150 : index
    %c0_144 = arith.constant 0 : index
    %191 = vector.load %arg7[%c0_143, %c150, %c0_144] : memref<1x200x384xf32, #tpu.memory_space<vmem>>, vector<1x10x384xf32>
    tpu.vector_store %arg7[%c0_143, %c150, %c0_144], %190 {strides = array<i32>} : memref<1x200x384xf32, #tpu.memory_space<vmem>>, vector<1x10x384xf32>,
    %c0_145 = arith.constant 0 : index
    %c16_146 = arith.constant 16 : index
    %c0_147 = arith.constant 0 : index
    %c0_148 = arith.constant 0 : index
    %192 = vector.load %arg1[%c0_145, %c16_146, %c0_147, %c0_148] : memref<1x21x11x128xbf16, #tpu.memory_space<vmem>>, vector<1x1x11x128xbf16>
    %193 = vector.shape_cast %192 : vector<1x1x11x128xbf16> to vector<1x11x128xbf16>
    %194 = arith.extf %193 : vector<1x11x128xbf16> to vector<1x11x128xf32>
    %195 = vector.extract_strided_slice %194 {offsets = [0, 0, 0], sizes = [1, 10, 128], strides = [1, 1, 1]} : vector<1x11x128xf32> to vector<1x10x128xf32>
    %196 = vector.extract_strided_slice %194 {offsets = [0, 1, 0], sizes = [1, 10, 64], strides = [1, 1, 1]} : vector<1x11x128xf32> to vector<1x10x64xf32>
    %c0_149 = arith.constant 0 : index
    %c17 = arith.constant 17 : index
    %c0_150 = arith.constant 0 : index
    %c0_151 = arith.constant 0 : index
    %197 = vector.load %arg1[%c0_149, %c17, %c0_150, %c0_151] : memref<1x21x11x128xbf16, #tpu.memory_space<vmem>>, vector<1x1x11x128xbf16>
    %198 = vector.shape_cast %197 : vector<1x1x11x128xbf16> to vector<1x11x128xbf16>
    %199 = arith.extf %198 : vector<1x11x128xbf16> to vector<1x11x128xf32>
    %200 = vector.extract_strided_slice %199 {offsets = [0, 0, 0], sizes = [1, 10, 128], strides = [1, 1, 1]} : vector<1x11x128xf32> to vector<1x10x128xf32>
    %201 = vector.extract_strided_slice %199 {offsets = [0, 1, 0], sizes = [1, 10, 64], strides = [1, 1, 1]} : vector<1x11x128xf32> to vector<1x10x64xf32>
    %202 = tpu.concatenate %195, %196, %200, %201 in 2 : vector<1x10x128xf32>, vector<1x10x64xf32>, vector<1x10x128xf32>, vector<1x10x64xf32> -> vector<1x10x384xf32>
    %c0_152 = arith.constant 0 : index
    %c160 = arith.constant 160 : index
    %c0_153 = arith.constant 0 : index
    %203 = vector.load %arg7[%c0_152, %c160, %c0_153] : memref<1x200x384xf32, #tpu.memory_space<vmem>>, vector<1x10x384xf32>
    tpu.vector_store %arg7[%c0_152, %c160, %c0_153], %202 {strides = array<i32>} : memref<1x200x384xf32, #tpu.memory_space<vmem>>, vector<1x10x384xf32>,
    %c0_154 = arith.constant 0 : index
    %c17_155 = arith.constant 17 : index
    %c0_156 = arith.constant 0 : index
    %c0_157 = arith.constant 0 : index
    %204 = vector.load %arg1[%c0_154, %c17_155, %c0_156, %c0_157] : memref<1x21x11x128xbf16, #tpu.memory_space<vmem>>, vector<1x1x11x128xbf16>
    %205 = vector.shape_cast %204 : vector<1x1x11x128xbf16> to vector<1x11x128xbf16>
    %206 = arith.extf %205 : vector<1x11x128xbf16> to vector<1x11x128xf32>
    %207 = vector.extract_strided_slice %206 {offsets = [0, 0, 0], sizes = [1, 10, 128], strides = [1, 1, 1]} : vector<1x11x128xf32> to vector<1x10x128xf32>
    %208 = vector.extract_strided_slice %206 {offsets = [0, 1, 0], sizes = [1, 10, 64], strides = [1, 1, 1]} : vector<1x11x128xf32> to vector<1x10x64xf32>
    %c0_158 = arith.constant 0 : index
    %c18 = arith.constant 18 : index
    %c0_159 = arith.constant 0 : index
    %c0_160 = arith.constant 0 : index
    %209 = vector.load %arg1[%c0_158, %c18, %c0_159, %c0_160] : memref<1x21x11x128xbf16, #tpu.memory_space<vmem>>, vector<1x1x11x128xbf16>
    %210 = vector.shape_cast %209 : vector<1x1x11x128xbf16> to vector<1x11x128xbf16>
    %211 = arith.extf %210 : vector<1x11x128xbf16> to vector<1x11x128xf32>
    %212 = vector.extract_strided_slice %211 {offsets = [0, 0, 0], sizes = [1, 10, 128], strides = [1, 1, 1]} : vector<1x11x128xf32> to vector<1x10x128xf32>
    %213 = vector.extract_strided_slice %211 {offsets = [0, 1, 0], sizes = [1, 10, 64], strides = [1, 1, 1]} : vector<1x11x128xf32> to vector<1x10x64xf32>
    %214 = tpu.concatenate %207, %208, %212, %213 in 2 : vector<1x10x128xf32>, vector<1x10x64xf32>, vector<1x10x128xf32>, vector<1x10x64xf32> -> vector<1x10x384xf32>
    %c0_161 = arith.constant 0 : index
    %c170 = arith.constant 170 : index
    %c0_162 = arith.constant 0 : index
    %215 = vector.load %arg7[%c0_161, %c170, %c0_162] : memref<1x200x384xf32, #tpu.memory_space<vmem>>, vector<1x10x384xf32>
    tpu.vector_store %arg7[%c0_161, %c170, %c0_162], %214 {strides = array<i32>} : memref<1x200x384xf32, #tpu.memory_space<vmem>>, vector<1x10x384xf32>,
    %c0_163 = arith.constant 0 : index
    %c18_164 = arith.constant 18 : index
    %c0_165 = arith.constant 0 : index
    %c0_166 = arith.constant 0 : index
    %216 = vector.load %arg1[%c0_163, %c18_164, %c0_165, %c0_166] : memref<1x21x11x128xbf16, #tpu.memory_space<vmem>>, vector<1x1x11x128xbf16>
    %217 = vector.shape_cast %216 : vector<1x1x11x128xbf16> to vector<1x11x128xbf16>
    %218 = arith.extf %217 : vector<1x11x128xbf16> to vector<1x11x128xf32>
    %219 = vector.extract_strided_slice %218 {offsets = [0, 0, 0], sizes = [1, 10, 128], strides = [1, 1, 1]} : vector<1x11x128xf32> to vector<1x10x128xf32>
    %220 = vector.extract_strided_slice %218 {offsets = [0, 1, 0], sizes = [1, 10, 64], strides = [1, 1, 1]} : vector<1x11x128xf32> to vector<1x10x64xf32>
    %c0_167 = arith.constant 0 : index
    %c19 = arith.constant 19 : index
    %c0_168 = arith.constant 0 : index
    %c0_169 = arith.constant 0 : index
    %221 = vector.load %arg1[%c0_167, %c19, %c0_168, %c0_169] : memref<1x21x11x128xbf16, #tpu.memory_space<vmem>>, vector<1x1x11x128xbf16>
    %222 = vector.shape_cast %221 : vector<1x1x11x128xbf16> to vector<1x11x128xbf16>
    %223 = arith.extf %222 : vector<1x11x128xbf16> to vector<1x11x128xf32>
    %224 = vector.extract_strided_slice %223 {offsets = [0, 0, 0], sizes = [1, 10, 128], strides = [1, 1, 1]} : vector<1x11x128xf32> to vector<1x10x128xf32>
    %225 = vector.extract_strided_slice %223 {offsets = [0, 1, 0], sizes = [1, 10, 64], strides = [1, 1, 1]} : vector<1x11x128xf32> to vector<1x10x64xf32>
    %226 = tpu.concatenate %219, %220, %224, %225 in 2 : vector<1x10x128xf32>, vector<1x10x64xf32>, vector<1x10x128xf32>, vector<1x10x64xf32> -> vector<1x10x384xf32>
    %c0_170 = arith.constant 0 : index
    %c180 = arith.constant 180 : index
    %c0_171 = arith.constant 0 : index
    %227 = vector.load %arg7[%c0_170, %c180, %c0_171] : memref<1x200x384xf32, #tpu.memory_space<vmem>>, vector<1x10x384xf32>
    tpu.vector_store %arg7[%c0_170, %c180, %c0_171], %226 {strides = array<i32>} : memref<1x200x384xf32, #tpu.memory_space<vmem>>, vector<1x10x384xf32>,
    %c0_172 = arith.constant 0 : index
    %c19_173 = arith.constant 19 : index
    %c0_174 = arith.constant 0 : index
    %c0_175 = arith.constant 0 : index
    %228 = vector.load %arg1[%c0_172, %c19_173, %c0_174, %c0_175] : memref<1x21x11x128xbf16, #tpu.memory_space<vmem>>, vector<1x1x11x128xbf16>
    %229 = vector.shape_cast %228 : vector<1x1x11x128xbf16> to vector<1x11x128xbf16>
    %230 = arith.extf %229 : vector<1x11x128xbf16> to vector<1x11x128xf32>
    %231 = vector.extract_strided_slice %230 {offsets = [0, 0, 0], sizes = [1, 10, 128], strides = [1, 1, 1]} : vector<1x11x128xf32> to vector<1x10x128xf32>
    %232 = vector.extract_strided_slice %230 {offsets = [0, 1, 0], sizes = [1, 10, 64], strides = [1, 1, 1]} : vector<1x11x128xf32> to vector<1x10x64xf32>
    %c0_176 = arith.constant 0 : index
    %c20_177 = arith.constant 20 : index
    %c0_178 = arith.constant 0 : index
    %c0_179 = arith.constant 0 : index
    %233 = vector.load %arg1[%c0_176, %c20_177, %c0_178, %c0_179] : memref<1x21x11x128xbf16, #tpu.memory_space<vmem>>, vector<1x1x11x128xbf16>
    %234 = vector.shape_cast %233 : vector<1x1x11x128xbf16> to vector<1x11x128xbf16>
    %235 = arith.extf %234 : vector<1x11x128xbf16> to vector<1x11x128xf32>
    %236 = vector.extract_strided_slice %235 {offsets = [0, 0, 0], sizes = [1, 10, 128], strides = [1, 1, 1]} : vector<1x11x128xf32> to vector<1x10x128xf32>
    %237 = vector.extract_strided_slice %235 {offsets = [0, 1, 0], sizes = [1, 10, 64], strides = [1, 1, 1]} : vector<1x11x128xf32> to vector<1x10x64xf32>
    %238 = tpu.concatenate %231, %232, %236, %237 in 2 : vector<1x10x128xf32>, vector<1x10x64xf32>, vector<1x10x128xf32>, vector<1x10x64xf32> -> vector<1x10x384xf32>
    %c0_180 = arith.constant 0 : index
    %c190 = arith.constant 190 : index
    %c0_181 = arith.constant 0 : index
    %239 = vector.load %arg7[%c0_180, %c190, %c0_181] : memref<1x200x384xf32, #tpu.memory_space<vmem>>, vector<1x10x384xf32>
    tpu.vector_store %arg7[%c0_180, %c190, %c0_181], %238 {strides = array<i32>} : memref<1x200x384xf32, #tpu.memory_space<vmem>>, vector<1x10x384xf32>,
    %c0_182 = arith.constant 0 : index
    %c0_183 = arith.constant 0 : index
    %240 = vector.load %arg2[%c0_182, %c0_183] : memref<384x32xbf16, #tpu.memory_space<vmem>>, vector<384x32xbf16>
    %c0_184 = arith.constant 0 : index
    %c0_185 = arith.constant 0 : index
    %241 = vector.load %arg3[%c0_184, %c0_185] : memref<1x32xf32, #tpu.memory_space<vmem>>, vector<1x32xf32>
    %c0_186 = arith.constant 0 : index
    %c0_187 = arith.constant 0 : index
    %c0_188 = arith.constant 0 : index
    %242 = vector.load %arg7[%c0_186, %c0_187, %c0_188] : memref<1x200x384xf32, #tpu.memory_space<vmem>>, vector<1x200x384xf32>
    %243 = vector.shape_cast %242 : vector<1x200x384xf32> to vector<200x384xf32>
    %244 = arith.truncf %243 : vector<200x384xf32> to vector<200x384xbf16>
    %cst = arith.constant dense<0.000000e+00> : vector<200x32xf32>
    %245 = tpu.matmul %244, %240, %cst {dimension_numbers = #tpu.dot_dimension_numbers<[1], [0], [0], [1], [0, 0, 1, 1], [], []>} : vector<200x384xbf16>, vector<384x32xbf16>, vector<200x32xf32> -> vector<200x32xf32>
    %246 = vector.broadcast %241 : vector<1x32xf32> to vector<200x32xf32>
    %247 = arith.addf %245, %246 : vector<200x32xf32>
    %cst_189 = arith.constant 0.000000e+00 : f32
    %248 = vector.broadcast %cst_189 : f32 to vector<200x32xf32>
    %249 = arith.maximumf %247, %248 : vector<200x32xf32>
    %c0_190 = arith.constant 0 : index
    %c0_191 = arith.constant 0 : index
    %c0_192 = arith.constant 0 : index
    %250 = vector.load %arg8[%c0_190, %c0_191, %c0_192] : memref<1x200x32xf32, #tpu.memory_space<vmem>>, vector<1x200x32xf32>
    %251 = vector.shape_cast %250 : vector<1x200x32xf32> to vector<200x32xf32>
    %252 = vector.shape_cast %249 : vector<200x32xf32> to vector<1x200x32xf32>
    tpu.vector_store %arg8[%c0_190, %c0_191, %c0_192], %252 {strides = array<i32>} : memref<1x200x32xf32, #tpu.memory_space<vmem>>, vector<1x200x32xf32>,
    %c0_193 = arith.constant 0 : index
    %c0_194 = arith.constant 0 : index
    %c0_195 = arith.constant 0 : index
    %253 = vector.load %arg8[%c0_193, %c0_194, %c0_195] : memref<1x200x32xf32, #tpu.memory_space<vmem>>, vector<1x9x32xf32>
    %c0_196 = arith.constant 0 : index
    %c1_197 = arith.constant 1 : index
    %c0_198 = arith.constant 0 : index
    %254 = vector.load %arg8[%c0_196, %c1_197, %c0_198] : memref<1x200x32xf32, #tpu.memory_space<vmem>>, vector<1x9x32xf32>
    %c0_199 = arith.constant 0 : index
    %c10_200 = arith.constant 10 : index
    %c0_201 = arith.constant 0 : index
    %255 = vector.load %arg8[%c0_199, %c10_200, %c0_201] : memref<1x200x32xf32, #tpu.memory_space<vmem>>, vector<1x9x32xf32>
    %c0_202 = arith.constant 0 : index
    %c11_203 = arith.constant 11 : index
    %c0_204 = arith.constant 0 : index
    %256 = vector.load %arg8[%c0_202, %c11_203, %c0_204] : memref<1x200x32xf32, #tpu.memory_space<vmem>>, vector<1x9x32xf32>
    %c0_205 = arith.constant 0 : index
    %c20_206 = arith.constant 20 : index
    %c0_207 = arith.constant 0 : index
    %257 = vector.load %arg8[%c0_205, %c20_206, %c0_207] : memref<1x200x32xf32, #tpu.memory_space<vmem>>, vector<1x9x32xf32>
    %c0_208 = arith.constant 0 : index
    %c21 = arith.constant 21 : index
    %c0_209 = arith.constant 0 : index
    %258 = vector.load %arg8[%c0_208, %c21, %c0_209] : memref<1x200x32xf32, #tpu.memory_space<vmem>>, vector<1x9x32xf32>
    %c0_210 = arith.constant 0 : index
    %c30_211 = arith.constant 30 : index
    %c0_212 = arith.constant 0 : index
    %259 = vector.load %arg8[%c0_210, %c30_211, %c0_212] : memref<1x200x32xf32, #tpu.memory_space<vmem>>, vector<1x9x32xf32>
    %c0_213 = arith.constant 0 : index
    %c31 = arith.constant 31 : index
    %c0_214 = arith.constant 0 : index
    %260 = vector.load %arg8[%c0_213, %c31, %c0_214] : memref<1x200x32xf32, #tpu.memory_space<vmem>>, vector<1x9x32xf32>
    %261 = tpu.concatenate %253, %254, %255, %256, %257, %258, %259, %260 in 2 : vector<1x9x32xf32>, vector<1x9x32xf32>, vector<1x9x32xf32>, vector<1x9x32xf32>, vector<1x9x32xf32>, vector<1x9x32xf32>, vector<1x9x32xf32>, vector<1x9x32xf32> -> vector<1x9x256xf32>
    %c0_215 = arith.constant 0 : index
    %c0_216 = arith.constant 0 : index
    %c0_217 = arith.constant 0 : index
    %262 = vector.load %arg9[%c0_215, %c0_216, %c0_217] : memref<1x81x256xf32, #tpu.memory_space<vmem>>, vector<1x9x256xf32>
    tpu.vector_store %arg9[%c0_215, %c0_216, %c0_217], %261 {strides = array<i32>} : memref<1x81x256xf32, #tpu.memory_space<vmem>>, vector<1x9x256xf32>,
    %c0_218 = arith.constant 0 : index
    %c20_219 = arith.constant 20 : index
    %c0_220 = arith.constant 0 : index
    %263 = vector.load %arg8[%c0_218, %c20_219, %c0_220] : memref<1x200x32xf32, #tpu.memory_space<vmem>>, vector<1x9x32xf32>
    %c0_221 = arith.constant 0 : index
    %c21_222 = arith.constant 21 : index
    %c0_223 = arith.constant 0 : index
    %264 = vector.load %arg8[%c0_221, %c21_222, %c0_223] : memref<1x200x32xf32, #tpu.memory_space<vmem>>, vector<1x9x32xf32>
    %c0_224 = arith.constant 0 : index
    %c30_225 = arith.constant 30 : index
    %c0_226 = arith.constant 0 : index
    %265 = vector.load %arg8[%c0_224, %c30_225, %c0_226] : memref<1x200x32xf32, #tpu.memory_space<vmem>>, vector<1x9x32xf32>
    %c0_227 = arith.constant 0 : index
    %c31_228 = arith.constant 31 : index
    %c0_229 = arith.constant 0 : index
    %266 = vector.load %arg8[%c0_227, %c31_228, %c0_229] : memref<1x200x32xf32, #tpu.memory_space<vmem>>, vector<1x9x32xf32>
    %c0_230 = arith.constant 0 : index
    %c40_231 = arith.constant 40 : index
    %c0_232 = arith.constant 0 : index
    %267 = vector.load %arg8[%c0_230, %c40_231, %c0_232] : memref<1x200x32xf32, #tpu.memory_space<vmem>>, vector<1x9x32xf32>
    %c0_233 = arith.constant 0 : index
    %c41 = arith.constant 41 : index
    %c0_234 = arith.constant 0 : index
    %268 = vector.load %arg8[%c0_233, %c41, %c0_234] : memref<1x200x32xf32, #tpu.memory_space<vmem>>, vector<1x9x32xf32>
    %c0_235 = arith.constant 0 : index
    %c50_236 = arith.constant 50 : index
    %c0_237 = arith.constant 0 : index
    %269 = vector.load %arg8[%c0_235, %c50_236, %c0_237] : memref<1x200x32xf32, #tpu.memory_space<vmem>>, vector<1x9x32xf32>
    %c0_238 = arith.constant 0 : index
    %c51 = arith.constant 51 : index
    %c0_239 = arith.constant 0 : index
    %270 = vector.load %arg8[%c0_238, %c51, %c0_239] : memref<1x200x32xf32, #tpu.memory_space<vmem>>, vector<1x9x32xf32>
    %271 = tpu.concatenate %263, %264, %265, %266, %267, %268, %269, %270 in 2 : vector<1x9x32xf32>, vector<1x9x32xf32>, vector<1x9x32xf32>, vector<1x9x32xf32>, vector<1x9x32xf32>, vector<1x9x32xf32>, vector<1x9x32xf32>, vector<1x9x32xf32> -> vector<1x9x256xf32>
    %c0_240 = arith.constant 0 : index
    %c9_241 = arith.constant 9 : index
    %c0_242 = arith.constant 0 : index
    %272 = vector.load %arg9[%c0_240, %c9_241, %c0_242] : memref<1x81x256xf32, #tpu.memory_space<vmem>>, vector<1x9x256xf32>
    tpu.vector_store %arg9[%c0_240, %c9_241, %c0_242], %271 {strides = array<i32>} : memref<1x81x256xf32, #tpu.memory_space<vmem>>, vector<1x9x256xf32>,
    %c0_243 = arith.constant 0 : index
    %c40_244 = arith.constant 40 : index
    %c0_245 = arith.constant 0 : index
    %273 = vector.load %arg8[%c0_243, %c40_244, %c0_245] : memref<1x200x32xf32, #tpu.memory_space<vmem>>, vector<1x9x32xf32>
    %c0_246 = arith.constant 0 : index
    %c41_247 = arith.constant 41 : index
    %c0_248 = arith.constant 0 : index
    %274 = vector.load %arg8[%c0_246, %c41_247, %c0_248] : memref<1x200x32xf32, #tpu.memory_space<vmem>>, vector<1x9x32xf32>
    %c0_249 = arith.constant 0 : index
    %c50_250 = arith.constant 50 : index
    %c0_251 = arith.constant 0 : index
    %275 = vector.load %arg8[%c0_249, %c50_250, %c0_251] : memref<1x200x32xf32, #tpu.memory_space<vmem>>, vector<1x9x32xf32>
    %c0_252 = arith.constant 0 : index
    %c51_253 = arith.constant 51 : index
    %c0_254 = arith.constant 0 : index
    %276 = vector.load %arg8[%c0_252, %c51_253, %c0_254] : memref<1x200x32xf32, #tpu.memory_space<vmem>>, vector<1x9x32xf32>
    %c0_255 = arith.constant 0 : index
    %c60_256 = arith.constant 60 : index
    %c0_257 = arith.constant 0 : index
    %277 = vector.load %arg8[%c0_255, %c60_256, %c0_257] : memref<1x200x32xf32, #tpu.memory_space<vmem>>, vector<1x9x32xf32>
    %c0_258 = arith.constant 0 : index
    %c61 = arith.constant 61 : index
    %c0_259 = arith.constant 0 : index
    %278 = vector.load %arg8[%c0_258, %c61, %c0_259] : memref<1x200x32xf32, #tpu.memory_space<vmem>>, vector<1x9x32xf32>
    %c0_260 = arith.constant 0 : index
    %c70_261 = arith.constant 70 : index
    %c0_262 = arith.constant 0 : index
    %279 = vector.load %arg8[%c0_260, %c70_261, %c0_262] : memref<1x200x32xf32, #tpu.memory_space<vmem>>, vector<1x9x32xf32>
    %c0_263 = arith.constant 0 : index
    %c71 = arith.constant 71 : index
    %c0_264 = arith.constant 0 : index
    %280 = vector.load %arg8[%c0_263, %c71, %c0_264] : memref<1x200x32xf32, #tpu.memory_space<vmem>>, vector<1x9x32xf32>
    %281 = tpu.concatenate %273, %274, %275, %276, %277, %278, %279, %280 in 2 : vector<1x9x32xf32>, vector<1x9x32xf32>, vector<1x9x32xf32>, vector<1x9x32xf32>, vector<1x9x32xf32>, vector<1x9x32xf32>, vector<1x9x32xf32>, vector<1x9x32xf32> -> vector<1x9x256xf32>
    %c0_265 = arith.constant 0 : index
    %c18_266 = arith.constant 18 : index
    %c0_267 = arith.constant 0 : index
    %282 = vector.load %arg9[%c0_265, %c18_266, %c0_267] : memref<1x81x256xf32, #tpu.memory_space<vmem>>, vector<1x9x256xf32>
    tpu.vector_store %arg9[%c0_265, %c18_266, %c0_267], %281 {strides = array<i32>} : memref<1x81x256xf32, #tpu.memory_space<vmem>>, vector<1x9x256xf32>,
    %c0_268 = arith.constant 0 : index
    %c60_269 = arith.constant 60 : index
    %c0_270 = arith.constant 0 : index
    %283 = vector.load %arg8[%c0_268, %c60_269, %c0_270] : memref<1x200x32xf32, #tpu.memory_space<vmem>>, vector<1x9x32xf32>
    %c0_271 = arith.constant 0 : index
    %c61_272 = arith.constant 61 : index
    %c0_273 = arith.constant 0 : index
    %284 = vector.load %arg8[%c0_271, %c61_272, %c0_273] : memref<1x200x32xf32, #tpu.memory_space<vmem>>, vector<1x9x32xf32>
    %c0_274 = arith.constant 0 : index
    %c70_275 = arith.constant 70 : index
    %c0_276 = arith.constant 0 : index
    %285 = vector.load %arg8[%c0_274, %c70_275, %c0_276] : memref<1x200x32xf32, #tpu.memory_space<vmem>>, vector<1x9x32xf32>
    %c0_277 = arith.constant 0 : index
    %c71_278 = arith.constant 71 : index
    %c0_279 = arith.constant 0 : index
    %286 = vector.load %arg8[%c0_277, %c71_278, %c0_279] : memref<1x200x32xf32, #tpu.memory_space<vmem>>, vector<1x9x32xf32>
    %c0_280 = arith.constant 0 : index
    %c80_281 = arith.constant 80 : index
    %c0_282 = arith.constant 0 : index
    %287 = vector.load %arg8[%c0_280, %c80_281, %c0_282] : memref<1x200x32xf32, #tpu.memory_space<vmem>>, vector<1x9x32xf32>
    %c0_283 = arith.constant 0 : index
    %c81 = arith.constant 81 : index
    %c0_284 = arith.constant 0 : index
    %288 = vector.load %arg8[%c0_283, %c81, %c0_284] : memref<1x200x32xf32, #tpu.memory_space<vmem>>, vector<1x9x32xf32>
    %c0_285 = arith.constant 0 : index
    %c90_286 = arith.constant 90 : index
    %c0_287 = arith.constant 0 : index
    %289 = vector.load %arg8[%c0_285, %c90_286, %c0_287] : memref<1x200x32xf32, #tpu.memory_space<vmem>>, vector<1x9x32xf32>
    %c0_288 = arith.constant 0 : index
    %c91 = arith.constant 91 : index
    %c0_289 = arith.constant 0 : index
    %290 = vector.load %arg8[%c0_288, %c91, %c0_289] : memref<1x200x32xf32, #tpu.memory_space<vmem>>, vector<1x9x32xf32>
    %291 = tpu.concatenate %283, %284, %285, %286, %287, %288, %289, %290 in 2 : vector<1x9x32xf32>, vector<1x9x32xf32>, vector<1x9x32xf32>, vector<1x9x32xf32>, vector<1x9x32xf32>, vector<1x9x32xf32>, vector<1x9x32xf32>, vector<1x9x32xf32> -> vector<1x9x256xf32>
    %c0_290 = arith.constant 0 : index
    %c27 = arith.constant 27 : index
    %c0_291 = arith.constant 0 : index
    %292 = vector.load %arg9[%c0_290, %c27, %c0_291] : memref<1x81x256xf32, #tpu.memory_space<vmem>>, vector<1x9x256xf32>
    tpu.vector_store %arg9[%c0_290, %c27, %c0_291], %291 {strides = array<i32>} : memref<1x81x256xf32, #tpu.memory_space<vmem>>, vector<1x9x256xf32>,
    %c0_292 = arith.constant 0 : index
    %c80_293 = arith.constant 80 : index
    %c0_294 = arith.constant 0 : index
    %293 = vector.load %arg8[%c0_292, %c80_293, %c0_294] : memref<1x200x32xf32, #tpu.memory_space<vmem>>, vector<1x9x32xf32>
    %c0_295 = arith.constant 0 : index
    %c81_296 = arith.constant 81 : index
    %c0_297 = arith.constant 0 : index
    %294 = vector.load %arg8[%c0_295, %c81_296, %c0_297] : memref<1x200x32xf32, #tpu.memory_space<vmem>>, vector<1x9x32xf32>
    %c0_298 = arith.constant 0 : index
    %c90_299 = arith.constant 90 : index
    %c0_300 = arith.constant 0 : index
    %295 = vector.load %arg8[%c0_298, %c90_299, %c0_300] : memref<1x200x32xf32, #tpu.memory_space<vmem>>, vector<1x9x32xf32>
    %c0_301 = arith.constant 0 : index
    %c91_302 = arith.constant 91 : index
    %c0_303 = arith.constant 0 : index
    %296 = vector.load %arg8[%c0_301, %c91_302, %c0_303] : memref<1x200x32xf32, #tpu.memory_space<vmem>>, vector<1x9x32xf32>
    %c0_304 = arith.constant 0 : index
    %c100_305 = arith.constant 100 : index
    %c0_306 = arith.constant 0 : index
    %297 = vector.load %arg8[%c0_304, %c100_305, %c0_306] : memref<1x200x32xf32, #tpu.memory_space<vmem>>, vector<1x9x32xf32>
    %c0_307 = arith.constant 0 : index
    %c101 = arith.constant 101 : index
    %c0_308 = arith.constant 0 : index
    %298 = vector.load %arg8[%c0_307, %c101, %c0_308] : memref<1x200x32xf32, #tpu.memory_space<vmem>>, vector<1x9x32xf32>
    %c0_309 = arith.constant 0 : index
    %c110_310 = arith.constant 110 : index
    %c0_311 = arith.constant 0 : index
    %299 = vector.load %arg8[%c0_309, %c110_310, %c0_311] : memref<1x200x32xf32, #tpu.memory_space<vmem>>, vector<1x9x32xf32>
    %c0_312 = arith.constant 0 : index
    %c111 = arith.constant 111 : index
    %c0_313 = arith.constant 0 : index
    %300 = vector.load %arg8[%c0_312, %c111, %c0_313] : memref<1x200x32xf32, #tpu.memory_space<vmem>>, vector<1x9x32xf32>
    %301 = tpu.concatenate %293, %294, %295, %296, %297, %298, %299, %300 in 2 : vector<1x9x32xf32>, vector<1x9x32xf32>, vector<1x9x32xf32>, vector<1x9x32xf32>, vector<1x9x32xf32>, vector<1x9x32xf32>, vector<1x9x32xf32>, vector<1x9x32xf32> -> vector<1x9x256xf32>
    %c0_314 = arith.constant 0 : index
    %c36 = arith.constant 36 : index
    %c0_315 = arith.constant 0 : index
    %302 = vector.load %arg9[%c0_314, %c36, %c0_315] : memref<1x81x256xf32, #tpu.memory_space<vmem>>, vector<1x9x256xf32>
    tpu.vector_store %arg9[%c0_314, %c36, %c0_315], %301 {strides = array<i32>} : memref<1x81x256xf32, #tpu.memory_space<vmem>>, vector<1x9x256xf32>,
    %c0_316 = arith.constant 0 : index
    %c100_317 = arith.constant 100 : index
    %c0_318 = arith.constant 0 : index
    %303 = vector.load %arg8[%c0_316, %c100_317, %c0_318] : memref<1x200x32xf32, #tpu.memory_space<vmem>>, vector<1x9x32xf32>
    %c0_319 = arith.constant 0 : index
    %c101_320 = arith.constant 101 : index
    %c0_321 = arith.constant 0 : index
    %304 = vector.load %arg8[%c0_319, %c101_320, %c0_321] : memref<1x200x32xf32, #tpu.memory_space<vmem>>, vector<1x9x32xf32>
    %c0_322 = arith.constant 0 : index
    %c110_323 = arith.constant 110 : index
    %c0_324 = arith.constant 0 : index
    %305 = vector.load %arg8[%c0_322, %c110_323, %c0_324] : memref<1x200x32xf32, #tpu.memory_space<vmem>>, vector<1x9x32xf32>
    %c0_325 = arith.constant 0 : index
    %c111_326 = arith.constant 111 : index
    %c0_327 = arith.constant 0 : index
    %306 = vector.load %arg8[%c0_325, %c111_326, %c0_327] : memref<1x200x32xf32, #tpu.memory_space<vmem>>, vector<1x9x32xf32>
    %c0_328 = arith.constant 0 : index
    %c120_329 = arith.constant 120 : index
    %c0_330 = arith.constant 0 : index
    %307 = vector.load %arg8[%c0_328, %c120_329, %c0_330] : memref<1x200x32xf32, #tpu.memory_space<vmem>>, vector<1x9x32xf32>
    %c0_331 = arith.constant 0 : index
    %c121 = arith.constant 121 : index
    %c0_332 = arith.constant 0 : index
    %308 = vector.load %arg8[%c0_331, %c121, %c0_332] : memref<1x200x32xf32, #tpu.memory_space<vmem>>, vector<1x9x32xf32>
    %c0_333 = arith.constant 0 : index
    %c130_334 = arith.constant 130 : index
    %c0_335 = arith.constant 0 : index
    %309 = vector.load %arg8[%c0_333, %c130_334, %c0_335] : memref<1x200x32xf32, #tpu.memory_space<vmem>>, vector<1x9x32xf32>
    %c0_336 = arith.constant 0 : index
    %c131 = arith.constant 131 : index
    %c0_337 = arith.constant 0 : index
    %310 = vector.load %arg8[%c0_336, %c131, %c0_337] : memref<1x200x32xf32, #tpu.memory_space<vmem>>, vector<1x9x32xf32>
    %311 = tpu.concatenate %303, %304, %305, %306, %307, %308, %309, %310 in 2 : vector<1x9x32xf32>, vector<1x9x32xf32>, vector<1x9x32xf32>, vector<1x9x32xf32>, vector<1x9x32xf32>, vector<1x9x32xf32>, vector<1x9x32xf32>, vector<1x9x32xf32> -> vector<1x9x256xf32>
    %c0_338 = arith.constant 0 : index
    %c45 = arith.constant 45 : index
    %c0_339 = arith.constant 0 : index
    %312 = vector.load %arg9[%c0_338, %c45, %c0_339] : memref<1x81x256xf32, #tpu.memory_space<vmem>>, vector<1x9x256xf32>
    tpu.vector_store %arg9[%c0_338, %c45, %c0_339], %311 {strides = array<i32>} : memref<1x81x256xf32, #tpu.memory_space<vmem>>, vector<1x9x256xf32>,
    %c0_340 = arith.constant 0 : index
    %c120_341 = arith.constant 120 : index
    %c0_342 = arith.constant 0 : index
    %313 = vector.load %arg8[%c0_340, %c120_341, %c0_342] : memref<1x200x32xf32, #tpu.memory_space<vmem>>, vector<1x9x32xf32>
    %c0_343 = arith.constant 0 : index
    %c121_344 = arith.constant 121 : index
    %c0_345 = arith.constant 0 : index
    %314 = vector.load %arg8[%c0_343, %c121_344, %c0_345] : memref<1x200x32xf32, #tpu.memory_space<vmem>>, vector<1x9x32xf32>
    %c0_346 = arith.constant 0 : index
    %c130_347 = arith.constant 130 : index
    %c0_348 = arith.constant 0 : index
    %315 = vector.load %arg8[%c0_346, %c130_347, %c0_348] : memref<1x200x32xf32, #tpu.memory_space<vmem>>, vector<1x9x32xf32>
    %c0_349 = arith.constant 0 : index
    %c131_350 = arith.constant 131 : index
    %c0_351 = arith.constant 0 : index
    %316 = vector.load %arg8[%c0_349, %c131_350, %c0_351] : memref<1x200x32xf32, #tpu.memory_space<vmem>>, vector<1x9x32xf32>
    %c0_352 = arith.constant 0 : index
    %c140_353 = arith.constant 140 : index
    %c0_354 = arith.constant 0 : index
    %317 = vector.load %arg8[%c0_352, %c140_353, %c0_354] : memref<1x200x32xf32, #tpu.memory_space<vmem>>, vector<1x9x32xf32>
    %c0_355 = arith.constant 0 : index
    %c141 = arith.constant 141 : index
    %c0_356 = arith.constant 0 : index
    %318 = vector.load %arg8[%c0_355, %c141, %c0_356] : memref<1x200x32xf32, #tpu.memory_space<vmem>>, vector<1x9x32xf32>
    %c0_357 = arith.constant 0 : index
    %c150_358 = arith.constant 150 : index
    %c0_359 = arith.constant 0 : index
    %319 = vector.load %arg8[%c0_357, %c150_358, %c0_359] : memref<1x200x32xf32, #tpu.memory_space<vmem>>, vector<1x9x32xf32>
    %c0_360 = arith.constant 0 : index
    %c151 = arith.constant 151 : index
    %c0_361 = arith.constant 0 : index
    %320 = vector.load %arg8[%c0_360, %c151, %c0_361] : memref<1x200x32xf32, #tpu.memory_space<vmem>>, vector<1x9x32xf32>
    %321 = tpu.concatenate %313, %314, %315, %316, %317, %318, %319, %320 in 2 : vector<1x9x32xf32>, vector<1x9x32xf32>, vector<1x9x32xf32>, vector<1x9x32xf32>, vector<1x9x32xf32>, vector<1x9x32xf32>, vector<1x9x32xf32>, vector<1x9x32xf32> -> vector<1x9x256xf32>
    %c0_362 = arith.constant 0 : index
    %c54 = arith.constant 54 : index
    %c0_363 = arith.constant 0 : index
    %322 = vector.load %arg9[%c0_362, %c54, %c0_363] : memref<1x81x256xf32, #tpu.memory_space<vmem>>, vector<1x9x256xf32>
    tpu.vector_store %arg9[%c0_362, %c54, %c0_363], %321 {strides = array<i32>} : memref<1x81x256xf32, #tpu.memory_space<vmem>>, vector<1x9x256xf32>,
    %c0_364 = arith.constant 0 : index
    %c140_365 = arith.constant 140 : index
    %c0_366 = arith.constant 0 : index
    %323 = vector.load %arg8[%c0_364, %c140_365, %c0_366] : memref<1x200x32xf32, #tpu.memory_space<vmem>>, vector<1x9x32xf32>
    %c0_367 = arith.constant 0 : index
    %c141_368 = arith.constant 141 : index
    %c0_369 = arith.constant 0 : index
    %324 = vector.load %arg8[%c0_367, %c141_368, %c0_369] : memref<1x200x32xf32, #tpu.memory_space<vmem>>, vector<1x9x32xf32>
    %c0_370 = arith.constant 0 : index
    %c150_371 = arith.constant 150 : index
    %c0_372 = arith.constant 0 : index
    %325 = vector.load %arg8[%c0_370, %c150_371, %c0_372] : memref<1x200x32xf32, #tpu.memory_space<vmem>>, vector<1x9x32xf32>
    %c0_373 = arith.constant 0 : index
    %c151_374 = arith.constant 151 : index
    %c0_375 = arith.constant 0 : index
    %326 = vector.load %arg8[%c0_373, %c151_374, %c0_375] : memref<1x200x32xf32, #tpu.memory_space<vmem>>, vector<1x9x32xf32>
    %c0_376 = arith.constant 0 : index
    %c160_377 = arith.constant 160 : index
    %c0_378 = arith.constant 0 : index
    %327 = vector.load %arg8[%c0_376, %c160_377, %c0_378] : memref<1x200x32xf32, #tpu.memory_space<vmem>>, vector<1x9x32xf32>
    %c0_379 = arith.constant 0 : index
    %c161 = arith.constant 161 : index
    %c0_380 = arith.constant 0 : index
    %328 = vector.load %arg8[%c0_379, %c161, %c0_380] : memref<1x200x32xf32, #tpu.memory_space<vmem>>, vector<1x9x32xf32>
    %c0_381 = arith.constant 0 : index
    %c170_382 = arith.constant 170 : index
    %c0_383 = arith.constant 0 : index
    %329 = vector.load %arg8[%c0_381, %c170_382, %c0_383] : memref<1x200x32xf32, #tpu.memory_space<vmem>>, vector<1x9x32xf32>
    %c0_384 = arith.constant 0 : index
    %c171 = arith.constant 171 : index
    %c0_385 = arith.constant 0 : index
    %330 = vector.load %arg8[%c0_384, %c171, %c0_385] : memref<1x200x32xf32, #tpu.memory_space<vmem>>, vector<1x9x32xf32>
    %331 = tpu.concatenate %323, %324, %325, %326, %327, %328, %329, %330 in 2 : vector<1x9x32xf32>, vector<1x9x32xf32>, vector<1x9x32xf32>, vector<1x9x32xf32>, vector<1x9x32xf32>, vector<1x9x32xf32>, vector<1x9x32xf32>, vector<1x9x32xf32> -> vector<1x9x256xf32>
    %c0_386 = arith.constant 0 : index
    %c63 = arith.constant 63 : index
    %c0_387 = arith.constant 0 : index
    %332 = vector.load %arg9[%c0_386, %c63, %c0_387] : memref<1x81x256xf32, #tpu.memory_space<vmem>>, vector<1x9x256xf32>
    tpu.vector_store %arg9[%c0_386, %c63, %c0_387], %331 {strides = array<i32>} : memref<1x81x256xf32, #tpu.memory_space<vmem>>, vector<1x9x256xf32>,
    %c0_388 = arith.constant 0 : index
    %c160_389 = arith.constant 160 : index
    %c0_390 = arith.constant 0 : index
    %333 = vector.load %arg8[%c0_388, %c160_389, %c0_390] : memref<1x200x32xf32, #tpu.memory_space<vmem>>, vector<1x9x32xf32>
    %c0_391 = arith.constant 0 : index
    %c161_392 = arith.constant 161 : index
    %c0_393 = arith.constant 0 : index
    %334 = vector.load %arg8[%c0_391, %c161_392, %c0_393] : memref<1x200x32xf32, #tpu.memory_space<vmem>>, vector<1x9x32xf32>
    %c0_394 = arith.constant 0 : index
    %c170_395 = arith.constant 170 : index
    %c0_396 = arith.constant 0 : index
    %335 = vector.load %arg8[%c0_394, %c170_395, %c0_396] : memref<1x200x32xf32, #tpu.memory_space<vmem>>, vector<1x9x32xf32>
    %c0_397 = arith.constant 0 : index
    %c171_398 = arith.constant 171 : index
    %c0_399 = arith.constant 0 : index
    %336 = vector.load %arg8[%c0_397, %c171_398, %c0_399] : memref<1x200x32xf32, #tpu.memory_space<vmem>>, vector<1x9x32xf32>
    %c0_400 = arith.constant 0 : index
    %c180_401 = arith.constant 180 : index
    %c0_402 = arith.constant 0 : index
    %337 = vector.load %arg8[%c0_400, %c180_401, %c0_402] : memref<1x200x32xf32, #tpu.memory_space<vmem>>, vector<1x9x32xf32>
    %c0_403 = arith.constant 0 : index
    %c181 = arith.constant 181 : index
    %c0_404 = arith.constant 0 : index
    %338 = vector.load %arg8[%c0_403, %c181, %c0_404] : memref<1x200x32xf32, #tpu.memory_space<vmem>>, vector<1x9x32xf32>
    %c0_405 = arith.constant 0 : index
    %c190_406 = arith.constant 190 : index
    %c0_407 = arith.constant 0 : index
    %339 = vector.load %arg8[%c0_405, %c190_406, %c0_407] : memref<1x200x32xf32, #tpu.memory_space<vmem>>, vector<1x9x32xf32>
    %c0_408 = arith.constant 0 : index
    %c191 = arith.constant 191 : index
    %c0_409 = arith.constant 0 : index
    %340 = vector.load %arg8[%c0_408, %c191, %c0_409] : memref<1x200x32xf32, #tpu.memory_space<vmem>>, vector<1x9x32xf32>
    %341 = tpu.concatenate %333, %334, %335, %336, %337, %338, %339, %340 in 2 : vector<1x9x32xf32>, vector<1x9x32xf32>, vector<1x9x32xf32>, vector<1x9x32xf32>, vector<1x9x32xf32>, vector<1x9x32xf32>, vector<1x9x32xf32>, vector<1x9x32xf32> -> vector<1x9x256xf32>
    %c0_410 = arith.constant 0 : index
    %c72 = arith.constant 72 : index
    %c0_411 = arith.constant 0 : index
    %342 = vector.load %arg9[%c0_410, %c72, %c0_411] : memref<1x81x256xf32, #tpu.memory_space<vmem>>, vector<1x9x256xf32>
    tpu.vector_store %arg9[%c0_410, %c72, %c0_411], %341 {strides = array<i32>} : memref<1x81x256xf32, #tpu.memory_space<vmem>>, vector<1x9x256xf32>,
    %c0_412 = arith.constant 0 : index
    %c0_413 = arith.constant 0 : index
    %343 = vector.load %arg4[%c0_412, %c0_413] : memref<256x32xbf16, #tpu.memory_space<vmem>>, vector<256x32xbf16>
    %c0_414 = arith.constant 0 : index
    %c0_415 = arith.constant 0 : index
    %344 = vector.load %arg5[%c0_414, %c0_415] : memref<1x32xf32, #tpu.memory_space<vmem>>, vector<1x32xf32>
    %c0_416 = arith.constant 0 : index
    %c0_417 = arith.constant 0 : index
    %c0_418 = arith.constant 0 : index
    %345 = vector.load %arg9[%c0_416, %c0_417, %c0_418] : memref<1x81x256xf32, #tpu.memory_space<vmem>>, vector<1x81x256xf32>
    %346 = vector.shape_cast %345 : vector<1x81x256xf32> to vector<81x256xf32>
    %347 = arith.truncf %346 : vector<81x256xf32> to vector<81x256xbf16>
    %cst_419 = arith.constant dense<0.000000e+00> : vector<81x32xf32>
    %348 = tpu.matmul %347, %343, %cst_419 {dimension_numbers = #tpu.dot_dimension_numbers<[1], [0], [0], [1], [0, 0, 1, 1], [], []>} : vector<81x256xbf16>, vector<256x32xbf16>, vector<81x32xf32> -> vector<81x32xf32>
    %349 = vector.broadcast %344 : vector<1x32xf32> to vector<81x32xf32>
    %350 = arith.addf %348, %349 : vector<81x32xf32>
    %cst_420 = arith.constant 0.000000e+00 : f32
    %351 = vector.broadcast %cst_420 : f32 to vector<81x32xf32>
    %352 = arith.maximumf %350, %351 : vector<81x32xf32>
    %353 = arith.truncf %352 : vector<81x32xf32> to vector<81x32xbf16>
    %c0_421 = arith.constant 0 : index
    %c0_422 = arith.constant 0 : index
    %c0_423 = arith.constant 0 : index
    %354 = vector.load %arg6[%c0_421, %c0_422, %c0_423] : memref<1x81x32xbf16, #tpu.memory_space<vmem>>, vector<1x81x32xbf16>
    %355 = vector.shape_cast %354 : vector<1x81x32xbf16> to vector<81x32xbf16>
    %356 = vector.shape_cast %353 : vector<81x32xbf16> to vector<1x81x32xbf16>
    tpu.vector_store %arg6[%c0_421, %c0_422, %c0_423], %356 {strides = array<i32>} : memref<1x81x32xbf16, #tpu.memory_space<vmem>>, vector<1x81x32xbf16>,
    return
  }
  func.func @transform_0(%arg0: i32) -> (i32, i32, i32, i32) {
    %c0_i32 = arith.constant 0 : i32
    %c0_i32_0 = arith.constant 0 : i32
    %c0_i32_1 = arith.constant 0 : i32
    %c0_i32_2 = arith.constant 0 : i32
    return %arg0, %c0_i32, %c0_i32_0, %c0_i32_1 : i32, i32, i32, i32
  }
  func.func @transform_1(%arg0: i32) -> (i32, i32) {
    %c0_i32 = arith.constant 0 : i32
    %c0_i32_0 = arith.constant 0 : i32
    %c0_i32_1 = arith.constant 0 : i32
    return %c0_i32, %c0_i32_0 : i32, i32
  }
  func.func @transform_2(%arg0: i32) -> (i32, i32) {
    %c0_i32 = arith.constant 0 : i32
    %c0_i32_0 = arith.constant 0 : i32
    %c0_i32_1 = arith.constant 0 : i32
    return %c0_i32, %c0_i32_0 : i32, i32
  }
  func.func @transform_3(%arg0: i32) -> (i32, i32) {
    %c0_i32 = arith.constant 0 : i32
    %c0_i32_0 = arith.constant 0 : i32
    %c0_i32_1 = arith.constant 0 : i32
    return %c0_i32, %c0_i32_0 : i32, i32
  }
  func.func @transform_4(%arg0: i32) -> (i32, i32) {
    %c0_i32 = arith.constant 0 : i32
    %c0_i32_0 = arith.constant 0 : i32
    %c0_i32_1 = arith.constant 0 : i32
    return %c0_i32, %c0_i32_0 : i32, i32
  }
  func.func @transform_5(%arg0: i32) -> (i32, i32, i32) {
    %c0_i32 = arith.constant 0 : i32
    %c0_i32_0 = arith.constant 0 : i32
    %c0_i32_1 = arith.constant 0 : i32
    return %arg0, %c0_i32, %c0_i32_0 : i32, i32, i32
  }
}

module attributes {stable_mosaic.version = 11 : i64} {
  func.func @_fc_fused_kernel(%arg0: i32, %arg1: memref<2x2592xbf16, #tpu.memory_space<vmem>>, %arg2: memref<2592x256xbf16, #tpu.memory_space<vmem>>, %arg3: memref<1x256xf32, #tpu.memory_space<vmem>>, %arg4: memref<256x4xbf16, #tpu.memory_space<vmem>>, %arg5: memref<1x4xf32, #tpu.memory_space<vmem>>, %arg6: memref<2x4xf32, #tpu.memory_space<vmem>>) attributes {dimension_semantics = [#tpu.dimension_semantics<parallel>], iteration_bounds = array<i64: 1>, scalar_prefetch = 0 : i64, scratch_operands = 0 : i64, tpu.core_type = #tpu.core_type<tc>, window_params = [{transform_indices = @transform_0, window_bounds = array<i64: 2, 2592>}, {pipeline_mode = #tpu.pipeline_mode<synchronous>, transform_indices = @transform_1, window_bounds = array<i64: 2592, 256>}, {pipeline_mode = #tpu.pipeline_mode<synchronous>, transform_indices = @transform_2, window_bounds = array<i64: 1, 256>}, {pipeline_mode = #tpu.pipeline_mode<synchronous>, transform_indices = @transform_3, window_bounds = array<i64: 256, 4>}, {pipeline_mode = #tpu.pipeline_mode<synchronous>, transform_indices = @transform_4, window_bounds = array<i64: 1, 4>}, {transform_indices = @transform_5, window_bounds = array<i64: 2, 4>}]} {
    %c0 = arith.constant 0 : index
    %c0_0 = arith.constant 0 : index
    %0 = vector.load %arg1[%c0, %c0_0] : memref<2x2592xbf16, #tpu.memory_space<vmem>>, vector<2x2592xbf16>
    %c0_1 = arith.constant 0 : index
    %c0_2 = arith.constant 0 : index
    %1 = vector.load %arg2[%c0_1, %c0_2] : memref<2592x256xbf16, #tpu.memory_space<vmem>>, vector<2592x256xbf16>
    %cst = arith.constant dense<0.000000e+00> : vector<2x256xf32>
    %2 = tpu.matmul %0, %1, %cst {dimension_numbers = #tpu.dot_dimension_numbers<[1], [0], [0], [1], [0, 0, 1, 1], [], []>} : vector<2x2592xbf16>, vector<2592x256xbf16>, vector<2x256xf32> -> vector<2x256xf32>
    %c0_3 = arith.constant 0 : index
    %c0_4 = arith.constant 0 : index
    %3 = vector.load %arg3[%c0_3, %c0_4] : memref<1x256xf32, #tpu.memory_space<vmem>>, vector<1x256xf32>
    %4 = vector.broadcast %3 : vector<1x256xf32> to vector<2x256xf32>
    %5 = arith.addf %2, %4 : vector<2x256xf32>
    %cst_5 = arith.constant 0.000000e+00 : f32
    %6 = vector.broadcast %cst_5 : f32 to vector<2x256xf32>
    %7 = arith.maximumf %5, %6 : vector<2x256xf32>
    %8 = arith.truncf %7 : vector<2x256xf32> to vector<2x256xbf16>
    %c0_6 = arith.constant 0 : index
    %c0_7 = arith.constant 0 : index
    %9 = vector.load %arg4[%c0_6, %c0_7] : memref<256x4xbf16, #tpu.memory_space<vmem>>, vector<256x4xbf16>
    %cst_8 = arith.constant dense<0.000000e+00> : vector<2x4xf32>
    %10 = tpu.matmul %8, %9, %cst_8 {dimension_numbers = #tpu.dot_dimension_numbers<[1], [0], [0], [1], [0, 0, 1, 1], [], []>} : vector<2x256xbf16>, vector<256x4xbf16>, vector<2x4xf32> -> vector<2x4xf32>
    %c0_9 = arith.constant 0 : index
    %c0_10 = arith.constant 0 : index
    %11 = vector.load %arg5[%c0_9, %c0_10] : memref<1x4xf32, #tpu.memory_space<vmem>>, vector<1x4xf32>
    %12 = vector.broadcast %11 : vector<1x4xf32> to vector<2x4xf32>
    %13 = arith.addf %10, %12 : vector<2x4xf32>
    %c0_11 = arith.constant 0 : index
    %c0_12 = arith.constant 0 : index
    %14 = vector.load %arg6[%c0_11, %c0_12] : memref<2x4xf32, #tpu.memory_space<vmem>>, vector<2x4xf32>
    tpu.vector_store %arg6[%c0_11, %c0_12], %13 {strides = array<i32>} : memref<2x4xf32, #tpu.memory_space<vmem>>, vector<2x4xf32>,
    return
  }
  func.func @transform_0(%arg0: i32) -> (i32, i32) {
    %c0_i32 = arith.constant 0 : i32
    %c0_i32_0 = arith.constant 0 : i32
    return %arg0, %c0_i32 : i32, i32
  }
  func.func @transform_1(%arg0: i32) -> (i32, i32) {
    %c0_i32 = arith.constant 0 : i32
    %c0_i32_0 = arith.constant 0 : i32
    %c0_i32_1 = arith.constant 0 : i32
    return %c0_i32, %c0_i32_0 : i32, i32
  }
  func.func @transform_2(%arg0: i32) -> (i32, i32) {
    %c0_i32 = arith.constant 0 : i32
    %c0_i32_0 = arith.constant 0 : i32
    %c0_i32_1 = arith.constant 0 : i32
    return %c0_i32, %c0_i32_0 : i32, i32
  }
  func.func @transform_3(%arg0: i32) -> (i32, i32) {
    %c0_i32 = arith.constant 0 : i32
    %c0_i32_0 = arith.constant 0 : i32
    %c0_i32_1 = arith.constant 0 : i32
    return %c0_i32, %c0_i32_0 : i32, i32
  }
  func.func @transform_4(%arg0: i32) -> (i32, i32) {
    %c0_i32 = arith.constant 0 : i32
    %c0_i32_0 = arith.constant 0 : i32
    %c0_i32_1 = arith.constant 0 : i32
    return %c0_i32, %c0_i32_0 : i32, i32
  }
  func.func @transform_5(%arg0: i32) -> (i32, i32) {
    %c0_i32 = arith.constant 0 : i32
    %c0_i32_0 = arith.constant 0 : i32
    return %arg0, %c0_i32 : i32, i32
  }
}

</mosaic_0001>

<llo_original>
// kernel: cnn_forward.2
$region0: #{cnn_forward.2}
  #allocation0 [shape = 'u32[]', space=smem, size = 0x4, offset = 0x4, fixed_abs, tag = 'smem constant byte address 0x4 - core index']
  #allocation1 [shape = 'u32[144,128]{1,0:T(1,128)}', space=vmem, size = 0x12000, scoped, tag = 'internal scratch']
  #allocation2 [shape = 'f32[1,200,384]{2,1,0:T(8,128)}', space=vmem, size = 0x4b000, scoped, tag = 'scratch operand']
  #allocation3 [shape = 'f32[1,200,32]{2,1,0:T(8,128)}', space=vmem, size = 0x19000, scoped, tag = 'scratch operand']
  #allocation4 [shape = 'f32[1,81,256]{2,1,0:T(8,128)}', space=vmem, size = 0x16000, scoped, tag = 'scratch operand']
  %s0 = inlined_call_operand.vmem [shape: bf16[2,21,11,128], index: 0, kind: input, shape index: {}]
  %s1 = inlined_call_operand.vmem [shape: bf16[384,32], index: 1, kind: input, shape index: {}]
  %s2 = inlined_call_operand.vmem [shape: f32[1,32], index: 2, kind: input, shape index: {}]
  %s3 = inlined_call_operand.vmem [shape: bf16[256,32], index: 3, kind: input, shape index: {}]
  %s4 = inlined_call_operand.vmem [shape: f32[1,32], index: 4, kind: input, shape index: {}]
  %s5 = inlined_call_operand.vmem [shape: bf16[2,81,32], index: 5, kind: output, shape index: {}]
  %s6 = sld [smem:[#allocation0]]
  $region53: #{cnn_forward.2} parent=0
    _
  %s8 = ssub.s32 1, %s6
  %s9 = scalar_select 0, %s8, %s6
  loop: start=0, step=1, limit=4
  $region2: #{cnn_forward.2} parent=0 // loop_pre_header
    _
  $region3: #{cnn_forward.2} parent=0 // loop_header
    %s11 = sphi 0, %s15
    %p12 = scmp.ge.s32.totalorder %s11, 4
    %s21 = sphi 0, %s23
    %s24 = sphi 0, %s21
    %s25 = sphi 0, %s24
    %s41 = sphi 0, %s25
    %s45 = sphi 0, %s45
    %s47 = sphi 0, %s45
    %s48 = sphi 0, %s47
    %s62 = sphi 0, %s48
    %s66 = sphi 0, %s66
    %s68 = sphi 0, %s66
    %s69 = sphi 0, %s68
    %s83 = sphi 0, %s69
    %s87 = sphi 0, %s87
    %s89 = sphi 0, %s87
    %s90 = sphi 0, %s89
    %s104 = sphi 0, %s90
    %s108 = sphi 0, %s108
    %s110 = sphi 0, %s108
    %s111 = sphi 0, %s110
    %s125 = sphi 0, %s111
    %s131 = sphi 0, %s133
    %s134 = sphi 0, %s131
    %s135 = sphi 0, %s134
    %s151 = sphi 0, %s135
  $region4: #{cnn_forward.2} parent=0 // loop_header_branch
    %14 = sbr.rel (%p12) target = $region8
  $region5: #{cnn_forward.2} parent=0 // loop_body
    %s16 = ssub.s32 %s11, 1
    %s17 = ssub.s32 %s11, 2
    %s18 = sadd.s32 %s11, 1
    %s19 = ssub.s32 %s11, %s18
    %p20 = scmp.eq.s32.totalorder %s19, 0
    %s22 = sadd.s32 %s21, 1
    %s23 = scalar_select %p20, %s21, %s22
    %p26 = pneg %p20
    %p27 = scmp.eq.s32.totalorder %s11, 1
    %p28 = por %p26, %p27
    %p29 = scmp.ne.s32.totalorder %s21, %s24
    %p30 = scmp.eq.s32.totalorder %s11, 0
    %p31 = por %p29, %p30
    %p32 = scmp.ne.s32.totalorder %s21, %s24
    %p33 = scmp.eq.s32.totalorder %s16, 1
    %p34 = por %p32, %p33
    %p35 = scmp.ne.s32.totalorder %s24, %s25
    %p36 = scmp.eq.s32.totalorder %s16, 0
    %p37 = por %p35, %p36
    %p38 = scmp.ne.s32.totalorder %s24, %s25
    %p39 = scmp.eq.s32.totalorder %s17, 1
    %p40 = por %p38, %p39
    %p42 = scmp.ne.s32.totalorder %s25, %s41
    %p43 = scmp.eq.s32.totalorder %s17, 0
    %p44 = por %p42, %p43
    %s46 = sadd.s32 %s45, 1
    %p49 = scmp.eq.s32.totalorder %s11, 1
    %p50 = scmp.ne.s32.totalorder %s45, %s47
    %p51 = scmp.eq.s32.totalorder %s11, 0
    %p52 = por %p50, %p51
    %p53 = scmp.ne.s32.totalorder %s45, %s47
    %p54 = scmp.eq.s32.totalorder %s16, 1
    %p55 = por %p53, %p54
    %p56 = scmp.ne.s32.totalorder %s47, %s48
    %p57 = scmp.eq.s32.totalorder %s16, 0
    %p58 = por %p56, %p57
    %p59 = scmp.ne.s32.totalorder %s47, %s48
    %p60 = scmp.eq.s32.totalorder %s17, 1
    %p61 = por %p59, %p60
    %p63 = scmp.ne.s32.totalorder %s48, %s62
    %p64 = scmp.eq.s32.totalorder %s17, 0
    %p65 = por %p63, %p64
    %s67 = sadd.s32 %s66, 1
    %p70 = scmp.eq.s32.totalorder %s11, 1
    %p71 = scmp.ne.s32.totalorder %s66, %s68
    %p72 = scmp.eq.s32.totalorder %s11, 0
    %p73 = por %p71, %p72
    %p74 = scmp.ne.s32.totalorder %s66, %s68
    %p75 = scmp.eq.s32.totalorder %s16, 1
    %p76 = por %p74, %p75
    %p77 = scmp.ne.s32.totalorder %s68, %s69
    %p78 = scmp.eq.s32.totalorder %s16, 0
    %p79 = por %p77, %p78
    %p80 = scmp.ne.s32.totalorder %s68, %s69
    %p81 = scmp.eq.s32.totalorder %s17, 1
    %p82 = por %p80, %p81
    %p84 = scmp.ne.s32.totalorder %s69, %s83
    %p85 = scmp.eq.s32.totalorder %s17, 0
    %p86 = por %p84, %p85
    %s88 = sadd.s32 %s87, 1
    %p91 = scmp.eq.s32.totalorder %s11, 1
    %p92 = scmp.ne.s32.totalorder %s87, %s89
    %p93 = scmp.eq.s32.totalorder %s11, 0
    %p94 = por %p92, %p93
    %p95 = scmp.ne.s32.totalorder %s87, %s89
    %p96 = scmp.eq.s32.totalorder %s16, 1
    %p97 = por %p95, %p96
    %p98 = scmp.ne.s32.totalorder %s89, %s90
    %p99 = scmp.eq.s32.totalorder %s16, 0
    %p100 = por %p98, %p99
    %p101 = scmp.ne.s32.totalorder %s89, %s90
    %p102 = scmp.eq.s32.totalorder %s17, 1
    %p103 = por %p101, %p102
    %p105 = scmp.ne.s32.totalorder %s90, %s104
    %p106 = scmp.eq.s32.totalorder %s17, 0
    %p107 = por %p105, %p106
    %s109 = sadd.s32 %s108, 1
    %p112 = scmp.eq.s32.totalorder %s11, 1
    %p113 = scmp.ne.s32.totalorder %s108, %s110
    %p114 = scmp.eq.s32.totalorder %s11, 0
    %p115 = por %p113, %p114
    %p116 = scmp.ne.s32.totalorder %s108, %s110
    %p117 = scmp.eq.s32.totalorder %s16, 1
    %p118 = por %p116, %p117
    %p119 = scmp.ne.s32.totalorder %s110, %s111
    %p120 = scmp.eq.s32.totalorder %s16, 0
    %p121 = por %p119, %p120
    %p122 = scmp.ne.s32.totalorder %s110, %s111
    %p123 = scmp.eq.s32.totalorder %s17, 1
    %p124 = por %p122, %p123
    %p126 = scmp.ne.s32.totalorder %s111, %s125
    %p127 = scmp.eq.s32.totalorder %s17, 0
    %p128 = por %p126, %p127
    %s129 = ssub.s32 %s11, %s18
    %p130 = scmp.eq.s32.totalorder %s129, 0
    %s132 = sadd.s32 %s131, 1
    %s133 = scalar_select %p130, %s131, %s132
    %p136 = pneg %p130
    %p137 = scmp.eq.s32.totalorder %s11, 1
    %p138 = por %p136, %p137
    %p139 = scmp.ne.s32.totalorder %s131, %s134
    %p140 = scmp.eq.s32.totalorder %s11, 0
    %p141 = por %p139, %p140
    %p142 = scmp.ne.s32.totalorder %s131, %s134
    %p143 = scmp.eq.s32.totalorder %s16, 1
    %p144 = por %p142, %p143
    %p145 = scmp.ne.s32.totalorder %s134, %s135
    %p146 = scmp.eq.s32.totalorder %s16, 0
    %p147 = por %p145, %p146
    %p148 = scmp.ne.s32.totalorder %s134, %s135
    %p149 = scmp.eq.s32.totalorder %s17, 1
    %p150 = por %p148, %p149
    %p152 = scmp.ne.s32.totalorder %s135, %s151
    %p153 = scmp.eq.s32.totalorder %s17, 0
    %p154 = por %p152, %p153
    %p155 = scmp.le.s32.totalorder 1, %s11
    %p156 = scmp.lt.s32.totalorder %s11, 3
    %p157 = pnand %p155, %p156
    %p158 = pneg %p157
    // Predicated region
    $region9: #{cnn_forward.2} parent=5 // pred_check
      _
    $region10: #{cnn_forward.2} parent=5 // pred_check_branch
      %160 = sbr.rel (%p157) target = $region12
    $region11: #{cnn_forward.2} parent=5 // pred_region
      %s161 = ssub.s32 %s11, 1
      // Predicated region
      $region13: #{cnn_forward.2} parent=11 // pred_check
        %p162 = pneg %p58
      $region14: #{cnn_forward.2} parent=11 // pred_check_branch
        %164 = sbr.rel (%p162) target = $region16
      $region15: #{cnn_forward.2} parent=11 // pred_region
        _
      $region16: #{cnn_forward.2} parent=11 // pred_fallthru
        _
      // Predicated region
      $region17: #{cnn_forward.2} parent=11 // pred_check
        %p165 = pneg %p79
      $region18: #{cnn_forward.2} parent=11 // pred_check_branch
        %167 = sbr.rel (%p165) target = $region20
      $region19: #{cnn_forward.2} parent=11 // pred_region
        _
      $region20: #{cnn_forward.2} parent=11 // pred_fallthru
        _
      // Predicated region
      $region21: #{cnn_forward.2} parent=11 // pred_check
        %p168 = pneg %p100
      $region22: #{cnn_forward.2} parent=11 // pred_check_branch
        %170 = sbr.rel (%p168) target = $region24
      $region23: #{cnn_forward.2} parent=11 // pred_region
        _
      $region24: #{cnn_forward.2} parent=11 // pred_fallthru
        _
      // Predicated region
      $region25: #{cnn_forward.2} parent=11 // pred_check
        %p171 = pneg %p121
      $region26: #{cnn_forward.2} parent=11 // pred_check_branch
        %173 = sbr.rel (%p171) target = $region28
      $region27: #{cnn_forward.2} parent=11 // pred_region
        _
      $region28: #{cnn_forward.2} parent=11 // pred_fallthru
        _
    $region12: #{cnn_forward.2} parent=5 // pred_fallthru
      _
    %p174 = scmp.lt.s32.totalorder %s11, 2
    // Predicated region
    $region29: #{cnn_forward.2} parent=5 // pred_check
      %p175 = pneg %p174
    $region30: #{cnn_forward.2} parent=5 // pred_check_branch
      %177 = sbr.rel (%p175) target = $region32
    $region31: #{cnn_forward.2} parent=5 // pred_region
      // Predicated region
      $region33: #{cnn_forward.2} parent=31 // pred_check
        %p178 = pneg %p31
      $region34: #{cnn_forward.2} parent=31 // pred_check_branch
        %180 = sbr.rel (%p178) target = $region36
      $region35: #{cnn_forward.2} parent=31 // pred_region
        %p181 = scmp.lt.s32.totalorder %s11, 1
        %s182 = scalar_select %p181, %s11, 1
        %s183 = smul.addr %s182, 42
        %s184 = smul.addr %s183, 4
        %s185 = scalar_lea.vmem %s0, %s184
      $region36: #{cnn_forward.2} parent=31 // pred_fallthru
        _
    $region32: #{cnn_forward.2} parent=5 // pred_fallthru
      _
    %p186 = scmp.le.s32.totalorder 1, %s11
    %p187 = scmp.lt.s32.totalorder %s11, 3
    %p188 = pnand %p186, %p187
    %p189 = pneg %p188
    // Predicated region
    $region37: #{cnn_forward.2} parent=5 // pred_check
      _
    $region38: #{cnn_forward.2} parent=5 // pred_check_branch
      %191 = sbr.rel (%p188) target = $region40
    $region39: #{cnn_forward.2} parent=5 // pred_region
      %s192 = ssub.s32 %s11, 1
      %p193 = scmp.lt.s32.totalorder %s16, 1
      %s194 = scalar_select %p193, %s16, 1
      %s195 = smul.addr %s194, 42
      %s196 = smul.addr %s195, 4
      %s197 = scalar_lea.vmem %s0, %s196
      %p198 = pneg %p37
      %p199 = pneg %p34
      %p200 = pneg %p58
      %p201 = pneg %p55
      %p202 = pneg %p79
      %p203 = pneg %p76
      %p204 = pneg %p100
      %p205 = pneg %p97
      %p206 = pneg %p121
      %p207 = pneg %p118
      %p208 = pneg %p147
      %p209 = pneg %p144
      %p210 = scmp.lt.s32.totalorder %s16, 1
      %s211 = scalar_select %p210, %s16, 1
      %s212 = smul.addr %s211, 11
      %s213 = smul.addr %s212, 4
      %s214 = scalar_lea.vmem %s5, %s213
      %p215 = scmp.lt.s32.totalorder %s16, 1
      %s216 = scalar_select %p215, %s16, 1
      %s217 = smul.addr %s216, 42
      %s218 = smul.addr %s217, 4
      %s219 = scalar_lea.vmem %s0, %s218
      %p220 = scmp.lt.s32.totalorder %s16, 1
      %s221 = scalar_select %p220, %s16, 1
      %s222 = smul.addr %s221, 11
      %s223 = smul.addr %s222, 4
      %s224 = scalar_lea.vmem %s5, %s223
      %v226 = vld [vmem:[%s219] sm:$0xf]
      %v227 = vld [vmem:[%s219 + $0x4] sm:$0x3]
      %v228 = vunpack.c.l.bf16 %v226
      %v229 = vunpack.c.l.bf16 %v227
      %s230 = scalar_lea.vmem %s219, 8
      %v231 = vld [vmem:[%s230] sm:$0xf]
      %v232 = vld [vmem:[%s230 + $0x4] sm:$0x3]
      %v233 = vunpack.c.l.bf16 %v231
      %v234 = vunpack.c.l.bf16 %v232
      %vm237 = vcmask 1046528
      %v238 = vrot.slane %v228, 1
      %v239 = vrot.slane %v229, 1
      %v240 = vsel %vm237, %v238, %v239
      %245 = vrot.lane.b32.xlu0 %v233, 64
      %v246 = vpop.permute.xlu0 %245
      %247 = vrot.lane.b32.xlu0 %v234, 64
      %v248 = vpop.permute.xlu0 %247
      %v251 = vrot.slane %v233, 1
      %v252 = vrot.slane %v234, 1
      %v253 = vsel %vm237, %v251, %v252
      %254 = vrot.lane.b32.xlu0 %v253, 64
      %v255 = vpop.permute.xlu0 %254
      %256 = vrot.lane.b32.xlu0 %v252, 64
      %v257 = vpop.permute.xlu0 %256
      %vm260 = vcmask 523264
      %v261 = vsel %vm260, %v240, %v246
      %v262 = vsel %vm260, %v239, %v248
      %v263 = vsel %vm260, %v246, %v255
      %v264 = vsel %vm260, %v248, %v257
      %265 = vst [vmem:[#allocation2] sm:$0xff] %v228
      %266 = vst [vmem:[#allocation2 + $0x8] sm:$0xff] %v261
      %267 = vst [vmem:[#allocation2 + $0x10] sm:$0xff] %v263
      %268 = vst [vmem:[#allocation2 + $0x18] sm:$0x3] %v229
      %269 = vst [vmem:[#allocation2 + $0x20] sm:$0x3] %v262
      %270 = vst [vmem:[#allocation2 + $0x28] sm:$0x3] %v264
      %v271 = vld [vmem:[%s230] sm:$0xf]
      %v272 = vld [vmem:[%s230 + $0x4] sm:$0x3]
      %v273 = vunpack.c.l.bf16 %v271
      %v274 = vunpack.c.l.bf16 %v272
      %s275 = scalar_lea.vmem %s219, 16
      %v276 = vld [vmem:[%s275] sm:$0xf]
      %v277 = vld [vmem:[%s275 + $0x4] sm:$0x3]
      %v278 = vunpack.c.l.bf16 %v276
      %v279 = vunpack.c.l.bf16 %v277
      %v282 = vrot.slane %v273, 1
      %v283 = vrot.slane %v274, 1
      %v284 = vsel %vm237, %v282, %v283
      %289 = vrot.lane.b32.xlu0 %v278, 64
      %v290 = vpop.permute.xlu0 %289
      %291 = vrot.lane.b32.xlu0 %v279, 64
      %v292 = vpop.permute.xlu0 %291
      %v295 = vrot.slane %v278, 1
      %v296 = vrot.slane %v279, 1
      %v297 = vsel %vm237, %v295, %v296
      %298 = vrot.lane.b32.xlu0 %v297, 64
      %v299 = vpop.permute.xlu0 %298
      %300 = vrot.lane.b32.xlu0 %v296, 64
      %v301 = vpop.permute.xlu0 %300
      %v304 = vsel %vm260, %v284, %v290
      %v305 = vsel %vm260, %v283, %v292
      %v306 = vsel %vm260, %v290, %v299
      %v307 = vsel %vm260, %v292, %v301
      %vm312 = vcmask 1041408
      %v313 = vrot.slane %v273, 6
      %v314 = vrot.slane %v304, 6
      %v315 = vrot.slane %v306, 6
      %v316 = vrot.slane %v274, 6
      %v317 = vsel %vm312, %v313, %v316
      %v318 = vrot.slane %v305, 6
      %v319 = vsel %vm312, %v314, %v318
      %v320 = vrot.slane %v307, 6
      %v321 = vsel %vm312, %v315, %v320
      %328 = vst [vmem:[#allocation2 + $0x18] sm:$0xfc] %v313
      %329 = vst [vmem:[#allocation2 + $0x20] sm:$0xfc] %v314
      %330 = vst [vmem:[#allocation2 + $0x28] sm:$0xfc] %v315
      %331 = vst [vmem:[#allocation2 + $0x30] sm:$0xf] %v317
      %332 = vst [vmem:[#allocation2 + $0x38] sm:$0xf] %v319
      %333 = vst [vmem:[#allocation2 + $0x40] sm:$0xf] %v321
      %v334 = vld [vmem:[%s275] sm:$0xf]
      %v335 = vld [vmem:[%s275 + $0x4] sm:$0x3]
      %v336 = vunpack.c.l.bf16 %v334
      %v337 = vunpack.c.l.bf16 %v335
      %s338 = scalar_lea.vmem %s219, 24
      %v339 = vld [vmem:[%s338] sm:$0xf]
      %v340 = vld [vmem:[%s338 + $0x4] sm:$0x3]
      %v341 = vunpack.c.l.bf16 %v339
      %v342 = vunpack.c.l.bf16 %v340
      %v345 = vrot.slane %v336, 1
      %v346 = vrot.slane %v337, 1
      %v347 = vsel %vm237, %v345, %v346
      %352 = vrot.lane.b32.xlu0 %v341, 64
      %v353 = vpop.permute.xlu0 %352
      %354 = vrot.lane.b32.xlu0 %v342, 64
      %v355 = vpop.permute.xlu0 %354
      %v358 = vrot.slane %v341, 1
      %v359 = vrot.slane %v342, 1
      %v360 = vsel %vm237, %v358, %v359
      %361 = vrot.lane.b32.xlu0 %v360, 64
      %v362 = vpop.permute.xlu0 %361
      %363 = vrot.lane.b32.xlu0 %v359, 64
      %v364 = vpop.permute.xlu0 %363
      %v367 = vsel %vm260, %v347, %v353
      %v368 = vsel %vm260, %v346, %v355
      %v369 = vsel %vm260, %v353, %v362
      %v370 = vsel %vm260, %v355, %v364
      %vm375 = vcmask 1043456
      %v376 = vrot.slane %v336, 4
      %v377 = vrot.slane %v367, 4
      %v378 = vrot.slane %v369, 4
      %v379 = vrot.slane %v337, 4
      %v380 = vsel %vm375, %v376, %v379
      %v381 = vrot.slane %v368, 4
      %v382 = vsel %vm375, %v377, %v381
      %v383 = vrot.slane %v370, 4
      %v384 = vsel %vm375, %v378, %v383
      %391 = vst [vmem:[#allocation2 + $0x30] sm:$0xf0] %v376
      %392 = vst [vmem:[#allocation2 + $0x38] sm:$0xf0] %v377
      %393 = vst [vmem:[#allocation2 + $0x40] sm:$0xf0] %v378
      %394 = vst [vmem:[#allocation2 + $0x48] sm:$0x3f] %v380
      %395 = vst [vmem:[#allocation2 + $0x50] sm:$0x3f] %v382
      %396 = vst [vmem:[#allocation2 + $0x58] sm:$0x3f] %v384
      %v397 = vld [vmem:[%s338] sm:$0xf]
      %v398 = vld [vmem:[%s338 + $0x4] sm:$0x3]
      %v399 = vunpack.c.l.bf16 %v397
      %v400 = vunpack.c.l.bf16 %v398
      %s401 = scalar_lea.vmem %s219, 32
      %v402 = vld [vmem:[%s401] sm:$0xf]
      %v403 = vld [vmem:[%s401 + $0x4] sm:$0x3]
      %v404 = vunpack.c.l.bf16 %v402
      %v405 = vunpack.c.l.bf16 %v403
      %v408 = vrot.slane %v399, 1
      %v409 = vrot.slane %v400, 1
      %v410 = vsel %vm237, %v408, %v409
      %415 = vrot.lane.b32.xlu0 %v404, 64
      %v416 = vpop.permute.xlu0 %415
      %417 = vrot.lane.b32.xlu0 %v405, 64
      %v418 = vpop.permute.xlu0 %417
      %v421 = vrot.slane %v404, 1
      %v422 = vrot.slane %v405, 1
      %v423 = vsel %vm237, %v421, %v422
      %424 = vrot.lane.b32.xlu0 %v423, 64
      %v425 = vpop.permute.xlu0 %424
      %426 = vrot.lane.b32.xlu0 %v422, 64
      %v427 = vpop.permute.xlu0 %426
      %v430 = vsel %vm260, %v410, %v416
      %v431 = vsel %vm260, %v409, %v418
      %v432 = vsel %vm260, %v416, %v425
      %v433 = vsel %vm260, %v418, %v427
      %vm438 = vcmask 1045504
      %v439 = vrot.slane %v399, 2
      %v440 = vrot.slane %v430, 2
      %v441 = vrot.slane %v432, 2
      %v442 = vrot.slane %v400, 2
      %v443 = vsel %vm438, %v439, %v442
      %v444 = vrot.slane %v431, 2
      %v445 = vsel %vm438, %v440, %v444
      %v446 = vrot.slane %v433, 2
      %v447 = vsel %vm438, %v441, %v446
      %454 = vst [vmem:[#allocation2 + $0x48] sm:$0xc0] %v439
      %455 = vst [vmem:[#allocation2 + $0x50] sm:$0xc0] %v440
      %456 = vst [vmem:[#allocation2 + $0x58] sm:$0xc0] %v441
      %457 = vst [vmem:[#allocation2 + $0x60] sm:$0xff] %v443
      %458 = vst [vmem:[#allocation2 + $0x68] sm:$0xff] %v445
      %459 = vst [vmem:[#allocation2 + $0x70] sm:$0xff] %v447
      %v460 = vld [vmem:[%s401] sm:$0xf]
      %v461 = vld [vmem:[%s401 + $0x4] sm:$0x3]
      %v462 = vunpack.c.l.bf16 %v460
      %v463 = vunpack.c.l.bf16 %v461
      %s464 = scalar_lea.vmem %s219, 40
      %v465 = vld [vmem:[%s464] sm:$0xf]
      %v466 = vld [vmem:[%s464 + $0x4] sm:$0x3]
      %v467 = vunpack.c.l.bf16 %v465
      %v468 = vunpack.c.l.bf16 %v466
      %v471 = vrot.slane %v462, 1
      %v472 = vrot.slane %v463, 1
      %v473 = vsel %vm237, %v471, %v472
      %478 = vrot.lane.b32.xlu0 %v467, 64
      %v479 = vpop.permute.xlu0 %478
      %480 = vrot.lane.b32.xlu0 %v468, 64
      %v481 = vpop.permute.xlu0 %480
      %v484 = vrot.slane %v467, 1
      %v485 = vrot.slane %v468, 1
      %v486 = vsel %vm237, %v484, %v485
      %487 = vrot.lane.b32.xlu0 %v486, 64
      %v488 = vpop.permute.xlu0 %487
      %489 = vrot.lane.b32.xlu0 %v485, 64
      %v490 = vpop.permute.xlu0 %489
      %v493 = vsel %vm260, %v473, %v479
      %v494 = vsel %vm260, %v472, %v481
      %v495 = vsel %vm260, %v479, %v488
      %v496 = vsel %vm260, %v481, %v490
      %497 = vst [vmem:[#allocation2 + $0x78] sm:$0xff] %v462
      %498 = vst [vmem:[#allocation2 + $0x80] sm:$0xff] %v493
      %499 = vst [vmem:[#allocation2 + $0x88] sm:$0xff] %v495
      %500 = vst [vmem:[#allocation2 + $0x90] sm:$0x3] %v463
      %501 = vst [vmem:[#allocation2 + $0x98] sm:$0x3] %v494
      %502 = vst [vmem:[#allocation2 + $0xa0] sm:$0x3] %v496
      %v503 = vld [vmem:[%s464] sm:$0xf]
      %v504 = vld [vmem:[%s464 + $0x4] sm:$0x3]
      %v505 = vunpack.c.l.bf16 %v503
      %v506 = vunpack.c.l.bf16 %v504
      %s507 = scalar_lea.vmem %s219, 48
      %v508 = vld [vmem:[%s507] sm:$0xf]
      %v509 = vld [vmem:[%s507 + $0x4] sm:$0x3]
      %v510 = vunpack.c.l.bf16 %v508
      %v511 = vunpack.c.l.bf16 %v509
      %v514 = vrot.slane %v505, 1
      %v515 = vrot.slane %v506, 1
      %v516 = vsel %vm237, %v514, %v515
      %521 = vrot.lane.b32.xlu0 %v510, 64
      %v522 = vpop.permute.xlu0 %521
      %523 = vrot.lane.b32.xlu0 %v511, 64
      %v524 = vpop.permute.xlu0 %523
      %v527 = vrot.slane %v510, 1
      %v528 = vrot.slane %v511, 1
      %v529 = vsel %vm237, %v527, %v528
      %530 = vrot.lane.b32.xlu0 %v529, 64
      %v531 = vpop.permute.xlu0 %530
      %532 = vrot.lane.b32.xlu0 %v528, 64
      %v533 = vpop.permute.xlu0 %532
      %v536 = vsel %vm260, %v516, %v522
      %v537 = vsel %vm260, %v515, %v524
      %v538 = vsel %vm260, %v522, %v531
      %v539 = vsel %vm260, %v524, %v533
      %v544 = vrot.slane %v505, 6
      %v545 = vrot.slane %v536, 6
      %v546 = vrot.slane %v538, 6
      %v547 = vrot.slane %v506, 6
      %v548 = vsel %vm312, %v544, %v547
      %v549 = vrot.slane %v537, 6
      %v550 = vsel %vm312, %v545, %v549
      %v551 = vrot.slane %v539, 6
      %v552 = vsel %vm312, %v546, %v551
      %559 = vst [vmem:[#allocation2 + $0x90] sm:$0xfc] %v544
      %560 = vst [vmem:[#allocation2 + $0x98] sm:$0xfc] %v545
      %561 = vst [vmem:[#allocation2 + $0xa0] sm:$0xfc] %v546
      %562 = vst [vmem:[#allocation2 + $0xa8] sm:$0xf] %v548
      %563 = vst [vmem:[#allocation2 + $0xb0] sm:$0xf] %v550
      %564 = vst [vmem:[#allocation2 + $0xb8] sm:$0xf] %v552
      %v565 = vld [vmem:[%s507] sm:$0xf]
      %v566 = vld [vmem:[%s507 + $0x4] sm:$0x3]
      %v567 = vunpack.c.l.bf16 %v565
      %v568 = vunpack.c.l.bf16 %v566
      %s569 = scalar_lea.vmem %s219, 56
      %v570 = vld [vmem:[%s569] sm:$0xf]
      %v571 = vld [vmem:[%s569 + $0x4] sm:$0x3]
      %v572 = vunpack.c.l.bf16 %v570
      %v573 = vunpack.c.l.bf16 %v571
      %v576 = vrot.slane %v567, 1
      %v577 = vrot.slane %v568, 1
      %v578 = vsel %vm237, %v576, %v577
      %583 = vrot.lane.b32.xlu0 %v572, 64
      %v584 = vpop.permute.xlu0 %583
      %585 = vrot.lane.b32.xlu0 %v573, 64
      %v586 = vpop.permute.xlu0 %585
      %v589 = vrot.slane %v572, 1
      %v590 = vrot.slane %v573, 1
      %v591 = vsel %vm237, %v589, %v590
      %592 = vrot.lane.b32.xlu0 %v591, 64
      %v593 = vpop.permute.xlu0 %592
      %594 = vrot.lane.b32.xlu0 %v590, 64
      %v595 = vpop.permute.xlu0 %594
      %v598 = vsel %vm260, %v578, %v584
      %v599 = vsel %vm260, %v577, %v586
      %v600 = vsel %vm260, %v584, %v593
      %v601 = vsel %vm260, %v586, %v595
      %v606 = vrot.slane %v567, 4
      %v607 = vrot.slane %v598, 4
      %v608 = vrot.slane %v600, 4
      %v609 = vrot.slane %v568, 4
      %v610 = vsel %vm375, %v606, %v609
      %v611 = vrot.slane %v599, 4
      %v612 = vsel %vm375, %v607, %v611
      %v613 = vrot.slane %v601, 4
      %v614 = vsel %vm375, %v608, %v613
      %621 = vst [vmem:[#allocation2 + $0xa8] sm:$0xf0] %v606
      %622 = vst [vmem:[#allocation2 + $0xb0] sm:$0xf0] %v607
      %623 = vst [vmem:[#allocation2 + $0xb8] sm:$0xf0] %v608
      %624 = vst [vmem:[#allocation2 + $0xc0] sm:$0x3f] %v610
      %625 = vst [vmem:[#allocation2 + $0xc8] sm:$0x3f] %v612
      %626 = vst [vmem:[#allocation2 + $0xd0] sm:$0x3f] %v614
      %v627 = vld [vmem:[%s569] sm:$0xf]
      %v628 = vld [vmem:[%s569 + $0x4] sm:$0x3]
      %v629 = vunpack.c.l.bf16 %v627
      %v630 = vunpack.c.l.bf16 %v628
      %s631 = scalar_lea.vmem %s219, 64
      %v632 = vld [vmem:[%s631] sm:$0xf]
      %v633 = vld [vmem:[%s631 + $0x4] sm:$0x3]
      %v634 = vunpack.c.l.bf16 %v632
      %v635 = vunpack.c.l.bf16 %v633
      %v638 = vrot.slane %v629, 1
      %v639 = vrot.slane %v630, 1
      %v640 = vsel %vm237, %v638, %v639
      %645 = vrot.lane.b32.xlu0 %v634, 64
      %v646 = vpop.permute.xlu0 %645
      %647 = vrot.lane.b32.xlu0 %v635, 64
      %v648 = vpop.permute.xlu0 %647
      %v651 = vrot.slane %v634, 1
      %v652 = vrot.slane %v635, 1
      %v653 = vsel %vm237, %v651, %v652
      %654 = vrot.lane.b32.xlu0 %v653, 64
      %v655 = vpop.permute.xlu0 %654
      %656 = vrot.lane.b32.xlu0 %v652, 64
      %v657 = vpop.permute.xlu0 %656
      %v660 = vsel %vm260, %v640, %v646
      %v661 = vsel %vm260, %v639, %v648
      %v662 = vsel %vm260, %v646, %v655
      %v663 = vsel %vm260, %v648, %v657
      %v668 = vrot.slane %v629, 2
      %v669 = vrot.slane %v660, 2
      %v670 = vrot.slane %v662, 2
      %v671 = vrot.slane %v630, 2
      %v672 = vsel %vm438, %v668, %v671
      %v673 = vrot.slane %v661, 2
      %v674 = vsel %vm438, %v669, %v673
      %v675 = vrot.slane %v663, 2
      %v676 = vsel %vm438, %v670, %v675
      %683 = vst [vmem:[#allocation2 + $0xc0] sm:$0xc0] %v668
      %684 = vst [vmem:[#allocation2 + $0xc8] sm:$0xc0] %v669
      %685 = vst [vmem:[#allocation2 + $0xd0] sm:$0xc0] %v670
      %686 = vst [vmem:[#allocation2 + $0xd8] sm:$0xff] %v672
      %687 = vst [vmem:[#allocation2 + $0xe0] sm:$0xff] %v674
      %688 = vst [vmem:[#allocation2 + $0xe8] sm:$0xff] %v676
      %v689 = vld [vmem:[%s631] sm:$0xf]
      %v690 = vld [vmem:[%s631 + $0x4] sm:$0x3]
      %v691 = vunpack.c.l.bf16 %v689
      %v692 = vunpack.c.l.bf16 %v690
      %s693 = scalar_lea.vmem %s219, 72
      %v694 = vld [vmem:[%s693] sm:$0xf]
      %v695 = vld [vmem:[%s693 + $0x4] sm:$0x3]
      %v696 = vunpack.c.l.bf16 %v694
      %v697 = vunpack.c.l.bf16 %v695
      %v700 = vrot.slane %v691, 1
      %v701 = vrot.slane %v692, 1
      %v702 = vsel %vm237, %v700, %v701
      %707 = vrot.lane.b32.xlu0 %v696, 64
      %v708 = vpop.permute.xlu0 %707
      %709 = vrot.lane.b32.xlu0 %v697, 64
      %v710 = vpop.permute.xlu0 %709
      %v713 = vrot.slane %v696, 1
      %v714 = vrot.slane %v697, 1
      %v715 = vsel %vm237, %v713, %v714
      %716 = vrot.lane.b32.xlu0 %v715, 64
      %v717 = vpop.permute.xlu0 %716
      %718 = vrot.lane.b32.xlu0 %v714, 64
      %v719 = vpop.permute.xlu0 %718
      %v722 = vsel %vm260, %v702, %v708
      %v723 = vsel %vm260, %v701, %v710
      %v724 = vsel %vm260, %v708, %v717
      %v725 = vsel %vm260, %v710, %v719
      %726 = vst [vmem:[#allocation2 + $0xf0] sm:$0xff] %v691
      %727 = vst [vmem:[#allocation2 + $0xf8] sm:$0xff] %v722
      %728 = vst [vmem:[#allocation2 + $0x100] sm:$0xff] %v724
      %729 = vst [vmem:[#allocation2 + $0x108] sm:$0x3] %v692
      %730 = vst [vmem:[#allocation2 + $0x110] sm:$0x3] %v723
      %731 = vst [vmem:[#allocation2 + $0x118] sm:$0x3] %v725
      %v732 = vld [vmem:[%s693] sm:$0xf]
      %v733 = vld [vmem:[%s693 + $0x4] sm:$0x3]
      %v734 = vunpack.c.l.bf16 %v732
      %v735 = vunpack.c.l.bf16 %v733
      %s736 = scalar_lea.vmem %s219, 80
      %v737 = vld [vmem:[%s736] sm:$0xf]
      %v738 = vld [vmem:[%s736 + $0x4] sm:$0x3]
      %v739 = vunpack.c.l.bf16 %v737
      %v740 = vunpack.c.l.bf16 %v738
      %v743 = vrot.slane %v734, 1
      %v744 = vrot.slane %v735, 1
      %v745 = vsel %vm237, %v743, %v744
      %750 = vrot.lane.b32.xlu0 %v739, 64
      %v751 = vpop.permute.xlu0 %750
      %752 = vrot.lane.b32.xlu0 %v740, 64
      %v753 = vpop.permute.xlu0 %752
      %v756 = vrot.slane %v739, 1
      %v757 = vrot.slane %v740, 1
      %v758 = vsel %vm237, %v756, %v757
      %759 = vrot.lane.b32.xlu0 %v758, 64
      %v760 = vpop.permute.xlu0 %759
      %761 = vrot.lane.b32.xlu0 %v757, 64
      %v762 = vpop.permute.xlu0 %761
      %v765 = vsel %vm260, %v745, %v751
      %v766 = vsel %vm260, %v744, %v753
      %v767 = vsel %vm260, %v751, %v760
      %v768 = vsel %vm260, %v753, %v762
      %v773 = vrot.slane %v734, 6
      %v774 = vrot.slane %v765, 6
      %v775 = vrot.slane %v767, 6
      %v776 = vrot.slane %v735, 6
      %v777 = vsel %vm312, %v773, %v776
      %v778 = vrot.slane %v766, 6
      %v779 = vsel %vm312, %v774, %v778
      %v780 = vrot.slane %v768, 6
      %v781 = vsel %vm312, %v775, %v780
      %788 = vst [vmem:[#allocation2 + $0x108] sm:$0xfc] %v773
      %789 = vst [vmem:[#allocation2 + $0x110] sm:$0xfc] %v774
      %790 = vst [vmem:[#allocation2 + $0x118] sm:$0xfc] %v775
      %791 = vst [vmem:[#allocation2 + $0x120] sm:$0xf] %v777
      %792 = vst [vmem:[#allocation2 + $0x128] sm:$0xf] %v779
      %793 = vst [vmem:[#allocation2 + $0x130] sm:$0xf] %v781
      %v794 = vld [vmem:[%s736] sm:$0xf]
      %v795 = vld [vmem:[%s736 + $0x4] sm:$0x3]
      %v796 = vunpack.c.l.bf16 %v794
      %v797 = vunpack.c.l.bf16 %v795
      %s798 = scalar_lea.vmem %s219, 88
      %v799 = vld [vmem:[%s798] sm:$0xf]
      %v800 = vld [vmem:[%s798 + $0x4] sm:$0x3]
      %v801 = vunpack.c.l.bf16 %v799
      %v802 = vunpack.c.l.bf16 %v800
      %v805 = vrot.slane %v796, 1
      %v806 = vrot.slane %v797, 1
      %v807 = vsel %vm237, %v805, %v806
      %812 = vrot.lane.b32.xlu0 %v801, 64
      %v813 = vpop.permute.xlu0 %812
      %814 = vrot.lane.b32.xlu0 %v802, 64
      %v815 = vpop.permute.xlu0 %814
      %v818 = vrot.slane %v801, 1
      %v819 = vrot.slane %v802, 1
      %v820 = vsel %vm237, %v818, %v819
      %821 = vrot.lane.b32.xlu0 %v820, 64
      %v822 = vpop.permute.xlu0 %821
      %823 = vrot.lane.b32.xlu0 %v819, 64
      %v824 = vpop.permute.xlu0 %823
      %v827 = vsel %vm260, %v807, %v813
      %v828 = vsel %vm260, %v806, %v815
      %v829 = vsel %vm260, %v813, %v822
      %v830 = vsel %vm260, %v815, %v824
      %v835 = vrot.slane %v796, 4
      %v836 = vrot.slane %v827, 4
      %v837 = vrot.slane %v829, 4
      %v838 = vrot.slane %v797, 4
      %v839 = vsel %vm375, %v835, %v838
      %v840 = vrot.slane %v828, 4
      %v841 = vsel %vm375, %v836, %v840
      %v842 = vrot.slane %v830, 4
      %v843 = vsel %vm375, %v837, %v842
      %850 = vst [vmem:[#allocation2 + $0x120] sm:$0xf0] %v835
      %851 = vst [vmem:[#allocation2 + $0x128] sm:$0xf0] %v836
      %852 = vst [vmem:[#allocation2 + $0x130] sm:$0xf0] %v837
      %853 = vst [vmem:[#allocation2 + $0x138] sm:$0x3f] %v839
      %854 = vst [vmem:[#allocation2 + $0x140] sm:$0x3f] %v841
      %855 = vst [vmem:[#allocation2 + $0x148] sm:$0x3f] %v843
      %v856 = vld [vmem:[%s798] sm:$0xf]
      %v857 = vld [vmem:[%s798 + $0x4] sm:$0x3]
      %v858 = vunpack.c.l.bf16 %v856
      %v859 = vunpack.c.l.bf16 %v857
      %s860 = scalar_lea.vmem %s219, 96
      %v861 = vld [vmem:[%s860] sm:$0xf]
      %v862 = vld [vmem:[%s860 + $0x4] sm:$0x3]
      %v863 = vunpack.c.l.bf16 %v861
      %v864 = vunpack.c.l.bf16 %v862
      %v867 = vrot.slane %v858, 1
      %v868 = vrot.slane %v859, 1
      %v869 = vsel %vm237, %v867, %v868
      %874 = vrot.lane.b32.xlu0 %v863, 64
      %v875 = vpop.permute.xlu0 %874
      %876 = vrot.lane.b32.xlu0 %v864, 64
      %v877 = vpop.permute.xlu0 %876
      %v880 = vrot.slane %v863, 1
      %v881 = vrot.slane %v864, 1
      %v882 = vsel %vm237, %v880, %v881
      %883 = vrot.lane.b32.xlu0 %v882, 64
      %v884 = vpop.permute.xlu0 %883
      %885 = vrot.lane.b32.xlu0 %v881, 64
      %v886 = vpop.permute.xlu0 %885
      %v889 = vsel %vm260, %v869, %v875
      %v890 = vsel %vm260, %v868, %v877
      %v891 = vsel %vm260, %v875, %v884
      %v892 = vsel %vm260, %v877, %v886
      %v897 = vrot.slane %v858, 2
      %v898 = vrot.slane %v889, 2
      %v899 = vrot.slane %v891, 2
      %v900 = vrot.slane %v859, 2
      %v901 = vsel %vm438, %v897, %v900
      %v902 = vrot.slane %v890, 2
      %v903 = vsel %vm438, %v898, %v902
      %v904 = vrot.slane %v892, 2
      %v905 = vsel %vm438, %v899, %v904
      %912 = vst [vmem:[#allocation2 + $0x138] sm:$0xc0] %v897
      %913 = vst [vmem:[#allocation2 + $0x140] sm:$0xc0] %v898
      %914 = vst [vmem:[#allocation2 + $0x148] sm:$0xc0] %v899
      %915 = vst [vmem:[#allocation2 + $0x150] sm:$0xff] %v901
      %916 = vst [vmem:[#allocation2 + $0x158] sm:$0xff] %v903
      %917 = vst [vmem:[#allocation2 + $0x160] sm:$0xff] %v905
      %v918 = vld [vmem:[%s860] sm:$0xf]
      %v919 = vld [vmem:[%s860 + $0x4] sm:$0x3]
      %v920 = vunpack.c.l.bf16 %v918
      %v921 = vunpack.c.l.bf16 %v919
      %s922 = scalar_lea.vmem %s219, 104
      %v923 = vld [vmem:[%s922] sm:$0xf]
      %v924 = vld [vmem:[%s922 + $0x4] sm:$0x3]
      %v925 = vunpack.c.l.bf16 %v923
      %v926 = vunpack.c.l.bf16 %v924
      %v929 = vrot.slane %v920, 1
      %v930 = vrot.slane %v921, 1
      %v931 = vsel %vm237, %v929, %v930
      %936 = vrot.lane.b32.xlu0 %v925, 64
      %v937 = vpop.permute.xlu0 %936
      %938 = vrot.lane.b32.xlu0 %v926, 64
      %v939 = vpop.permute.xlu0 %938
      %v942 = vrot.slane %v925, 1
      %v943 = vrot.slane %v926, 1
      %v944 = vsel %vm237, %v942, %v943
      %945 = vrot.lane.b32.xlu0 %v944, 64
      %v946 = vpop.permute.xlu0 %945
      %947 = vrot.lane.b32.xlu0 %v943, 64
      %v948 = vpop.permute.xlu0 %947
      %v951 = vsel %vm260, %v931, %v937
      %v952 = vsel %vm260, %v930, %v939
      %v953 = vsel %vm260, %v937, %v946
      %v954 = vsel %vm260, %v939, %v948
      %955 = vst [vmem:[#allocation2 + $0x168] sm:$0xff] %v920
      %956 = vst [vmem:[#allocation2 + $0x170] sm:$0xff] %v951
      %957 = vst [vmem:[#allocation2 + $0x178] sm:$0xff] %v953
      %958 = vst [vmem:[#allocation2 + $0x180] sm:$0x3] %v921
      %959 = vst [vmem:[#allocation2 + $0x188] sm:$0x3] %v952
      %960 = vst [vmem:[#allocation2 + $0x190] sm:$0x3] %v954
      %v961 = vld [vmem:[%s922] sm:$0xf]
      %v962 = vld [vmem:[%s922 + $0x4] sm:$0x3]
      %v963 = vunpack.c.l.bf16 %v961
      %v964 = vunpack.c.l.bf16 %v962
      %s965 = scalar_lea.vmem %s219, 112
      %v966 = vld [vmem:[%s965] sm:$0xf]
      %v967 = vld [vmem:[%s965 + $0x4] sm:$0x3]
      %v968 = vunpack.c.l.bf16 %v966
      %v969 = vunpack.c.l.bf16 %v967
      %v972 = vrot.slane %v963, 1
      %v973 = vrot.slane %v964, 1
      %v974 = vsel %vm237, %v972, %v973
      %979 = vrot.lane.b32.xlu0 %v968, 64
      %v980 = vpop.permute.xlu0 %979
      %981 = vrot.lane.b32.xlu0 %v969, 64
      %v982 = vpop.permute.xlu0 %981
      %v985 = vrot.slane %v968, 1
      %v986 = vrot.slane %v969, 1
      %v987 = vsel %vm237, %v985, %v986
      %988 = vrot.lane.b32.xlu0 %v987, 64
      %v989 = vpop.permute.xlu0 %988
      %990 = vrot.lane.b32.xlu0 %v986, 64
      %v991 = vpop.permute.xlu0 %990
      %v994 = vsel %vm260, %v974, %v980
      %v995 = vsel %vm260, %v973, %v982
      %v996 = vsel %vm260, %v980, %v989
      %v997 = vsel %vm260, %v982, %v991
      %v1002 = vrot.slane %v963, 6
      %v1003 = vrot.slane %v994, 6
      %v1004 = vrot.slane %v996, 6
      %v1005 = vrot.slane %v964, 6
      %v1006 = vsel %vm312, %v1002, %v1005
      %v1007 = vrot.slane %v995, 6
      %v1008 = vsel %vm312, %v1003, %v1007
      %v1009 = vrot.slane %v997, 6
      %v1010 = vsel %vm312, %v1004, %v1009
      %1017 = vst [vmem:[#allocation2 + $0x180] sm:$0xfc] %v1002
      %1018 = vst [vmem:[#allocation2 + $0x188] sm:$0xfc] %v1003
      %1019 = vst [vmem:[#allocation2 + $0x190] sm:$0xfc] %v1004
      %1020 = vst [vmem:[#allocation2 + $0x198] sm:$0xf] %v1006
      %1021 = vst [vmem:[#allocation2 + $0x1a0] sm:$0xf] %v1008
      %1022 = vst [vmem:[#allocation2 + $0x1a8] sm:$0xf] %v1010
      %v1023 = vld [vmem:[%s965] sm:$0xf]
      %v1024 = vld [vmem:[%s965 + $0x4] sm:$0x3]
      %v1025 = vunpack.c.l.bf16 %v1023
      %v1026 = vunpack.c.l.bf16 %v1024
      %s1027 = scalar_lea.vmem %s219, 120
      %v1028 = vld [vmem:[%s1027] sm:$0xf]
      %v1029 = vld [vmem:[%s1027 + $0x4] sm:$0x3]
      %v1030 = vunpack.c.l.bf16 %v1028
      %v1031 = vunpack.c.l.bf16 %v1029
      %v1034 = vrot.slane %v1025, 1
      %v1035 = vrot.slane %v1026, 1
      %v1036 = vsel %vm237, %v1034, %v1035
      %1041 = vrot.lane.b32.xlu0 %v1030, 64
      %v1042 = vpop.permute.xlu0 %1041
      %1043 = vrot.lane.b32.xlu0 %v1031, 64
      %v1044 = vpop.permute.xlu0 %1043
      %v1047 = vrot.slane %v1030, 1
      %v1048 = vrot.slane %v1031, 1
      %v1049 = vsel %vm237, %v1047, %v1048
      %1050 = vrot.lane.b32.xlu0 %v1049, 64
      %v1051 = vpop.permute.xlu0 %1050
      %1052 = vrot.lane.b32.xlu0 %v1048, 64
      %v1053 = vpop.permute.xlu0 %1052
      %v1056 = vsel %vm260, %v1036, %v1042
      %v1057 = vsel %vm260, %v1035, %v1044
      %v1058 = vsel %vm260, %v1042, %v1051
      %v1059 = vsel %vm260, %v1044, %v1053
      %v1064 = vrot.slane %v1025, 4
      %v1065 = vrot.slane %v1056, 4
      %v1066 = vrot.slane %v1058, 4
      %v1067 = vrot.slane %v1026, 4
      %v1068 = vsel %vm375, %v1064, %v1067
      %v1069 = vrot.slane %v1057, 4
      %v1070 = vsel %vm375, %v1065, %v1069
      %v1071 = vrot.slane %v1059, 4
      %v1072 = vsel %vm375, %v1066, %v1071
      %1079 = vst [vmem:[#allocation2 + $0x198] sm:$0xf0] %v1064
      %1080 = vst [vmem:[#allocation2 + $0x1a0] sm:$0xf0] %v1065
      %1081 = vst [vmem:[#allocation2 + $0x1a8] sm:$0xf0] %v1066
      %1082 = vst [vmem:[#allocation2 + $0x1b0] sm:$0x3f] %v1068
      %1083 = vst [vmem:[#allocation2 + $0x1b8] sm:$0x3f] %v1070
      %1084 = vst [vmem:[#allocation2 + $0x1c0] sm:$0x3f] %v1072
      %v1085 = vld [vmem:[%s1027] sm:$0xf]
      %v1086 = vld [vmem:[%s1027 + $0x4] sm:$0x3]
      %v1087 = vunpack.c.l.bf16 %v1085
      %v1088 = vunpack.c.l.bf16 %v1086
      %s1089 = scalar_lea.vmem %s219, 128
      %v1090 = vld [vmem:[%s1089] sm:$0xf]
      %v1091 = vld [vmem:[%s1089 + $0x4] sm:$0x3]
      %v1092 = vunpack.c.l.bf16 %v1090
      %v1093 = vunpack.c.l.bf16 %v1091
      %v1096 = vrot.slane %v1087, 1
      %v1097 = vrot.slane %v1088, 1
      %v1098 = vsel %vm237, %v1096, %v1097
      %1103 = vrot.lane.b32.xlu0 %v1092, 64
      %v1104 = vpop.permute.xlu0 %1103
      %1105 = vrot.lane.b32.xlu0 %v1093, 64
      %v1106 = vpop.permute.xlu0 %1105
      %v1109 = vrot.slane %v1092, 1
      %v1110 = vrot.slane %v1093, 1
      %v1111 = vsel %vm237, %v1109, %v1110
      %1112 = vrot.lane.b32.xlu0 %v1111, 64
      %v1113 = vpop.permute.xlu0 %1112
      %1114 = vrot.lane.b32.xlu0 %v1110, 64
      %v1115 = vpop.permute.xlu0 %1114
      %v1118 = vsel %vm260, %v1098, %v1104
      %v1119 = vsel %vm260, %v1097, %v1106
      %v1120 = vsel %vm260, %v1104, %v1113
      %v1121 = vsel %vm260, %v1106, %v1115
      %v1126 = vrot.slane %v1087, 2
      %v1127 = vrot.slane %v1118, 2
      %v1128 = vrot.slane %v1120, 2
      %v1129 = vrot.slane %v1088, 2
      %v1130 = vsel %vm438, %v1126, %v1129
      %v1131 = vrot.slane %v1119, 2
      %v1132 = vsel %vm438, %v1127, %v1131
      %v1133 = vrot.slane %v1121, 2
      %v1134 = vsel %vm438, %v1128, %v1133
      %1141 = vst [vmem:[#allocation2 + $0x1b0] sm:$0xc0] %v1126
      %1142 = vst [vmem:[#allocation2 + $0x1b8] sm:$0xc0] %v1127
      %1143 = vst [vmem:[#allocation2 + $0x1c0] sm:$0xc0] %v1128
      %1144 = vst [vmem:[#allocation2 + $0x1c8] sm:$0xff] %v1130
      %1145 = vst [vmem:[#allocation2 + $0x1d0] sm:$0xff] %v1132
      %1146 = vst [vmem:[#allocation2 + $0x1d8] sm:$0xff] %v1134
      %v1147 = vld [vmem:[%s1089] sm:$0xf]
      %v1148 = vld [vmem:[%s1089 + $0x4] sm:$0x3]
      %v1149 = vunpack.c.l.bf16 %v1147
      %v1150 = vunpack.c.l.bf16 %v1148
      %s1151 = scalar_lea.vmem %s219, 136
      %v1152 = vld [vmem:[%s1151] sm:$0xf]
      %v1153 = vld [vmem:[%s1151 + $0x4] sm:$0x3]
      %v1154 = vunpack.c.l.bf16 %v1152
      %v1155 = vunpack.c.l.bf16 %v1153
      %v1158 = vrot.slane %v1149, 1
      %v1159 = vrot.slane %v1150, 1
      %v1160 = vsel %vm237, %v1158, %v1159
      %1165 = vrot.lane.b32.xlu0 %v1154, 64
      %v1166 = vpop.permute.xlu0 %1165
      %1167 = vrot.lane.b32.xlu0 %v1155, 64
      %v1168 = vpop.permute.xlu0 %1167
      %v1171 = vrot.slane %v1154, 1
      %v1172 = vrot.slane %v1155, 1
      %v1173 = vsel %vm237, %v1171, %v1172
      %1174 = vrot.lane.b32.xlu0 %v1173, 64
      %v1175 = vpop.permute.xlu0 %1174
      %1176 = vrot.lane.b32.xlu0 %v1172, 64
      %v1177 = vpop.permute.xlu0 %1176
      %v1180 = vsel %vm260, %v1160, %v1166
      %v1181 = vsel %vm260, %v1159, %v1168
      %v1182 = vsel %vm260, %v1166, %v1175
      %v1183 = vsel %vm260, %v1168, %v1177
      %1184 = vst [vmem:[#allocation2 + $0x1e0] sm:$0xff] %v1149
      %1185 = vst [vmem:[#allocation2 + $0x1e8] sm:$0xff] %v1180
      %1186 = vst [vmem:[#allocation2 + $0x1f0] sm:$0xff] %v1182
      %1187 = vst [vmem:[#allocation2 + $0x1f8] sm:$0x3] %v1150
      %1188 = vst [vmem:[#allocation2 + $0x200] sm:$0x3] %v1181
      %1189 = vst [vmem:[#allocation2 + $0x208] sm:$0x3] %v1183
      %v1190 = vld [vmem:[%s1151] sm:$0xf]
      %v1191 = vld [vmem:[%s1151 + $0x4] sm:$0x3]
      %v1192 = vunpack.c.l.bf16 %v1190
      %v1193 = vunpack.c.l.bf16 %v1191
      %s1194 = scalar_lea.vmem %s219, 144
      %v1195 = vld [vmem:[%s1194] sm:$0xf]
      %v1196 = vld [vmem:[%s1194 + $0x4] sm:$0x3]
      %v1197 = vunpack.c.l.bf16 %v1195
      %v1198 = vunpack.c.l.bf16 %v1196
      %v1201 = vrot.slane %v1192, 1
      %v1202 = vrot.slane %v1193, 1
      %v1203 = vsel %vm237, %v1201, %v1202
      %1208 = vrot.lane.b32.xlu0 %v1197, 64
      %v1209 = vpop.permute.xlu0 %1208
      %1210 = vrot.lane.b32.xlu0 %v1198, 64
      %v1211 = vpop.permute.xlu0 %1210
      %v1214 = vrot.slane %v1197, 1
      %v1215 = vrot.slane %v1198, 1
      %v1216 = vsel %vm237, %v1214, %v1215
      %1217 = vrot.lane.b32.xlu0 %v1216, 64
      %v1218 = vpop.permute.xlu0 %1217
      %1219 = vrot.lane.b32.xlu0 %v1215, 64
      %v1220 = vpop.permute.xlu0 %1219
      %v1223 = vsel %vm260, %v1203, %v1209
      %v1224 = vsel %vm260, %v1202, %v1211
      %v1225 = vsel %vm260, %v1209, %v1218
      %v1226 = vsel %vm260, %v1211, %v1220
      %v1231 = vrot.slane %v1192, 6
      %v1232 = vrot.slane %v1223, 6
      %v1233 = vrot.slane %v1225, 6
      %v1234 = vrot.slane %v1193, 6
      %v1235 = vsel %vm312, %v1231, %v1234
      %v1236 = vrot.slane %v1224, 6
      %v1237 = vsel %vm312, %v1232, %v1236
      %v1238 = vrot.slane %v1226, 6
      %v1239 = vsel %vm312, %v1233, %v1238
      %1246 = vst [vmem:[#allocation2 + $0x1f8] sm:$0xfc] %v1231
      %1247 = vst [vmem:[#allocation2 + $0x200] sm:$0xfc] %v1232
      %1248 = vst [vmem:[#allocation2 + $0x208] sm:$0xfc] %v1233
      %1249 = vst [vmem:[#allocation2 + $0x210] sm:$0xf] %v1235
      %1250 = vst [vmem:[#allocation2 + $0x218] sm:$0xf] %v1237
      %1251 = vst [vmem:[#allocation2 + $0x220] sm:$0xf] %v1239
      %v1252 = vld [vmem:[%s1194] sm:$0xf]
      %v1253 = vld [vmem:[%s1194 + $0x4] sm:$0x3]
      %v1254 = vunpack.c.l.bf16 %v1252
      %v1255 = vunpack.c.l.bf16 %v1253
      %s1256 = scalar_lea.vmem %s219, 152
      %v1257 = vld [vmem:[%s1256] sm:$0xf]
      %v1258 = vld [vmem:[%s1256 + $0x4] sm:$0x3]
      %v1259 = vunpack.c.l.bf16 %v1257
      %v1260 = vunpack.c.l.bf16 %v1258
      %v1263 = vrot.slane %v1254, 1
      %v1264 = vrot.slane %v1255, 1
      %v1265 = vsel %vm237, %v1263, %v1264
      %1270 = vrot.lane.b32.xlu0 %v1259, 64
      %v1271 = vpop.permute.xlu0 %1270
      %1272 = vrot.lane.b32.xlu0 %v1260, 64
      %v1273 = vpop.permute.xlu0 %1272
      %v1276 = vrot.slane %v1259, 1
      %v1277 = vrot.slane %v1260, 1
      %v1278 = vsel %vm237, %v1276, %v1277
      %1279 = vrot.lane.b32.xlu0 %v1278, 64
      %v1280 = vpop.permute.xlu0 %1279
      %1281 = vrot.lane.b32.xlu0 %v1277, 64
      %v1282 = vpop.permute.xlu0 %1281
      %v1285 = vsel %vm260, %v1265, %v1271
      %v1286 = vsel %vm260, %v1264, %v1273
      %v1287 = vsel %vm260, %v1271, %v1280
      %v1288 = vsel %vm260, %v1273, %v1282
      %v1293 = vrot.slane %v1254, 4
      %v1294 = vrot.slane %v1285, 4
      %v1295 = vrot.slane %v1287, 4
      %v1296 = vrot.slane %v1255, 4
      %v1297 = vsel %vm375, %v1293, %v1296
      %v1298 = vrot.slane %v1286, 4
      %v1299 = vsel %vm375, %v1294, %v1298
      %v1300 = vrot.slane %v1288, 4
      %v1301 = vsel %vm375, %v1295, %v1300
      %1308 = vst [vmem:[#allocation2 + $0x210] sm:$0xf0] %v1293
      %1309 = vst [vmem:[#allocation2 + $0x218] sm:$0xf0] %v1294
      %1310 = vst [vmem:[#allocation2 + $0x220] sm:$0xf0] %v1295
      %1311 = vst [vmem:[#allocation2 + $0x228] sm:$0x3f] %v1297
      %1312 = vst [vmem:[#allocation2 + $0x230] sm:$0x3f] %v1299
      %1313 = vst [vmem:[#allocation2 + $0x238] sm:$0x3f] %v1301
      %v1314 = vld [vmem:[%s1256] sm:$0xf]
      %v1315 = vld [vmem:[%s1256 + $0x4] sm:$0x3]
      %v1316 = vunpack.c.l.bf16 %v1314
      %v1317 = vunpack.c.l.bf16 %v1315
      %s1318 = scalar_lea.vmem %s219, 160
      %v1319 = vld [vmem:[%s1318] sm:$0xf]
      %v1320 = vld [vmem:[%s1318 + $0x4] sm:$0x3]
      %v1321 = vunpack.c.l.bf16 %v1319
      %v1322 = vunpack.c.l.bf16 %v1320
      %v1325 = vrot.slane %v1316, 1
      %v1326 = vrot.slane %v1317, 1
      %v1327 = vsel %vm237, %v1325, %v1326
      %1332 = vrot.lane.b32.xlu0 %v1321, 64
      %v1333 = vpop.permute.xlu0 %1332
      %1334 = vrot.lane.b32.xlu0 %v1322, 64
      %v1335 = vpop.permute.xlu0 %1334
      %v1338 = vrot.slane %v1321, 1
      %v1339 = vrot.slane %v1322, 1
      %v1340 = vsel %vm237, %v1338, %v1339
      %1341 = vrot.lane.b32.xlu0 %v1340, 64
      %v1342 = vpop.permute.xlu0 %1341
      %1343 = vrot.lane.b32.xlu0 %v1339, 64
      %v1344 = vpop.permute.xlu0 %1343
      %v1347 = vsel %vm260, %v1327, %v1333
      %v1348 = vsel %vm260, %v1326, %v1335
      %v1349 = vsel %vm260, %v1333, %v1342
      %v1350 = vsel %vm260, %v1335, %v1344
      %v1355 = vrot.slane %v1316, 2
      %v1356 = vrot.slane %v1347, 2
      %v1357 = vrot.slane %v1349, 2
      %v1358 = vrot.slane %v1317, 2
      %v1359 = vsel %vm438, %v1355, %v1358
      %v1360 = vrot.slane %v1348, 2
      %v1361 = vsel %vm438, %v1356, %v1360
      %v1362 = vrot.slane %v1350, 2
      %v1363 = vsel %vm438, %v1357, %v1362
      %1370 = vst [vmem:[#allocation2 + $0x228] sm:$0xc0] %v1355
      %1371 = vst [vmem:[#allocation2 + $0x230] sm:$0xc0] %v1356
      %1372 = vst [vmem:[#allocation2 + $0x238] sm:$0xc0] %v1357
      %1373 = vst [vmem:[#allocation2 + $0x240] sm:$0xff] %v1359
      %1374 = vst [vmem:[#allocation2 + $0x248] sm:$0xff] %v1361
      %1375 = vst [vmem:[#allocation2 + $0x250] sm:$0xff] %v1363
      %v1376 = vld [vmem:[%s1] sm:$0xf]
      %v1377 = vld [vmem:[%s1 + $0x4] sm:$0xf]
      %v1378 = vld [vmem:[%s1 + $0x8] sm:$0xf]
      %v1379 = vld [vmem:[%s1 + $0xc] sm:$0xf]
      %v1380 = vld [vmem:[%s1 + $0x10] sm:$0xf]
      %v1381 = vld [vmem:[%s1 + $0x14] sm:$0xf]
      %v1382 = vld [vmem:[%s1 + $0x18] sm:$0xf]
      %v1383 = vld [vmem:[%s1 + $0x1c] sm:$0xf]
      %v1384 = vld [vmem:[%s1 + $0x20] sm:$0xf]
      %v1385 = vld [vmem:[%s1 + $0x24] sm:$0xf]
      %v1386 = vld [vmem:[%s1 + $0x28] sm:$0xf]
      %v1387 = vld [vmem:[%s1 + $0x2c] sm:$0xf]
      %v1388 = vld [vmem:[%s1 + $0x30] sm:$0xf]
      %v1389 = vld [vmem:[%s1 + $0x34] sm:$0xf]
      %v1390 = vld [vmem:[%s1 + $0x38] sm:$0xf]
      %v1391 = vld [vmem:[%s1 + $0x3c] sm:$0xf]
      %v1392 = vld [vmem:[%s1 + $0x40] sm:$0xf]
      %v1393 = vld [vmem:[%s1 + $0x44] sm:$0xf]
      %v1394 = vld [vmem:[%s1 + $0x48] sm:$0xf]
      %v1395 = vld [vmem:[%s1 + $0x4c] sm:$0xf]
      %v1396 = vld [vmem:[%s1 + $0x50] sm:$0xf]
      %v1397 = vld [vmem:[%s1 + $0x54] sm:$0xf]
      %v1398 = vld [vmem:[%s1 + $0x58] sm:$0xf]
      %v1399 = vld [vmem:[%s1 + $0x5c] sm:$0xf]
      %v1400 = vld [vmem:[%s1 + $0x60] sm:$0xf]
      %v1401 = vld [vmem:[%s1 + $0x64] sm:$0xf]
      %v1402 = vld [vmem:[%s1 + $0x68] sm:$0xf]
      %v1403 = vld [vmem:[%s1 + $0x6c] sm:$0xf]
      %v1404 = vld [vmem:[%s1 + $0x70] sm:$0xf]
      %v1405 = vld [vmem:[%s1 + $0x74] sm:$0xf]
      %v1406 = vld [vmem:[%s1 + $0x78] sm:$0xf]
      %v1407 = vld [vmem:[%s1 + $0x7c] sm:$0xf]
      %v1408 = vld [vmem:[%s1 + $0x80] sm:$0xf]
      %v1409 = vld [vmem:[%s1 + $0x84] sm:$0xf]
      %v1410 = vld [vmem:[%s1 + $0x88] sm:$0xf]
      %v1411 = vld [vmem:[%s1 + $0x8c] sm:$0xf]
      %v1412 = vld [vmem:[%s1 + $0x90] sm:$0xf]
      %v1413 = vld [vmem:[%s1 + $0x94] sm:$0xf]
      %v1414 = vld [vmem:[%s1 + $0x98] sm:$0xf]
      %v1415 = vld [vmem:[%s1 + $0x9c] sm:$0xf]
      %v1416 = vld [vmem:[%s1 + $0xa0] sm:$0xf]
      %v1417 = vld [vmem:[%s1 + $0xa4] sm:$0xf]
      %v1418 = vld [vmem:[%s1 + $0xa8] sm:$0xf]
      %v1419 = vld [vmem:[%s1 + $0xac] sm:$0xf]
      %v1420 = vld [vmem:[%s1 + $0xb0] sm:$0xf]
      %v1421 = vld [vmem:[%s1 + $0xb4] sm:$0xf]
      %v1422 = vld [vmem:[%s1 + $0xb8] sm:$0xf]
      %v1423 = vld [vmem:[%s1 + $0xbc] sm:$0xf]
      %v1424 = vld [vmem:[%s2] sm:$0x1]
      %v1425 = vld [vmem:[#allocation2] sm:$0xff]
      %v1426 = vld [vmem:[#allocation2 + $0x8] sm:$0xff]
      %v1427 = vld [vmem:[#allocation2 + $0x10] sm:$0xff]
      %v1428 = vld [vmem:[#allocation2 + $0x18] sm:$0xff]
      %v1429 = vld [vmem:[#allocation2 + $0x20] sm:$0xff]
      %v1430 = vld [vmem:[#allocation2 + $0x28] sm:$0xff]
      %v1431 = vld [vmem:[#allocation2 + $0x30] sm:$0xff]
      %v1432 = vld [vmem:[#allocation2 + $0x38] sm:$0xff]
      %v1433 = vld [vmem:[#allocation2 + $0x40] sm:$0xff]
      %v1434 = vld [vmem:[#allocation2 + $0x48] sm:$0xff]
      %v1435 = vld [vmem:[#allocation2 + $0x50] sm:$0xff]
      %v1436 = vld [vmem:[#allocation2 + $0x58] sm:$0xff]
      %v1437 = vld [vmem:[#allocation2 + $0x60] sm:$0xff]
      %v1438 = vld [vmem:[#allocation2 + $0x68] sm:$0xff]
      %v1439 = vld [vmem:[#allocation2 + $0x70] sm:$0xff]
      %v1440 = vld [vmem:[#allocation2 + $0x78] sm:$0xff]
      %v1441 = vld [vmem:[#allocation2 + $0x80] sm:$0xff]
      %v1442 = vld [vmem:[#allocation2 + $0x88] sm:$0xff]
      %v1443 = vld [vmem:[#allocation2 + $0x90] sm:$0xff]
      %v1444 = vld [vmem:[#allocation2 + $0x98] sm:$0xff]
      %v1445 = vld [vmem:[#allocation2 + $0xa0] sm:$0xff]
      %v1446 = vld [vmem:[#allocation2 + $0xa8] sm:$0xff]
      %v1447 = vld [vmem:[#allocation2 + $0xb0] sm:$0xff]
      %v1448 = vld [vmem:[#allocation2 + $0xb8] sm:$0xff]
      %v1449 = vld [vmem:[#allocation2 + $0xc0] sm:$0xff]
      %v1450 = vld [vmem:[#allocation2 + $0xc8] sm:$0xff]
      %v1451 = vld [vmem:[#allocation2 + $0xd0] sm:$0xff]
      %v1452 = vld [vmem:[#allocation2 + $0xd8] sm:$0xff]
      %v1453 = vld [vmem:[#allocation2 + $0xe0] sm:$0xff]
      %v1454 = vld [vmem:[#allocation2 + $0xe8] sm:$0xff]
      %v1455 = vld [vmem:[#allocation2 + $0xf0] sm:$0xff]
      %v1456 = vld [vmem:[#allocation2 + $0xf8] sm:$0xff]
      %v1457 = vld [vmem:[#allocation2 + $0x100] sm:$0xff]
      %v1458 = vld [vmem:[#allocation2 + $0x108] sm:$0xff]
      %v1459 = vld [vmem:[#allocation2 + $0x110] sm:$0xff]
      %v1460 = vld [vmem:[#allocation2 + $0x118] sm:$0xff]
      %v1461 = vld [vmem:[#allocation2 + $0x120] sm:$0xff]
      %v1462 = vld [vmem:[#allocation2 + $0x128] sm:$0xff]
      %v1463 = vld [vmem:[#allocation2 + $0x130] sm:$0xff]
      %v1464 = vld [vmem:[#allocation2 + $0x138] sm:$0xff]
      %v1465 = vld [vmem:[#allocation2 + $0x140] sm:$0xff]
      %v1466 = vld [vmem:[#allocation2 + $0x148] sm:$0xff]
      %v1467 = vld [vmem:[#allocation2 + $0x150] sm:$0xff]
      %v1468 = vld [vmem:[#allocation2 + $0x158] sm:$0xff]
      %v1469 = vld [vmem:[#allocation2 + $0x160] sm:$0xff]
      %v1470 = vld [vmem:[#allocation2 + $0x168] sm:$0xff]
      %v1471 = vld [vmem:[#allocation2 + $0x170] sm:$0xff]
      %v1472 = vld [vmem:[#allocation2 + $0x178] sm:$0xff]
      %v1473 = vld [vmem:[#allocation2 + $0x180] sm:$0xff]
      %v1474 = vld [vmem:[#allocation2 + $0x188] sm:$0xff]
      %v1475 = vld [vmem:[#allocation2 + $0x190] sm:$0xff]
      %v1476 = vld [vmem:[#allocation2 + $0x198] sm:$0xff]
      %v1477 = vld [vmem:[#allocation2 + $0x1a0] sm:$0xff]
      %v1478 = vld [vmem:[#allocation2 + $0x1a8] sm:$0xff]
      %v1479 = vld [vmem:[#allocation2 + $0x1b0] sm:$0xff]
      %v1480 = vld [vmem:[#allocation2 + $0x1b8] sm:$0xff]
      %v1481 = vld [vmem:[#allocation2 + $0x1c0] sm:$0xff]
      %v1482 = vld [vmem:[#allocation2 + $0x1c8] sm:$0xff]
      %v1483 = vld [vmem:[#allocation2 + $0x1d0] sm:$0xff]
      %v1484 = vld [vmem:[#allocation2 + $0x1d8] sm:$0xff]
      %v1485 = vld [vmem:[#allocation2 + $0x1e0] sm:$0xff]
      %v1486 = vld [vmem:[#allocation2 + $0x1e8] sm:$0xff]
      %v1487 = vld [vmem:[#allocation2 + $0x1f0] sm:$0xff]
      %v1488 = vld [vmem:[#allocation2 + $0x1f8] sm:$0xff]
      %v1489 = vld [vmem:[#allocation2 + $0x200] sm:$0xff]
      %v1490 = vld [vmem:[#allocation2 + $0x208] sm:$0xff]
      %v1491 = vld [vmem:[#allocation2 + $0x210] sm:$0xff]
      %v1492 = vld [vmem:[#allocation2 + $0x218] sm:$0xff]
      %v1493 = vld [vmem:[#allocation2 + $0x220] sm:$0xff]
      %v1494 = vld [vmem:[#allocation2 + $0x228] sm:$0xff]
      %v1495 = vld [vmem:[#allocation2 + $0x230] sm:$0xff]
      %v1496 = vld [vmem:[#allocation2 + $0x238] sm:$0xff]
      %v1497 = vld [vmem:[#allocation2 + $0x240] sm:$0xff]
      %v1498 = vld [vmem:[#allocation2 + $0x248] sm:$0xff]
      %v1499 = vld [vmem:[#allocation2 + $0x250] sm:$0xff]
      %v1500 = vpack.c.bf16 %v1428, %v1425
      %v1501 = vpack.c.bf16 %v1429, %v1426
      %v1502 = vpack.c.bf16 %v1430, %v1427
      %v1503 = vpack.c.bf16 %v1434, %v1431
      %v1504 = vpack.c.bf16 %v1435, %v1432
      %v1505 = vpack.c.bf16 %v1436, %v1433
      %v1506 = vpack.c.bf16 %v1440, %v1437
      %v1507 = vpack.c.bf16 %v1441, %v1438
      %v1508 = vpack.c.bf16 %v1442, %v1439
      %v1509 = vpack.c.bf16 %v1446, %v1443
      %v1510 = vpack.c.bf16 %v1447, %v1444
      %v1511 = vpack.c.bf16 %v1448, %v1445
      %v1512 = vpack.c.bf16 %v1452, %v1449
      %v1513 = vpack.c.bf16 %v1453, %v1450
      %v1514 = vpack.c.bf16 %v1454, %v1451
      %v1515 = vpack.c.bf16 %v1458, %v1455
      %v1516 = vpack.c.bf16 %v1459, %v1456
      %v1517 = vpack.c.bf16 %v1460, %v1457
      %v1518 = vpack.c.bf16 %v1464, %v1461
      %v1519 = vpack.c.bf16 %v1465, %v1462
      %v1520 = vpack.c.bf16 %v1466, %v1463
      %v1521 = vpack.c.bf16 %v1470, %v1467
      %v1522 = vpack.c.bf16 %v1471, %v1468
      %v1523 = vpack.c.bf16 %v1472, %v1469
      %v1524 = vpack.c.bf16 %v1476, %v1473
      %v1525 = vpack.c.bf16 %v1477, %v1474
      %v1526 = vpack.c.bf16 %v1478, %v1475
      %v1527 = vpack.c.bf16 %v1482, %v1479
      %v1528 = vpack.c.bf16 %v1483, %v1480
      %v1529 = vpack.c.bf16 %v1484, %v1481
      %v1530 = vpack.c.bf16 %v1488, %v1485
      %v1531 = vpack.c.bf16 %v1489, %v1486
      %v1532 = vpack.c.bf16 %v1490, %v1487
      %v1533 = vpack.c.bf16 %v1494, %v1491
      %v1534 = vpack.c.bf16 %v1495, %v1492
      %v1535 = vpack.c.bf16 %v1496, %v1493
      %v1536 = vpack.c.bf16 %v1497, %v1497
      %v1537 = vpack.c.bf16 %v1498, %v1498
      %v1538 = vpack.c.bf16 %v1499, %v1499
      %v1540 = vlaneseq
      %v1541 = vshrl.u32 %v1540, 7
      %v1542 = vsub.s32 0, %v1541
      %v1543 = vrot.slane %v1424, %v1542
      %v1593 = vunpack.c.l.b16 %v1376
      %v1594 = vunpack.c.l.b16 %v1377
      %v1595 = vunpack.c.l.b16 %v1378
      %v1596 = vunpack.c.l.b16 %v1379
      %v1597 = vunpack.c.l.b16 %v1380
      %v1598 = vunpack.c.l.b16 %v1381
      %v1599 = vunpack.c.l.b16 %v1382
      %v1600 = vunpack.c.l.b16 %v1383
      %v1601 = vunpack.c.l.b16 %v1384
      %v1602 = vunpack.c.l.b16 %v1385
      %v1603 = vunpack.c.l.b16 %v1386
      %v1604 = vunpack.c.l.b16 %v1387
      %v1605 = vunpack.c.l.b16 %v1388
      %v1606 = vunpack.c.l.b16 %v1389
      %v1607 = vunpack.c.l.b16 %v1390
      %v1608 = vunpack.c.l.b16 %v1391
      %v1609 = vunpack.c.l.b16 %v1392
      %v1610 = vunpack.c.l.b16 %v1393
      %v1611 = vunpack.c.l.b16 %v1394
      %v1612 = vunpack.c.l.b16 %v1395
      %v1613 = vunpack.c.l.b16 %v1396
      %v1614 = vunpack.c.l.b16 %v1397
      %v1615 = vunpack.c.l.b16 %v1398
      %v1616 = vunpack.c.l.b16 %v1399
      %v1617 = vunpack.c.l.b16 %v1400
      %v1618 = vunpack.c.l.b16 %v1401
      %v1619 = vunpack.c.l.b16 %v1402
      %v1620 = vunpack.c.l.b16 %v1403
      %v1621 = vunpack.c.l.b16 %v1404
      %v1622 = vunpack.c.l.b16 %v1405
      %v1623 = vunpack.c.l.b16 %v1406
      %v1624 = vunpack.c.l.b16 %v1407
      %v1625 = vunpack.c.l.b16 %v1408
      %v1626 = vunpack.c.l.b16 %v1409
      %v1627 = vunpack.c.l.b16 %v1410
      %v1628 = vunpack.c.l.b16 %v1411
      %v1629 = vunpack.c.l.b16 %v1412
      %v1630 = vunpack.c.l.b16 %v1413
      %v1631 = vunpack.c.l.b16 %v1414
      %v1632 = vunpack.c.l.b16 %v1415
      %v1633 = vunpack.c.l.b16 %v1416
      %v1634 = vunpack.c.l.b16 %v1417
      %v1635 = vunpack.c.l.b16 %v1418
      %v1636 = vunpack.c.l.b16 %v1419
      %v1637 = vunpack.c.l.b16 %v1420
      %v1638 = vunpack.c.l.b16 %v1421
      %v1639 = vunpack.c.l.b16 %v1422
      %v1640 = vunpack.c.l.b16 %v1423
      %v1641 = vpack.c.b16 %v1594, %v1593
      %v1642 = vpack.c.b16 %v1596, %v1595
      %v1643 = vpack.c.b16 %v1598, %v1597
      %v1644 = vpack.c.b16 %v1600, %v1599
      %v1645 = vpack.c.b16 %v1602, %v1601
      %v1646 = vpack.c.b16 %v1604, %v1603
      %v1647 = vpack.c.b16 %v1606, %v1605
      %v1648 = vpack.c.b16 %v1608, %v1607
      %v1649 = vpack.c.b16 %v1610, %v1609
      %v1650 = vpack.c.b16 %v1612, %v1611
      %v1651 = vpack.c.b16 %v1614, %v1613
      %v1652 = vpack.c.b16 %v1616, %v1615
      %v1653 = vpack.c.b16 %v1618, %v1617
      %v1654 = vpack.c.b16 %v1620, %v1619
      %v1655 = vpack.c.b16 %v1622, %v1621
      %v1656 = vpack.c.b16 %v1624, %v1623
      %v1657 = vpack.c.b16 %v1626, %v1625
      %v1658 = vpack.c.b16 %v1628, %v1627
      %v1659 = vpack.c.b16 %v1630, %v1629
      %v1660 = vpack.c.b16 %v1632, %v1631
      %v1661 = vpack.c.b16 %v1634, %v1633
      %v1662 = vpack.c.b16 %v1636, %v1635
      %v1663 = vpack.c.b16 %v1638, %v1637
      %v1664 = vpack.c.b16 %v1640, %v1639
      %1689 = vmatprep.subr.bf16.mxu0 0
      %1690 = vmatpush1.bf16.msra.mxu0 %v1648
      %1691 = vmatprep.subr.bf16.mxu0 0
      %1692 = vmatpush1.bf16.msra.mxu0 %v1647
      %1693 = vmatprep.subr.bf16.mxu0 0
      %1694 = vmatpush1.bf16.msra.mxu0 %v1646
      %1695 = vmatprep.subr.bf16.mxu0 0
      %1696 = vmatpush1.bf16.msra.mxu0 %v1645
      %1697 = vmatprep.subr.bf16.mxu0 0
      %1698 = vmatpush1.bf16.msra.mxu0 %v1644
      %1699 = vmatprep.subr.bf16.mxu0 0
      %1700 = vmatpush1.bf16.msra.mxu0 %v1643
      %1701 = vmatprep.subr.bf16.mxu0 0
      %1702 = vmatpush1.bf16.msra.mxu0 %v1642
      %1703 = vmatprep.subr.bf16.mxu0 0
      %1704 = vmatpush1.bf16.msra.mxu0 %v1641
      %1705 = vmatprep.subr.bf16.mxu0 0
      %1706 = vmatpush2.bf16.msra.mxu0 %v1656
      %1707 = vmatprep.subr.bf16.mxu0 0
      %1708 = vmatpush2.bf16.msra.mxu0 %v1655
      %1709 = vmatprep.subr.bf16.mxu0 0
      %1710 = vmatpush2.bf16.msra.mxu0 %v1654
      %1711 = vmatprep.subr.bf16.mxu0 0
      %1712 = vmatpush2.bf16.msra.mxu0 %v1653
      %1713 = vmatprep.subr.bf16.mxu0 0
      %1714 = vmatpush2.bf16.msra.mxu0 %v1652
      %1715 = vmatprep.subr.bf16.mxu0 0
      %1716 = vmatpush2.bf16.msra.mxu0 %v1651
      %1717 = vmatprep.subr.bf16.mxu0 0
      %1718 = vmatpush2.bf16.msra.mxu0 %v1650
      %1719 = vmatprep.subr.bf16.mxu0 0
      %1720 = vmatpush2.bf16.msra.mxu0 %v1649
      %1721 = vmatprep.mubr.bf16.mxu0 %v1501
      %1722 = vmatmul.mubr.bf16.gmra.mxu0 %v1500
      %v1723 = vpop.f32.mrf.mxu0
      %v1724 = vadd.f32 %v1543, %v1723
      %v1725 = vpop.f32.mrf.mxu0
      %v1726 = vpop.f32.mrf.mxu0
      %v1727 = vadd.f32 %v1543, %v1726
      %v1728 = vpop.f32.mrf.mxu0
      %1729 = vmatprep.mubr.bf16.mxu0 %v1504
      %1730 = vmatmul.mubr.bf16.gmra.mxu0 %v1503
      %v1731 = vpop.f32.mrf.mxu0
      %v1732 = vadd.f32 %v1543, %v1731
      %v1733 = vpop.f32.mrf.mxu0
      %v1734 = vpop.f32.mrf.mxu0
      %v1735 = vadd.f32 %v1543, %v1734
      %v1736 = vpop.f32.mrf.mxu0
      %1737 = vmatprep.mubr.bf16.mxu0 %v1507
      %1738 = vmatmul.mubr.bf16.gmra.mxu0 %v1506
      %v1739 = vpop.f32.mrf.mxu0
      %v1740 = vadd.f32 %v1543, %v1739
      %v1741 = vpop.f32.mrf.mxu0
      %v1742 = vpop.f32.mrf.mxu0
      %v1743 = vadd.f32 %v1543, %v1742
      %v1744 = vpop.f32.mrf.mxu0
      %1745 = vmatprep.mubr.bf16.mxu0 %v1510
      %1746 = vmatmul.mubr.bf16.gmra.mxu0 %v1509
      %v1747 = vpop.f32.mrf.mxu0
      %v1748 = vadd.f32 %v1543, %v1747
      %v1749 = vpop.f32.mrf.mxu0
      %v1750 = vpop.f32.mrf.mxu0
      %v1751 = vadd.f32 %v1543, %v1750
      %v1752 = vpop.f32.mrf.mxu0
      %1753 = vmatprep.mubr.bf16.mxu0 %v1513
      %1754 = vmatmul.mubr.bf16.gmra.mxu0 %v1512
      %v1755 = vpop.f32.mrf.mxu0
      %v1756 = vadd.f32 %v1543, %v1755
      %v1757 = vpop.f32.mrf.mxu0
      %v1758 = vpop.f32.mrf.mxu0
      %v1759 = vadd.f32 %v1543, %v1758
      %v1760 = vpop.f32.mrf.mxu0
      %1761 = vmatprep.mubr.bf16.mxu0 %v1516
      %1762 = vmatmul.mubr.bf16.gmra.mxu0 %v1515
      %v1763 = vpop.f32.mrf.mxu0
      %v1764 = vadd.f32 %v1543, %v1763
      %v1765 = vpop.f32.mrf.mxu0
      %v1766 = vpop.f32.mrf.mxu0
      %v1767 = vadd.f32 %v1543, %v1766
      %v1768 = vpop.f32.mrf.mxu0
      %1769 = vmatprep.mubr.bf16.mxu0 %v1519
      %1770 = vmatmul.mubr.bf16.gmra.mxu0 %v1518
      %v1771 = vpop.f32.mrf.mxu0
      %v1772 = vadd.f32 %v1543, %v1771
      %v1773 = vpop.f32.mrf.mxu0
      %v1774 = vpop.f32.mrf.mxu0
      %v1775 = vadd.f32 %v1543, %v1774
      %v1776 = vpop.f32.mrf.mxu0
      %1777 = vmatprep.mubr.bf16.mxu0 %v1522
      %1778 = vmatmul.mubr.bf16.gmra.mxu0 %v1521
      %v1779 = vpop.f32.mrf.mxu0
      %v1780 = vadd.f32 %v1543, %v1779
      %v1781 = vpop.f32.mrf.mxu0
      %v1782 = vpop.f32.mrf.mxu0
      %v1783 = vadd.f32 %v1543, %v1782
      %v1784 = vpop.f32.mrf.mxu0
      %1785 = vmatprep.mubr.bf16.mxu0 %v1525
      %1786 = vmatmul.mubr.bf16.gmra.mxu0 %v1524
      %v1787 = vpop.f32.mrf.mxu0
      %v1788 = vadd.f32 %v1543, %v1787
      %v1789 = vpop.f32.mrf.mxu0
      %v1790 = vpop.f32.mrf.mxu0
      %v1791 = vadd.f32 %v1543, %v1790
      %v1792 = vpop.f32.mrf.mxu0
      %1793 = vmatprep.mubr.bf16.mxu0 %v1528
      %1794 = vmatmul.mubr.bf16.gmra.mxu0 %v1527
      %v1795 = vpop.f32.mrf.mxu0
      %v1796 = vadd.f32 %v1543, %v1795
      %v1797 = vpop.f32.mrf.mxu0
      %v1798 = vpop.f32.mrf.mxu0
      %v1799 = vadd.f32 %v1543, %v1798
      %v1800 = vpop.f32.mrf.mxu0
      %1801 = vmatprep.mubr.bf16.mxu0 %v1531
      %1802 = vmatmul.mubr.bf16.gmra.mxu0 %v1530
      %v1803 = vpop.f32.mrf.mxu0
      %v1804 = vadd.f32 %v1543, %v1803
      %v1805 = vpop.f32.mrf.mxu0
      %v1806 = vpop.f32.mrf.mxu0
      %v1807 = vadd.f32 %v1543, %v1806
      %v1808 = vpop.f32.mrf.mxu0
      %1809 = vmatprep.mubr.bf16.mxu0 %v1534
      %1810 = vmatmul.mubr.bf16.gmra.mxu0 %v1533
      %v1811 = vpop.f32.mrf.mxu0
      %v1812 = vadd.f32 %v1543, %v1811
      %v1813 = vpop.f32.mrf.mxu0
      %v1814 = vpop.f32.mrf.mxu0
      %v1815 = vadd.f32 %v1543, %v1814
      %v1816 = vpop.f32.mrf.mxu0
      %1817 = vmatprep.mubr.bf16.mxu0 %v1537
      %1818 = vmatmul.mubr.bf16.gmra.mxu0 %v1536
      %v1819 = vpop.f32.mrf.mxu0
      %v1820 = vadd.f32 %v1543, %v1819
      %v1821 = vpop.f32.mrf.mxu0
      %v1822 = vpop.f32.mrf.mxu0
      %v1823 = vpop.f32.mrf.mxu0
      %1824 = vdwg.mxu0
      %1825 = vmatprep.subr.bf16.mxu0 0
      %1826 = vmatpush1.bf16.msra.mxu0 %v1664
      %1827 = vmatprep.subr.bf16.mxu0 0
      %1828 = vmatpush1.bf16.msra.mxu0 %v1663
      %1829 = vmatprep.subr.bf16.mxu0 0
      %1830 = vmatpush1.bf16.msra.mxu0 %v1662
      %1831 = vmatprep.subr.bf16.mxu0 0
      %1832 = vmatpush1.bf16.msra.mxu0 %v1661
      %1833 = vmatprep.subr.bf16.mxu0 0
      %1834 = vmatpush1.bf16.msra.mxu0 %v1660
      %1835 = vmatprep.subr.bf16.mxu0 0
      %1836 = vmatpush1.bf16.msra.mxu0 %v1659
      %1837 = vmatprep.subr.bf16.mxu0 0
      %1838 = vmatpush1.bf16.msra.mxu0 %v1658
      %1839 = vmatprep.subr.bf16.mxu0 0
      %1840 = vmatpush1.bf16.msra.mxu0 %v1657
      %1841 = vmatprep.subr.bf16.mxu0 0
      %1842 = vmatpush2.bf16.msra.mxu0 0
      %1843 = vmatprep.subr.bf16.mxu0 0
      %1844 = vmatpush2.bf16.msra.mxu0 0
      %1845 = vmatprep.subr.bf16.mxu0 0
      %1846 = vmatpush2.bf16.msra.mxu0 0
      %1847 = vmatprep.subr.bf16.mxu0 0
      %1848 = vmatpush2.bf16.msra.mxu0 0
      %1849 = vmatprep.subr.bf16.mxu0 0
      %1850 = vmatpush2.bf16.msra.mxu0 0
      %1851 = vmatprep.subr.bf16.mxu0 0
      %1852 = vmatpush2.bf16.msra.mxu0 0
      %1853 = vmatprep.subr.bf16.mxu0 0
      %1854 = vmatpush2.bf16.msra.mxu0 0
      %1855 = vmatprep.subr.bf16.mxu0 0
      %1856 = vmatpush2.bf16.msra.mxu0 0
      %1857 = vmatprep.mubr.bf16.mxu0 0
      %1858 = vmatmul.mubr.bf16.gmra.mxu0 %v1502
      %v1859 = vpop.f32.mrf.mxu0
      %v1860 = vadd.f32 %v1724, %v1859
      %v1861 = vpop.f32.mrf.mxu0
      %v1862 = vpop.f32.mrf.mxu0
      %v1863 = vadd.f32 %v1727, %v1862
      %v1864 = vpop.f32.mrf.mxu0
      %1865 = vmatprep.mubr.bf16.mxu0 0
      %1866 = vmatmul.mubr.bf16.gmra.mxu0 %v1505
      %v1867 = vpop.f32.mrf.mxu0
      %v1868 = vadd.f32 %v1732, %v1867
      %v1869 = vpop.f32.mrf.mxu0
      %v1870 = vpop.f32.mrf.mxu0
      %v1871 = vadd.f32 %v1735, %v1870
      %v1872 = vpop.f32.mrf.mxu0
      %1873 = vmatprep.mubr.bf16.mxu0 0
      %1874 = vmatmul.mubr.bf16.gmra.mxu0 %v1508
      %v1875 = vpop.f32.mrf.mxu0
      %v1876 = vadd.f32 %v1740, %v1875
      %v1877 = vpop.f32.mrf.mxu0
      %v1878 = vpop.f32.mrf.mxu0
      %v1879 = vadd.f32 %v1743, %v1878
      %v1880 = vpop.f32.mrf.mxu0
      %1881 = vmatprep.mubr.bf16.mxu0 0
      %1882 = vmatmul.mubr.bf16.gmra.mxu0 %v1511
      %v1883 = vpop.f32.mrf.mxu0
      %v1884 = vadd.f32 %v1748, %v1883
      %v1885 = vpop.f32.mrf.mxu0
      %v1886 = vpop.f32.mrf.mxu0
      %v1887 = vadd.f32 %v1751, %v1886
      %v1888 = vpop.f32.mrf.mxu0
      %1889 = vmatprep.mubr.bf16.mxu0 0
      %1890 = vmatmul.mubr.bf16.gmra.mxu0 %v1514
      %v1891 = vpop.f32.mrf.mxu0
      %v1892 = vadd.f32 %v1756, %v1891
      %v1893 = vpop.f32.mrf.mxu0
      %v1894 = vpop.f32.mrf.mxu0
      %v1895 = vadd.f32 %v1759, %v1894
      %v1896 = vpop.f32.mrf.mxu0
      %1897 = vmatprep.mubr.bf16.mxu0 0
      %1898 = vmatmul.mubr.bf16.gmra.mxu0 %v1517
      %v1899 = vpop.f32.mrf.mxu0
      %v1900 = vadd.f32 %v1764, %v1899
      %v1901 = vpop.f32.mrf.mxu0
      %v1902 = vpop.f32.mrf.mxu0
      %v1903 = vadd.f32 %v1767, %v1902
      %v1904 = vpop.f32.mrf.mxu0
      %1905 = vmatprep.mubr.bf16.mxu0 0
      %1906 = vmatmul.mubr.bf16.gmra.mxu0 %v1520
      %v1907 = vpop.f32.mrf.mxu0
      %v1908 = vadd.f32 %v1772, %v1907
      %v1909 = vpop.f32.mrf.mxu0
      %v1910 = vpop.f32.mrf.mxu0
      %v1911 = vadd.f32 %v1775, %v1910
      %v1912 = vpop.f32.mrf.mxu0
      %1913 = vmatprep.mubr.bf16.mxu0 0
      %1914 = vmatmul.mubr.bf16.gmra.mxu0 %v1523
      %v1915 = vpop.f32.mrf.mxu0
      %v1916 = vadd.f32 %v1780, %v1915
      %v1917 = vpop.f32.mrf.mxu0
      %v1918 = vpop.f32.mrf.mxu0
      %v1919 = vadd.f32 %v1783, %v1918
      %v1920 = vpop.f32.mrf.mxu0
      %1921 = vmatprep.mubr.bf16.mxu0 0
      %1922 = vmatmul.mubr.bf16.gmra.mxu0 %v1526
      %v1923 = vpop.f32.mrf.mxu0
      %v1924 = vadd.f32 %v1788, %v1923
      %v1925 = vpop.f32.mrf.mxu0
      %v1926 = vpop.f32.mrf.mxu0
      %v1927 = vadd.f32 %v1791, %v1926
      %v1928 = vpop.f32.mrf.mxu0
      %1929 = vmatprep.mubr.bf16.mxu0 0
      %1930 = vmatmul.mubr.bf16.gmra.mxu0 %v1529
      %v1931 = vpop.f32.mrf.mxu0
      %v1932 = vadd.f32 %v1796, %v1931
      %v1933 = vpop.f32.mrf.mxu0
      %v1934 = vpop.f32.mrf.mxu0
      %v1935 = vadd.f32 %v1799, %v1934
      %v1936 = vpop.f32.mrf.mxu0
      %1937 = vmatprep.mubr.bf16.mxu0 0
      %1938 = vmatmul.mubr.bf16.gmra.mxu0 %v1532
      %v1939 = vpop.f32.mrf.mxu0
      %v1940 = vadd.f32 %v1804, %v1939
      %v1941 = vpop.f32.mrf.mxu0
      %v1942 = vpop.f32.mrf.mxu0
      %v1943 = vadd.f32 %v1807, %v1942
      %v1944 = vpop.f32.mrf.mxu0
      %1945 = vmatprep.mubr.bf16.mxu0 0
      %1946 = vmatmul.mubr.bf16.gmra.mxu0 %v1535
      %v1947 = vpop.f32.mrf.mxu0
      %v1948 = vadd.f32 %v1812, %v1947
      %v1949 = vpop.f32.mrf.mxu0
      %v1950 = vpop.f32.mrf.mxu0
      %v1951 = vadd.f32 %v1815, %v1950
      %v1952 = vpop.f32.mrf.mxu0
      %1953 = vmatprep.mubr.bf16.mxu0 0
      %1954 = vmatmul.mubr.bf16.gmra.mxu0 %v1538
      %v1955 = vpop.f32.mrf.mxu0
      %v1956 = vadd.f32 %v1820, %v1955
      %v1957 = vpop.f32.mrf.mxu0
      %v1958 = vpop.f32.mrf.mxu0
      %v1959 = vpop.f32.mrf.mxu0
      %1960 = vdwg.mxu0
      %v1961 = vmax.f32 %v1860, 0.0
      %v1962 = vmax.f32 %v1863, 0.0
      %v1963 = vmax.f32 %v1868, 0.0
      %v1964 = vmax.f32 %v1871, 0.0
      %v1965 = vmax.f32 %v1876, 0.0
      %v1966 = vmax.f32 %v1879, 0.0
      %v1967 = vmax.f32 %v1884, 0.0
      %v1968 = vmax.f32 %v1887, 0.0
      %v1969 = vmax.f32 %v1892, 0.0
      %v1970 = vmax.f32 %v1895, 0.0
      %v1971 = vmax.f32 %v1900, 0.0
      %v1972 = vmax.f32 %v1903, 0.0
      %v1973 = vmax.f32 %v1908, 0.0
      %v1974 = vmax.f32 %v1911, 0.0
      %v1975 = vmax.f32 %v1916, 0.0
      %v1976 = vmax.f32 %v1919, 0.0
      %v1977 = vmax.f32 %v1924, 0.0
      %v1978 = vmax.f32 %v1927, 0.0
      %v1979 = vmax.f32 %v1932, 0.0
      %v1980 = vmax.f32 %v1935, 0.0
      %v1981 = vmax.f32 %v1940, 0.0
      %v1982 = vmax.f32 %v1943, 0.0
      %v1983 = vmax.f32 %v1948, 0.0
      %v1984 = vmax.f32 %v1951, 0.0
      %v1985 = vmax.f32 %v1956, 0.0
      %vm1986 = vcmask 261120
      %1987 = vst.msk [vmem:[#allocation3] sm:$0xff] %vm1986, %v1961
      %1988 = vst.msk [vmem:[#allocation3 + $0x8] sm:$0xff] %vm1986, %v1962
      %1989 = vst.msk [vmem:[#allocation3 + $0x10] sm:$0xff] %vm1986, %v1963
      %1990 = vst.msk [vmem:[#allocation3 + $0x18] sm:$0xff] %vm1986, %v1964
      %1991 = vst.msk [vmem:[#allocation3 + $0x20] sm:$0xff] %vm1986, %v1965
      %1992 = vst.msk [vmem:[#allocation3 + $0x28] sm:$0xff] %vm1986, %v1966
      %1993 = vst.msk [vmem:[#allocation3 + $0x30] sm:$0xff] %vm1986, %v1967
      %1994 = vst.msk [vmem:[#allocation3 + $0x38] sm:$0xff] %vm1986, %v1968
      %1995 = vst.msk [vmem:[#allocation3 + $0x40] sm:$0xff] %vm1986, %v1969
      %1996 = vst.msk [vmem:[#allocation3 + $0x48] sm:$0xff] %vm1986, %v1970
      %1997 = vst.msk [vmem:[#allocation3 + $0x50] sm:$0xff] %vm1986, %v1971
      %1998 = vst.msk [vmem:[#allocation3 + $0x58] sm:$0xff] %vm1986, %v1972
      %1999 = vst.msk [vmem:[#allocation3 + $0x60] sm:$0xff] %vm1986, %v1973
      %2000 = vst.msk [vmem:[#allocation3 + $0x68] sm:$0xff] %vm1986, %v1974
      %2001 = vst.msk [vmem:[#allocation3 + $0x70] sm:$0xff] %vm1986, %v1975
      %2002 = vst.msk [vmem:[#allocation3 + $0x78] sm:$0xff] %vm1986, %v1976
      %2003 = vst.msk [vmem:[#allocation3 + $0x80] sm:$0xff] %vm1986, %v1977
      %2004 = vst.msk [vmem:[#allocation3 + $0x88] sm:$0xff] %vm1986, %v1978
      %2005 = vst.msk [vmem:[#allocation3 + $0x90] sm:$0xff] %vm1986, %v1979
      %2006 = vst.msk [vmem:[#allocation3 + $0x98] sm:$0xff] %vm1986, %v1980
      %2007 = vst.msk [vmem:[#allocation3 + $0xa0] sm:$0xff] %vm1986, %v1981
      %2008 = vst.msk [vmem:[#allocation3 + $0xa8] sm:$0xff] %vm1986, %v1982
      %2009 = vst.msk [vmem:[#allocation3 + $0xb0] sm:$0xff] %vm1986, %v1983
      %2010 = vst.msk [vmem:[#allocation3 + $0xb8] sm:$0xff] %vm1986, %v1984
      %2011 = vst.msk [vmem:[#allocation3 + $0xc0] sm:$0xff] %vm1986, %v1985
      %v2012 = vld [vmem:[#allocation3] sm:$0xff]
      %v2013 = vld [vmem:[#allocation3 + $0x8] sm:$0x1]
      %v2014 = vld [vmem:[#allocation3 + $0x1] sm:$0xff]
      %v2015 = vld [vmem:[#allocation3 + $0x9] sm:$0x1]
      %v2016 = vld [vmem:[#allocation3 + $0xa] sm:$0xff]
      %v2017 = vld [vmem:[#allocation3 + $0x12] sm:$0x1]
      %v2018 = vld [vmem:[#allocation3 + $0xb] sm:$0xff]
      %v2019 = vld [vmem:[#allocation3 + $0x13] sm:$0x1]
      %v2020 = vld [vmem:[#allocation3 + $0x14] sm:$0xff]
      %v2021 = vld [vmem:[#allocation3 + $0x1c] sm:$0x1]
      %v2022 = vld [vmem:[#allocation3 + $0x15] sm:$0xff]
      %v2023 = vld [vmem:[#allocation3 + $0x1d] sm:$0x1]
      %v2024 = vld [vmem:[#allocation3 + $0x1e] sm:$0xff]
      %v2025 = vld [vmem:[#allocation3 + $0x26] sm:$0x1]
      %v2026 = vld [vmem:[#allocation3 + $0x1f] sm:$0xff]
      %v2027 = vld [vmem:[#allocation3 + $0x27] sm:$0x1]
      %2030 = vrot.lane.b32.xlu0 %v2014, 32
      %v2031 = vpop.permute.xlu0 %2030
      %2032 = vrot.lane.b32.xlu0 %v2015, 32
      %v2033 = vpop.permute.xlu0 %2032
      %2038 = vrot.lane.b32.xlu0 %v2016, 64
      %v2039 = vpop.permute.xlu0 %2038
      %2040 = vrot.lane.b32.xlu0 %v2017, 64
      %v2041 = vpop.permute.xlu0 %2040
      %2046 = vrot.lane.b32.xlu0 %v2018, 96
      %v2047 = vpop.permute.xlu0 %2046
      %2048 = vrot.lane.b32.xlu0 %v2019, 96
      %v2049 = vpop.permute.xlu0 %2048
      %2054 = vrot.lane.b32.xlu0 %v2022, 32
      %v2055 = vpop.permute.xlu0 %2054
      %2056 = vrot.lane.b32.xlu0 %v2023, 32
      %v2057 = vpop.permute.xlu0 %2056
      %2062 = vrot.lane.b32.xlu0 %v2024, 64
      %v2063 = vpop.permute.xlu0 %2062
      %2064 = vrot.lane.b32.xlu0 %v2025, 64
      %v2065 = vpop.permute.xlu0 %2064
      %2070 = vrot.lane.b32.xlu0 %v2026, 96
      %v2071 = vpop.permute.xlu0 %2070
      %2072 = vrot.lane.b32.xlu0 %v2027, 96
      %v2073 = vpop.permute.xlu0 %2072
      %v2076 = vsel %vm1986, %v2012, %v2031
      %v2077 = vsel %vm1986, %v2013, %v2033
      %v2078 = vsel %vm260, %v2076, %v2039
      %v2079 = vsel %vm260, %v2077, %v2041
      %vm2080 = vcmask 785408
      %v2081 = vsel %vm2080, %v2078, %v2047
      %v2082 = vsel %vm2080, %v2079, %v2049
      %v2083 = vsel %vm1986, %v2020, %v2055
      %v2084 = vsel %vm1986, %v2021, %v2057
      %v2085 = vsel %vm260, %v2083, %v2063
      %v2086 = vsel %vm260, %v2084, %v2065
      %v2087 = vsel %vm2080, %v2085, %v2071
      %v2088 = vsel %vm2080, %v2086, %v2073
      %2089 = vst [vmem:[#allocation4] sm:$0xff] %v2081
      %2090 = vst [vmem:[#allocation4 + $0x8] sm:$0xff] %v2087
      %2091 = vst [vmem:[#allocation4 + $0x10] sm:$0x1] %v2082
      %2092 = vst [vmem:[#allocation4 + $0x18] sm:$0x1] %v2088
      %v2093 = vld [vmem:[#allocation3 + $0x14] sm:$0xff]
      %v2094 = vld [vmem:[#allocation3 + $0x1c] sm:$0x1]
      %v2095 = vld [vmem:[#allocation3 + $0x15] sm:$0xff]
      %v2096 = vld [vmem:[#allocation3 + $0x1d] sm:$0x1]
      %v2097 = vld [vmem:[#allocation3 + $0x1e] sm:$0xff]
      %v2098 = vld [vmem:[#allocation3 + $0x26] sm:$0x1]
      %v2099 = vld [vmem:[#allocation3 + $0x1f] sm:$0xff]
      %v2100 = vld [vmem:[#allocation3 + $0x27] sm:$0x1]
      %v2101 = vld [vmem:[#allocation3 + $0x28] sm:$0xff]
      %v2102 = vld [vmem:[#allocation3 + $0x30] sm:$0x1]
      %v2103 = vld [vmem:[#allocation3 + $0x29] sm:$0xff]
      %v2104 = vld [vmem:[#allocation3 + $0x31] sm:$0x1]
      %v2105 = vld [vmem:[#allocation3 + $0x32] sm:$0xff]
      %v2106 = vld [vmem:[#allocation3 + $0x3a] sm:$0x1]
      %v2107 = vld [vmem:[#allocation3 + $0x33] sm:$0xff]
      %v2108 = vld [vmem:[#allocation3 + $0x3b] sm:$0x1]
      %2111 = vrot.lane.b32.xlu0 %v2095, 32
      %v2112 = vpop.permute.xlu0 %2111
      %2113 = vrot.lane.b32.xlu0 %v2096, 32
      %v2114 = vpop.permute.xlu0 %2113
      %2119 = vrot.lane.b32.xlu0 %v2097, 64
      %v2120 = vpop.permute.xlu0 %2119
      %2121 = vrot.lane.b32.xlu0 %v2098, 64
      %v2122 = vpop.permute.xlu0 %2121
      %2127 = vrot.lane.b32.xlu0 %v2099, 96
      %v2128 = vpop.permute.xlu0 %2127
      %2129 = vrot.lane.b32.xlu0 %v2100, 96
      %v2130 = vpop.permute.xlu0 %2129
      %2135 = vrot.lane.b32.xlu0 %v2103, 32
      %v2136 = vpop.permute.xlu0 %2135
      %2137 = vrot.lane.b32.xlu0 %v2104, 32
      %v2138 = vpop.permute.xlu0 %2137
      %2143 = vrot.lane.b32.xlu0 %v2105, 64
      %v2144 = vpop.permute.xlu0 %2143
      %2145 = vrot.lane.b32.xlu0 %v2106, 64
      %v2146 = vpop.permute.xlu0 %2145
      %2151 = vrot.lane.b32.xlu0 %v2107, 96
      %v2152 = vpop.permute.xlu0 %2151
      %2153 = vrot.lane.b32.xlu0 %v2108, 96
      %v2154 = vpop.permute.xlu0 %2153
      %v2157 = vsel %vm1986, %v2093, %v2112
      %v2158 = vsel %vm1986, %v2094, %v2114
      %v2159 = vsel %vm260, %v2157, %v2120
      %v2160 = vsel %vm260, %v2158, %v2122
      %v2161 = vsel %vm2080, %v2159, %v2128
      %v2162 = vsel %vm2080, %v2160, %v2130
      %v2163 = vsel %vm1986, %v2101, %v2136
      %v2164 = vsel %vm1986, %v2102, %v2138
      %v2165 = vsel %vm260, %v2163, %v2144
      %v2166 = vsel %vm260, %v2164, %v2146
      %v2167 = vsel %vm2080, %v2165, %v2152
      %v2168 = vsel %vm2080, %v2166, %v2154
      %vm2173 = vcmask 1040384
      %v2174 = vrot.slane %v2161, 7
      %v2175 = vrot.slane %v2167, 7
      %v2176 = vrot.slane %v2162, 7
      %v2177 = vsel %vm2173, %v2174, %v2176
      %v2178 = vrot.slane %v2168, 7
      %v2179 = vsel %vm2173, %v2175, %v2178
      %2184 = vst [vmem:[#allocation4 + $0x10] sm:$0xfe] %v2174
      %2185 = vst [vmem:[#allocation4 + $0x18] sm:$0xfe] %v2175
      %2186 = vst [vmem:[#allocation4 + $0x20] sm:$0x3] %v2177
      %2187 = vst [vmem:[#allocation4 + $0x28] sm:$0x3] %v2179
      %v2188 = vld [vmem:[#allocation3 + $0x28] sm:$0xff]
      %v2189 = vld [vmem:[#allocation3 + $0x30] sm:$0x1]
      %v2190 = vld [vmem:[#allocation3 + $0x29] sm:$0xff]
      %v2191 = vld [vmem:[#allocation3 + $0x31] sm:$0x1]
      %v2192 = vld [vmem:[#allocation3 + $0x32] sm:$0xff]
      %v2193 = vld [vmem:[#allocation3 + $0x3a] sm:$0x1]
      %v2194 = vld [vmem:[#allocation3 + $0x33] sm:$0xff]
      %v2195 = vld [vmem:[#allocation3 + $0x3b] sm:$0x1]
      %v2196 = vld [vmem:[#allocation3 + $0x3c] sm:$0xff]
      %v2197 = vld [vmem:[#allocation3 + $0x44] sm:$0x1]
      %v2198 = vld [vmem:[#allocation3 + $0x3d] sm:$0xff]
      %v2199 = vld [vmem:[#allocation3 + $0x45] sm:$0x1]
      %v2200 = vld [vmem:[#allocation3 + $0x46] sm:$0xff]
      %v2201 = vld [vmem:[#allocation3 + $0x4e] sm:$0x1]
      %v2202 = vld [vmem:[#allocation3 + $0x47] sm:$0xff]
      %v2203 = vld [vmem:[#allocation3 + $0x4f] sm:$0x1]
      %2206 = vrot.lane.b32.xlu0 %v2190, 32
      %v2207 = vpop.permute.xlu0 %2206
      %2208 = vrot.lane.b32.xlu0 %v2191, 32
      %v2209 = vpop.permute.xlu0 %2208
      %2214 = vrot.lane.b32.xlu0 %v2192, 64
      %v2215 = vpop.permute.xlu0 %2214
      %2216 = vrot.lane.b32.xlu0 %v2193, 64
      %v2217 = vpop.permute.xlu0 %2216
      %2222 = vrot.lane.b32.xlu0 %v2194, 96
      %v2223 = vpop.permute.xlu0 %2222
      %2224 = vrot.lane.b32.xlu0 %v2195, 96
      %v2225 = vpop.permute.xlu0 %2224
      %2230 = vrot.lane.b32.xlu0 %v2198, 32
      %v2231 = vpop.permute.xlu0 %2230
      %2232 = vrot.lane.b32.xlu0 %v2199, 32
      %v2233 = vpop.permute.xlu0 %2232
      %2238 = vrot.lane.b32.xlu0 %v2200, 64
      %v2239 = vpop.permute.xlu0 %2238
      %2240 = vrot.lane.b32.xlu0 %v2201, 64
      %v2241 = vpop.permute.xlu0 %2240
      %2246 = vrot.lane.b32.xlu0 %v2202, 96
      %v2247 = vpop.permute.xlu0 %2246
      %2248 = vrot.lane.b32.xlu0 %v2203, 96
      %v2249 = vpop.permute.xlu0 %2248
      %v2252 = vsel %vm1986, %v2188, %v2207
      %v2253 = vsel %vm1986, %v2189, %v2209
      %v2254 = vsel %vm260, %v2252, %v2215
      %v2255 = vsel %vm260, %v2253, %v2217
      %v2256 = vsel %vm2080, %v2254, %v2223
      %v2257 = vsel %vm2080, %v2255, %v2225
      %v2258 = vsel %vm1986, %v2196, %v2231
      %v2259 = vsel %vm1986, %v2197, %v2233
      %v2260 = vsel %vm260, %v2258, %v2239
      %v2261 = vsel %vm260, %v2259, %v2241
      %v2262 = vsel %vm2080, %v2260, %v2247
      %v2263 = vsel %vm2080, %v2261, %v2249
      %v2268 = vrot.slane %v2256, 6
      %v2269 = vrot.slane %v2262, 6
      %v2270 = vrot.slane %v2257, 6
      %v2271 = vsel %vm312, %v2268, %v2270
      %v2272 = vrot.slane %v2263, 6
      %v2273 = vsel %vm312, %v2269, %v2272
      %2278 = vst [vmem:[#allocation4 + $0x20] sm:$0xfc] %v2268
      %2279 = vst [vmem:[#allocation4 + $0x28] sm:$0xfc] %v2269
      %2280 = vst [vmem:[#allocation4 + $0x30] sm:$0x7] %v2271
      %2281 = vst [vmem:[#allocation4 + $0x38] sm:$0x7] %v2273
      %v2282 = vld [vmem:[#allocation3 + $0x3c] sm:$0xff]
      %v2283 = vld [vmem:[#allocation3 + $0x44] sm:$0x1]
      %v2284 = vld [vmem:[#allocation3 + $0x3d] sm:$0xff]
      %v2285 = vld [vmem:[#allocation3 + $0x45] sm:$0x1]
      %v2286 = vld [vmem:[#allocation3 + $0x46] sm:$0xff]
      %v2287 = vld [vmem:[#allocation3 + $0x4e] sm:$0x1]
      %v2288 = vld [vmem:[#allocation3 + $0x47] sm:$0xff]
      %v2289 = vld [vmem:[#allocation3 + $0x4f] sm:$0x1]
      %v2290 = vld [vmem:[#allocation3 + $0x50] sm:$0xff]
      %v2291 = vld [vmem:[#allocation3 + $0x58] sm:$0x1]
      %v2292 = vld [vmem:[#allocation3 + $0x51] sm:$0xff]
      %v2293 = vld [vmem:[#allocation3 + $0x59] sm:$0x1]
      %v2294 = vld [vmem:[#allocation3 + $0x5a] sm:$0xff]
      %v2295 = vld [vmem:[#allocation3 + $0x62] sm:$0x1]
      %v2296 = vld [vmem:[#allocation3 + $0x5b] sm:$0xff]
      %v2297 = vld [vmem:[#allocation3 + $0x63] sm:$0x1]
      %2300 = vrot.lane.b32.xlu0 %v2284, 32
      %v2301 = vpop.permute.xlu0 %2300
      %2302 = vrot.lane.b32.xlu0 %v2285, 32
      %v2303 = vpop.permute.xlu0 %2302
      %2308 = vrot.lane.b32.xlu0 %v2286, 64
      %v2309 = vpop.permute.xlu0 %2308
      %2310 = vrot.lane.b32.xlu0 %v2287, 64
      %v2311 = vpop.permute.xlu0 %2310
      %2316 = vrot.lane.b32.xlu0 %v2288, 96
      %v2317 = vpop.permute.xlu0 %2316
      %2318 = vrot.lane.b32.xlu0 %v2289, 96
      %v2319 = vpop.permute.xlu0 %2318
      %2324 = vrot.lane.b32.xlu0 %v2292, 32
      %v2325 = vpop.permute.xlu0 %2324
      %2326 = vrot.lane.b32.xlu0 %v2293, 32
      %v2327 = vpop.permute.xlu0 %2326
      %2332 = vrot.lane.b32.xlu0 %v2294, 64
      %v2333 = vpop.permute.xlu0 %2332
      %2334 = vrot.lane.b32.xlu0 %v2295, 64
      %v2335 = vpop.permute.xlu0 %2334
      %2340 = vrot.lane.b32.xlu0 %v2296, 96
      %v2341 = vpop.permute.xlu0 %2340
      %2342 = vrot.lane.b32.xlu0 %v2297, 96
      %v2343 = vpop.permute.xlu0 %2342
      %v2346 = vsel %vm1986, %v2282, %v2301
      %v2347 = vsel %vm1986, %v2283, %v2303
      %v2348 = vsel %vm260, %v2346, %v2309
      %v2349 = vsel %vm260, %v2347, %v2311
      %v2350 = vsel %vm2080, %v2348, %v2317
      %v2351 = vsel %vm2080, %v2349, %v2319
      %v2352 = vsel %vm1986, %v2290, %v2325
      %v2353 = vsel %vm1986, %v2291, %v2327
      %v2354 = vsel %vm260, %v2352, %v2333
      %v2355 = vsel %vm260, %v2353, %v2335
      %v2356 = vsel %vm2080, %v2354, %v2341
      %v2357 = vsel %vm2080, %v2355, %v2343
      %vm2362 = vcmask 1042432
      %v2363 = vrot.slane %v2350, 5
      %v2364 = vrot.slane %v2356, 5
      %v2365 = vrot.slane %v2351, 5
      %v2366 = vsel %vm2362, %v2363, %v2365
      %v2367 = vrot.slane %v2357, 5
      %v2368 = vsel %vm2362, %v2364, %v2367
      %2373 = vst [vmem:[#allocation4 + $0x30] sm:$0xf8] %v2363
      %2374 = vst [vmem:[#allocation4 + $0x38] sm:$0xf8] %v2364
      %2375 = vst [vmem:[#allocation4 + $0x40] sm:$0xf] %v2366
      %2376 = vst [vmem:[#allocation4 + $0x48] sm:$0xf] %v2368
      %v2377 = vld [vmem:[#allocation3 + $0x50] sm:$0xff]
      %v2378 = vld [vmem:[#allocation3 + $0x58] sm:$0x1]
      %v2379 = vld [vmem:[#allocation3 + $0x51] sm:$0xff]
      %v2380 = vld [vmem:[#allocation3 + $0x59] sm:$0x1]
      %v2381 = vld [vmem:[#allocation3 + $0x5a] sm:$0xff]
      %v2382 = vld [vmem:[#allocation3 + $0x62] sm:$0x1]
      %v2383 = vld [vmem:[#allocation3 + $0x5b] sm:$0xff]
      %v2384 = vld [vmem:[#allocation3 + $0x63] sm:$0x1]
      %v2385 = vld [vmem:[#allocation3 + $0x64] sm:$0xff]
      %v2386 = vld [vmem:[#allocation3 + $0x6c] sm:$0x1]
      %v2387 = vld [vmem:[#allocation3 + $0x65] sm:$0xff]
      %v2388 = vld [vmem:[#allocation3 + $0x6d] sm:$0x1]
      %v2389 = vld [vmem:[#allocation3 + $0x6e] sm:$0xff]
      %v2390 = vld [vmem:[#allocation3 + $0x76] sm:$0x1]
      %v2391 = vld [vmem:[#allocation3 + $0x6f] sm:$0xff]
      %v2392 = vld [vmem:[#allocation3 + $0x77] sm:$0x1]
      %2395 = vrot.lane.b32.xlu0 %v2379, 32
      %v2396 = vpop.permute.xlu0 %2395
      %2397 = vrot.lane.b32.xlu0 %v2380, 32
      %v2398 = vpop.permute.xlu0 %2397
      %2403 = vrot.lane.b32.xlu0 %v2381, 64
      %v2404 = vpop.permute.xlu0 %2403
      %2405 = vrot.lane.b32.xlu0 %v2382, 64
      %v2406 = vpop.permute.xlu0 %2405
      %2411 = vrot.lane.b32.xlu0 %v2383, 96
      %v2412 = vpop.permute.xlu0 %2411
      %2413 = vrot.lane.b32.xlu0 %v2384, 96
      %v2414 = vpop.permute.xlu0 %2413
      %2419 = vrot.lane.b32.xlu0 %v2387, 32
      %v2420 = vpop.permute.xlu0 %2419
      %2421 = vrot.lane.b32.xlu0 %v2388, 32
      %v2422 = vpop.permute.xlu0 %2421
      %2427 = vrot.lane.b32.xlu0 %v2389, 64
      %v2428 = vpop.permute.xlu0 %2427
      %2429 = vrot.lane.b32.xlu0 %v2390, 64
      %v2430 = vpop.permute.xlu0 %2429
      %2435 = vrot.lane.b32.xlu0 %v2391, 96
      %v2436 = vpop.permute.xlu0 %2435
      %2437 = vrot.lane.b32.xlu0 %v2392, 96
      %v2438 = vpop.permute.xlu0 %2437
      %v2441 = vsel %vm1986, %v2377, %v2396
      %v2442 = vsel %vm1986, %v2378, %v2398
      %v2443 = vsel %vm260, %v2441, %v2404
      %v2444 = vsel %vm260, %v2442, %v2406
      %v2445 = vsel %vm2080, %v2443, %v2412
      %v2446 = vsel %vm2080, %v2444, %v2414
      %v2447 = vsel %vm1986, %v2385, %v2420
      %v2448 = vsel %vm1986, %v2386, %v2422
      %v2449 = vsel %vm260, %v2447, %v2428
      %v2450 = vsel %vm260, %v2448, %v2430
      %v2451 = vsel %vm2080, %v2449, %v2436
      %v2452 = vsel %vm2080, %v2450, %v2438
      %v2457 = vrot.slane %v2445, 4
      %v2458 = vrot.slane %v2451, 4
      %v2459 = vrot.slane %v2446, 4
      %v2460 = vsel %vm375, %v2457, %v2459
      %v2461 = vrot.slane %v2452, 4
      %v2462 = vsel %vm375, %v2458, %v2461
      %2467 = vst [vmem:[#allocation4 + $0x40] sm:$0xf0] %v2457
      %2468 = vst [vmem:[#allocation4 + $0x48] sm:$0xf0] %v2458
      %2469 = vst [vmem:[#allocation4 + $0x50] sm:$0x1f] %v2460
      %2470 = vst [vmem:[#allocation4 + $0x58] sm:$0x1f] %v2462
      %v2471 = vld [vmem:[#allocation3 + $0x64] sm:$0xff]
      %v2472 = vld [vmem:[#allocation3 + $0x6c] sm:$0x1]
      %v2473 = vld [vmem:[#allocation3 + $0x65] sm:$0xff]
      %v2474 = vld [vmem:[#allocation3 + $0x6d] sm:$0x1]
      %v2475 = vld [vmem:[#allocation3 + $0x6e] sm:$0xff]
      %v2476 = vld [vmem:[#allocation3 + $0x76] sm:$0x1]
      %v2477 = vld [vmem:[#allocation3 + $0x6f] sm:$0xff]
      %v2478 = vld [vmem:[#allocation3 + $0x77] sm:$0x1]
      %v2479 = vld [vmem:[#allocation3 + $0x78] sm:$0xff]
      %v2480 = vld [vmem:[#allocation3 + $0x80] sm:$0x1]
      %v2481 = vld [vmem:[#allocation3 + $0x79] sm:$0xff]
      %v2482 = vld [vmem:[#allocation3 + $0x81] sm:$0x1]
      %v2483 = vld [vmem:[#allocation3 + $0x82] sm:$0xff]
      %v2484 = vld [vmem:[#allocation3 + $0x8a] sm:$0x1]
      %v2485 = vld [vmem:[#allocation3 + $0x83] sm:$0xff]
      %v2486 = vld [vmem:[#allocation3 + $0x8b] sm:$0x1]
      %2489 = vrot.lane.b32.xlu0 %v2473, 32
      %v2490 = vpop.permute.xlu0 %2489
      %2491 = vrot.lane.b32.xlu0 %v2474, 32
      %v2492 = vpop.permute.xlu0 %2491
      %2497 = vrot.lane.b32.xlu0 %v2475, 64
      %v2498 = vpop.permute.xlu0 %2497
      %2499 = vrot.lane.b32.xlu0 %v2476, 64
      %v2500 = vpop.permute.xlu0 %2499
      %2505 = vrot.lane.b32.xlu0 %v2477, 96
      %v2506 = vpop.permute.xlu0 %2505
      %2507 = vrot.lane.b32.xlu0 %v2478, 96
      %v2508 = vpop.permute.xlu0 %2507
      %2513 = vrot.lane.b32.xlu0 %v2481, 32
      %v2514 = vpop.permute.xlu0 %2513
      %2515 = vrot.lane.b32.xlu0 %v2482, 32
      %v2516 = vpop.permute.xlu0 %2515
      %2521 = vrot.lane.b32.xlu0 %v2483, 64
      %v2522 = vpop.permute.xlu0 %2521
      %2523 = vrot.lane.b32.xlu0 %v2484, 64
      %v2524 = vpop.permute.xlu0 %2523
      %2529 = vrot.lane.b32.xlu0 %v2485, 96
      %v2530 = vpop.permute.xlu0 %2529
      %2531 = vrot.lane.b32.xlu0 %v2486, 96
      %v2532 = vpop.permute.xlu0 %2531
      %v2535 = vsel %vm1986, %v2471, %v2490
      %v2536 = vsel %vm1986, %v2472, %v2492
      %v2537 = vsel %vm260, %v2535, %v2498
      %v2538 = vsel %vm260, %v2536, %v2500
      %v2539 = vsel %vm2080, %v2537, %v2506
      %v2540 = vsel %vm2080, %v2538, %v2508
      %v2541 = vsel %vm1986, %v2479, %v2514
      %v2542 = vsel %vm1986, %v2480, %v2516
      %v2543 = vsel %vm260, %v2541, %v2522
      %v2544 = vsel %vm260, %v2542, %v2524
      %v2545 = vsel %vm2080, %v2543, %v2530
      %v2546 = vsel %vm2080, %v2544, %v2532
      %vm2551 = vcmask 1044480
      %v2552 = vrot.slane %v2539, 3
      %v2553 = vrot.slane %v2545, 3
      %v2554 = vrot.slane %v2540, 3
      %v2555 = vsel %vm2551, %v2552, %v2554
      %v2556 = vrot.slane %v2546, 3
      %v2557 = vsel %vm2551, %v2553, %v2556
      %2562 = vst [vmem:[#allocation4 + $0x50] sm:$0xe0] %v2552
      %2563 = vst [vmem:[#allocation4 + $0x58] sm:$0xe0] %v2553
      %2564 = vst [vmem:[#allocation4 + $0x60] sm:$0x3f] %v2555
      %2565 = vst [vmem:[#allocation4 + $0x68] sm:$0x3f] %v2557
      %v2566 = vld [vmem:[#allocation3 + $0x78] sm:$0xff]
      %v2567 = vld [vmem:[#allocation3 + $0x80] sm:$0x1]
      %v2568 = vld [vmem:[#allocation3 + $0x79] sm:$0xff]
      %v2569 = vld [vmem:[#allocation3 + $0x81] sm:$0x1]
      %v2570 = vld [vmem:[#allocation3 + $0x82] sm:$0xff]
      %v2571 = vld [vmem:[#allocation3 + $0x8a] sm:$0x1]
      %v2572 = vld [vmem:[#allocation3 + $0x83] sm:$0xff]
      %v2573 = vld [vmem:[#allocation3 + $0x8b] sm:$0x1]
      %v2574 = vld [vmem:[#allocation3 + $0x8c] sm:$0xff]
      %v2575 = vld [vmem:[#allocation3 + $0x94] sm:$0x1]
      %v2576 = vld [vmem:[#allocation3 + $0x8d] sm:$0xff]
      %v2577 = vld [vmem:[#allocation3 + $0x95] sm:$0x1]
      %v2578 = vld [vmem:[#allocation3 + $0x96] sm:$0xff]
      %v2579 = vld [vmem:[#allocation3 + $0x9e] sm:$0x1]
      %v2580 = vld [vmem:[#allocation3 + $0x97] sm:$0xff]
      %v2581 = vld [vmem:[#allocation3 + $0x9f] sm:$0x1]
      %2584 = vrot.lane.b32.xlu0 %v2568, 32
      %v2585 = vpop.permute.xlu0 %2584
      %2586 = vrot.lane.b32.xlu0 %v2569, 32
      %v2587 = vpop.permute.xlu0 %2586
      %2592 = vrot.lane.b32.xlu0 %v2570, 64
      %v2593 = vpop.permute.xlu0 %2592
      %2594 = vrot.lane.b32.xlu0 %v2571, 64
      %v2595 = vpop.permute.xlu0 %2594
      %2600 = vrot.lane.b32.xlu0 %v2572, 96
      %v2601 = vpop.permute.xlu0 %2600
      %2602 = vrot.lane.b32.xlu0 %v2573, 96
      %v2603 = vpop.permute.xlu0 %2602
      %2608 = vrot.lane.b32.xlu0 %v2576, 32
      %v2609 = vpop.permute.xlu0 %2608
      %2610 = vrot.lane.b32.xlu0 %v2577, 32
      %v2611 = vpop.permute.xlu0 %2610
      %2616 = vrot.lane.b32.xlu0 %v2578, 64
      %v2617 = vpop.permute.xlu0 %2616
      %2618 = vrot.lane.b32.xlu0 %v2579, 64
      %v2619 = vpop.permute.xlu0 %2618
      %2624 = vrot.lane.b32.xlu0 %v2580, 96
      %v2625 = vpop.permute.xlu0 %2624
      %2626 = vrot.lane.b32.xlu0 %v2581, 96
      %v2627 = vpop.permute.xlu0 %2626
      %v2630 = vsel %vm1986, %v2566, %v2585
      %v2631 = vsel %vm1986, %v2567, %v2587
      %v2632 = vsel %vm260, %v2630, %v2593
      %v2633 = vsel %vm260, %v2631, %v2595
      %v2634 = vsel %vm2080, %v2632, %v2601
      %v2635 = vsel %vm2080, %v2633, %v2603
      %v2636 = vsel %vm1986, %v2574, %v2609
      %v2637 = vsel %vm1986, %v2575, %v2611
      %v2638 = vsel %vm260, %v2636, %v2617
      %v2639 = vsel %vm260, %v2637, %v2619
      %v2640 = vsel %vm2080, %v2638, %v2625
      %v2641 = vsel %vm2080, %v2639, %v2627
      %v2646 = vrot.slane %v2634, 2
      %v2647 = vrot.slane %v2640, 2
      %v2648 = vrot.slane %v2635, 2
      %v2649 = vsel %vm438, %v2646, %v2648
      %v2650 = vrot.slane %v2641, 2
      %v2651 = vsel %vm438, %v2647, %v2650
      %2656 = vst [vmem:[#allocation4 + $0x60] sm:$0xc0] %v2646
      %2657 = vst [vmem:[#allocation4 + $0x68] sm:$0xc0] %v2647
      %2658 = vst [vmem:[#allocation4 + $0x70] sm:$0x7f] %v2649
      %2659 = vst [vmem:[#allocation4 + $0x78] sm:$0x7f] %v2651
      %v2660 = vld [vmem:[#allocation3 + $0x8c] sm:$0xff]
      %v2661 = vld [vmem:[#allocation3 + $0x94] sm:$0x1]
      %v2662 = vld [vmem:[#allocation3 + $0x8d] sm:$0xff]
      %v2663 = vld [vmem:[#allocation3 + $0x95] sm:$0x1]
      %v2664 = vld [vmem:[#allocation3 + $0x96] sm:$0xff]
      %v2665 = vld [vmem:[#allocation3 + $0x9e] sm:$0x1]
      %v2666 = vld [vmem:[#allocation3 + $0x97] sm:$0xff]
      %v2667 = vld [vmem:[#allocation3 + $0x9f] sm:$0x1]
      %v2668 = vld [vmem:[#allocation3 + $0xa0] sm:$0xff]
      %v2669 = vld [vmem:[#allocation3 + $0xa8] sm:$0x1]
      %v2670 = vld [vmem:[#allocation3 + $0xa1] sm:$0xff]
      %v2671 = vld [vmem:[#allocation3 + $0xa9] sm:$0x1]
      %v2672 = vld [vmem:[#allocation3 + $0xaa] sm:$0xff]
      %v2673 = vld [vmem:[#allocation3 + $0xb2] sm:$0x1]
      %v2674 = vld [vmem:[#allocation3 + $0xab] sm:$0xff]
      %v2675 = vld [vmem:[#allocation3 + $0xb3] sm:$0x1]
      %2678 = vrot.lane.b32.xlu0 %v2662, 32
      %v2679 = vpop.permute.xlu0 %2678
      %2680 = vrot.lane.b32.xlu0 %v2663, 32
      %v2681 = vpop.permute.xlu0 %2680
      %2686 = vrot.lane.b32.xlu0 %v2664, 64
      %v2687 = vpop.permute.xlu0 %2686
      %2688 = vrot.lane.b32.xlu0 %v2665, 64
      %v2689 = vpop.permute.xlu0 %2688
      %2694 = vrot.lane.b32.xlu0 %v2666, 96
      %v2695 = vpop.permute.xlu0 %2694
      %2696 = vrot.lane.b32.xlu0 %v2667, 96
      %v2697 = vpop.permute.xlu0 %2696
      %2702 = vrot.lane.b32.xlu0 %v2670, 32
      %v2703 = vpop.permute.xlu0 %2702
      %2704 = vrot.lane.b32.xlu0 %v2671, 32
      %v2705 = vpop.permute.xlu0 %2704
      %2710 = vrot.lane.b32.xlu0 %v2672, 64
      %v2711 = vpop.permute.xlu0 %2710
      %2712 = vrot.lane.b32.xlu0 %v2673, 64
      %v2713 = vpop.permute.xlu0 %2712
      %2718 = vrot.lane.b32.xlu0 %v2674, 96
      %v2719 = vpop.permute.xlu0 %2718
      %2720 = vrot.lane.b32.xlu0 %v2675, 96
      %v2721 = vpop.permute.xlu0 %2720
      %v2724 = vsel %vm1986, %v2660, %v2679
      %v2725 = vsel %vm1986, %v2661, %v2681
      %v2726 = vsel %vm260, %v2724, %v2687
      %v2727 = vsel %vm260, %v2725, %v2689
      %v2728 = vsel %vm2080, %v2726, %v2695
      %v2729 = vsel %vm2080, %v2727, %v2697
      %v2730 = vsel %vm1986, %v2668, %v2703
      %v2731 = vsel %vm1986, %v2669, %v2705
      %v2732 = vsel %vm260, %v2730, %v2711
      %v2733 = vsel %vm260, %v2731, %v2713
      %v2734 = vsel %vm2080, %v2732, %v2719
      %v2735 = vsel %vm2080, %v2733, %v2721
      %v2740 = vrot.slane %v2728, 1
      %v2741 = vrot.slane %v2734, 1
      %v2742 = vrot.slane %v2729, 1
      %v2743 = vsel %vm237, %v2740, %v2742
      %v2744 = vrot.slane %v2735, 1
      %v2745 = vsel %vm237, %v2741, %v2744
      %2750 = vst [vmem:[#allocation4 + $0x70] sm:$0x80] %v2740
      %2751 = vst [vmem:[#allocation4 + $0x78] sm:$0x80] %v2741
      %2752 = vst [vmem:[#allocation4 + $0x80] sm:$0xff] %v2743
      %2753 = vst [vmem:[#allocation4 + $0x88] sm:$0xff] %v2745
      %v2754 = vld [vmem:[#allocation3 + $0xa0] sm:$0xff]
      %v2755 = vld [vmem:[#allocation3 + $0xa8] sm:$0x1]
      %v2756 = vld [vmem:[#allocation3 + $0xa1] sm:$0xff]
      %v2757 = vld [vmem:[#allocation3 + $0xa9] sm:$0x1]
      %v2758 = vld [vmem:[#allocation3 + $0xaa] sm:$0xff]
      %v2759 = vld [vmem:[#allocation3 + $0xb2] sm:$0x1]
      %v2760 = vld [vmem:[#allocation3 + $0xab] sm:$0xff]
      %v2761 = vld [vmem:[#allocation3 + $0xb3] sm:$0x1]
      %v2762 = vld [vmem:[#allocation3 + $0xb4] sm:$0xff]
      %v2763 = vld [vmem:[#allocation3 + $0xbc] sm:$0x1]
      %v2764 = vld [vmem:[#allocation3 + $0xb5] sm:$0xff]
      %v2765 = vld [vmem:[#allocation3 + $0xbd] sm:$0x1]
      %v2766 = vld [vmem:[#allocation3 + $0xbe] sm:$0xff]
      %v2767 = vld [vmem:[#allocation3 + $0xc6] sm:$0x1]
      %v2768 = vld [vmem:[#allocation3 + $0xbf] sm:$0xff]
      %v2769 = vld [vmem:[#allocation3 + $0xc7] sm:$0x1]
      %2772 = vrot.lane.b32.xlu0 %v2756, 32
      %v2773 = vpop.permute.xlu0 %2772
      %2774 = vrot.lane.b32.xlu0 %v2757, 32
      %v2775 = vpop.permute.xlu0 %2774
      %2780 = vrot.lane.b32.xlu0 %v2758, 64
      %v2781 = vpop.permute.xlu0 %2780
      %2782 = vrot.lane.b32.xlu0 %v2759, 64
      %v2783 = vpop.permute.xlu0 %2782
      %2788 = vrot.lane.b32.xlu0 %v2760, 96
      %v2789 = vpop.permute.xlu0 %2788
      %2790 = vrot.lane.b32.xlu0 %v2761, 96
      %v2791 = vpop.permute.xlu0 %2790
      %2796 = vrot.lane.b32.xlu0 %v2764, 32
      %v2797 = vpop.permute.xlu0 %2796
      %2798 = vrot.lane.b32.xlu0 %v2765, 32
      %v2799 = vpop.permute.xlu0 %2798
      %2804 = vrot.lane.b32.xlu0 %v2766, 64
      %v2805 = vpop.permute.xlu0 %2804
      %2806 = vrot.lane.b32.xlu0 %v2767, 64
      %v2807 = vpop.permute.xlu0 %2806
      %2812 = vrot.lane.b32.xlu0 %v2768, 96
      %v2813 = vpop.permute.xlu0 %2812
      %2814 = vrot.lane.b32.xlu0 %v2769, 96
      %v2815 = vpop.permute.xlu0 %2814
      %v2818 = vsel %vm1986, %v2754, %v2773
      %v2819 = vsel %vm1986, %v2755, %v2775
      %v2820 = vsel %vm260, %v2818, %v2781
      %v2821 = vsel %vm260, %v2819, %v2783
      %v2822 = vsel %vm2080, %v2820, %v2789
      %v2823 = vsel %vm2080, %v2821, %v2791
      %v2824 = vsel %vm1986, %v2762, %v2797
      %v2825 = vsel %vm1986, %v2763, %v2799
      %v2826 = vsel %vm260, %v2824, %v2805
      %v2827 = vsel %vm260, %v2825, %v2807
      %v2828 = vsel %vm2080, %v2826, %v2813
      %v2829 = vsel %vm2080, %v2827, %v2815
      %2830 = vst [vmem:[#allocation4 + $0x90] sm:$0xff] %v2822
      %2831 = vst [vmem:[#allocation4 + $0x98] sm:$0xff] %v2828
      %2832 = vst [vmem:[#allocation4 + $0xa0] sm:$0x1] %v2823
      %2833 = vst [vmem:[#allocation4 + $0xa8] sm:$0x1] %v2829
      %v2834 = vld [vmem:[%s3] sm:$0xf]
      %v2835 = vld [vmem:[%s3 + $0x4] sm:$0xf]
      %v2836 = vld [vmem:[%s3 + $0x8] sm:$0xf]
      %v2837 = vld [vmem:[%s3 + $0xc] sm:$0xf]
      %v2838 = vld [vmem:[%s3 + $0x10] sm:$0xf]
      %v2839 = vld [vmem:[%s3 + $0x14] sm:$0xf]
      %v2840 = vld [vmem:[%s3 + $0x18] sm:$0xf]
      %v2841 = vld [vmem:[%s3 + $0x1c] sm:$0xf]
      %v2842 = vld [vmem:[%s3 + $0x20] sm:$0xf]
      %v2843 = vld [vmem:[%s3 + $0x24] sm:$0xf]
      %v2844 = vld [vmem:[%s3 + $0x28] sm:$0xf]
      %v2845 = vld [vmem:[%s3 + $0x2c] sm:$0xf]
      %v2846 = vld [vmem:[%s3 + $0x30] sm:$0xf]
      %v2847 = vld [vmem:[%s3 + $0x34] sm:$0xf]
      %v2848 = vld [vmem:[%s3 + $0x38] sm:$0xf]
      %v2849 = vld [vmem:[%s3 + $0x3c] sm:$0xf]
      %v2850 = vld [vmem:[%s3 + $0x40] sm:$0xf]
      %v2851 = vld [vmem:[%s3 + $0x44] sm:$0xf]
      %v2852 = vld [vmem:[%s3 + $0x48] sm:$0xf]
      %v2853 = vld [vmem:[%s3 + $0x4c] sm:$0xf]
      %v2854 = vld [vmem:[%s3 + $0x50] sm:$0xf]
      %v2855 = vld [vmem:[%s3 + $0x54] sm:$0xf]
      %v2856 = vld [vmem:[%s3 + $0x58] sm:$0xf]
      %v2857 = vld [vmem:[%s3 + $0x5c] sm:$0xf]
      %v2858 = vld [vmem:[%s3 + $0x60] sm:$0xf]
      %v2859 = vld [vmem:[%s3 + $0x64] sm:$0xf]
      %v2860 = vld [vmem:[%s3 + $0x68] sm:$0xf]
      %v2861 = vld [vmem:[%s3 + $0x6c] sm:$0xf]
      %v2862 = vld [vmem:[%s3 + $0x70] sm:$0xf]
      %v2863 = vld [vmem:[%s3 + $0x74] sm:$0xf]
      %v2864 = vld [vmem:[%s3 + $0x78] sm:$0xf]
      %v2865 = vld [vmem:[%s3 + $0x7c] sm:$0xf]
      %v2866 = vld [vmem:[%s4] sm:$0x1]
      %v2867 = vld [vmem:[#allocation4] sm:$0xff]
      %v2868 = vld [vmem:[#allocation4 + $0x8] sm:$0xff]
      %v2869 = vld [vmem:[#allocation4 + $0x10] sm:$0xff]
      %v2870 = vld [vmem:[#allocation4 + $0x18] sm:$0xff]
      %v2871 = vld [vmem:[#allocation4 + $0x20] sm:$0xff]
      %v2872 = vld [vmem:[#allocation4 + $0x28] sm:$0xff]
      %v2873 = vld [vmem:[#allocation4 + $0x30] sm:$0xff]
      %v2874 = vld [vmem:[#allocation4 + $0x38] sm:$0xff]
      %v2875 = vld [vmem:[#allocation4 + $0x40] sm:$0xff]
      %v2876 = vld [vmem:[#allocation4 + $0x48] sm:$0xff]
      %v2877 = vld [vmem:[#allocation4 + $0x50] sm:$0xff]
      %v2878 = vld [vmem:[#allocation4 + $0x58] sm:$0xff]
      %v2879 = vld [vmem:[#allocation4 + $0x60] sm:$0xff]
      %v2880 = vld [vmem:[#allocation4 + $0x68] sm:$0xff]
      %v2881 = vld [vmem:[#allocation4 + $0x70] sm:$0xff]
      %v2882 = vld [vmem:[#allocation4 + $0x78] sm:$0xff]
      %v2883 = vld [vmem:[#allocation4 + $0x80] sm:$0xff]
      %v2884 = vld [vmem:[#allocation4 + $0x88] sm:$0xff]
      %v2885 = vld [vmem:[#allocation4 + $0x90] sm:$0xff]
      %v2886 = vld [vmem:[#allocation4 + $0x98] sm:$0xff]
      %v2887 = vld [vmem:[#allocation4 + $0xa0] sm:$0x1]
      %v2888 = vld [vmem:[#allocation4 + $0xa8] sm:$0x1]
      %v2889 = vpack.c.bf16 %v2869, %v2867
      %v2890 = vpack.c.bf16 %v2870, %v2868
      %v2891 = vpack.c.bf16 %v2873, %v2871
      %v2892 = vpack.c.bf16 %v2874, %v2872
      %v2893 = vpack.c.bf16 %v2877, %v2875
      %v2894 = vpack.c.bf16 %v2878, %v2876
      %v2895 = vpack.c.bf16 %v2881, %v2879
      %v2896 = vpack.c.bf16 %v2882, %v2880
      %v2897 = vpack.c.bf16 %v2885, %v2883
      %v2898 = vpack.c.bf16 %v2886, %v2884
      %v2899 = vpack.c.bf16 %v2887, %v2887
      %v2900 = vpack.c.bf16 %v2888, %v2888
      %v2902 = vlaneseq
      %v2903 = vshrl.u32 %v2902, 7
      %v2904 = vsub.s32 0, %v2903
      %v2905 = vrot.slane %v2866, %v2904
      %v2939 = vunpack.c.l.b16 %v2834
      %v2940 = vunpack.c.l.b16 %v2835
      %v2941 = vunpack.c.l.b16 %v2836
      %v2942 = vunpack.c.l.b16 %v2837
      %v2943 = vunpack.c.l.b16 %v2838
      %v2944 = vunpack.c.l.b16 %v2839
      %v2945 = vunpack.c.l.b16 %v2840
      %v2946 = vunpack.c.l.b16 %v2841
      %v2947 = vunpack.c.l.b16 %v2842
      %v2948 = vunpack.c.l.b16 %v2843
      %v2949 = vunpack.c.l.b16 %v2844
      %v2950 = vunpack.c.l.b16 %v2845
      %v2951 = vunpack.c.l.b16 %v2846
      %v2952 = vunpack.c.l.b16 %v2847
      %v2953 = vunpack.c.l.b16 %v2848
      %v2954 = vunpack.c.l.b16 %v2849
      %v2955 = vunpack.c.l.b16 %v2850
      %v2956 = vunpack.c.l.b16 %v2851
      %v2957 = vunpack.c.l.b16 %v2852
      %v2958 = vunpack.c.l.b16 %v2853
      %v2959 = vunpack.c.l.b16 %v2854
      %v2960 = vunpack.c.l.b16 %v2855
      %v2961 = vunpack.c.l.b16 %v2856
      %v2962 = vunpack.c.l.b16 %v2857
      %v2963 = vunpack.c.l.b16 %v2858
      %v2964 = vunpack.c.l.b16 %v2859
      %v2965 = vunpack.c.l.b16 %v2860
      %v2966 = vunpack.c.l.b16 %v2861
      %v2967 = vunpack.c.l.b16 %v2862
      %v2968 = vunpack.c.l.b16 %v2863
      %v2969 = vunpack.c.l.b16 %v2864
      %v2970 = vunpack.c.l.b16 %v2865
      %v2971 = vpack.c.b16 %v2940, %v2939
      %v2972 = vpack.c.b16 %v2942, %v2941
      %v2973 = vpack.c.b16 %v2944, %v2943
      %v2974 = vpack.c.b16 %v2946, %v2945
      %v2975 = vpack.c.b16 %v2948, %v2947
      %v2976 = vpack.c.b16 %v2950, %v2949
      %v2977 = vpack.c.b16 %v2952, %v2951
      %v2978 = vpack.c.b16 %v2954, %v2953
      %v2979 = vpack.c.b16 %v2956, %v2955
      %v2980 = vpack.c.b16 %v2958, %v2957
      %v2981 = vpack.c.b16 %v2960, %v2959
      %v2982 = vpack.c.b16 %v2962, %v2961
      %v2983 = vpack.c.b16 %v2964, %v2963
      %v2984 = vpack.c.b16 %v2966, %v2965
      %v2985 = vpack.c.b16 %v2968, %v2967
      %v2986 = vpack.c.b16 %v2970, %v2969
      %3003 = vmatprep.subr.bf16.mxu0 0
      %3004 = vmatpush1.bf16.msra.mxu0 %v2978
      %3005 = vmatprep.subr.bf16.mxu0 0
      %3006 = vmatpush1.bf16.msra.mxu0 %v2977
      %3007 = vmatprep.subr.bf16.mxu0 0
      %3008 = vmatpush1.bf16.msra.mxu0 %v2976
      %3009 = vmatprep.subr.bf16.mxu0 0
      %3010 = vmatpush1.bf16.msra.mxu0 %v2975
      %3011 = vmatprep.subr.bf16.mxu0 0
      %3012 = vmatpush1.bf16.msra.mxu0 %v2974
      %3013 = vmatprep.subr.bf16.mxu0 0
      %3014 = vmatpush1.bf16.msra.mxu0 %v2973
      %3015 = vmatprep.subr.bf16.mxu0 0
      %3016 = vmatpush1.bf16.msra.mxu0 %v2972
      %3017 = vmatprep.subr.bf16.mxu0 0
      %3018 = vmatpush1.bf16.msra.mxu0 %v2971
      %3019 = vmatprep.subr.bf16.mxu0 0
      %3020 = vmatpush2.bf16.msra.mxu0 %v2986
      %3021 = vmatprep.subr.bf16.mxu0 0
      %3022 = vmatpush2.bf16.msra.mxu0 %v2985
      %3023 = vmatprep.subr.bf16.mxu0 0
      %3024 = vmatpush2.bf16.msra.mxu0 %v2984
      %3025 = vmatprep.subr.bf16.mxu0 0
      %3026 = vmatpush2.bf16.msra.mxu0 %v2983
      %3027 = vmatprep.subr.bf16.mxu0 0
      %3028 = vmatpush2.bf16.msra.mxu0 %v2982
      %3029 = vmatprep.subr.bf16.mxu0 0
      %3030 = vmatpush2.bf16.msra.mxu0 %v2981
      %3031 = vmatprep.subr.bf16.mxu0 0
      %3032 = vmatpush2.bf16.msra.mxu0 %v2980
      %3033 = vmatprep.subr.bf16.mxu0 0
      %3034 = vmatpush2.bf16.msra.mxu0 %v2979
      %3035 = vmatprep.mubr.bf16.mxu0 %v2890
      %3036 = vmatmul.mubr.bf16.gmra.mxu0 %v2889
      %v3037 = vpop.f32.mrf.mxu0
      %v3038 = vadd.f32 %v2905, %v3037
      %v3039 = vpop.f32.mrf.mxu0
      %v3040 = vpop.f32.mrf.mxu0
      %v3041 = vadd.f32 %v2905, %v3040
      %v3042 = vpop.f32.mrf.mxu0
      %3043 = vmatprep.mubr.bf16.mxu0 %v2892
      %3044 = vmatmul.mubr.bf16.gmra.mxu0 %v2891
      %v3045 = vpop.f32.mrf.mxu0
      %v3046 = vadd.f32 %v2905, %v3045
      %v3047 = vpop.f32.mrf.mxu0
      %v3048 = vpop.f32.mrf.mxu0
      %v3049 = vadd.f32 %v2905, %v3048
      %v3050 = vpop.f32.mrf.mxu0
      %3051 = vmatprep.mubr.bf16.mxu0 %v2894
      %3052 = vmatmul.mubr.bf16.gmra.mxu0 %v2893
      %v3053 = vpop.f32.mrf.mxu0
      %v3054 = vadd.f32 %v2905, %v3053
      %v3055 = vpop.f32.mrf.mxu0
      %v3056 = vpop.f32.mrf.mxu0
      %v3057 = vadd.f32 %v2905, %v3056
      %v3058 = vpop.f32.mrf.mxu0
      %3059 = vmatprep.mubr.bf16.mxu0 %v2896
      %3060 = vmatmul.mubr.bf16.gmra.mxu0 %v2895
      %v3061 = vpop.f32.mrf.mxu0
      %v3062 = vadd.f32 %v2905, %v3061
      %v3063 = vpop.f32.mrf.mxu0
      %v3064 = vpop.f32.mrf.mxu0
      %v3065 = vadd.f32 %v2905, %v3064
      %v3066 = vpop.f32.mrf.mxu0
      %3067 = vmatprep.mubr.bf16.mxu0 %v2898
      %3068 = vmatmul.mubr.bf16.gmra.mxu0 %v2897
      %v3069 = vpop.f32.mrf.mxu0
      %v3070 = vadd.f32 %v2905, %v3069
      %v3071 = vpop.f32.mrf.mxu0
      %v3072 = vpop.f32.mrf.mxu0
      %v3073 = vadd.f32 %v2905, %v3072
      %v3074 = vpop.f32.mrf.mxu0
      %3075 = vmatprep.mubr.bf16.mxu0 %v2900
      %3076 = vmatmul.mubr.bf16.gmra.mxu0 %v2899
      %v3077 = vpop.f32.mrf.mxu0
      %v3078 = vadd.f32 %v2905, %v3077
      %v3079 = vpop.f32.mrf.mxu0
      %v3080 = vpop.f32.mrf.mxu0
      %v3081 = vpop.f32.mrf.mxu0
      %3082 = vdwg.mxu0
      %v3083 = vmax.f32 %v3038, 0.0
      %v3084 = vmax.f32 %v3041, 0.0
      %v3085 = vmax.f32 %v3046, 0.0
      %v3086 = vmax.f32 %v3049, 0.0
      %v3087 = vmax.f32 %v3054, 0.0
      %v3088 = vmax.f32 %v3057, 0.0
      %v3089 = vmax.f32 %v3062, 0.0
      %v3090 = vmax.f32 %v3065, 0.0
      %v3091 = vmax.f32 %v3070, 0.0
      %v3092 = vmax.f32 %v3073, 0.0
      %v3093 = vmax.f32 %v3078, 0.0
      %v3094 = vpack.c.bf16 %v3084, %v3083
      %v3095 = vpack.c.bf16 %v3086, %v3085
      %v3096 = vpack.c.bf16 %v3088, %v3087
      %v3097 = vpack.c.bf16 %v3090, %v3089
      %v3098 = vpack.c.bf16 %v3092, %v3091
      %v3099 = vpack.c.bf16 %v3093, %v3093
      %v3106 = vunpack.c.l.b16 %v3094
      %v3107 = vunpack.c.h.b16 %v3094
      %v3108 = vunpack.c.l.b16 %v3095
      %v3109 = vunpack.c.h.b16 %v3095
      %v3110 = vunpack.c.l.b16 %v3096
      %v3111 = vunpack.c.h.b16 %v3096
      %v3112 = vunpack.c.l.b16 %v3097
      %v3113 = vunpack.c.h.b16 %v3097
      %v3114 = vunpack.c.l.b16 %v3098
      %v3115 = vunpack.c.h.b16 %v3098
      %v3116 = vunpack.c.l.b16 %v3099
      %v3117 = vpack.c.b16 %v3106, %v3106
      %v3118 = vpack.c.b16 %v3107, %v3107
      %v3119 = vpack.c.b16 %v3108, %v3108
      %v3120 = vpack.c.b16 %v3109, %v3109
      %v3121 = vpack.c.b16 %v3110, %v3110
      %v3122 = vpack.c.b16 %v3111, %v3111
      %v3123 = vpack.c.b16 %v3112, %v3112
      %v3124 = vpack.c.b16 %v3113, %v3113
      %v3125 = vpack.c.b16 %v3114, %v3114
      %v3126 = vpack.c.b16 %v3115, %v3115
      %v3127 = vpack.c.b16 %v3116, %v3116
      %vm3139 = vcmask 257024
      %3140 = vst.msk [vmem:[%s224] sm:$0xf] %vm3139, %v3117
      %3141 = vst.msk [vmem:[%s224 + $0x4] sm:$0xf] %vm3139, %v3118
      %3142 = vst.msk [vmem:[%s224 + $0x8] sm:$0xf] %vm3139, %v3119
      %3143 = vst.msk [vmem:[%s224 + $0xc] sm:$0xf] %vm3139, %v3120
      %3144 = vst.msk [vmem:[%s224 + $0x10] sm:$0xf] %vm3139, %v3121
      %3145 = vst.msk [vmem:[%s224 + $0x14] sm:$0xf] %vm3139, %v3122
      %3146 = vst.msk [vmem:[%s224 + $0x18] sm:$0xf] %vm3139, %v3123
      %3147 = vst.msk [vmem:[%s224 + $0x1c] sm:$0xf] %vm3139, %v3124
      %3148 = vst.msk [vmem:[%s224 + $0x20] sm:$0xf] %vm3139, %v3125
      %3149 = vst.msk [vmem:[%s224 + $0x24] sm:$0xf] %vm3139, %v3126
      %vm3150 = vcmask 253952
      %vm3151 = vsmask.f32 256
      %vm3152 = vmand %vm3150, %vm3151
      %v3153 = vld [vmem:[%s224 + $0x28] sm:$0x1]
      %v3154 = vsel %vm3152, %v3127, %v3153
      %3155 = vst [vmem:[%s224 + $0x28] sm:$0x1] %v3154
      %p3156 = scmp.lt.s32.totalorder %s16, 1
      %s3157 = scalar_select %p3156, %s16, 1
      %s3158 = smul.addr %s3157, 11
      %s3159 = smul.addr %s3158, 4
      %s3160 = scalar_lea.vmem %s5, %s3159
      // Predicated region
      $region41: #{cnn_forward.2} parent=39 // pred_check
        %p3161 = pneg %p144
      $region42: #{cnn_forward.2} parent=39 // pred_check_branch
        %3163 = sbr.rel (%p3161) target = $region44
      $region43: #{cnn_forward.2} parent=39 // pred_region
        _
      $region44: #{cnn_forward.2} parent=39 // pred_fallthru
        _
    $region40: #{cnn_forward.2} parent=5 // pred_fallthru
      _
    %p3164 = scmp.le.s32.totalorder 2, %s11
    // Predicated region
    $region45: #{cnn_forward.2} parent=5 // pred_check
      %p3165 = pneg %p3164
    $region46: #{cnn_forward.2} parent=5 // pred_check_branch
      %3167 = sbr.rel (%p3165) target = $region48
    $region47: #{cnn_forward.2} parent=5 // pred_region
      %s3168 = ssub.s32 %s11, 2
      // Predicated region
      $region49: #{cnn_forward.2} parent=47 // pred_check
        %p3169 = pneg %p150
      $region50: #{cnn_forward.2} parent=47 // pred_check_branch
        %3171 = sbr.rel (%p3169) target = $region52
      $region51: #{cnn_forward.2} parent=47 // pred_region
        %p3172 = scmp.lt.s32.totalorder %s17, 1
        %s3173 = scalar_select %p3172, %s17, 1
        %s3174 = smul.addr %s3173, 11
        %s3175 = smul.addr %s3174, 4
        %s3176 = scalar_lea.vmem %s5, %s3175
      $region52: #{cnn_forward.2} parent=47 // pred_fallthru
        _
    $region48: #{cnn_forward.2} parent=5 // pred_fallthru
      _
  $region6: #{cnn_forward.2} parent=0 // loop_footer
    %s15 = sadd.s32 1, %s11
  $region7: #{cnn_forward.2} parent=0 // loop_footer_branch
    %10 = sbr.rel target = $region3
  $region8: #{cnn_forward.2} parent=0 // loop_exit
    _

// kernel: cnn_forward.3
$region0: #{cnn_forward.3}
  #allocation0 [shape = 'u32[]', space=smem, size = 0x4, offset = 0x4, fixed_abs, tag = 'smem constant byte address 0x4 - core index']
  #allocation1 [shape = 'u32[144,128]{1,0:T(1,128)}', space=vmem, size = 0x12000, scoped, tag = 'internal scratch']
  %s0 = inlined_call_operand.vmem [shape: bf16[2,2592], index: 0, kind: input, shape index: {}]
  %s1 = inlined_call_operand.vmem [shape: bf16[2592,256], index: 1, kind: input, shape index: {}]
  %s2 = inlined_call_operand.vmem [shape: f32[1,256], index: 2, kind: input, shape index: {}]
  %s3 = inlined_call_operand.vmem [shape: bf16[256,4], index: 3, kind: input, shape index: {}]
  %s4 = inlined_call_operand.vmem [shape: f32[1,4], index: 4, kind: input, shape index: {}]
  %s5 = inlined_call_operand.hbm [shape: f32[2,4], index: 5, kind: output, shape index: {}]
  %s6 = sld [smem:[#allocation0]]
  $region30: #{cnn_forward.3} parent=0
    _
  %s8 = ssub.s32 1, %s6
  %s9 = scalar_select 0, %s8, %s6
  $region1: #{cnn_forward.3} parent=0
    #allocation2 [shape = 'u8[1024]{0}', space=vmem, size = 0x400, scoped, tag = 'output window, operand 0, single buffered']
    #allocation3 [shape = 's32[1]{0}', space=sflag, size = 0x4, scoped, tag = 'scoped memory for cnn_forward.3']
    %10 = vsyncpa [#allocation3], 0
    // Predicated region
    $region2: #{cnn_forward.3} parent=1 // pred_check
      _
    $region3: #{cnn_forward.3} parent=1 // pred_check_branch
      %12 = sbr.rel (0) target = $region5
    $region4: #{cnn_forward.3} parent=1 // pred_region
      _
    $region5: #{cnn_forward.3} parent=1 // pred_fallthru
      _
    // Predicated region
    $region6: #{cnn_forward.3} parent=1 // pred_check
      _
    $region7: #{cnn_forward.3} parent=1 // pred_check_branch
      %14 = sbr.rel (0) target = $region9
    $region8: #{cnn_forward.3} parent=1 // pred_region
      _
    $region9: #{cnn_forward.3} parent=1 // pred_fallthru
      _
    // Predicated region
    $region10: #{cnn_forward.3} parent=1 // pred_check
      _
    $region11: #{cnn_forward.3} parent=1 // pred_check_branch
      %16 = sbr.rel (0) target = $region13
    $region12: #{cnn_forward.3} parent=1 // pred_region
      _
    $region13: #{cnn_forward.3} parent=1 // pred_fallthru
      _
    // Predicated region
    $region14: #{cnn_forward.3} parent=1 // pred_check
      _
    $region15: #{cnn_forward.3} parent=1 // pred_check_branch
      %18 = sbr.rel (0) target = $region17
    $region16: #{cnn_forward.3} parent=1 // pred_region
      _
    $region17: #{cnn_forward.3} parent=1 // pred_fallthru
      _
    // Predicated region
    $region18: #{cnn_forward.3} parent=1 // pred_check
      _
    $region19: #{cnn_forward.3} parent=1 // pred_check_branch
      %20 = sbr.rel (0) target = $region21
    $region20: #{cnn_forward.3} parent=1 // pred_region
      _
    $region21: #{cnn_forward.3} parent=1 // pred_fallthru
      _
    %v22 = vld [vmem:[%s0] sm:$0xff]
    %v23 = vld [vmem:[%s0 + $0x8] sm:$0xff]
    %v24 = vld [vmem:[%s0 + $0x10] sm:$0x1f]
    %v25 = vld [vmem:[%s1] sm:$0xff]
    %v26 = vld [vmem:[%s1 + $0x8] sm:$0xff]
    %v27 = vld [vmem:[%s1 + $0x10] sm:$0xff]
    %v28 = vld [vmem:[%s1 + $0x18] sm:$0xff]
    %v29 = vld [vmem:[%s1 + $0x20] sm:$0xff]
    %v30 = vld [vmem:[%s1 + $0x28] sm:$0xff]
    %v31 = vld [vmem:[%s1 + $0x30] sm:$0xff]
    %v32 = vld [vmem:[%s1 + $0x38] sm:$0xff]
    %v33 = vld [vmem:[%s1 + $0x40] sm:$0xff]
    %v34 = vld [vmem:[%s1 + $0x48] sm:$0xff]
    %v35 = vld [vmem:[%s1 + $0x50] sm:$0xff]
    %v36 = vld [vmem:[%s1 + $0x58] sm:$0xff]
    %v37 = vld [vmem:[%s1 + $0x60] sm:$0xff]
    %v38 = vld [vmem:[%s1 + $0x68] sm:$0xff]
    %v39 = vld [vmem:[%s1 + $0x70] sm:$0xff]
    %v40 = vld [vmem:[%s1 + $0x78] sm:$0xff]
    %v41 = vld [vmem:[%s1 + $0x80] sm:$0xff]
    %v42 = vld [vmem:[%s1 + $0x88] sm:$0xff]
    %v43 = vld [vmem:[%s1 + $0x90] sm:$0xff]
    %v44 = vld [vmem:[%s1 + $0x98] sm:$0xff]
    %v45 = vld [vmem:[%s1 + $0xa0] sm:$0xff]
    %v46 = vld [vmem:[%s1 + $0xa8] sm:$0xff]
    %v47 = vld [vmem:[%s1 + $0xb0] sm:$0xff]
    %v48 = vld [vmem:[%s1 + $0xb8] sm:$0xff]
    %v49 = vld [vmem:[%s1 + $0xc0] sm:$0xff]
    %v50 = vld [vmem:[%s1 + $0xc8] sm:$0xff]
    %v51 = vld [vmem:[%s1 + $0xd0] sm:$0xff]
    %v52 = vld [vmem:[%s1 + $0xd8] sm:$0xff]
    %v53 = vld [vmem:[%s1 + $0xe0] sm:$0xff]
    %v54 = vld [vmem:[%s1 + $0xe8] sm:$0xff]
    %v55 = vld [vmem:[%s1 + $0xf0] sm:$0xff]
    %v56 = vld [vmem:[%s1 + $0xf8] sm:$0xff]
    %v57 = vld [vmem:[%s1 + $0x100] sm:$0xff]
    %v58 = vld [vmem:[%s1 + $0x108] sm:$0xff]
    %v59 = vld [vmem:[%s1 + $0x110] sm:$0xff]
    %v60 = vld [vmem:[%s1 + $0x118] sm:$0xff]
    %v61 = vld [vmem:[%s1 + $0x120] sm:$0xff]
    %v62 = vld [vmem:[%s1 + $0x128] sm:$0xff]
    %v63 = vld [vmem:[%s1 + $0x130] sm:$0xff]
    %v64 = vld [vmem:[%s1 + $0x138] sm:$0xff]
    %v65 = vld [vmem:[%s1 + $0x140] sm:$0xff]
    %v66 = vld [vmem:[%s1 + $0x148] sm:$0xff]
    %v67 = vld [vmem:[%s1 + $0x150] sm:$0xff]
    %v68 = vld [vmem:[%s1 + $0x158] sm:$0xff]
    %v69 = vld [vmem:[%s1 + $0x160] sm:$0xff]
    %v70 = vld [vmem:[%s1 + $0x168] sm:$0xff]
    %v71 = vld [vmem:[%s1 + $0x170] sm:$0xff]
    %v72 = vld [vmem:[%s1 + $0x178] sm:$0xff]
    %v73 = vld [vmem:[%s1 + $0x180] sm:$0xff]
    %v74 = vld [vmem:[%s1 + $0x188] sm:$0xff]
    %v75 = vld [vmem:[%s1 + $0x190] sm:$0xff]
    %v76 = vld [vmem:[%s1 + $0x198] sm:$0xff]
    %v77 = vld [vmem:[%s1 + $0x1a0] sm:$0xff]
    %v78 = vld [vmem:[%s1 + $0x1a8] sm:$0xff]
    %v79 = vld [vmem:[%s1 + $0x1b0] sm:$0xff]
    %v80 = vld [vmem:[%s1 + $0x1b8] sm:$0xff]
    %v81 = vld [vmem:[%s1 + $0x1c0] sm:$0xff]
    %v82 = vld [vmem:[%s1 + $0x1c8] sm:$0xff]
    %v83 = vld [vmem:[%s1 + $0x1d0] sm:$0xff]
    %v84 = vld [vmem:[%s1 + $0x1d8] sm:$0xff]
    %v85 = vld [vmem:[%s1 + $0x1e0] sm:$0xff]
    %v86 = vld [vmem:[%s1 + $0x1e8] sm:$0xff]
    %v87 = vld [vmem:[%s1 + $0x1f0] sm:$0xff]
    %v88 = vld [vmem:[%s1 + $0x1f8] sm:$0xff]
    %v89 = vld [vmem:[%s1 + $0x200] sm:$0xff]
    %v90 = vld [vmem:[%s1 + $0x208] sm:$0xff]
    %v91 = vld [vmem:[%s1 + $0x210] sm:$0xff]
    %v92 = vld [vmem:[%s1 + $0x218] sm:$0xff]
    %v93 = vld [vmem:[%s1 + $0x220] sm:$0xff]
    %v94 = vld [vmem:[%s1 + $0x228] sm:$0xff]
    %v95 = vld [vmem:[%s1 + $0x230] sm:$0xff]
    %v96 = vld [vmem:[%s1 + $0x238] sm:$0xff]
    %v97 = vld [vmem:[%s1 + $0x240] sm:$0xff]
    %v98 = vld [vmem:[%s1 + $0x248] sm:$0xff]
    %v99 = vld [vmem:[%s1 + $0x250] sm:$0xff]
    %v100 = vld [vmem:[%s1 + $0x258] sm:$0xff]
    %v101 = vld [vmem:[%s1 + $0x260] sm:$0xff]
    %v102 = vld [vmem:[%s1 + $0x268] sm:$0xff]
    %v103 = vld [vmem:[%s1 + $0x270] sm:$0xff]
    %v104 = vld [vmem:[%s1 + $0x278] sm:$0xff]
    %v105 = vld [vmem:[%s1 + $0x280] sm:$0xff]
    %v106 = vld [vmem:[%s1 + $0x288] sm:$0xff]
    %v107 = vld [vmem:[%s1 + $0x290] sm:$0xff]
    %v108 = vld [vmem:[%s1 + $0x298] sm:$0xff]
    %v109 = vld [vmem:[%s1 + $0x2a0] sm:$0xff]
    %v110 = vld [vmem:[%s1 + $0x2a8] sm:$0xff]
    %v111 = vld [vmem:[%s1 + $0x2b0] sm:$0xff]
    %v112 = vld [vmem:[%s1 + $0x2b8] sm:$0xff]
    %v113 = vld [vmem:[%s1 + $0x2c0] sm:$0xff]
    %v114 = vld [vmem:[%s1 + $0x2c8] sm:$0xff]
    %v115 = vld [vmem:[%s1 + $0x2d0] sm:$0xff]
    %v116 = vld [vmem:[%s1 + $0x2d8] sm:$0xff]
    %v117 = vld [vmem:[%s1 + $0x2e0] sm:$0xff]
    %v118 = vld [vmem:[%s1 + $0x2e8] sm:$0xff]
    %v119 = vld [vmem:[%s1 + $0x2f0] sm:$0xff]
    %v120 = vld [vmem:[%s1 + $0x2f8] sm:$0xff]
    %v121 = vld [vmem:[%s1 + $0x300] sm:$0xff]
    %v122 = vld [vmem:[%s1 + $0x308] sm:$0xff]
    %v123 = vld [vmem:[%s1 + $0x310] sm:$0xff]
    %v124 = vld [vmem:[%s1 + $0x318] sm:$0xff]
    %v125 = vld [vmem:[%s1 + $0x320] sm:$0xff]
    %v126 = vld [vmem:[%s1 + $0x328] sm:$0xff]
    %v127 = vld [vmem:[%s1 + $0x330] sm:$0xff]
    %v128 = vld [vmem:[%s1 + $0x338] sm:$0xff]
    %v129 = vld [vmem:[%s1 + $0x340] sm:$0xff]
    %v130 = vld [vmem:[%s1 + $0x348] sm:$0xff]
    %v131 = vld [vmem:[%s1 + $0x350] sm:$0xff]
    %v132 = vld [vmem:[%s1 + $0x358] sm:$0xff]
    %v133 = vld [vmem:[%s1 + $0x360] sm:$0xff]
    %v134 = vld [vmem:[%s1 + $0x368] sm:$0xff]
    %v135 = vld [vmem:[%s1 + $0x370] sm:$0xff]
    %v136 = vld [vmem:[%s1 + $0x378] sm:$0xff]
    %v137 = vld [vmem:[%s1 + $0x380] sm:$0xff]
    %v138 = vld [vmem:[%s1 + $0x388] sm:$0xff]
    %v139 = vld [vmem:[%s1 + $0x390] sm:$0xff]
    %v140 = vld [vmem:[%s1 + $0x398] sm:$0xff]
    %v141 = vld [vmem:[%s1 + $0x3a0] sm:$0xff]
    %v142 = vld [vmem:[%s1 + $0x3a8] sm:$0xff]
    %v143 = vld [vmem:[%s1 + $0x3b0] sm:$0xff]
    %v144 = vld [vmem:[%s1 + $0x3b8] sm:$0xff]
    %v145 = vld [vmem:[%s1 + $0x3c0] sm:$0xff]
    %v146 = vld [vmem:[%s1 + $0x3c8] sm:$0xff]
    %v147 = vld [vmem:[%s1 + $0x3d0] sm:$0xff]
    %v148 = vld [vmem:[%s1 + $0x3d8] sm:$0xff]
    %v149 = vld [vmem:[%s1 + $0x3e0] sm:$0xff]
    %v150 = vld [vmem:[%s1 + $0x3e8] sm:$0xff]
    %v151 = vld [vmem:[%s1 + $0x3f0] sm:$0xff]
    %v152 = vld [vmem:[%s1 + $0x3f8] sm:$0xff]
    %v153 = vld [vmem:[%s1 + $0x400] sm:$0xff]
    %v154 = vld [vmem:[%s1 + $0x408] sm:$0xff]
    %v155 = vld [vmem:[%s1 + $0x410] sm:$0xff]
    %v156 = vld [vmem:[%s1 + $0x418] sm:$0xff]
    %v157 = vld [vmem:[%s1 + $0x420] sm:$0xff]
    %v158 = vld [vmem:[%s1 + $0x428] sm:$0xff]
    %v159 = vld [vmem:[%s1 + $0x430] sm:$0xff]
    %v160 = vld [vmem:[%s1 + $0x438] sm:$0xff]
    %v161 = vld [vmem:[%s1 + $0x440] sm:$0xff]
    %v162 = vld [vmem:[%s1 + $0x448] sm:$0xff]
    %v163 = vld [vmem:[%s1 + $0x450] sm:$0xff]
    %v164 = vld [vmem:[%s1 + $0x458] sm:$0xff]
    %v165 = vld [vmem:[%s1 + $0x460] sm:$0xff]
    %v166 = vld [vmem:[%s1 + $0x468] sm:$0xff]
    %v167 = vld [vmem:[%s1 + $0x470] sm:$0xff]
    %v168 = vld [vmem:[%s1 + $0x478] sm:$0xff]
    %v169 = vld [vmem:[%s1 + $0x480] sm:$0xff]
    %v170 = vld [vmem:[%s1 + $0x488] sm:$0xff]
    %v171 = vld [vmem:[%s1 + $0x490] sm:$0xff]
    %v172 = vld [vmem:[%s1 + $0x498] sm:$0xff]
    %v173 = vld [vmem:[%s1 + $0x4a0] sm:$0xff]
    %v174 = vld [vmem:[%s1 + $0x4a8] sm:$0xff]
    %v175 = vld [vmem:[%s1 + $0x4b0] sm:$0xff]
    %v176 = vld [vmem:[%s1 + $0x4b8] sm:$0xff]
    %v177 = vld [vmem:[%s1 + $0x4c0] sm:$0xff]
    %v178 = vld [vmem:[%s1 + $0x4c8] sm:$0xff]
    %v179 = vld [vmem:[%s1 + $0x4d0] sm:$0xff]
    %v180 = vld [vmem:[%s1 + $0x4d8] sm:$0xff]
    %v181 = vld [vmem:[%s1 + $0x4e0] sm:$0xff]
    %v182 = vld [vmem:[%s1 + $0x4e8] sm:$0xff]
    %v183 = vld [vmem:[%s1 + $0x4f0] sm:$0xff]
    %v184 = vld [vmem:[%s1 + $0x4f8] sm:$0xff]
    %v185 = vld [vmem:[%s1 + $0x500] sm:$0xff]
    %v186 = vld [vmem:[%s1 + $0x508] sm:$0xff]
    %v187 = vld [vmem:[%s1 + $0x510] sm:$0xff]
    %v188 = vld [vmem:[%s1 + $0x518] sm:$0xff]
    %v189 = vld [vmem:[%s1 + $0x520] sm:$0xff]
    %v190 = vld [vmem:[%s1 + $0x528] sm:$0xff]
    %v191 = vld [vmem:[%s1 + $0x530] sm:$0xff]
    %v192 = vld [vmem:[%s1 + $0x538] sm:$0xff]
    %v193 = vld [vmem:[%s1 + $0x540] sm:$0xff]
    %v194 = vld [vmem:[%s1 + $0x548] sm:$0xff]
    %v195 = vld [vmem:[%s1 + $0x550] sm:$0xff]
    %v196 = vld [vmem:[%s1 + $0x558] sm:$0xff]
    %v197 = vld [vmem:[%s1 + $0x560] sm:$0xff]
    %v198 = vld [vmem:[%s1 + $0x568] sm:$0xff]
    %v199 = vld [vmem:[%s1 + $0x570] sm:$0xff]
    %v200 = vld [vmem:[%s1 + $0x578] sm:$0xff]
    %v201 = vld [vmem:[%s1 + $0x580] sm:$0xff]
    %v202 = vld [vmem:[%s1 + $0x588] sm:$0xff]
    %v203 = vld [vmem:[%s1 + $0x590] sm:$0xff]
    %v204 = vld [vmem:[%s1 + $0x598] sm:$0xff]
    %v205 = vld [vmem:[%s1 + $0x5a0] sm:$0xff]
    %v206 = vld [vmem:[%s1 + $0x5a8] sm:$0xff]
    %v207 = vld [vmem:[%s1 + $0x5b0] sm:$0xff]
    %v208 = vld [vmem:[%s1 + $0x5b8] sm:$0xff]
    %v209 = vld [vmem:[%s1 + $0x5c0] sm:$0xff]
    %v210 = vld [vmem:[%s1 + $0x5c8] sm:$0xff]
    %v211 = vld [vmem:[%s1 + $0x5d0] sm:$0xff]
    %v212 = vld [vmem:[%s1 + $0x5d8] sm:$0xff]
    %v213 = vld [vmem:[%s1 + $0x5e0] sm:$0xff]
    %v214 = vld [vmem:[%s1 + $0x5e8] sm:$0xff]
    %v215 = vld [vmem:[%s1 + $0x5f0] sm:$0xff]
    %v216 = vld [vmem:[%s1 + $0x5f8] sm:$0xff]
    %v217 = vld [vmem:[%s1 + $0x600] sm:$0xff]
    %v218 = vld [vmem:[%s1 + $0x608] sm:$0xff]
    %v219 = vld [vmem:[%s1 + $0x610] sm:$0xff]
    %v220 = vld [vmem:[%s1 + $0x618] sm:$0xff]
    %v221 = vld [vmem:[%s1 + $0x620] sm:$0xff]
    %v222 = vld [vmem:[%s1 + $0x628] sm:$0xff]
    %v223 = vld [vmem:[%s1 + $0x630] sm:$0xff]
    %v224 = vld [vmem:[%s1 + $0x638] sm:$0xff]
    %v225 = vld [vmem:[%s1 + $0x640] sm:$0xff]
    %v226 = vld [vmem:[%s1 + $0x648] sm:$0xff]
    %v227 = vld [vmem:[%s1 + $0x650] sm:$0xff]
    %v228 = vld [vmem:[%s1 + $0x658] sm:$0xff]
    %v229 = vld [vmem:[%s1 + $0x660] sm:$0xff]
    %v230 = vld [vmem:[%s1 + $0x668] sm:$0xff]
    %v231 = vld [vmem:[%s1 + $0x670] sm:$0xff]
    %v232 = vld [vmem:[%s1 + $0x678] sm:$0xff]
    %v233 = vld [vmem:[%s1 + $0x680] sm:$0xff]
    %v234 = vld [vmem:[%s1 + $0x688] sm:$0xff]
    %v235 = vld [vmem:[%s1 + $0x690] sm:$0xff]
    %v236 = vld [vmem:[%s1 + $0x698] sm:$0xff]
    %v237 = vld [vmem:[%s1 + $0x6a0] sm:$0xff]
    %v238 = vld [vmem:[%s1 + $0x6a8] sm:$0xff]
    %v239 = vld [vmem:[%s1 + $0x6b0] sm:$0xff]
    %v240 = vld [vmem:[%s1 + $0x6b8] sm:$0xff]
    %v241 = vld [vmem:[%s1 + $0x6c0] sm:$0xff]
    %v242 = vld [vmem:[%s1 + $0x6c8] sm:$0xff]
    %v243 = vld [vmem:[%s1 + $0x6d0] sm:$0xff]
    %v244 = vld [vmem:[%s1 + $0x6d8] sm:$0xff]
    %v245 = vld [vmem:[%s1 + $0x6e0] sm:$0xff]
    %v246 = vld [vmem:[%s1 + $0x6e8] sm:$0xff]
    %v247 = vld [vmem:[%s1 + $0x6f0] sm:$0xff]
    %v248 = vld [vmem:[%s1 + $0x6f8] sm:$0xff]
    %v249 = vld [vmem:[%s1 + $0x700] sm:$0xff]
    %v250 = vld [vmem:[%s1 + $0x708] sm:$0xff]
    %v251 = vld [vmem:[%s1 + $0x710] sm:$0xff]
    %v252 = vld [vmem:[%s1 + $0x718] sm:$0xff]
    %v253 = vld [vmem:[%s1 + $0x720] sm:$0xff]
    %v254 = vld [vmem:[%s1 + $0x728] sm:$0xff]
    %v255 = vld [vmem:[%s1 + $0x730] sm:$0xff]
    %v256 = vld [vmem:[%s1 + $0x738] sm:$0xff]
    %v257 = vld [vmem:[%s1 + $0x740] sm:$0xff]
    %v258 = vld [vmem:[%s1 + $0x748] sm:$0xff]
    %v259 = vld [vmem:[%s1 + $0x750] sm:$0xff]
    %v260 = vld [vmem:[%s1 + $0x758] sm:$0xff]
    %v261 = vld [vmem:[%s1 + $0x760] sm:$0xff]
    %v262 = vld [vmem:[%s1 + $0x768] sm:$0xff]
    %v263 = vld [vmem:[%s1 + $0x770] sm:$0xff]
    %v264 = vld [vmem:[%s1 + $0x778] sm:$0xff]
    %v265 = vld [vmem:[%s1 + $0x780] sm:$0xff]
    %v266 = vld [vmem:[%s1 + $0x788] sm:$0xff]
    %v267 = vld [vmem:[%s1 + $0x790] sm:$0xff]
    %v268 = vld [vmem:[%s1 + $0x798] sm:$0xff]
    %v269 = vld [vmem:[%s1 + $0x7a0] sm:$0xff]
    %v270 = vld [vmem:[%s1 + $0x7a8] sm:$0xff]
    %v271 = vld [vmem:[%s1 + $0x7b0] sm:$0xff]
    %v272 = vld [vmem:[%s1 + $0x7b8] sm:$0xff]
    %v273 = vld [vmem:[%s1 + $0x7c0] sm:$0xff]
    %v274 = vld [vmem:[%s1 + $0x7c8] sm:$0xff]
    %v275 = vld [vmem:[%s1 + $0x7d0] sm:$0xff]
    %v276 = vld [vmem:[%s1 + $0x7d8] sm:$0xff]
    %v277 = vld [vmem:[%s1 + $0x7e0] sm:$0xff]
    %v278 = vld [vmem:[%s1 + $0x7e8] sm:$0xff]
    %v279 = vld [vmem:[%s1 + $0x7f0] sm:$0xff]
    %v280 = vld [vmem:[%s1 + $0x7f8] sm:$0xff]
    %v281 = vld [vmem:[%s1 + $0x800] sm:$0xff]
    %v282 = vld [vmem:[%s1 + $0x808] sm:$0xff]
    %v283 = vld [vmem:[%s1 + $0x810] sm:$0xff]
    %v284 = vld [vmem:[%s1 + $0x818] sm:$0xff]
    %v285 = vld [vmem:[%s1 + $0x820] sm:$0xff]
    %v286 = vld [vmem:[%s1 + $0x828] sm:$0xff]
    %v287 = vld [vmem:[%s1 + $0x830] sm:$0xff]
    %v288 = vld [vmem:[%s1 + $0x838] sm:$0xff]
    %v289 = vld [vmem:[%s1 + $0x840] sm:$0xff]
    %v290 = vld [vmem:[%s1 + $0x848] sm:$0xff]
    %v291 = vld [vmem:[%s1 + $0x850] sm:$0xff]
    %v292 = vld [vmem:[%s1 + $0x858] sm:$0xff]
    %v293 = vld [vmem:[%s1 + $0x860] sm:$0xff]
    %v294 = vld [vmem:[%s1 + $0x868] sm:$0xff]
    %v295 = vld [vmem:[%s1 + $0x870] sm:$0xff]
    %v296 = vld [vmem:[%s1 + $0x878] sm:$0xff]
    %v297 = vld [vmem:[%s1 + $0x880] sm:$0xff]
    %v298 = vld [vmem:[%s1 + $0x888] sm:$0xff]
    %v299 = vld [vmem:[%s1 + $0x890] sm:$0xff]
    %v300 = vld [vmem:[%s1 + $0x898] sm:$0xff]
    %v301 = vld [vmem:[%s1 + $0x8a0] sm:$0xff]
    %v302 = vld [vmem:[%s1 + $0x8a8] sm:$0xff]
    %v303 = vld [vmem:[%s1 + $0x8b0] sm:$0xff]
    %v304 = vld [vmem:[%s1 + $0x8b8] sm:$0xff]
    %v305 = vld [vmem:[%s1 + $0x8c0] sm:$0xff]
    %v306 = vld [vmem:[%s1 + $0x8c8] sm:$0xff]
    %v307 = vld [vmem:[%s1 + $0x8d0] sm:$0xff]
    %v308 = vld [vmem:[%s1 + $0x8d8] sm:$0xff]
    %v309 = vld [vmem:[%s1 + $0x8e0] sm:$0xff]
    %v310 = vld [vmem:[%s1 + $0x8e8] sm:$0xff]
    %v311 = vld [vmem:[%s1 + $0x8f0] sm:$0xff]
    %v312 = vld [vmem:[%s1 + $0x8f8] sm:$0xff]
    %v313 = vld [vmem:[%s1 + $0x900] sm:$0xff]
    %v314 = vld [vmem:[%s1 + $0x908] sm:$0xff]
    %v315 = vld [vmem:[%s1 + $0x910] sm:$0xff]
    %v316 = vld [vmem:[%s1 + $0x918] sm:$0xff]
    %v317 = vld [vmem:[%s1 + $0x920] sm:$0xff]
    %v318 = vld [vmem:[%s1 + $0x928] sm:$0xff]
    %v319 = vld [vmem:[%s1 + $0x930] sm:$0xff]
    %v320 = vld [vmem:[%s1 + $0x938] sm:$0xff]
    %v321 = vld [vmem:[%s1 + $0x940] sm:$0xff]
    %v322 = vld [vmem:[%s1 + $0x948] sm:$0xff]
    %v323 = vld [vmem:[%s1 + $0x950] sm:$0xff]
    %v324 = vld [vmem:[%s1 + $0x958] sm:$0xff]
    %v325 = vld [vmem:[%s1 + $0x960] sm:$0xff]
    %v326 = vld [vmem:[%s1 + $0x968] sm:$0xff]
    %v327 = vld [vmem:[%s1 + $0x970] sm:$0xff]
    %v328 = vld [vmem:[%s1 + $0x978] sm:$0xff]
    %v329 = vld [vmem:[%s1 + $0x980] sm:$0xff]
    %v330 = vld [vmem:[%s1 + $0x988] sm:$0xff]
    %v331 = vld [vmem:[%s1 + $0x990] sm:$0xff]
    %v332 = vld [vmem:[%s1 + $0x998] sm:$0xff]
    %v333 = vld [vmem:[%s1 + $0x9a0] sm:$0xff]
    %v334 = vld [vmem:[%s1 + $0x9a8] sm:$0xff]
    %v335 = vld [vmem:[%s1 + $0x9b0] sm:$0xff]
    %v336 = vld [vmem:[%s1 + $0x9b8] sm:$0xff]
    %v337 = vld [vmem:[%s1 + $0x9c0] sm:$0xff]
    %v338 = vld [vmem:[%s1 + $0x9c8] sm:$0xff]
    %v339 = vld [vmem:[%s1 + $0x9d0] sm:$0xff]
    %v340 = vld [vmem:[%s1 + $0x9d8] sm:$0xff]
    %v341 = vld [vmem:[%s1 + $0x9e0] sm:$0xff]
    %v342 = vld [vmem:[%s1 + $0x9e8] sm:$0xff]
    %v343 = vld [vmem:[%s1 + $0x9f0] sm:$0xff]
    %v344 = vld [vmem:[%s1 + $0x9f8] sm:$0xff]
    %v345 = vld [vmem:[%s1 + $0xa00] sm:$0xff]
    %v346 = vld [vmem:[%s1 + $0xa08] sm:$0xff]
    %v347 = vld [vmem:[%s1 + $0xa10] sm:$0xff]
    %v348 = vld [vmem:[%s1 + $0xa18] sm:$0xff]
    %v349 = vld [vmem:[%s2] sm:$0x3]
    %v351 = vlaneseq
    %v352 = vshrl.u32 %v351, 7
    %v353 = vsub.s32 0, %v352
    %v354 = vrot.slane %v349, %v353
    %v355 = vlaneseq
    %v356 = vshrl.u32 %v355, 7
    %v357 = vsub.s32 1, %v356
    %v358 = vrot.slane %v349, %v357
    %v364 = vcombine.high %v22, %v22
    %v366 = vunpack.c.l.s4 1966171168
    %v367 = vunpack.c.0.s8 %v366
    %v368 = vlaneseq
    %v369 = vshrl.u32 %v368, 7
    %v370 = vsub.s32 %v367, %v369
    %v371 = vrot.slane %v22, %v370
    %v373 = vunpack.c.l.s4 1966171168
    %v374 = vunpack.c.0.s8 %v373
    %v375 = vlaneseq
    %v376 = vshrl.u32 %v375, 7
    %v377 = vsub.s32 %v374, %v376
    %v378 = vrot.slane %v364, %v377
    %v379 = vcombine.high %v371, %v371
    %v380 = vcombine.high %v378, %v378
    %v382 = vunpack.c.l.s4 1966171168
    %v383 = vunpack.c.0.s8 %v382
    %v384 = vlaneseq
    %v385 = vshrl.u32 %v384, 7
    %v386 = vsub.s32 %v383, %v385
    %v387 = vrot.slane %v371, %v386
    %v389 = vunpack.c.l.s4 1966171168
    %v390 = vunpack.c.0.s8 %v389
    %v391 = vlaneseq
    %v392 = vshrl.u32 %v391, 7
    %v393 = vsub.s32 %v390, %v392
    %v394 = vrot.slane %v378, %v393
    %v396 = vunpack.c.l.s4 1966171168
    %v397 = vunpack.c.0.s8 %v396
    %v398 = vlaneseq
    %v399 = vshrl.u32 %v398, 7
    %v400 = vsub.s32 %v397, %v399
    %v401 = vrot.slane %v379, %v400
    %v403 = vunpack.c.l.s4 1966171168
    %v404 = vunpack.c.0.s8 %v403
    %v405 = vlaneseq
    %v406 = vshrl.u32 %v405, 7
    %v407 = vsub.s32 %v404, %v406
    %v408 = vrot.slane %v380, %v407
    %v409 = vcombine.high %v387, %v387
    %v410 = vcombine.high %v394, %v394
    %v411 = vcombine.high %v401, %v401
    %v412 = vcombine.high %v408, %v408
    %v413 = vcombine.high %v23, %v23
    %v415 = vunpack.c.l.s4 1966171168
    %v416 = vunpack.c.0.s8 %v415
    %v417 = vlaneseq
    %v418 = vshrl.u32 %v417, 7
    %v419 = vsub.s32 %v416, %v418
    %v420 = vrot.slane %v23, %v419
    %v422 = vunpack.c.l.s4 1966171168
    %v423 = vunpack.c.0.s8 %v422
    %v424 = vlaneseq
    %v425 = vshrl.u32 %v424, 7
    %v426 = vsub.s32 %v423, %v425
    %v427 = vrot.slane %v413, %v426
    %v428 = vcombine.high %v420, %v420
    %v429 = vcombine.high %v427, %v427
    %v431 = vunpack.c.l.s4 1966171168
    %v432 = vunpack.c.0.s8 %v431
    %v433 = vlaneseq
    %v434 = vshrl.u32 %v433, 7
    %v435 = vsub.s32 %v432, %v434
    %v436 = vrot.slane %v420, %v435
    %v438 = vunpack.c.l.s4 1966171168
    %v439 = vunpack.c.0.s8 %v438
    %v440 = vlaneseq
    %v441 = vshrl.u32 %v440, 7
    %v442 = vsub.s32 %v439, %v441
    %v443 = vrot.slane %v427, %v442
    %v445 = vunpack.c.l.s4 1966171168
    %v446 = vunpack.c.0.s8 %v445
    %v447 = vlaneseq
    %v448 = vshrl.u32 %v447, 7
    %v449 = vsub.s32 %v446, %v448
    %v450 = vrot.slane %v428, %v449
    %v452 = vunpack.c.l.s4 1966171168
    %v453 = vunpack.c.0.s8 %v452
    %v454 = vlaneseq
    %v455 = vshrl.u32 %v454, 7
    %v456 = vsub.s32 %v453, %v455
    %v457 = vrot.slane %v429, %v456
    %v458 = vcombine.high %v436, %v436
    %v459 = vcombine.high %v443, %v443
    %v460 = vcombine.high %v450, %v450
    %v461 = vcombine.high %v457, %v457
    %v462 = vcombine.high %v24, %v24
    %v464 = vunpack.c.l.s4 1966171168
    %v465 = vunpack.c.0.s8 %v464
    %v466 = vlaneseq
    %v467 = vshrl.u32 %v466, 7
    %v468 = vsub.s32 %v465, %v467
    %v469 = vrot.slane %v24, %v468
    %v471 = vunpack.c.l.s4 1966171168
    %v472 = vunpack.c.0.s8 %v471
    %v473 = vlaneseq
    %v474 = vshrl.u32 %v473, 7
    %v475 = vsub.s32 %v472, %v474
    %v476 = vrot.slane %v462, %v475
    %v477 = vcombine.high %v469, %v469
    %v479 = vunpack.c.l.s4 1966171168
    %v480 = vunpack.c.0.s8 %v479
    %v481 = vlaneseq
    %v482 = vshrl.u32 %v481, 7
    %v483 = vsub.s32 %v480, %v482
    %v484 = vrot.slane %v469, %v483
    %v486 = vunpack.c.l.s4 1966171168
    %v487 = vunpack.c.0.s8 %v486
    %v488 = vlaneseq
    %v489 = vshrl.u32 %v488, 7
    %v490 = vsub.s32 %v487, %v489
    %v491 = vrot.slane %v476, %v490
    %v493 = vunpack.c.l.s4 1966171168
    %v494 = vunpack.c.0.s8 %v493
    %v495 = vlaneseq
    %v496 = vshrl.u32 %v495, 7
    %v497 = vsub.s32 %v494, %v496
    %v498 = vrot.slane %v477, %v497
    %v499 = vcombine.high %v484, %v484
    %v500 = vcombine.high %v498, %v498
    %v845 = vunpack.c.l.b16 %v25
    %v846 = vunpack.c.h.b16 %v25
    %v847 = vunpack.c.l.b16 %v26
    %v848 = vunpack.c.h.b16 %v26
    %v849 = vunpack.c.l.b16 %v27
    %v850 = vunpack.c.h.b16 %v27
    %v851 = vunpack.c.l.b16 %v28
    %v852 = vunpack.c.h.b16 %v28
    %v853 = vunpack.c.l.b16 %v29
    %v854 = vunpack.c.h.b16 %v29
    %v855 = vunpack.c.l.b16 %v30
    %v856 = vunpack.c.h.b16 %v30
    %v857 = vunpack.c.l.b16 %v31
    %v858 = vunpack.c.h.b16 %v31
    %v859 = vunpack.c.l.b16 %v32
    %v860 = vunpack.c.h.b16 %v32
    %v861 = vunpack.c.l.b16 %v33
    %v862 = vunpack.c.h.b16 %v33
    %v863 = vunpack.c.l.b16 %v34
    %v864 = vunpack.c.h.b16 %v34
    %v865 = vunpack.c.l.b16 %v35
    %v866 = vunpack.c.h.b16 %v35
    %v867 = vunpack.c.l.b16 %v36
    %v868 = vunpack.c.h.b16 %v36
    %v869 = vunpack.c.l.b16 %v37
    %v870 = vunpack.c.h.b16 %v37
    %v871 = vunpack.c.l.b16 %v38
    %v872 = vunpack.c.h.b16 %v38
    %v873 = vunpack.c.l.b16 %v39
    %v874 = vunpack.c.h.b16 %v39
    %v875 = vunpack.c.l.b16 %v40
    %v876 = vunpack.c.h.b16 %v40
    %v877 = vunpack.c.l.b16 %v41
    %v878 = vunpack.c.h.b16 %v41
    %v879 = vunpack.c.l.b16 %v42
    %v880 = vunpack.c.h.b16 %v42
    %v881 = vunpack.c.l.b16 %v43
    %v882 = vunpack.c.h.b16 %v43
    %v883 = vunpack.c.l.b16 %v44
    %v884 = vunpack.c.h.b16 %v44
    %v885 = vunpack.c.l.b16 %v45
    %v886 = vunpack.c.h.b16 %v45
    %v887 = vunpack.c.l.b16 %v46
    %v888 = vunpack.c.h.b16 %v46
    %v889 = vunpack.c.l.b16 %v47
    %v890 = vunpack.c.h.b16 %v47
    %v891 = vunpack.c.l.b16 %v48
    %v892 = vunpack.c.h.b16 %v48
    %v893 = vunpack.c.l.b16 %v49
    %v894 = vunpack.c.h.b16 %v49
    %v895 = vunpack.c.l.b16 %v50
    %v896 = vunpack.c.h.b16 %v50
    %v897 = vunpack.c.l.b16 %v51
    %v898 = vunpack.c.h.b16 %v51
    %v899 = vunpack.c.l.b16 %v52
    %v900 = vunpack.c.h.b16 %v52
    %v901 = vunpack.c.l.b16 %v53
    %v902 = vunpack.c.h.b16 %v53
    %v903 = vunpack.c.l.b16 %v54
    %v904 = vunpack.c.h.b16 %v54
    %v905 = vunpack.c.l.b16 %v55
    %v906 = vunpack.c.h.b16 %v55
    %v907 = vunpack.c.l.b16 %v56
    %v908 = vunpack.c.h.b16 %v56
    %v909 = vunpack.c.l.b16 %v57
    %v910 = vunpack.c.h.b16 %v57
    %v911 = vunpack.c.l.b16 %v58
    %v912 = vunpack.c.h.b16 %v58
    %v913 = vunpack.c.l.b16 %v59
    %v914 = vunpack.c.h.b16 %v59
    %v915 = vunpack.c.l.b16 %v60
    %v916 = vunpack.c.h.b16 %v60
    %v917 = vunpack.c.l.b16 %v61
    %v918 = vunpack.c.h.b16 %v61
    %v919 = vunpack.c.l.b16 %v62
    %v920 = vunpack.c.h.b16 %v62
    %v921 = vunpack.c.l.b16 %v63
    %v922 = vunpack.c.h.b16 %v63
    %v923 = vunpack.c.l.b16 %v64
    %v924 = vunpack.c.h.b16 %v64
    %v925 = vunpack.c.l.b16 %v65
    %v926 = vunpack.c.h.b16 %v65
    %v927 = vunpack.c.l.b16 %v66
    %v928 = vunpack.c.h.b16 %v66
    %v929 = vunpack.c.l.b16 %v67
    %v930 = vunpack.c.h.b16 %v67
    %v931 = vunpack.c.l.b16 %v68
    %v932 = vunpack.c.h.b16 %v68
    %v933 = vunpack.c.l.b16 %v69
    %v934 = vunpack.c.h.b16 %v69
    %v935 = vunpack.c.l.b16 %v70
    %v936 = vunpack.c.h.b16 %v70
    %v937 = vunpack.c.l.b16 %v71
    %v938 = vunpack.c.h.b16 %v71
    %v939 = vunpack.c.l.b16 %v72
    %v940 = vunpack.c.h.b16 %v72
    %v941 = vunpack.c.l.b16 %v73
    %v942 = vunpack.c.h.b16 %v73
    %v943 = vunpack.c.l.b16 %v74
    %v944 = vunpack.c.h.b16 %v74
    %v945 = vunpack.c.l.b16 %v75
    %v946 = vunpack.c.h.b16 %v75
    %v947 = vunpack.c.l.b16 %v76
    %v948 = vunpack.c.h.b16 %v76
    %v949 = vunpack.c.l.b16 %v77
    %v950 = vunpack.c.h.b16 %v77
    %v951 = vunpack.c.l.b16 %v78
    %v952 = vunpack.c.h.b16 %v78
    %v953 = vunpack.c.l.b16 %v79
    %v954 = vunpack.c.h.b16 %v79
    %v955 = vunpack.c.l.b16 %v80
    %v956 = vunpack.c.h.b16 %v80
    %v957 = vunpack.c.l.b16 %v81
    %v958 = vunpack.c.h.b16 %v81
    %v959 = vunpack.c.l.b16 %v82
    %v960 = vunpack.c.h.b16 %v82
    %v961 = vunpack.c.l.b16 %v83
    %v962 = vunpack.c.h.b16 %v83
    %v963 = vunpack.c.l.b16 %v84
    %v964 = vunpack.c.h.b16 %v84
    %v965 = vunpack.c.l.b16 %v85
    %v966 = vunpack.c.h.b16 %v85
    %v967 = vunpack.c.l.b16 %v86
    %v968 = vunpack.c.h.b16 %v86
    %v969 = vunpack.c.l.b16 %v87
    %v970 = vunpack.c.h.b16 %v87
    %v971 = vunpack.c.l.b16 %v88
    %v972 = vunpack.c.h.b16 %v88
    %v973 = vunpack.c.l.b16 %v89
    %v974 = vunpack.c.h.b16 %v89
    %v975 = vunpack.c.l.b16 %v90
    %v976 = vunpack.c.h.b16 %v90
    %v977 = vunpack.c.l.b16 %v91
    %v978 = vunpack.c.h.b16 %v91
    %v979 = vunpack.c.l.b16 %v92
    %v980 = vunpack.c.h.b16 %v92
    %v981 = vunpack.c.l.b16 %v93
    %v982 = vunpack.c.h.b16 %v93
    %v983 = vunpack.c.l.b16 %v94
    %v984 = vunpack.c.h.b16 %v94
    %v985 = vunpack.c.l.b16 %v95
    %v986 = vunpack.c.h.b16 %v95
    %v987 = vunpack.c.l.b16 %v96
    %v988 = vunpack.c.h.b16 %v96
    %v989 = vunpack.c.l.b16 %v97
    %v990 = vunpack.c.h.b16 %v97
    %v991 = vunpack.c.l.b16 %v98
    %v992 = vunpack.c.h.b16 %v98
    %v993 = vunpack.c.l.b16 %v99
    %v994 = vunpack.c.h.b16 %v99
    %v995 = vunpack.c.l.b16 %v100
    %v996 = vunpack.c.h.b16 %v100
    %v997 = vunpack.c.l.b16 %v101
    %v998 = vunpack.c.h.b16 %v101
    %v999 = vunpack.c.l.b16 %v102
    %v1000 = vunpack.c.h.b16 %v102
    %v1001 = vunpack.c.l.b16 %v103
    %v1002 = vunpack.c.h.b16 %v103
    %v1003 = vunpack.c.l.b16 %v104
    %v1004 = vunpack.c.h.b16 %v104
    %v1005 = vunpack.c.l.b16 %v105
    %v1006 = vunpack.c.h.b16 %v105
    %v1007 = vunpack.c.l.b16 %v106
    %v1008 = vunpack.c.h.b16 %v106
    %v1009 = vunpack.c.l.b16 %v107
    %v1010 = vunpack.c.h.b16 %v107
    %v1011 = vunpack.c.l.b16 %v108
    %v1012 = vunpack.c.h.b16 %v108
    %v1013 = vunpack.c.l.b16 %v109
    %v1014 = vunpack.c.h.b16 %v109
    %v1015 = vunpack.c.l.b16 %v110
    %v1016 = vunpack.c.h.b16 %v110
    %v1017 = vunpack.c.l.b16 %v111
    %v1018 = vunpack.c.h.b16 %v111
    %v1019 = vunpack.c.l.b16 %v112
    %v1020 = vunpack.c.h.b16 %v112
    %v1021 = vunpack.c.l.b16 %v113
    %v1022 = vunpack.c.h.b16 %v113
    %v1023 = vunpack.c.l.b16 %v114
    %v1024 = vunpack.c.h.b16 %v114
    %v1025 = vunpack.c.l.b16 %v115
    %v1026 = vunpack.c.h.b16 %v115
    %v1027 = vunpack.c.l.b16 %v116
    %v1028 = vunpack.c.h.b16 %v116
    %v1029 = vunpack.c.l.b16 %v117
    %v1030 = vunpack.c.h.b16 %v117
    %v1031 = vunpack.c.l.b16 %v118
    %v1032 = vunpack.c.h.b16 %v118
    %v1033 = vunpack.c.l.b16 %v119
    %v1034 = vunpack.c.h.b16 %v119
    %v1035 = vunpack.c.l.b16 %v120
    %v1036 = vunpack.c.h.b16 %v120
    %v1037 = vunpack.c.l.b16 %v121
    %v1038 = vunpack.c.h.b16 %v121
    %v1039 = vunpack.c.l.b16 %v122
    %v1040 = vunpack.c.h.b16 %v122
    %v1041 = vunpack.c.l.b16 %v123
    %v1042 = vunpack.c.h.b16 %v123
    %v1043 = vunpack.c.l.b16 %v124
    %v1044 = vunpack.c.h.b16 %v124
    %v1045 = vunpack.c.l.b16 %v125
    %v1046 = vunpack.c.h.b16 %v125
    %v1047 = vunpack.c.l.b16 %v126
    %v1048 = vunpack.c.h.b16 %v126
    %v1049 = vunpack.c.l.b16 %v127
    %v1050 = vunpack.c.h.b16 %v127
    %v1051 = vunpack.c.l.b16 %v128
    %v1052 = vunpack.c.h.b16 %v128
    %v1053 = vunpack.c.l.b16 %v129
    %v1054 = vunpack.c.h.b16 %v129
    %v1055 = vunpack.c.l.b16 %v130
    %v1056 = vunpack.c.h.b16 %v130
    %v1057 = vunpack.c.l.b16 %v131
    %v1058 = vunpack.c.h.b16 %v131
    %v1059 = vunpack.c.l.b16 %v132
    %v1060 = vunpack.c.h.b16 %v132
    %v1061 = vunpack.c.l.b16 %v133
    %v1062 = vunpack.c.h.b16 %v133
    %v1063 = vunpack.c.l.b16 %v134
    %v1064 = vunpack.c.h.b16 %v134
    %v1065 = vunpack.c.l.b16 %v135
    %v1066 = vunpack.c.h.b16 %v135
    %v1067 = vunpack.c.l.b16 %v136
    %v1068 = vunpack.c.h.b16 %v136
    %v1069 = vunpack.c.l.b16 %v137
    %v1070 = vunpack.c.h.b16 %v137
    %v1071 = vunpack.c.l.b16 %v138
    %v1072 = vunpack.c.h.b16 %v138
    %v1073 = vunpack.c.l.b16 %v139
    %v1074 = vunpack.c.h.b16 %v139
    %v1075 = vunpack.c.l.b16 %v140
    %v1076 = vunpack.c.h.b16 %v140
    %v1077 = vunpack.c.l.b16 %v141
    %v1078 = vunpack.c.h.b16 %v141
    %v1079 = vunpack.c.l.b16 %v142
    %v1080 = vunpack.c.h.b16 %v142
    %v1081 = vunpack.c.l.b16 %v143
    %v1082 = vunpack.c.h.b16 %v143
    %v1083 = vunpack.c.l.b16 %v144
    %v1084 = vunpack.c.h.b16 %v144
    %v1085 = vunpack.c.l.b16 %v145
    %v1086 = vunpack.c.h.b16 %v145
    %v1087 = vunpack.c.l.b16 %v146
    %v1088 = vunpack.c.h.b16 %v146
    %v1089 = vunpack.c.l.b16 %v147
    %v1090 = vunpack.c.h.b16 %v147
    %v1091 = vunpack.c.l.b16 %v148
    %v1092 = vunpack.c.h.b16 %v148
    %v1093 = vunpack.c.l.b16 %v149
    %v1094 = vunpack.c.h.b16 %v149
    %v1095 = vunpack.c.l.b16 %v150
    %v1096 = vunpack.c.h.b16 %v150
    %v1097 = vunpack.c.l.b16 %v151
    %v1098 = vunpack.c.h.b16 %v151
    %v1099 = vunpack.c.l.b16 %v152
    %v1100 = vunpack.c.h.b16 %v152
    %v1101 = vunpack.c.l.b16 %v153
    %v1102 = vunpack.c.h.b16 %v153
    %v1103 = vunpack.c.l.b16 %v154
    %v1104 = vunpack.c.h.b16 %v154
    %v1105 = vunpack.c.l.b16 %v155
    %v1106 = vunpack.c.h.b16 %v155
    %v1107 = vunpack.c.l.b16 %v156
    %v1108 = vunpack.c.h.b16 %v156
    %v1109 = vunpack.c.l.b16 %v157
    %v1110 = vunpack.c.h.b16 %v157
    %v1111 = vunpack.c.l.b16 %v158
    %v1112 = vunpack.c.h.b16 %v158
    %v1113 = vunpack.c.l.b16 %v159
    %v1114 = vunpack.c.h.b16 %v159
    %v1115 = vunpack.c.l.b16 %v160
    %v1116 = vunpack.c.h.b16 %v160
    %v1117 = vunpack.c.l.b16 %v161
    %v1118 = vunpack.c.h.b16 %v161
    %v1119 = vunpack.c.l.b16 %v162
    %v1120 = vunpack.c.h.b16 %v162
    %v1121 = vunpack.c.l.b16 %v163
    %v1122 = vunpack.c.h.b16 %v163
    %v1123 = vunpack.c.l.b16 %v164
    %v1124 = vunpack.c.h.b16 %v164
    %v1125 = vunpack.c.l.b16 %v165
    %v1126 = vunpack.c.h.b16 %v165
    %v1127 = vunpack.c.l.b16 %v166
    %v1128 = vunpack.c.h.b16 %v166
    %v1129 = vunpack.c.l.b16 %v167
    %v1130 = vunpack.c.h.b16 %v167
    %v1131 = vunpack.c.l.b16 %v168
    %v1132 = vunpack.c.h.b16 %v168
    %v1133 = vunpack.c.l.b16 %v169
    %v1134 = vunpack.c.h.b16 %v169
    %v1135 = vunpack.c.l.b16 %v170
    %v1136 = vunpack.c.h.b16 %v170
    %v1137 = vunpack.c.l.b16 %v171
    %v1138 = vunpack.c.h.b16 %v171
    %v1139 = vunpack.c.l.b16 %v172
    %v1140 = vunpack.c.h.b16 %v172
    %v1141 = vunpack.c.l.b16 %v173
    %v1142 = vunpack.c.h.b16 %v173
    %v1143 = vunpack.c.l.b16 %v174
    %v1144 = vunpack.c.h.b16 %v174
    %v1145 = vunpack.c.l.b16 %v175
    %v1146 = vunpack.c.h.b16 %v175
    %v1147 = vunpack.c.l.b16 %v176
    %v1148 = vunpack.c.h.b16 %v176
    %v1149 = vunpack.c.l.b16 %v177
    %v1150 = vunpack.c.h.b16 %v177
    %v1151 = vunpack.c.l.b16 %v178
    %v1152 = vunpack.c.h.b16 %v178
    %v1153 = vunpack.c.l.b16 %v179
    %v1154 = vunpack.c.h.b16 %v179
    %v1155 = vunpack.c.l.b16 %v180
    %v1156 = vunpack.c.h.b16 %v180
    %v1157 = vunpack.c.l.b16 %v181
    %v1158 = vunpack.c.h.b16 %v181
    %v1159 = vunpack.c.l.b16 %v182
    %v1160 = vunpack.c.h.b16 %v182
    %v1161 = vunpack.c.l.b16 %v183
    %v1162 = vunpack.c.h.b16 %v183
    %v1163 = vunpack.c.l.b16 %v184
    %v1164 = vunpack.c.h.b16 %v184
    %v1165 = vunpack.c.l.b16 %v185
    %v1166 = vunpack.c.h.b16 %v185
    %v1167 = vunpack.c.l.b16 %v186
    %v1168 = vunpack.c.h.b16 %v186
    %v1169 = vunpack.c.l.b16 %v187
    %v1170 = vunpack.c.h.b16 %v187
    %v1171 = vunpack.c.l.b16 %v188
    %v1172 = vunpack.c.h.b16 %v188
    %v1173 = vunpack.c.l.b16 %v189
    %v1174 = vunpack.c.h.b16 %v189
    %v1175 = vunpack.c.l.b16 %v190
    %v1176 = vunpack.c.h.b16 %v190
    %v1177 = vunpack.c.l.b16 %v191
    %v1178 = vunpack.c.h.b16 %v191
    %v1179 = vunpack.c.l.b16 %v192
    %v1180 = vunpack.c.h.b16 %v192
    %v1181 = vunpack.c.l.b16 %v193
    %v1182 = vunpack.c.h.b16 %v193
    %v1183 = vunpack.c.l.b16 %v194
    %v1184 = vunpack.c.h.b16 %v194
    %v1185 = vunpack.c.l.b16 %v195
    %v1186 = vunpack.c.h.b16 %v195
    %v1187 = vunpack.c.l.b16 %v196
    %v1188 = vunpack.c.h.b16 %v196
    %v1189 = vunpack.c.l.b16 %v197
    %v1190 = vunpack.c.h.b16 %v197
    %v1191 = vunpack.c.l.b16 %v198
    %v1192 = vunpack.c.h.b16 %v198
    %v1193 = vunpack.c.l.b16 %v199
    %v1194 = vunpack.c.h.b16 %v199
    %v1195 = vunpack.c.l.b16 %v200
    %v1196 = vunpack.c.h.b16 %v200
    %v1197 = vunpack.c.l.b16 %v201
    %v1198 = vunpack.c.h.b16 %v201
    %v1199 = vunpack.c.l.b16 %v202
    %v1200 = vunpack.c.h.b16 %v202
    %v1201 = vunpack.c.l.b16 %v203
    %v1202 = vunpack.c.h.b16 %v203
    %v1203 = vunpack.c.l.b16 %v204
    %v1204 = vunpack.c.h.b16 %v204
    %v1205 = vunpack.c.l.b16 %v205
    %v1206 = vunpack.c.h.b16 %v205
    %v1207 = vunpack.c.l.b16 %v206
    %v1208 = vunpack.c.h.b16 %v206
    %v1209 = vunpack.c.l.b16 %v207
    %v1210 = vunpack.c.h.b16 %v207
    %v1211 = vunpack.c.l.b16 %v208
    %v1212 = vunpack.c.h.b16 %v208
    %v1213 = vunpack.c.l.b16 %v209
    %v1214 = vunpack.c.h.b16 %v209
    %v1215 = vunpack.c.l.b16 %v210
    %v1216 = vunpack.c.h.b16 %v210
    %v1217 = vunpack.c.l.b16 %v211
    %v1218 = vunpack.c.h.b16 %v211
    %v1219 = vunpack.c.l.b16 %v212
    %v1220 = vunpack.c.h.b16 %v212
    %v1221 = vunpack.c.l.b16 %v213
    %v1222 = vunpack.c.h.b16 %v213
    %v1223 = vunpack.c.l.b16 %v214
    %v1224 = vunpack.c.h.b16 %v214
    %v1225 = vunpack.c.l.b16 %v215
    %v1226 = vunpack.c.h.b16 %v215
    %v1227 = vunpack.c.l.b16 %v216
    %v1228 = vunpack.c.h.b16 %v216
    %v1229 = vunpack.c.l.b16 %v217
    %v1230 = vunpack.c.h.b16 %v217
    %v1231 = vunpack.c.l.b16 %v218
    %v1232 = vunpack.c.h.b16 %v218
    %v1233 = vunpack.c.l.b16 %v219
    %v1234 = vunpack.c.h.b16 %v219
    %v1235 = vunpack.c.l.b16 %v220
    %v1236 = vunpack.c.h.b16 %v220
    %v1237 = vunpack.c.l.b16 %v221
    %v1238 = vunpack.c.h.b16 %v221
    %v1239 = vunpack.c.l.b16 %v222
    %v1240 = vunpack.c.h.b16 %v222
    %v1241 = vunpack.c.l.b16 %v223
    %v1242 = vunpack.c.h.b16 %v223
    %v1243 = vunpack.c.l.b16 %v224
    %v1244 = vunpack.c.h.b16 %v224
    %v1245 = vunpack.c.l.b16 %v225
    %v1246 = vunpack.c.h.b16 %v225
    %v1247 = vunpack.c.l.b16 %v226
    %v1248 = vunpack.c.h.b16 %v226
    %v1249 = vunpack.c.l.b16 %v227
    %v1250 = vunpack.c.h.b16 %v227
    %v1251 = vunpack.c.l.b16 %v228
    %v1252 = vunpack.c.h.b16 %v228
    %v1253 = vunpack.c.l.b16 %v229
    %v1254 = vunpack.c.h.b16 %v229
    %v1255 = vunpack.c.l.b16 %v230
    %v1256 = vunpack.c.h.b16 %v230
    %v1257 = vunpack.c.l.b16 %v231
    %v1258 = vunpack.c.h.b16 %v231
    %v1259 = vunpack.c.l.b16 %v232
    %v1260 = vunpack.c.h.b16 %v232
    %v1261 = vunpack.c.l.b16 %v233
    %v1262 = vunpack.c.h.b16 %v233
    %v1263 = vunpack.c.l.b16 %v234
    %v1264 = vunpack.c.h.b16 %v234
    %v1265 = vunpack.c.l.b16 %v235
    %v1266 = vunpack.c.h.b16 %v235
    %v1267 = vunpack.c.l.b16 %v236
    %v1268 = vunpack.c.h.b16 %v236
    %v1269 = vunpack.c.l.b16 %v237
    %v1270 = vunpack.c.h.b16 %v237
    %v1271 = vunpack.c.l.b16 %v238
    %v1272 = vunpack.c.h.b16 %v238
    %v1273 = vunpack.c.l.b16 %v239
    %v1274 = vunpack.c.h.b16 %v239
    %v1275 = vunpack.c.l.b16 %v240
    %v1276 = vunpack.c.h.b16 %v240
    %v1277 = vunpack.c.l.b16 %v241
    %v1278 = vunpack.c.h.b16 %v241
    %v1279 = vunpack.c.l.b16 %v242
    %v1280 = vunpack.c.h.b16 %v242
    %v1281 = vunpack.c.l.b16 %v243
    %v1282 = vunpack.c.h.b16 %v243
    %v1283 = vunpack.c.l.b16 %v244
    %v1284 = vunpack.c.h.b16 %v244
    %v1285 = vunpack.c.l.b16 %v245
    %v1286 = vunpack.c.h.b16 %v245
    %v1287 = vunpack.c.l.b16 %v246
    %v1288 = vunpack.c.h.b16 %v246
    %v1289 = vunpack.c.l.b16 %v247
    %v1290 = vunpack.c.h.b16 %v247
    %v1291 = vunpack.c.l.b16 %v248
    %v1292 = vunpack.c.h.b16 %v248
    %v1293 = vunpack.c.l.b16 %v249
    %v1294 = vunpack.c.h.b16 %v249
    %v1295 = vunpack.c.l.b16 %v250
    %v1296 = vunpack.c.h.b16 %v250
    %v1297 = vunpack.c.l.b16 %v251
    %v1298 = vunpack.c.h.b16 %v251
    %v1299 = vunpack.c.l.b16 %v252
    %v1300 = vunpack.c.h.b16 %v252
    %v1301 = vunpack.c.l.b16 %v253
    %v1302 = vunpack.c.h.b16 %v253
    %v1303 = vunpack.c.l.b16 %v254
    %v1304 = vunpack.c.h.b16 %v254
    %v1305 = vunpack.c.l.b16 %v255
    %v1306 = vunpack.c.h.b16 %v255
    %v1307 = vunpack.c.l.b16 %v256
    %v1308 = vunpack.c.h.b16 %v256
    %v1309 = vunpack.c.l.b16 %v257
    %v1310 = vunpack.c.h.b16 %v257
    %v1311 = vunpack.c.l.b16 %v258
    %v1312 = vunpack.c.h.b16 %v258
    %v1313 = vunpack.c.l.b16 %v259
    %v1314 = vunpack.c.h.b16 %v259
    %v1315 = vunpack.c.l.b16 %v260
    %v1316 = vunpack.c.h.b16 %v260
    %v1317 = vunpack.c.l.b16 %v261
    %v1318 = vunpack.c.h.b16 %v261
    %v1319 = vunpack.c.l.b16 %v262
    %v1320 = vunpack.c.h.b16 %v262
    %v1321 = vunpack.c.l.b16 %v263
    %v1322 = vunpack.c.h.b16 %v263
    %v1323 = vunpack.c.l.b16 %v264
    %v1324 = vunpack.c.h.b16 %v264
    %v1325 = vunpack.c.l.b16 %v265
    %v1326 = vunpack.c.h.b16 %v265
    %v1327 = vunpack.c.l.b16 %v266
    %v1328 = vunpack.c.h.b16 %v266
    %v1329 = vunpack.c.l.b16 %v267
    %v1330 = vunpack.c.h.b16 %v267
    %v1331 = vunpack.c.l.b16 %v268
    %v1332 = vunpack.c.h.b16 %v268
    %v1333 = vunpack.c.l.b16 %v269
    %v1334 = vunpack.c.h.b16 %v269
    %v1335 = vunpack.c.l.b16 %v270
    %v1336 = vunpack.c.h.b16 %v270
    %v1337 = vunpack.c.l.b16 %v271
    %v1338 = vunpack.c.h.b16 %v271
    %v1339 = vunpack.c.l.b16 %v272
    %v1340 = vunpack.c.h.b16 %v272
    %v1341 = vunpack.c.l.b16 %v273
    %v1342 = vunpack.c.h.b16 %v273
    %v1343 = vunpack.c.l.b16 %v274
    %v1344 = vunpack.c.h.b16 %v274
    %v1345 = vunpack.c.l.b16 %v275
    %v1346 = vunpack.c.h.b16 %v275
    %v1347 = vunpack.c.l.b16 %v276
    %v1348 = vunpack.c.h.b16 %v276
    %v1349 = vunpack.c.l.b16 %v277
    %v1350 = vunpack.c.h.b16 %v277
    %v1351 = vunpack.c.l.b16 %v278
    %v1352 = vunpack.c.h.b16 %v278
    %v1353 = vunpack.c.l.b16 %v279
    %v1354 = vunpack.c.h.b16 %v279
    %v1355 = vunpack.c.l.b16 %v280
    %v1356 = vunpack.c.h.b16 %v280
    %v1357 = vunpack.c.l.b16 %v281
    %v1358 = vunpack.c.h.b16 %v281
    %v1359 = vunpack.c.l.b16 %v282
    %v1360 = vunpack.c.h.b16 %v282
    %v1361 = vunpack.c.l.b16 %v283
    %v1362 = vunpack.c.h.b16 %v283
    %v1363 = vunpack.c.l.b16 %v284
    %v1364 = vunpack.c.h.b16 %v284
    %v1365 = vunpack.c.l.b16 %v285
    %v1366 = vunpack.c.h.b16 %v285
    %v1367 = vunpack.c.l.b16 %v286
    %v1368 = vunpack.c.h.b16 %v286
    %v1369 = vunpack.c.l.b16 %v287
    %v1370 = vunpack.c.h.b16 %v287
    %v1371 = vunpack.c.l.b16 %v288
    %v1372 = vunpack.c.h.b16 %v288
    %v1373 = vunpack.c.l.b16 %v289
    %v1374 = vunpack.c.h.b16 %v289
    %v1375 = vunpack.c.l.b16 %v290
    %v1376 = vunpack.c.h.b16 %v290
    %v1377 = vunpack.c.l.b16 %v291
    %v1378 = vunpack.c.h.b16 %v291
    %v1379 = vunpack.c.l.b16 %v292
    %v1380 = vunpack.c.h.b16 %v292
    %v1381 = vunpack.c.l.b16 %v293
    %v1382 = vunpack.c.h.b16 %v293
    %v1383 = vunpack.c.l.b16 %v294
    %v1384 = vunpack.c.h.b16 %v294
    %v1385 = vunpack.c.l.b16 %v295
    %v1386 = vunpack.c.h.b16 %v295
    %v1387 = vunpack.c.l.b16 %v296
    %v1388 = vunpack.c.h.b16 %v296
    %v1389 = vunpack.c.l.b16 %v297
    %v1390 = vunpack.c.h.b16 %v297
    %v1391 = vunpack.c.l.b16 %v298
    %v1392 = vunpack.c.h.b16 %v298
    %v1393 = vunpack.c.l.b16 %v299
    %v1394 = vunpack.c.h.b16 %v299
    %v1395 = vunpack.c.l.b16 %v300
    %v1396 = vunpack.c.h.b16 %v300
    %v1397 = vunpack.c.l.b16 %v301
    %v1398 = vunpack.c.h.b16 %v301
    %v1399 = vunpack.c.l.b16 %v302
    %v1400 = vunpack.c.h.b16 %v302
    %v1401 = vunpack.c.l.b16 %v303
    %v1402 = vunpack.c.h.b16 %v303
    %v1403 = vunpack.c.l.b16 %v304
    %v1404 = vunpack.c.h.b16 %v304
    %v1405 = vunpack.c.l.b16 %v305
    %v1406 = vunpack.c.h.b16 %v305
    %v1407 = vunpack.c.l.b16 %v306
    %v1408 = vunpack.c.h.b16 %v306
    %v1409 = vunpack.c.l.b16 %v307
    %v1410 = vunpack.c.h.b16 %v307
    %v1411 = vunpack.c.l.b16 %v308
    %v1412 = vunpack.c.h.b16 %v308
    %v1413 = vunpack.c.l.b16 %v309
    %v1414 = vunpack.c.h.b16 %v309
    %v1415 = vunpack.c.l.b16 %v310
    %v1416 = vunpack.c.h.b16 %v310
    %v1417 = vunpack.c.l.b16 %v311
    %v1418 = vunpack.c.h.b16 %v311
    %v1419 = vunpack.c.l.b16 %v312
    %v1420 = vunpack.c.h.b16 %v312
    %v1421 = vunpack.c.l.b16 %v313
    %v1422 = vunpack.c.h.b16 %v313
    %v1423 = vunpack.c.l.b16 %v314
    %v1424 = vunpack.c.h.b16 %v314
    %v1425 = vunpack.c.l.b16 %v315
    %v1426 = vunpack.c.h.b16 %v315
    %v1427 = vunpack.c.l.b16 %v316
    %v1428 = vunpack.c.h.b16 %v316
    %v1429 = vunpack.c.l.b16 %v317
    %v1430 = vunpack.c.h.b16 %v317
    %v1431 = vunpack.c.l.b16 %v318
    %v1432 = vunpack.c.h.b16 %v318
    %v1433 = vunpack.c.l.b16 %v319
    %v1434 = vunpack.c.h.b16 %v319
    %v1435 = vunpack.c.l.b16 %v320
    %v1436 = vunpack.c.h.b16 %v320
    %v1437 = vunpack.c.l.b16 %v321
    %v1438 = vunpack.c.h.b16 %v321
    %v1439 = vunpack.c.l.b16 %v322
    %v1440 = vunpack.c.h.b16 %v322
    %v1441 = vunpack.c.l.b16 %v323
    %v1442 = vunpack.c.h.b16 %v323
    %v1443 = vunpack.c.l.b16 %v324
    %v1444 = vunpack.c.h.b16 %v324
    %v1445 = vunpack.c.l.b16 %v325
    %v1446 = vunpack.c.h.b16 %v325
    %v1447 = vunpack.c.l.b16 %v326
    %v1448 = vunpack.c.h.b16 %v326
    %v1449 = vunpack.c.l.b16 %v327
    %v1450 = vunpack.c.h.b16 %v327
    %v1451 = vunpack.c.l.b16 %v328
    %v1452 = vunpack.c.h.b16 %v328
    %v1453 = vunpack.c.l.b16 %v329
    %v1454 = vunpack.c.h.b16 %v329
    %v1455 = vunpack.c.l.b16 %v330
    %v1456 = vunpack.c.h.b16 %v330
    %v1457 = vunpack.c.l.b16 %v331
    %v1458 = vunpack.c.h.b16 %v331
    %v1459 = vunpack.c.l.b16 %v332
    %v1460 = vunpack.c.h.b16 %v332
    %v1461 = vunpack.c.l.b16 %v333
    %v1462 = vunpack.c.h.b16 %v333
    %v1463 = vunpack.c.l.b16 %v334
    %v1464 = vunpack.c.h.b16 %v334
    %v1465 = vunpack.c.l.b16 %v335
    %v1466 = vunpack.c.h.b16 %v335
    %v1467 = vunpack.c.l.b16 %v336
    %v1468 = vunpack.c.h.b16 %v336
    %v1469 = vunpack.c.l.b16 %v337
    %v1470 = vunpack.c.h.b16 %v337
    %v1471 = vunpack.c.l.b16 %v338
    %v1472 = vunpack.c.h.b16 %v338
    %v1473 = vunpack.c.l.b16 %v339
    %v1474 = vunpack.c.h.b16 %v339
    %v1475 = vunpack.c.l.b16 %v340
    %v1476 = vunpack.c.h.b16 %v340
    %v1477 = vunpack.c.l.b16 %v341
    %v1478 = vunpack.c.h.b16 %v341
    %v1479 = vunpack.c.l.b16 %v342
    %v1480 = vunpack.c.h.b16 %v342
    %v1481 = vunpack.c.l.b16 %v343
    %v1482 = vunpack.c.h.b16 %v343
    %v1483 = vunpack.c.l.b16 %v344
    %v1484 = vunpack.c.h.b16 %v344
    %v1485 = vunpack.c.l.b16 %v345
    %v1486 = vunpack.c.h.b16 %v345
    %v1487 = vunpack.c.l.b16 %v346
    %v1488 = vunpack.c.h.b16 %v346
    %v1489 = vunpack.c.l.b16 %v347
    %v1490 = vunpack.c.h.b16 %v347
    %v1491 = vunpack.c.l.b16 %v348
    %v1492 = vunpack.c.h.b16 %v348
    %v1493 = vpack.c.b16 %v847, %v845
    %v1494 = vpack.c.b16 %v848, %v846
    %v1495 = vpack.c.b16 %v851, %v849
    %v1496 = vpack.c.b16 %v852, %v850
    %v1497 = vpack.c.b16 %v855, %v853
    %v1498 = vpack.c.b16 %v856, %v854
    %v1499 = vpack.c.b16 %v859, %v857
    %v1500 = vpack.c.b16 %v860, %v858
    %v1501 = vpack.c.b16 %v863, %v861
    %v1502 = vpack.c.b16 %v864, %v862
    %v1503 = vpack.c.b16 %v867, %v865
    %v1504 = vpack.c.b16 %v868, %v866
    %v1505 = vpack.c.b16 %v871, %v869
    %v1506 = vpack.c.b16 %v872, %v870
    %v1507 = vpack.c.b16 %v875, %v873
    %v1508 = vpack.c.b16 %v876, %v874
    %v1509 = vpack.c.b16 %v879, %v877
    %v1510 = vpack.c.b16 %v880, %v878
    %v1511 = vpack.c.b16 %v883, %v881
    %v1512 = vpack.c.b16 %v884, %v882
    %v1513 = vpack.c.b16 %v887, %v885
    %v1514 = vpack.c.b16 %v888, %v886
    %v1515 = vpack.c.b16 %v891, %v889
    %v1516 = vpack.c.b16 %v892, %v890
    %v1517 = vpack.c.b16 %v895, %v893
    %v1518 = vpack.c.b16 %v896, %v894
    %v1519 = vpack.c.b16 %v899, %v897
    %v1520 = vpack.c.b16 %v900, %v898
    %v1521 = vpack.c.b16 %v903, %v901
    %v1522 = vpack.c.b16 %v904, %v902
    %v1523 = vpack.c.b16 %v907, %v905
    %v1524 = vpack.c.b16 %v908, %v906
    %v1525 = vpack.c.b16 %v911, %v909
    %v1526 = vpack.c.b16 %v912, %v910
    %v1527 = vpack.c.b16 %v915, %v913
    %v1528 = vpack.c.b16 %v916, %v914
    %v1529 = vpack.c.b16 %v919, %v917
    %v1530 = vpack.c.b16 %v920, %v918
    %v1531 = vpack.c.b16 %v923, %v921
    %v1532 = vpack.c.b16 %v924, %v922
    %v1533 = vpack.c.b16 %v927, %v925
    %v1534 = vpack.c.b16 %v928, %v926
    %v1535 = vpack.c.b16 %v931, %v929
    %v1536 = vpack.c.b16 %v932, %v930
    %v1537 = vpack.c.b16 %v935, %v933
    %v1538 = vpack.c.b16 %v936, %v934
    %v1539 = vpack.c.b16 %v939, %v937
    %v1540 = vpack.c.b16 %v940, %v938
    %v1541 = vpack.c.b16 %v943, %v941
    %v1542 = vpack.c.b16 %v944, %v942
    %v1543 = vpack.c.b16 %v947, %v945
    %v1544 = vpack.c.b16 %v948, %v946
    %v1545 = vpack.c.b16 %v951, %v949
    %v1546 = vpack.c.b16 %v952, %v950
    %v1547 = vpack.c.b16 %v955, %v953
    %v1548 = vpack.c.b16 %v956, %v954
    %v1549 = vpack.c.b16 %v959, %v957
    %v1550 = vpack.c.b16 %v960, %v958
    %v1551 = vpack.c.b16 %v963, %v961
    %v1552 = vpack.c.b16 %v964, %v962
    %v1553 = vpack.c.b16 %v967, %v965
    %v1554 = vpack.c.b16 %v968, %v966
    %v1555 = vpack.c.b16 %v971, %v969
    %v1556 = vpack.c.b16 %v972, %v970
    %v1557 = vpack.c.b16 %v975, %v973
    %v1558 = vpack.c.b16 %v976, %v974
    %v1559 = vpack.c.b16 %v979, %v977
    %v1560 = vpack.c.b16 %v980, %v978
    %v1561 = vpack.c.b16 %v983, %v981
    %v1562 = vpack.c.b16 %v984, %v982
    %v1563 = vpack.c.b16 %v987, %v985
    %v1564 = vpack.c.b16 %v988, %v986
    %v1565 = vpack.c.b16 %v991, %v989
    %v1566 = vpack.c.b16 %v992, %v990
    %v1567 = vpack.c.b16 %v995, %v993
    %v1568 = vpack.c.b16 %v996, %v994
    %v1569 = vpack.c.b16 %v999, %v997
    %v1570 = vpack.c.b16 %v1000, %v998
    %v1571 = vpack.c.b16 %v1003, %v1001
    %v1572 = vpack.c.b16 %v1004, %v1002
    %v1573 = vpack.c.b16 %v1007, %v1005
    %v1574 = vpack.c.b16 %v1008, %v1006
    %v1575 = vpack.c.b16 %v1011, %v1009
    %v1576 = vpack.c.b16 %v1012, %v1010
    %v1577 = vpack.c.b16 %v1015, %v1013
    %v1578 = vpack.c.b16 %v1016, %v1014
    %v1579 = vpack.c.b16 %v1019, %v1017
    %v1580 = vpack.c.b16 %v1020, %v1018
    %v1581 = vpack.c.b16 %v1023, %v1021
    %v1582 = vpack.c.b16 %v1024, %v1022
    %v1583 = vpack.c.b16 %v1027, %v1025
    %v1584 = vpack.c.b16 %v1028, %v1026
    %v1585 = vpack.c.b16 %v1031, %v1029
    %v1586 = vpack.c.b16 %v1032, %v1030
    %v1587 = vpack.c.b16 %v1035, %v1033
    %v1588 = vpack.c.b16 %v1036, %v1034
    %v1589 = vpack.c.b16 %v1039, %v1037
    %v1590 = vpack.c.b16 %v1040, %v1038
    %v1591 = vpack.c.b16 %v1043, %v1041
    %v1592 = vpack.c.b16 %v1044, %v1042
    %v1593 = vpack.c.b16 %v1047, %v1045
    %v1594 = vpack.c.b16 %v1048, %v1046
    %v1595 = vpack.c.b16 %v1051, %v1049
    %v1596 = vpack.c.b16 %v1052, %v1050
    %v1597 = vpack.c.b16 %v1055, %v1053
    %v1598 = vpack.c.b16 %v1056, %v1054
    %v1599 = vpack.c.b16 %v1059, %v1057
    %v1600 = vpack.c.b16 %v1060, %v1058
    %v1601 = vpack.c.b16 %v1063, %v1061
    %v1602 = vpack.c.b16 %v1064, %v1062
    %v1603 = vpack.c.b16 %v1067, %v1065
    %v1604 = vpack.c.b16 %v1068, %v1066
    %v1605 = vpack.c.b16 %v1071, %v1069
    %v1606 = vpack.c.b16 %v1072, %v1070
    %v1607 = vpack.c.b16 %v1075, %v1073
    %v1608 = vpack.c.b16 %v1076, %v1074
    %v1609 = vpack.c.b16 %v1079, %v1077
    %v1610 = vpack.c.b16 %v1080, %v1078
    %v1611 = vpack.c.b16 %v1083, %v1081
    %v1612 = vpack.c.b16 %v1084, %v1082
    %v1613 = vpack.c.b16 %v1087, %v1085
    %v1614 = vpack.c.b16 %v1088, %v1086
    %v1615 = vpack.c.b16 %v1091, %v1089
    %v1616 = vpack.c.b16 %v1092, %v1090
    %v1617 = vpack.c.b16 %v1095, %v1093
    %v1618 = vpack.c.b16 %v1096, %v1094
    %v1619 = vpack.c.b16 %v1099, %v1097
    %v1620 = vpack.c.b16 %v1100, %v1098
    %v1621 = vpack.c.b16 %v1103, %v1101
    %v1622 = vpack.c.b16 %v1104, %v1102
    %v1623 = vpack.c.b16 %v1107, %v1105
    %v1624 = vpack.c.b16 %v1108, %v1106
    %v1625 = vpack.c.b16 %v1111, %v1109
    %v1626 = vpack.c.b16 %v1112, %v1110
    %v1627 = vpack.c.b16 %v1115, %v1113
    %v1628 = vpack.c.b16 %v1116, %v1114
    %v1629 = vpack.c.b16 %v1119, %v1117
    %v1630 = vpack.c.b16 %v1120, %v1118
    %v1631 = vpack.c.b16 %v1123, %v1121
    %v1632 = vpack.c.b16 %v1124, %v1122
    %v1633 = vpack.c.b16 %v1127, %v1125
    %v1634 = vpack.c.b16 %v1128, %v1126
    %v1635 = vpack.c.b16 %v1131, %v1129
    %v1636 = vpack.c.b16 %v1132, %v1130
    %v1637 = vpack.c.b16 %v1135, %v1133
    %v1638 = vpack.c.b16 %v1136, %v1134
    %v1639 = vpack.c.b16 %v1139, %v1137
    %v1640 = vpack.c.b16 %v1140, %v1138
    %v1641 = vpack.c.b16 %v1143, %v1141
    %v1642 = vpack.c.b16 %v1144, %v1142
    %v1643 = vpack.c.b16 %v1147, %v1145
    %v1644 = vpack.c.b16 %v1148, %v1146
    %v1645 = vpack.c.b16 %v1151, %v1149
    %v1646 = vpack.c.b16 %v1152, %v1150
    %v1647 = vpack.c.b16 %v1155, %v1153
    %v1648 = vpack.c.b16 %v1156, %v1154
    %v1649 = vpack.c.b16 %v1159, %v1157
    %v1650 = vpack.c.b16 %v1160, %v1158
    %v1651 = vpack.c.b16 %v1163, %v1161
    %v1652 = vpack.c.b16 %v1164, %v1162
    %v1653 = vpack.c.b16 %v1167, %v1165
    %v1654 = vpack.c.b16 %v1168, %v1166
    %v1655 = vpack.c.b16 %v1171, %v1169
    %v1656 = vpack.c.b16 %v1172, %v1170
    %v1657 = vpack.c.b16 %v1175, %v1173
    %v1658 = vpack.c.b16 %v1176, %v1174
    %v1659 = vpack.c.b16 %v1179, %v1177
    %v1660 = vpack.c.b16 %v1180, %v1178
    %v1661 = vpack.c.b16 %v1183, %v1181
    %v1662 = vpack.c.b16 %v1184, %v1182
    %v1663 = vpack.c.b16 %v1187, %v1185
    %v1664 = vpack.c.b16 %v1188, %v1186
    %v1665 = vpack.c.b16 %v1191, %v1189
    %v1666 = vpack.c.b16 %v1192, %v1190
    %v1667 = vpack.c.b16 %v1195, %v1193
    %v1668 = vpack.c.b16 %v1196, %v1194
    %v1669 = vpack.c.b16 %v1199, %v1197
    %v1670 = vpack.c.b16 %v1200, %v1198
    %v1671 = vpack.c.b16 %v1203, %v1201
    %v1672 = vpack.c.b16 %v1204, %v1202
    %v1673 = vpack.c.b16 %v1207, %v1205
    %v1674 = vpack.c.b16 %v1208, %v1206
    %v1675 = vpack.c.b16 %v1211, %v1209
    %v1676 = vpack.c.b16 %v1212, %v1210
    %v1677 = vpack.c.b16 %v1215, %v1213
    %v1678 = vpack.c.b16 %v1216, %v1214
    %v1679 = vpack.c.b16 %v1219, %v1217
    %v1680 = vpack.c.b16 %v1220, %v1218
    %v1681 = vpack.c.b16 %v1223, %v1221
    %v1682 = vpack.c.b16 %v1224, %v1222
    %v1683 = vpack.c.b16 %v1227, %v1225
    %v1684 = vpack.c.b16 %v1228, %v1226
    %v1685 = vpack.c.b16 %v1231, %v1229
    %v1686 = vpack.c.b16 %v1232, %v1230
    %v1687 = vpack.c.b16 %v1235, %v1233
    %v1688 = vpack.c.b16 %v1236, %v1234
    %v1689 = vpack.c.b16 %v1239, %v1237
    %v1690 = vpack.c.b16 %v1240, %v1238
    %v1691 = vpack.c.b16 %v1243, %v1241
    %v1692 = vpack.c.b16 %v1244, %v1242
    %v1693 = vpack.c.b16 %v1247, %v1245
    %v1694 = vpack.c.b16 %v1248, %v1246
    %v1695 = vpack.c.b16 %v1251, %v1249
    %v1696 = vpack.c.b16 %v1252, %v1250
    %v1697 = vpack.c.b16 %v1255, %v1253
    %v1698 = vpack.c.b16 %v1256, %v1254
    %v1699 = vpack.c.b16 %v1259, %v1257
    %v1700 = vpack.c.b16 %v1260, %v1258
    %v1701 = vpack.c.b16 %v1263, %v1261
    %v1702 = vpack.c.b16 %v1264, %v1262
    %v1703 = vpack.c.b16 %v1267, %v1265
    %v1704 = vpack.c.b16 %v1268, %v1266
    %v1705 = vpack.c.b16 %v1271, %v1269
    %v1706 = vpack.c.b16 %v1272, %v1270
    %v1707 = vpack.c.b16 %v1275, %v1273
    %v1708 = vpack.c.b16 %v1276, %v1274
    %v1709 = vpack.c.b16 %v1279, %v1277
    %v1710 = vpack.c.b16 %v1280, %v1278
    %v1711 = vpack.c.b16 %v1283, %v1281
    %v1712 = vpack.c.b16 %v1284, %v1282
    %v1713 = vpack.c.b16 %v1287, %v1285
    %v1714 = vpack.c.b16 %v1288, %v1286
    %v1715 = vpack.c.b16 %v1291, %v1289
    %v1716 = vpack.c.b16 %v1292, %v1290
    %v1717 = vpack.c.b16 %v1295, %v1293
    %v1718 = vpack.c.b16 %v1296, %v1294
    %v1719 = vpack.c.b16 %v1299, %v1297
    %v1720 = vpack.c.b16 %v1300, %v1298
    %v1721 = vpack.c.b16 %v1303, %v1301
    %v1722 = vpack.c.b16 %v1304, %v1302
    %v1723 = vpack.c.b16 %v1307, %v1305
    %v1724 = vpack.c.b16 %v1308, %v1306
    %v1725 = vpack.c.b16 %v1311, %v1309
    %v1726 = vpack.c.b16 %v1312, %v1310
    %v1727 = vpack.c.b16 %v1315, %v1313
    %v1728 = vpack.c.b16 %v1316, %v1314
    %v1729 = vpack.c.b16 %v1319, %v1317
    %v1730 = vpack.c.b16 %v1320, %v1318
    %v1731 = vpack.c.b16 %v1323, %v1321
    %v1732 = vpack.c.b16 %v1324, %v1322
    %v1733 = vpack.c.b16 %v1327, %v1325
    %v1734 = vpack.c.b16 %v1328, %v1326
    %v1735 = vpack.c.b16 %v1331, %v1329
    %v1736 = vpack.c.b16 %v1332, %v1330
    %v1737 = vpack.c.b16 %v1335, %v1333
    %v1738 = vpack.c.b16 %v1336, %v1334
    %v1739 = vpack.c.b16 %v1339, %v1337
    %v1740 = vpack.c.b16 %v1340, %v1338
    %v1741 = vpack.c.b16 %v1343, %v1341
    %v1742 = vpack.c.b16 %v1344, %v1342
    %v1743 = vpack.c.b16 %v1347, %v1345
    %v1744 = vpack.c.b16 %v1348, %v1346
    %v1745 = vpack.c.b16 %v1351, %v1349
    %v1746 = vpack.c.b16 %v1352, %v1350
    %v1747 = vpack.c.b16 %v1355, %v1353
    %v1748 = vpack.c.b16 %v1356, %v1354
    %v1749 = vpack.c.b16 %v1359, %v1357
    %v1750 = vpack.c.b16 %v1360, %v1358
    %v1751 = vpack.c.b16 %v1363, %v1361
    %v1752 = vpack.c.b16 %v1364, %v1362
    %v1753 = vpack.c.b16 %v1367, %v1365
    %v1754 = vpack.c.b16 %v1368, %v1366
    %v1755 = vpack.c.b16 %v1371, %v1369
    %v1756 = vpack.c.b16 %v1372, %v1370
    %v1757 = vpack.c.b16 %v1375, %v1373
    %v1758 = vpack.c.b16 %v1376, %v1374
    %v1759 = vpack.c.b16 %v1379, %v1377
    %v1760 = vpack.c.b16 %v1380, %v1378
    %v1761 = vpack.c.b16 %v1383, %v1381
    %v1762 = vpack.c.b16 %v1384, %v1382
    %v1763 = vpack.c.b16 %v1387, %v1385
    %v1764 = vpack.c.b16 %v1388, %v1386
    %v1765 = vpack.c.b16 %v1391, %v1389
    %v1766 = vpack.c.b16 %v1392, %v1390
    %v1767 = vpack.c.b16 %v1395, %v1393
    %v1768 = vpack.c.b16 %v1396, %v1394
    %v1769 = vpack.c.b16 %v1399, %v1397
    %v1770 = vpack.c.b16 %v1400, %v1398
    %v1771 = vpack.c.b16 %v1403, %v1401
    %v1772 = vpack.c.b16 %v1404, %v1402
    %v1773 = vpack.c.b16 %v1407, %v1405
    %v1774 = vpack.c.b16 %v1408, %v1406
    %v1775 = vpack.c.b16 %v1411, %v1409
    %v1776 = vpack.c.b16 %v1412, %v1410
    %v1777 = vpack.c.b16 %v1415, %v1413
    %v1778 = vpack.c.b16 %v1416, %v1414
    %v1779 = vpack.c.b16 %v1419, %v1417
    %v1780 = vpack.c.b16 %v1420, %v1418
    %v1781 = vpack.c.b16 %v1423, %v1421
    %v1782 = vpack.c.b16 %v1424, %v1422
    %v1783 = vpack.c.b16 %v1427, %v1425
    %v1784 = vpack.c.b16 %v1428, %v1426
    %v1785 = vpack.c.b16 %v1431, %v1429
    %v1786 = vpack.c.b16 %v1432, %v1430
    %v1787 = vpack.c.b16 %v1435, %v1433
    %v1788 = vpack.c.b16 %v1436, %v1434
    %v1789 = vpack.c.b16 %v1439, %v1437
    %v1790 = vpack.c.b16 %v1440, %v1438
    %v1791 = vpack.c.b16 %v1443, %v1441
    %v1792 = vpack.c.b16 %v1444, %v1442
    %v1793 = vpack.c.b16 %v1447, %v1445
    %v1794 = vpack.c.b16 %v1448, %v1446
    %v1795 = vpack.c.b16 %v1451, %v1449
    %v1796 = vpack.c.b16 %v1452, %v1450
    %v1797 = vpack.c.b16 %v1455, %v1453
    %v1798 = vpack.c.b16 %v1456, %v1454
    %v1799 = vpack.c.b16 %v1459, %v1457
    %v1800 = vpack.c.b16 %v1460, %v1458
    %v1801 = vpack.c.b16 %v1463, %v1461
    %v1802 = vpack.c.b16 %v1464, %v1462
    %v1803 = vpack.c.b16 %v1467, %v1465
    %v1804 = vpack.c.b16 %v1468, %v1466
    %v1805 = vpack.c.b16 %v1471, %v1469
    %v1806 = vpack.c.b16 %v1472, %v1470
    %v1807 = vpack.c.b16 %v1475, %v1473
    %v1808 = vpack.c.b16 %v1476, %v1474
    %v1809 = vpack.c.b16 %v1479, %v1477
    %v1810 = vpack.c.b16 %v1480, %v1478
    %v1811 = vpack.c.b16 %v1483, %v1481
    %v1812 = vpack.c.b16 %v1484, %v1482
    %v1813 = vpack.c.b16 %v1487, %v1485
    %v1814 = vpack.c.b16 %v1488, %v1486
    %v1815 = vpack.c.b16 %v1491, %v1489
    %v1816 = vpack.c.b16 %v1492, %v1490
    %vm2141 = vcmask 261120
    %v2143 = vsel %vm2141, %v491, 0
    %2145 = vmatprep.subr.bf16.mxu0 %v1508
    %2146 = vmatpush1.bf16.msra.mxu0 %v1507
    %2147 = vmatprep.subr.bf16.mxu0 %v1506
    %2148 = vmatpush1.bf16.msra.mxu0 %v1505
    %2149 = vmatprep.subr.bf16.mxu0 %v1504
    %2150 = vmatpush1.bf16.msra.mxu0 %v1503
    %2151 = vmatprep.subr.bf16.mxu0 %v1502
    %2152 = vmatpush1.bf16.msra.mxu0 %v1501
    %2153 = vmatprep.subr.bf16.mxu0 %v1500
    %2154 = vmatpush1.bf16.msra.mxu0 %v1499
    %2155 = vmatprep.subr.bf16.mxu0 %v1498
    %2156 = vmatpush1.bf16.msra.mxu0 %v1497
    %2157 = vmatprep.subr.bf16.mxu0 %v1496
    %2158 = vmatpush1.bf16.msra.mxu0 %v1495
    %2159 = vmatprep.subr.bf16.mxu0 %v1494
    %2160 = vmatpush1.bf16.msra.mxu0 %v1493
    %2161 = vmatprep.subr.bf16.mxu0 %v1524
    %2162 = vmatpush2.bf16.msra.mxu0 %v1523
    %2163 = vmatprep.subr.bf16.mxu0 %v1522
    %2164 = vmatpush2.bf16.msra.mxu0 %v1521
    %2165 = vmatprep.subr.bf16.mxu0 %v1520
    %2166 = vmatpush2.bf16.msra.mxu0 %v1519
    %2167 = vmatprep.subr.bf16.mxu0 %v1518
    %2168 = vmatpush2.bf16.msra.mxu0 %v1517
    %2169 = vmatprep.subr.bf16.mxu0 %v1516
    %2170 = vmatpush2.bf16.msra.mxu0 %v1515
    %2171 = vmatprep.subr.bf16.mxu0 %v1514
    %2172 = vmatpush2.bf16.msra.mxu0 %v1513
    %2173 = vmatprep.subr.bf16.mxu0 %v1512
    %2174 = vmatpush2.bf16.msra.mxu0 %v1511
    %2175 = vmatprep.subr.bf16.mxu0 %v1510
    %2176 = vmatpush2.bf16.msra.mxu0 %v1509
    %2177 = vmatprep.mubr.bf16.mxu0 %v401
    %2178 = vmatmul.mubr.bf16.gmra.mxu0 %v387
    %v2179 = vpop.f32.mrf.mxu0
    %v2180 = vadd.f32 %v354, %v2179
    %v2181 = vpop.f32.mrf.mxu0
    %v2182 = vadd.f32 %v358, %v2181
    %v2183 = vpop.f32.mrf.mxu0
    %v2184 = vpop.f32.mrf.mxu0
    %2185 = vdwg.mxu0
    %2186 = vmatprep.subr.bf16.mxu0 %v1540
    %2187 = vmatpush1.bf16.msra.mxu0 %v1539
    %2188 = vmatprep.subr.bf16.mxu0 %v1538
    %2189 = vmatpush1.bf16.msra.mxu0 %v1537
    %2190 = vmatprep.subr.bf16.mxu0 %v1536
    %2191 = vmatpush1.bf16.msra.mxu0 %v1535
    %2192 = vmatprep.subr.bf16.mxu0 %v1534
    %2193 = vmatpush1.bf16.msra.mxu0 %v1533
    %2194 = vmatprep.subr.bf16.mxu0 %v1532
    %2195 = vmatpush1.bf16.msra.mxu0 %v1531
    %2196 = vmatprep.subr.bf16.mxu0 %v1530
    %2197 = vmatpush1.bf16.msra.mxu0 %v1529
    %2198 = vmatprep.subr.bf16.mxu0 %v1528
    %2199 = vmatpush1.bf16.msra.mxu0 %v1527
    %2200 = vmatprep.subr.bf16.mxu0 %v1526
    %2201 = vmatpush1.bf16.msra.mxu0 %v1525
    %2202 = vmatprep.subr.bf16.mxu0 %v1556
    %2203 = vmatpush2.bf16.msra.mxu0 %v1555
    %2204 = vmatprep.subr.bf16.mxu0 %v1554
    %2205 = vmatpush2.bf16.msra.mxu0 %v1553
    %2206 = vmatprep.subr.bf16.mxu0 %v1552
    %2207 = vmatpush2.bf16.msra.mxu0 %v1551
    %2208 = vmatprep.subr.bf16.mxu0 %v1550
    %2209 = vmatpush2.bf16.msra.mxu0 %v1549
    %2210 = vmatprep.subr.bf16.mxu0 %v1548
    %2211 = vmatpush2.bf16.msra.mxu0 %v1547
    %2212 = vmatprep.subr.bf16.mxu0 %v1546
    %2213 = vmatpush2.bf16.msra.mxu0 %v1545
    %2214 = vmatprep.subr.bf16.mxu0 %v1544
    %2215 = vmatpush2.bf16.msra.mxu0 %v1543
    %2216 = vmatprep.subr.bf16.mxu0 %v1542
    %2217 = vmatpush2.bf16.msra.mxu0 %v1541
    %2218 = vmatprep.mubr.bf16.mxu0 %v411
    %2219 = vmatmul.mubr.bf16.gmra.mxu0 %v409
    %v2220 = vpop.f32.mrf.mxu0
    %v2221 = vadd.f32 %v2180, %v2220
    %v2222 = vpop.f32.mrf.mxu0
    %v2223 = vadd.f32 %v2182, %v2222
    %v2224 = vpop.f32.mrf.mxu0
    %v2225 = vpop.f32.mrf.mxu0
    %2226 = vdwg.mxu0
    %2227 = vmatprep.subr.bf16.mxu0 %v1572
    %2228 = vmatpush1.bf16.msra.mxu0 %v1571
    %2229 = vmatprep.subr.bf16.mxu0 %v1570
    %2230 = vmatpush1.bf16.msra.mxu0 %v1569
    %2231 = vmatprep.subr.bf16.mxu0 %v1568
    %2232 = vmatpush1.bf16.msra.mxu0 %v1567
    %2233 = vmatprep.subr.bf16.mxu0 %v1566
    %2234 = vmatpush1.bf16.msra.mxu0 %v1565
    %2235 = vmatprep.subr.bf16.mxu0 %v1564
    %2236 = vmatpush1.bf16.msra.mxu0 %v1563
    %2237 = vmatprep.subr.bf16.mxu0 %v1562
    %2238 = vmatpush1.bf16.msra.mxu0 %v1561
    %2239 = vmatprep.subr.bf16.mxu0 %v1560
    %2240 = vmatpush1.bf16.msra.mxu0 %v1559
    %2241 = vmatprep.subr.bf16.mxu0 %v1558
    %2242 = vmatpush1.bf16.msra.mxu0 %v1557
    %2243 = vmatprep.subr.bf16.mxu0 %v1588
    %2244 = vmatpush2.bf16.msra.mxu0 %v1587
    %2245 = vmatprep.subr.bf16.mxu0 %v1586
    %2246 = vmatpush2.bf16.msra.mxu0 %v1585
    %2247 = vmatprep.subr.bf16.mxu0 %v1584
    %2248 = vmatpush2.bf16.msra.mxu0 %v1583
    %2249 = vmatprep.subr.bf16.mxu0 %v1582
    %2250 = vmatpush2.bf16.msra.mxu0 %v1581
    %2251 = vmatprep.subr.bf16.mxu0 %v1580
    %2252 = vmatpush2.bf16.msra.mxu0 %v1579
    %2253 = vmatprep.subr.bf16.mxu0 %v1578
    %2254 = vmatpush2.bf16.msra.mxu0 %v1577
    %2255 = vmatprep.subr.bf16.mxu0 %v1576
    %2256 = vmatpush2.bf16.msra.mxu0 %v1575
    %2257 = vmatprep.subr.bf16.mxu0 %v1574
    %2258 = vmatpush2.bf16.msra.mxu0 %v1573
    %2259 = vmatprep.mubr.bf16.mxu0 %v408
    %2260 = vmatmul.mubr.bf16.gmra.mxu0 %v394
    %v2261 = vpop.f32.mrf.mxu0
    %v2262 = vadd.f32 %v2221, %v2261
    %v2263 = vpop.f32.mrf.mxu0
    %v2264 = vadd.f32 %v2223, %v2263
    %v2265 = vpop.f32.mrf.mxu0
    %v2266 = vpop.f32.mrf.mxu0
    %2267 = vdwg.mxu0
    %2268 = vmatprep.subr.bf16.mxu0 %v1604
    %2269 = vmatpush1.bf16.msra.mxu0 %v1603
    %2270 = vmatprep.subr.bf16.mxu0 %v1602
    %2271 = vmatpush1.bf16.msra.mxu0 %v1601
    %2272 = vmatprep.subr.bf16.mxu0 %v1600
    %2273 = vmatpush1.bf16.msra.mxu0 %v1599
    %2274 = vmatprep.subr.bf16.mxu0 %v1598
    %2275 = vmatpush1.bf16.msra.mxu0 %v1597
    %2276 = vmatprep.subr.bf16.mxu0 %v1596
    %2277 = vmatpush1.bf16.msra.mxu0 %v1595
    %2278 = vmatprep.subr.bf16.mxu0 %v1594
    %2279 = vmatpush1.bf16.msra.mxu0 %v1593
    %2280 = vmatprep.subr.bf16.mxu0 %v1592
    %2281 = vmatpush1.bf16.msra.mxu0 %v1591
    %2282 = vmatprep.subr.bf16.mxu0 %v1590
    %2283 = vmatpush1.bf16.msra.mxu0 %v1589
    %2284 = vmatprep.subr.bf16.mxu0 %v1620
    %2285 = vmatpush2.bf16.msra.mxu0 %v1619
    %2286 = vmatprep.subr.bf16.mxu0 %v1618
    %2287 = vmatpush2.bf16.msra.mxu0 %v1617
    %2288 = vmatprep.subr.bf16.mxu0 %v1616
    %2289 = vmatpush2.bf16.msra.mxu0 %v1615
    %2290 = vmatprep.subr.bf16.mxu0 %v1614
    %2291 = vmatpush2.bf16.msra.mxu0 %v1613
    %2292 = vmatprep.subr.bf16.mxu0 %v1612
    %2293 = vmatpush2.bf16.msra.mxu0 %v1611
    %2294 = vmatprep.subr.bf16.mxu0 %v1610
    %2295 = vmatpush2.bf16.msra.mxu0 %v1609
    %2296 = vmatprep.subr.bf16.mxu0 %v1608
    %2297 = vmatpush2.bf16.msra.mxu0 %v1607
    %2298 = vmatprep.subr.bf16.mxu0 %v1606
    %2299 = vmatpush2.bf16.msra.mxu0 %v1605
    %2300 = vmatprep.mubr.bf16.mxu0 %v412
    %2301 = vmatmul.mubr.bf16.gmra.mxu0 %v410
    %v2302 = vpop.f32.mrf.mxu0
    %v2303 = vadd.f32 %v2262, %v2302
    %v2304 = vpop.f32.mrf.mxu0
    %v2305 = vadd.f32 %v2264, %v2304
    %v2306 = vpop.f32.mrf.mxu0
    %v2307 = vpop.f32.mrf.mxu0
    %2308 = vdwg.mxu0
    %2309 = vmatprep.subr.bf16.mxu0 %v1636
    %2310 = vmatpush1.bf16.msra.mxu0 %v1635
    %2311 = vmatprep.subr.bf16.mxu0 %v1634
    %2312 = vmatpush1.bf16.msra.mxu0 %v1633
    %2313 = vmatprep.subr.bf16.mxu0 %v1632
    %2314 = vmatpush1.bf16.msra.mxu0 %v1631
    %2315 = vmatprep.subr.bf16.mxu0 %v1630
    %2316 = vmatpush1.bf16.msra.mxu0 %v1629
    %2317 = vmatprep.subr.bf16.mxu0 %v1628
    %2318 = vmatpush1.bf16.msra.mxu0 %v1627
    %2319 = vmatprep.subr.bf16.mxu0 %v1626
    %2320 = vmatpush1.bf16.msra.mxu0 %v1625
    %2321 = vmatprep.subr.bf16.mxu0 %v1624
    %2322 = vmatpush1.bf16.msra.mxu0 %v1623
    %2323 = vmatprep.subr.bf16.mxu0 %v1622
    %2324 = vmatpush1.bf16.msra.mxu0 %v1621
    %2325 = vmatprep.subr.bf16.mxu0 %v1652
    %2326 = vmatpush2.bf16.msra.mxu0 %v1651
    %2327 = vmatprep.subr.bf16.mxu0 %v1650
    %2328 = vmatpush2.bf16.msra.mxu0 %v1649
    %2329 = vmatprep.subr.bf16.mxu0 %v1648
    %2330 = vmatpush2.bf16.msra.mxu0 %v1647
    %2331 = vmatprep.subr.bf16.mxu0 %v1646
    %2332 = vmatpush2.bf16.msra.mxu0 %v1645
    %2333 = vmatprep.subr.bf16.mxu0 %v1644
    %2334 = vmatpush2.bf16.msra.mxu0 %v1643
    %2335 = vmatprep.subr.bf16.mxu0 %v1642
    %2336 = vmatpush2.bf16.msra.mxu0 %v1641
    %2337 = vmatprep.subr.bf16.mxu0 %v1640
    %2338 = vmatpush2.bf16.msra.mxu0 %v1639
    %2339 = vmatprep.subr.bf16.mxu0 %v1638
    %2340 = vmatpush2.bf16.msra.mxu0 %v1637
    %2341 = vmatprep.mubr.bf16.mxu0 %v450
    %2342 = vmatmul.mubr.bf16.gmra.mxu0 %v436
    %v2343 = vpop.f32.mrf.mxu0
    %v2344 = vadd.f32 %v2303, %v2343
    %v2345 = vpop.f32.mrf.mxu0
    %v2346 = vadd.f32 %v2305, %v2345
    %v2347 = vpop.f32.mrf.mxu0
    %v2348 = vpop.f32.mrf.mxu0
    %2349 = vdwg.mxu0
    %2350 = vmatprep.subr.bf16.mxu0 %v1668
    %2351 = vmatpush1.bf16.msra.mxu0 %v1667
    %2352 = vmatprep.subr.bf16.mxu0 %v1666
    %2353 = vmatpush1.bf16.msra.mxu0 %v1665
    %2354 = vmatprep.subr.bf16.mxu0 %v1664
    %2355 = vmatpush1.bf16.msra.mxu0 %v1663
    %2356 = vmatprep.subr.bf16.mxu0 %v1662
    %2357 = vmatpush1.bf16.msra.mxu0 %v1661
    %2358 = vmatprep.subr.bf16.mxu0 %v1660
    %2359 = vmatpush1.bf16.msra.mxu0 %v1659
    %2360 = vmatprep.subr.bf16.mxu0 %v1658
    %2361 = vmatpush1.bf16.msra.mxu0 %v1657
    %2362 = vmatprep.subr.bf16.mxu0 %v1656
    %2363 = vmatpush1.bf16.msra.mxu0 %v1655
    %2364 = vmatprep.subr.bf16.mxu0 %v1654
    %2365 = vmatpush1.bf16.msra.mxu0 %v1653
    %2366 = vmatprep.subr.bf16.mxu0 %v1684
    %2367 = vmatpush2.bf16.msra.mxu0 %v1683
    %2368 = vmatprep.subr.bf16.mxu0 %v1682
    %2369 = vmatpush2.bf16.msra.mxu0 %v1681
    %2370 = vmatprep.subr.bf16.mxu0 %v1680
    %2371 = vmatpush2.bf16.msra.mxu0 %v1679
    %2372 = vmatprep.subr.bf16.mxu0 %v1678
    %2373 = vmatpush2.bf16.msra.mxu0 %v1677
    %2374 = vmatprep.subr.bf16.mxu0 %v1676
    %2375 = vmatpush2.bf16.msra.mxu0 %v1675
    %2376 = vmatprep.subr.bf16.mxu0 %v1674
    %2377 = vmatpush2.bf16.msra.mxu0 %v1673
    %2378 = vmatprep.subr.bf16.mxu0 %v1672
    %2379 = vmatpush2.bf16.msra.mxu0 %v1671
    %2380 = vmatprep.subr.bf16.mxu0 %v1670
    %2381 = vmatpush2.bf16.msra.mxu0 %v1669
    %2382 = vmatprep.mubr.bf16.mxu0 %v460
    %2383 = vmatmul.mubr.bf16.gmra.mxu0 %v458
    %v2384 = vpop.f32.mrf.mxu0
    %v2385 = vadd.f32 %v2344, %v2384
    %v2386 = vpop.f32.mrf.mxu0
    %v2387 = vadd.f32 %v2346, %v2386
    %v2388 = vpop.f32.mrf.mxu0
    %v2389 = vpop.f32.mrf.mxu0
    %2390 = vdwg.mxu0
    %2391 = vmatprep.subr.bf16.mxu0 %v1700
    %2392 = vmatpush1.bf16.msra.mxu0 %v1699
    %2393 = vmatprep.subr.bf16.mxu0 %v1698
    %2394 = vmatpush1.bf16.msra.mxu0 %v1697
    %2395 = vmatprep.subr.bf16.mxu0 %v1696
    %2396 = vmatpush1.bf16.msra.mxu0 %v1695
    %2397 = vmatprep.subr.bf16.mxu0 %v1694
    %2398 = vmatpush1.bf16.msra.mxu0 %v1693
    %2399 = vmatprep.subr.bf16.mxu0 %v1692
    %2400 = vmatpush1.bf16.msra.mxu0 %v1691
    %2401 = vmatprep.subr.bf16.mxu0 %v1690
    %2402 = vmatpush1.bf16.msra.mxu0 %v1689
    %2403 = vmatprep.subr.bf16.mxu0 %v1688
    %2404 = vmatpush1.bf16.msra.mxu0 %v1687
    %2405 = vmatprep.subr.bf16.mxu0 %v1686
    %2406 = vmatpush1.bf16.msra.mxu0 %v1685
    %2407 = vmatprep.subr.bf16.mxu0 %v1716
    %2408 = vmatpush2.bf16.msra.mxu0 %v1715
    %2409 = vmatprep.subr.bf16.mxu0 %v1714
    %2410 = vmatpush2.bf16.msra.mxu0 %v1713
    %2411 = vmatprep.subr.bf16.mxu0 %v1712
    %2412 = vmatpush2.bf16.msra.mxu0 %v1711
    %2413 = vmatprep.subr.bf16.mxu0 %v1710
    %2414 = vmatpush2.bf16.msra.mxu0 %v1709
    %2415 = vmatprep.subr.bf16.mxu0 %v1708
    %2416 = vmatpush2.bf16.msra.mxu0 %v1707
    %2417 = vmatprep.subr.bf16.mxu0 %v1706
    %2418 = vmatpush2.bf16.msra.mxu0 %v1705
    %2419 = vmatprep.subr.bf16.mxu0 %v1704
    %2420 = vmatpush2.bf16.msra.mxu0 %v1703
    %2421 = vmatprep.subr.bf16.mxu0 %v1702
    %2422 = vmatpush2.bf16.msra.mxu0 %v1701
    %2423 = vmatprep.mubr.bf16.mxu0 %v457
    %2424 = vmatmul.mubr.bf16.gmra.mxu0 %v443
    %v2425 = vpop.f32.mrf.mxu0
    %v2426 = vadd.f32 %v2385, %v2425
    %v2427 = vpop.f32.mrf.mxu0
    %v2428 = vadd.f32 %v2387, %v2427
    %v2429 = vpop.f32.mrf.mxu0
    %v2430 = vpop.f32.mrf.mxu0
    %2431 = vdwg.mxu0
    %2432 = vmatprep.subr.bf16.mxu0 %v1732
    %2433 = vmatpush1.bf16.msra.mxu0 %v1731
    %2434 = vmatprep.subr.bf16.mxu0 %v1730
    %2435 = vmatpush1.bf16.msra.mxu0 %v1729
    %2436 = vmatprep.subr.bf16.mxu0 %v1728
    %2437 = vmatpush1.bf16.msra.mxu0 %v1727
    %2438 = vmatprep.subr.bf16.mxu0 %v1726
    %2439 = vmatpush1.bf16.msra.mxu0 %v1725
    %2440 = vmatprep.subr.bf16.mxu0 %v1724
    %2441 = vmatpush1.bf16.msra.mxu0 %v1723
    %2442 = vmatprep.subr.bf16.mxu0 %v1722
    %2443 = vmatpush1.bf16.msra.mxu0 %v1721
    %2444 = vmatprep.subr.bf16.mxu0 %v1720
    %2445 = vmatpush1.bf16.msra.mxu0 %v1719
    %2446 = vmatprep.subr.bf16.mxu0 %v1718
    %2447 = vmatpush1.bf16.msra.mxu0 %v1717
    %2448 = vmatprep.subr.bf16.mxu0 %v1748
    %2449 = vmatpush2.bf16.msra.mxu0 %v1747
    %2450 = vmatprep.subr.bf16.mxu0 %v1746
    %2451 = vmatpush2.bf16.msra.mxu0 %v1745
    %2452 = vmatprep.subr.bf16.mxu0 %v1744
    %2453 = vmatpush2.bf16.msra.mxu0 %v1743
    %2454 = vmatprep.subr.bf16.mxu0 %v1742
    %2455 = vmatpush2.bf16.msra.mxu0 %v1741
    %2456 = vmatprep.subr.bf16.mxu0 %v1740
    %2457 = vmatpush2.bf16.msra.mxu0 %v1739
    %2458 = vmatprep.subr.bf16.mxu0 %v1738
    %2459 = vmatpush2.bf16.msra.mxu0 %v1737
    %2460 = vmatprep.subr.bf16.mxu0 %v1736
    %2461 = vmatpush2.bf16.msra.mxu0 %v1735
    %2462 = vmatprep.subr.bf16.mxu0 %v1734
    %2463 = vmatpush2.bf16.msra.mxu0 %v1733
    %2464 = vmatprep.mubr.bf16.mxu0 %v461
    %2465 = vmatmul.mubr.bf16.gmra.mxu0 %v459
    %v2466 = vpop.f32.mrf.mxu0
    %v2467 = vadd.f32 %v2426, %v2466
    %v2468 = vpop.f32.mrf.mxu0
    %v2469 = vadd.f32 %v2428, %v2468
    %v2470 = vpop.f32.mrf.mxu0
    %v2471 = vpop.f32.mrf.mxu0
    %2472 = vdwg.mxu0
    %2473 = vmatprep.subr.bf16.mxu0 %v1764
    %2474 = vmatpush1.bf16.msra.mxu0 %v1763
    %2475 = vmatprep.subr.bf16.mxu0 %v1762
    %2476 = vmatpush1.bf16.msra.mxu0 %v1761
    %2477 = vmatprep.subr.bf16.mxu0 %v1760
    %2478 = vmatpush1.bf16.msra.mxu0 %v1759
    %2479 = vmatprep.subr.bf16.mxu0 %v1758
    %2480 = vmatpush1.bf16.msra.mxu0 %v1757
    %2481 = vmatprep.subr.bf16.mxu0 %v1756
    %2482 = vmatpush1.bf16.msra.mxu0 %v1755
    %2483 = vmatprep.subr.bf16.mxu0 %v1754
    %2484 = vmatpush1.bf16.msra.mxu0 %v1753
    %2485 = vmatprep.subr.bf16.mxu0 %v1752
    %2486 = vmatpush1.bf16.msra.mxu0 %v1751
    %2487 = vmatprep.subr.bf16.mxu0 %v1750
    %2488 = vmatpush1.bf16.msra.mxu0 %v1749
    %2489 = vmatprep.subr.bf16.mxu0 %v1780
    %2490 = vmatpush2.bf16.msra.mxu0 %v1779
    %2491 = vmatprep.subr.bf16.mxu0 %v1778
    %2492 = vmatpush2.bf16.msra.mxu0 %v1777
    %2493 = vmatprep.subr.bf16.mxu0 %v1776
    %2494 = vmatpush2.bf16.msra.mxu0 %v1775
    %2495 = vmatprep.subr.bf16.mxu0 %v1774
    %2496 = vmatpush2.bf16.msra.mxu0 %v1773
    %2497 = vmatprep.subr.bf16.mxu0 %v1772
    %2498 = vmatpush2.bf16.msra.mxu0 %v1771
    %2499 = vmatprep.subr.bf16.mxu0 %v1770
    %2500 = vmatpush2.bf16.msra.mxu0 %v1769
    %2501 = vmatprep.subr.bf16.mxu0 %v1768
    %2502 = vmatpush2.bf16.msra.mxu0 %v1767
    %2503 = vmatprep.subr.bf16.mxu0 %v1766
    %2504 = vmatpush2.bf16.msra.mxu0 %v1765
    %2505 = vmatprep.mubr.bf16.mxu0 %v498
    %2506 = vmatmul.mubr.bf16.gmra.mxu0 %v484
    %v2507 = vpop.f32.mrf.mxu0
    %v2508 = vadd.f32 %v2467, %v2507
    %v2509 = vpop.f32.mrf.mxu0
    %v2510 = vadd.f32 %v2469, %v2509
    %v2511 = vpop.f32.mrf.mxu0
    %v2512 = vpop.f32.mrf.mxu0
    %2513 = vdwg.mxu0
    %2514 = vmatprep.subr.bf16.mxu0 %v1796
    %2515 = vmatpush1.bf16.msra.mxu0 %v1795
    %2516 = vmatprep.subr.bf16.mxu0 %v1794
    %2517 = vmatpush1.bf16.msra.mxu0 %v1793
    %2518 = vmatprep.subr.bf16.mxu0 %v1792
    %2519 = vmatpush1.bf16.msra.mxu0 %v1791
    %2520 = vmatprep.subr.bf16.mxu0 %v1790
    %2521 = vmatpush1.bf16.msra.mxu0 %v1789
    %2522 = vmatprep.subr.bf16.mxu0 %v1788
    %2523 = vmatpush1.bf16.msra.mxu0 %v1787
    %2524 = vmatprep.subr.bf16.mxu0 %v1786
    %2525 = vmatpush1.bf16.msra.mxu0 %v1785
    %2526 = vmatprep.subr.bf16.mxu0 %v1784
    %2527 = vmatpush1.bf16.msra.mxu0 %v1783
    %2528 = vmatprep.subr.bf16.mxu0 %v1782
    %2529 = vmatpush1.bf16.msra.mxu0 %v1781
    %2530 = vmatprep.subr.bf16.mxu0 %v1812
    %2531 = vmatpush2.bf16.msra.mxu0 %v1811
    %2532 = vmatprep.subr.bf16.mxu0 %v1810
    %2533 = vmatpush2.bf16.msra.mxu0 %v1809
    %2534 = vmatprep.subr.bf16.mxu0 %v1808
    %2535 = vmatpush2.bf16.msra.mxu0 %v1807
    %2536 = vmatprep.subr.bf16.mxu0 %v1806
    %2537 = vmatpush2.bf16.msra.mxu0 %v1805
    %2538 = vmatprep.subr.bf16.mxu0 %v1804
    %2539 = vmatpush2.bf16.msra.mxu0 %v1803
    %2540 = vmatprep.subr.bf16.mxu0 %v1802
    %2541 = vmatpush2.bf16.msra.mxu0 %v1801
    %2542 = vmatprep.subr.bf16.mxu0 %v1800
    %2543 = vmatpush2.bf16.msra.mxu0 %v1799
    %2544 = vmatprep.subr.bf16.mxu0 %v1798
    %2545 = vmatpush2.bf16.msra.mxu0 %v1797
    %2546 = vmatprep.mubr.bf16.mxu0 %v500
    %2547 = vmatmul.mubr.bf16.gmra.mxu0 %v499
    %v2548 = vpop.f32.mrf.mxu0
    %v2549 = vadd.f32 %v2508, %v2548
    %v2550 = vpop.f32.mrf.mxu0
    %v2551 = vadd.f32 %v2510, %v2550
    %v2552 = vpop.f32.mrf.mxu0
    %v2553 = vpop.f32.mrf.mxu0
    %2554 = vdwg.mxu0
    %2555 = vmatprep.subr.bf16.mxu0 0
    %2556 = vmatpush1.bf16.msra.mxu0 0
    %2557 = vmatprep.subr.bf16.mxu0 0
    %2558 = vmatpush1.bf16.msra.mxu0 0
    %2559 = vmatprep.subr.bf16.mxu0 0
    %2560 = vmatpush1.bf16.msra.mxu0 0
    %2561 = vmatprep.subr.bf16.mxu0 0
    %2562 = vmatpush1.bf16.msra.mxu0 0
    %2563 = vmatprep.subr.bf16.mxu0 0
    %2564 = vmatpush1.bf16.msra.mxu0 0
    %2565 = vmatprep.subr.bf16.mxu0 0
    %2566 = vmatpush1.bf16.msra.mxu0 0
    %2567 = vmatprep.subr.bf16.mxu0 %v1816
    %2568 = vmatpush1.bf16.msra.mxu0 %v1815
    %2569 = vmatprep.subr.bf16.mxu0 %v1814
    %2570 = vmatpush1.bf16.msra.mxu0 %v1813
    %2571 = vmatprep.subr.bf16.mxu0 0
    %2572 = vmatpush2.bf16.msra.mxu0 0
    %2573 = vmatprep.subr.bf16.mxu0 0
    %2574 = vmatpush2.bf16.msra.mxu0 0
    %2575 = vmatprep.subr.bf16.mxu0 0
    %2576 = vmatpush2.bf16.msra.mxu0 0
    %2577 = vmatprep.subr.bf16.mxu0 0
    %2578 = vmatpush2.bf16.msra.mxu0 0
    %2579 = vmatprep.subr.bf16.mxu0 0
    %2580 = vmatpush2.bf16.msra.mxu0 0
    %2581 = vmatprep.subr.bf16.mxu0 0
    %2582 = vmatpush2.bf16.msra.mxu0 0
    %2583 = vmatprep.subr.bf16.mxu0 0
    %2584 = vmatpush2.bf16.msra.mxu0 0
    %2585 = vmatprep.subr.bf16.mxu0 0
    %2586 = vmatpush2.bf16.msra.mxu0 0
    %2587 = vmatprep.mubr.bf16.mxu0 0
    %2588 = vmatmul.mubr.bf16.gmra.mxu0 %v2143
    %v2589 = vpop.f32.mrf.mxu0
    %v2590 = vadd.f32 %v2549, %v2589
    %v2591 = vpop.f32.mrf.mxu0
    %v2592 = vadd.f32 %v2551, %v2591
    %v2593 = vpop.f32.mrf.mxu0
    %v2594 = vpop.f32.mrf.mxu0
    %2595 = vdwg.mxu0
    %v2596 = vmax.f32 %v2590, 0.0
    %v2597 = vmax.f32 %v2592, 0.0
    %v2598 = vpack.c.bf16 %v2596, %v2596
    %v2599 = vpack.c.bf16 %v2597, %v2597
    %v2600 = vld [vmem:[%s3] sm:$0xf]
    %v2601 = vld [vmem:[%s3 + $0x4] sm:$0xf]
    %v2602 = vld [vmem:[%s3 + $0x8] sm:$0xf]
    %v2603 = vld [vmem:[%s3 + $0xc] sm:$0xf]
    %v2604 = vld [vmem:[%s3 + $0x10] sm:$0xf]
    %v2605 = vld [vmem:[%s3 + $0x14] sm:$0xf]
    %v2606 = vld [vmem:[%s3 + $0x18] sm:$0xf]
    %v2607 = vld [vmem:[%s3 + $0x1c] sm:$0xf]
    %v2608 = vld [vmem:[%s3 + $0x20] sm:$0xf]
    %v2609 = vld [vmem:[%s3 + $0x24] sm:$0xf]
    %v2610 = vld [vmem:[%s3 + $0x28] sm:$0xf]
    %v2611 = vld [vmem:[%s3 + $0x2c] sm:$0xf]
    %v2612 = vld [vmem:[%s3 + $0x30] sm:$0xf]
    %v2613 = vld [vmem:[%s3 + $0x34] sm:$0xf]
    %v2614 = vld [vmem:[%s3 + $0x38] sm:$0xf]
    %v2615 = vld [vmem:[%s3 + $0x3c] sm:$0xf]
    %v2616 = vld [vmem:[%s3 + $0x40] sm:$0xf]
    %v2617 = vld [vmem:[%s3 + $0x44] sm:$0xf]
    %v2618 = vld [vmem:[%s3 + $0x48] sm:$0xf]
    %v2619 = vld [vmem:[%s3 + $0x4c] sm:$0xf]
    %v2620 = vld [vmem:[%s3 + $0x50] sm:$0xf]
    %v2621 = vld [vmem:[%s3 + $0x54] sm:$0xf]
    %v2622 = vld [vmem:[%s3 + $0x58] sm:$0xf]
    %v2623 = vld [vmem:[%s3 + $0x5c] sm:$0xf]
    %v2624 = vld [vmem:[%s3 + $0x60] sm:$0xf]
    %v2625 = vld [vmem:[%s3 + $0x64] sm:$0xf]
    %v2626 = vld [vmem:[%s3 + $0x68] sm:$0xf]
    %v2627 = vld [vmem:[%s3 + $0x6c] sm:$0xf]
    %v2628 = vld [vmem:[%s3 + $0x70] sm:$0xf]
    %v2629 = vld [vmem:[%s3 + $0x74] sm:$0xf]
    %v2630 = vld [vmem:[%s3 + $0x78] sm:$0xf]
    %v2631 = vld [vmem:[%s3 + $0x7c] sm:$0xf]
    %v2632 = vld [vmem:[%s4] sm:$0x1]
    %v2634 = vlaneseq
    %v2635 = vshrl.u32 %v2634, 7
    %v2636 = vsub.s32 0, %v2635
    %v2637 = vrot.slane %v2632, %v2636
    %v2671 = vunpack.c.l.b16 %v2600
    %v2672 = vunpack.c.l.b16 %v2601
    %v2673 = vunpack.c.l.b16 %v2602
    %v2674 = vunpack.c.l.b16 %v2603
    %v2675 = vunpack.c.l.b16 %v2604
    %v2676 = vunpack.c.l.b16 %v2605
    %v2677 = vunpack.c.l.b16 %v2606
    %v2678 = vunpack.c.l.b16 %v2607
    %v2679 = vunpack.c.l.b16 %v2608
    %v2680 = vunpack.c.l.b16 %v2609
    %v2681 = vunpack.c.l.b16 %v2610
    %v2682 = vunpack.c.l.b16 %v2611
    %v2683 = vunpack.c.l.b16 %v2612
    %v2684 = vunpack.c.l.b16 %v2613
    %v2685 = vunpack.c.l.b16 %v2614
    %v2686 = vunpack.c.l.b16 %v2615
    %v2687 = vunpack.c.l.b16 %v2616
    %v2688 = vunpack.c.l.b16 %v2617
    %v2689 = vunpack.c.l.b16 %v2618
    %v2690 = vunpack.c.l.b16 %v2619
    %v2691 = vunpack.c.l.b16 %v2620
    %v2692 = vunpack.c.l.b16 %v2621
    %v2693 = vunpack.c.l.b16 %v2622
    %v2694 = vunpack.c.l.b16 %v2623
    %v2695 = vunpack.c.l.b16 %v2624
    %v2696 = vunpack.c.l.b16 %v2625
    %v2697 = vunpack.c.l.b16 %v2626
    %v2698 = vunpack.c.l.b16 %v2627
    %v2699 = vunpack.c.l.b16 %v2628
    %v2700 = vunpack.c.l.b16 %v2629
    %v2701 = vunpack.c.l.b16 %v2630
    %v2702 = vunpack.c.l.b16 %v2631
    %v2703 = vpack.c.b16 %v2672, %v2671
    %v2704 = vpack.c.b16 %v2674, %v2673
    %v2705 = vpack.c.b16 %v2676, %v2675
    %v2706 = vpack.c.b16 %v2678, %v2677
    %v2707 = vpack.c.b16 %v2680, %v2679
    %v2708 = vpack.c.b16 %v2682, %v2681
    %v2709 = vpack.c.b16 %v2684, %v2683
    %v2710 = vpack.c.b16 %v2686, %v2685
    %v2711 = vpack.c.b16 %v2688, %v2687
    %v2712 = vpack.c.b16 %v2690, %v2689
    %v2713 = vpack.c.b16 %v2692, %v2691
    %v2714 = vpack.c.b16 %v2694, %v2693
    %v2715 = vpack.c.b16 %v2696, %v2695
    %v2716 = vpack.c.b16 %v2698, %v2697
    %v2717 = vpack.c.b16 %v2700, %v2699
    %v2718 = vpack.c.b16 %v2702, %v2701
    %2735 = vmatprep.subr.bf16.mxu0 0
    %2736 = vmatpush1.bf16.msra.mxu0 %v2710
    %2737 = vmatprep.subr.bf16.mxu0 0
    %2738 = vmatpush1.bf16.msra.mxu0 %v2709
    %2739 = vmatprep.subr.bf16.mxu0 0
    %2740 = vmatpush1.bf16.msra.mxu0 %v2708
    %2741 = vmatprep.subr.bf16.mxu0 0
    %2742 = vmatpush1.bf16.msra.mxu0 %v2707
    %2743 = vmatprep.subr.bf16.mxu0 0
    %2744 = vmatpush1.bf16.msra.mxu0 %v2706
    %2745 = vmatprep.subr.bf16.mxu0 0
    %2746 = vmatpush1.bf16.msra.mxu0 %v2705
    %2747 = vmatprep.subr.bf16.mxu0 0
    %2748 = vmatpush1.bf16.msra.mxu0 %v2704
    %2749 = vmatprep.subr.bf16.mxu0 0
    %2750 = vmatpush1.bf16.msra.mxu0 %v2703
    %2751 = vmatprep.subr.bf16.mxu0 0
    %2752 = vmatpush2.bf16.msra.mxu0 %v2718
    %2753 = vmatprep.subr.bf16.mxu0 0
    %2754 = vmatpush2.bf16.msra.mxu0 %v2717
    %2755 = vmatprep.subr.bf16.mxu0 0
    %2756 = vmatpush2.bf16.msra.mxu0 %v2716
    %2757 = vmatprep.subr.bf16.mxu0 0
    %2758 = vmatpush2.bf16.msra.mxu0 %v2715
    %2759 = vmatprep.subr.bf16.mxu0 0
    %2760 = vmatpush2.bf16.msra.mxu0 %v2714
    %2761 = vmatprep.subr.bf16.mxu0 0
    %2762 = vmatpush2.bf16.msra.mxu0 %v2713
    %2763 = vmatprep.subr.bf16.mxu0 0
    %2764 = vmatpush2.bf16.msra.mxu0 %v2712
    %2765 = vmatprep.subr.bf16.mxu0 0
    %2766 = vmatpush2.bf16.msra.mxu0 %v2711
    %2767 = vmatprep.mubr.bf16.mxu0 %v2599
    %2768 = vmatmul.mubr.bf16.gmra.mxu0 %v2598
    %v2769 = vpop.f32.mrf.mxu0
    %v2770 = vadd.f32 %v2637, %v2769
    %v2771 = vpop.f32.mrf.mxu0
    %v2772 = vpop.f32.mrf.mxu0
    %v2773 = vpop.f32.mrf.mxu0
    %2774 = vdwg.mxu0
    %vm2775 = vcmask 25600
    %2776 = vst.msk [vmem:[#allocation2] sm:$0x3] %vm2775, %v2770
    // Predicated region
    $region22: #{cnn_forward.3} parent=1 // pred_check
      _
    $region23: #{cnn_forward.3} parent=1 // pred_check_branch
      %2778 = sbr.rel (0) target = $region25
    $region24: #{cnn_forward.3} parent=1 // pred_region
      %s2780 = ssub.s32 32, 32
      %2781 = vsyncadd [#allocation3], %s2780
      %s2783 = sshll.u32 [#allocation2], 4
      %s2784 = int_to_ptr.vmem [resolvable:$true] %s2783
      %2786 = dma.vmem_to_hbm [thread:$0]  %s2784, 32, %s5, [#allocation3]
    $region25: #{cnn_forward.3} parent=1 // pred_fallthru
      _
    // Predicated region
    $region26: #{cnn_forward.3} parent=1 // pred_check
      _
    $region27: #{cnn_forward.3} parent=1 // pred_check_branch
      %2788 = sbr.rel (0) target = $region29
    $region28: #{cnn_forward.3} parent=1 // pred_region
      %2789 = dma.done [#allocation3], 32
    $region29: #{cnn_forward.3} parent=1 // pred_fallthru
      _
    %2790 = vsyncpa [#allocation3], 1

</llo_original>
